<compile_context>
chip_gen: v5e
topology: v5e:2x2
jax: 0.10.0
libtpu: 0.0.40
codegen_flags: <defaults>
</compile_context>

<pallas_src>
import numpy as np
import jax
import jax.numpy as jnp
from jax.experimental import pallas as pl
from jax.experimental.pallas import tpu as pltpu


# ----------------------------------------------------------------------------
# small helpers
# ----------------------------------------------------------------------------
def _round_up(x, m):
    return ((x + m - 1) // m) * m


def gaussian_basis(distances, centers, gamma):
    """Default radial basis: exp(-gamma * (d - mu_k)^2)."""
    return jnp.exp(-gamma * (distances[..., None] - centers) ** 2)


class SO3VecArray:
    """Minimal stand-in for pygelib's SO3VecArray: list of parts (2, N, 2l+1, tau)."""

    def __init__(self, parts):
        self.parts = list(parts)

    def __getitem__(self, i):
        return self.parts[i]

    def __iter__(self):
        return iter(self.parts)

    def __len__(self):
        return len(self.parts)


def _bf16_split(x):
    """Split an f32 array into bf16 (hi, lo) with hi + lo == x to ~2^-18 relative."""
    hi = x.astype(jnp.bfloat16)
    lo = (x - hi.astype(jnp.float32)).astype(jnp.bfloat16)
    return hi, lo


# ----------------------------------------------------------------------------
# Pallas kernel
# ----------------------------------------------------------------------------
def _make_l1diff_kernel(TN, TE, F, K, gamma):
    inv_sqrt2 = float(1.0 / np.sqrt(2.0))
    neg_gamma = float(-gamma)

    def kernel(pos_i_ref, pos_j_ref, nfj_ref, scat_ref, cent_ref, pf_ref,
               out1_ref, acc_ref, iota_ref):
        n_i = pl.program_id(0)
        e_i = pl.program_id(1)
        n_e = pl.num_programs(1)

        # ---- init: zero accumulator, cache the e-invariant one-hot row iota ----
        @pl.when(e_i == 0)
        def _init():
            acc_ref[...] = jnp.zeros_like(acc_ref)
            iota_ref[...] = jax.lax.broadcasted_iota(jnp.int32, (TN, TE), 0)

        # ---- per-edge geometry -------------------------------------------------
        dsp = pos_j_ref[...] - pos_i_ref[...]                 # (TE, 3)
        dist2 = jnp.sum(dsp * dsp, axis=-1, keepdims=True)    # (TE, 1)
        dist = jnp.sqrt(dist2)
        safe = jnp.where(dist > 0.0, dist, 1.0)               # guard self-loop / pad edges
        unit = dsp / safe                                     # (TE, 3)

        # ---- Gaussian radial basis on lane-expanded centers --------------------
        # cent_ref[0, c] = centers[c // F]  ->  bf_rep[e, c] = exp(-g (d_e - mu_{c//F})^2)
        dd = dist - cent_ref[...]                             # (TE, K)
        bf_rep = jnp.exp(neg_gamma * dd * dd)                 # (TE, K)

        # ---- F -> K feature replication: nf_rep[e, c] = nf_j[e, c % F] ---------
        # 0/1 replication matrix is exact in bf16; nf_j is hi/lo split -> exact,
        # 2 native MXU passes of contraction depth F (vs 6 HIGHEST passes before).
        pf_bf = pf_ref[...].astype(jnp.bfloat16)              # (F, K), exact 0/1
        nf_hi, nf_lo = _bf16_split(nfj_ref[...])              # (TE, F)
        nf_rep = (jnp.dot(nf_hi, pf_bf, preferred_element_type=jnp.float32)
                  + jnp.dot(nf_lo, pf_bf, preferred_element_type=jnp.float32))
        kf = bf_rep * nf_rep                                  # (TE, K)

        # ---- build (TE, 3K) message, xyz-major (matches accumulator layout) ----
        msg3 = jnp.concatenate([unit[:, x:x + 1] * kf for x in range(3)], axis=-1)

        # ---- scatter-add over destination nodes: one fused one-hot MXU matmul --
        # onehot is exactly representable in bf16; msg3 is hi/lo split -> 2 passes.
        onehot = (iota_ref[...] == (scat_ref[...] - n_i * TN)).astype(jnp.bfloat16)
        m_hi, m_lo = _bf16_split(msg3)                        # (TE, 3K)
        acc_ref[...] += (jnp.dot(onehot, m_hi, preferred_element_type=jnp.float32)
                         + jnp.dot(onehot, m_lo, preferred_element_type=jnp.float32))

        # ---- finalize: pos_to_rep, stored lane/sublane-dense as (6, TN, K) ------
        # TODO(synk): pos_to_rep sign convention assumed to be cormorant/pygelib's
        #             ( (x+iy)/sqrt2 , z , (-x+iy)/sqrt2 ).
        @pl.when(e_i == n_e - 1)
        def _finalize():
            vx = acc_ref[:, 0 * K:1 * K]
            vy = acc_ref[:, 1 * K:2 * K]
            vz = acc_ref[:, 2 * K:3 * K]
            # rows: [re(m=-1), re(m=0), re(m=+1), im(m=-1), im(m=0), im(m=+1)]
            out1_ref[0, :, :] = vx * inv_sqrt2
            out1_ref[1, :, :] = vz
            out1_ref[2, :, :] = -vx * inv_sqrt2
            out1_ref[3, :, :] = vy * inv_sqrt2
            out1_ref[4, :, :] = jnp.zeros_like(vz)
            out1_ref[5, :, :] = vy * inv_sqrt2

    return kernel


# ----------------------------------------------------------------------------
# wrapper
# ----------------------------------------------------------------------------
def l1_difference_forward(pos, node_features, edge_idx, centers, gamma,
                          remove_self_loops=True, block_n=512, block_e=1024):
    pos = jnp.asarray(pos, jnp.float32)
    nf = jnp.asarray(node_features, jnp.float32)
    edge_idx = jnp.asarray(edge_idx, jnp.int32)
    centers = np.asarray(centers, np.float32)

    N, F = nf.shape
    nb = centers.shape[0]
    K = nb * F
    E = edge_idx.shape[1]

    i_idx = edge_idx[0]          # scatter destination node
    j_idx = edge_idx[1]          # neighbour node (features / displacement head)

    # per-edge gathers (data-dependent; done with XLA take outside the kernel)
    pos_i = jnp.take(pos, i_idx, axis=0)        # (E, 3)
    pos_j = jnp.take(pos, j_idx, axis=0)        # (E, 3)
    nf_j = jnp.take(nf, j_idx, axis=0)          # (E, F)

    # self-loop removal via masking (static shapes): invalid edges scatter to -1
    scat = jnp.where(i_idx == j_idx, -1, i_idx) if remove_self_loops else i_idx

    # tile sizes / padding
    block_n = _round_up(int(block_n), 8)
    block_e = _round_up(int(block_e), 128)
    TN = int(min(block_n, _round_up(N, 8)))
    TE = int(min(block_e, _round_up(E, 128)))
    N_pad = _round_up(N, TN)
    E_pad = _round_up(E, TE)

    pos_i = jnp.pad(pos_i, ((0, E_pad - E), (0, 0)))
    pos_j = jnp.pad(pos_j, ((0, E_pad - E), (0, 0)))
    nf_j = jnp.pad(nf_j, ((0, E_pad - E), (0, 0)))
    scat = jnp.pad(scat, (0, E_pad - E), constant_values=-1).reshape(1, E_pad)

    # constants: lane-expanded centers and the (F -> nb*F) 0/1 replication matrix
    cent_rep = jnp.asarray(np.repeat(centers, F).reshape(1, K))      # cent_rep[0, c] = mu[c//F]
    pf_np = np.zeros((F, K), np.float32)
    pf_np[np.arange(K) % F, np.arange(K)] = 1.0                      # pf[f, k*F+f] = 1
    pf = jnp.asarray(pf_np)

    # TODO(synk): for large graphs with many node blocks, sort edges by destination node and
    #             switch to pltpu.PrefetchScalarGridSpec with a per-node-block edge-offset
    #             table so each node block only visits edge tiles that can scatter into it
    #             (removes the O(N_pad/TN) edge-revisit factor).
    grid = (N_pad // TN, E_pad // TE)
    kernel = _make_l1diff_kernel(TN, TE, F, K, float(gamma))

    out1_flat = pl.pallas_call(
        kernel,
        out_shape=jax.ShapeDtypeStruct((6, N_pad, K), jnp.float32),
        grid=grid,
        in_specs=[
            pl.BlockSpec((TE, 3), lambda n, e: (e, 0)),     # pos[edge_idx[0]]
            pl.BlockSpec((TE, 3), lambda n, e: (e, 0)),     # pos[edge_idx[1]]
            pl.BlockSpec((TE, F), lambda n, e: (e, 0)),     # node_features[edge_idx[1]]
            pl.BlockSpec((1, TE), lambda n, e: (0, e)),     # scatter index (int32)
            pl.BlockSpec((1, K), lambda n, e: (0, 0)),      # expanded basis centers
            pl.BlockSpec((F, K), lambda n, e: (0, 0)),      # channel replication matrix
        ],
        out_specs=pl.BlockSpec((6, TN, K), lambda n, e: (0, n, 0)),
        scratch_shapes=[pltpu.VMEM((TN, 3 * K), jnp.float32),   # xyz-major accumulator
                        pltpu.VMEM((TN, TE), jnp.int32)],       # cached one-hot row iota
        compiler_params=pltpu.CompilerParams(
            dimension_semantics=("parallel", "arbitrary"),
            vmem_limit_bytes=48 * 1024 * 1024),
    )(pos_i, pos_j, nf_j, scat, cent_rep, pf)

    # lane-dense (6, N_pad, K) -> (2, N, 3, K)  (cheap layout plumbing in XLA)
    l1 = jnp.transpose(out1_flat.reshape(2, 3, N_pad, K), (0, 2, 1, 3))
    if N_pad != N:
        l1 = l1[:, :N]

    # l=0 part (ExpandNodeLayer) — trivially mem-bound, done in the wrapper
    l0 = jnp.stack([nf, jnp.zeros_like(nf)], axis=0)[:, :, None, :]   # (2, N, 1, F)
    return SO3VecArray([l0, l1])


class L1DifferenceLayer:
    """JAX/Pallas equivalent of pygelib's L1DifferenceLayer forward (no learned params)."""

    def __init__(self, basis_fxn=gaussian_basis, remove_self_loops=True,
                 block_n=512, block_e=1024, **kwargs):
        # TODO(synk): arbitrary user basis_fxn cannot be fused into the kernel; only the
        #             Gaussian RBF basis (centers, gamma) is implemented in-kernel.
        self.bf_fxn = basis_fxn
        self.bf_args = kwargs
        self.remove_self_loops = remove_self_loops
        self.block_n = block_n
        self.block_e = block_e

    def __call__(self, pos, node_features, edge_idx):
        centers = np.asarray(self.bf_args["centers"], np.float32)
        gamma = float(self.bf_args.get("gamma", 1.0))
        return l1_difference_forward(pos, node_features, edge_idx, centers, gamma,
                                     remove_self_loops=self.remove_self_loops,
                                     block_n=self.block_n, block_e=self.block_e)


# ----------------------------------------------------------------------------
# numpy reference for correctness checking
# ----------------------------------------------------------------------------
def l1_difference_ref(pos, node_features, edge_idx, centers, gamma, remove_self_loops=True):
    pos = np.asarray(pos, np.float64)
    nf = np.asarray(node_features, np.float64)
    ei = np.asarray(edge_idx)
    if remove_self_loops:
        ei = ei[:, ei[0] != ei[1]]
    i, j = ei[0], ei[1]
    disp = pos[j] - pos[i]
    dist = np.linalg.norm(disp, axis=-1)
    bf = np.exp(-gamma * (dist[:, None] - np.asarray(centers, np.float64)[None, :]) ** 2)
    unit = disp / dist[:, None]
    v = unit[:, :, None] * bf[:, None, :]                 # (E, 3, nb)
    v = v[:, :, :, None] * nf[j][:, None, None, :]        # (E, 3, nb, F)
    v = v.reshape(v.shape[0], 3, -1)                      # (E, 3, nb*F)
    N = pos.shape[0]
    node_vecs = np.zeros((N, 3, v.shape[-1]))
    np.add.at(node_vecs, i, v)
    x, y, z = node_vecs[:, 0, :], node_vecs[:, 1, :], node_vecs[:, 2, :]
    s = 1.0 / np.sqrt(2.0)
    re = np.stack([x * s, z, -x * s], axis=1)
    im = np.stack([y * s, np.zeros_like(z), y * s], axis=1)
    l1 = np.stack([re, im], axis=0)                       # (2, N, 3, nb*F)
    l0 = np.stack([nf, np.zeros_like(nf)], axis=0)[:, :, None, :]   # (2, N, 1, F)
    return [l0, l1]


# ----------------------------------------------------------------------------
# demo / test
# ----------------------------------------------------------------------------
if __name__ == "__main__":
    key = jax.random.PRNGKey(0)
    N, F, nb, deg = 64, 8, 16, 8

    k1, k2 = jax.random.split(key)
    pos = jax.random.normal(k1, (N, 3), dtype=jnp.float32) * 1.5
    node_features = jax.random.normal(k2, (N, F), dtype=jnp.float32)

    # deterministic ring-style graph (deg out-edges per node) plus a few self loops
    src = np.repeat(np.arange(N), deg)
    dst = (src + np.tile(np.arange(1, deg + 1), N)) % N
    e0 = np.concatenate([src, np.arange(0, N, 8)])   # scatter target node
    e1 = np.concatenate([dst, np.arange(0, N, 8)])   # neighbour node
    edge_idx = np.stack([e0, e1]).astype(np.int32)   # (2, 520) incl. 8 self loops

    centers = np.linspace(0.0, 3.0, nb).astype(np.float32)
    gamma = 2.0

    layer = L1DifferenceLayer(gaussian_basis, remove_self_loops=True,
                              centers=centers, gamma=gamma)
    out = layer(pos, node_features, jnp.asarray(edge_idx))
    out = [jax.block_until_ready(p) for p in out]

    ref = l1_difference_ref(np.asarray(pos), np.asarray(node_features), edge_idx,
                            centers, gamma, remove_self_loops=True)
    assert len(out) == len(ref) == 2
    for got, want in zip(out, ref):
        np.testing.assert_allclose(np.asarray(got), want, rtol=1e-3, atol=1e-3)

    print("KERNEL_OK")
</pallas_src>

<mosaic_0001>
module attributes {stable_mosaic.version = 11 : i64} {
  func.func @kernel(%arg0: i32, %arg1: i32, %arg2: memref<640x3xf32, #tpu.memory_space<vmem>>, %arg3: memref<640x3xf32, #tpu.memory_space<vmem>>, %arg4: memref<640x8xf32, #tpu.memory_space<vmem>>, %arg5: memref<1x640xi32, #tpu.memory_space<vmem>>, %arg6: memref<1x128xf32, #tpu.memory_space<vmem>>, %arg7: memref<8x128xf32, #tpu.memory_space<vmem>>, %arg8: memref<6x64x128xf32, #tpu.memory_space<vmem>>, %arg9: memref<64x384xf32, #tpu.memory_space<vmem>>, %arg10: memref<64x640xi32, #tpu.memory_space<vmem>>) attributes {dimension_semantics = [#tpu.dimension_semantics<parallel>, #tpu.dimension_semantics<arbitrary>], iteration_bounds = array<i64: 1, 1>, scalar_prefetch = 0 : i64, scratch_operands = 2 : i64, tpu.core_type = #tpu.core_type<tc>, window_params = [{transform_indices = @transform_0, window_bounds = array<i64: 640, 3>}, {transform_indices = @transform_1, window_bounds = array<i64: 640, 3>}, {transform_indices = @transform_2, window_bounds = array<i64: 640, 8>}, {transform_indices = @transform_3, window_bounds = array<i64: 1, 640>}, {pipeline_mode = #tpu.pipeline_mode<synchronous>, transform_indices = @transform_4, window_bounds = array<i64: 1, 128>}, {pipeline_mode = #tpu.pipeline_mode<synchronous>, transform_indices = @transform_5, window_bounds = array<i64: 8, 128>}, {transform_indices = @transform_6, window_bounds = array<i64: 6, 64, 128>}]} {
    %c0_i32 = arith.constant 0 : i32
    %0 = arith.cmpi eq, %arg1, %c0_i32 : i32
    %1 = arith.extui %0 : i1 to i32
    %c0_i32_0 = arith.constant 0 : i32
    %2 = arith.cmpi ne, %1, %c0_i32_0 : i32
    scf.if %2 {
      %cst_27 = arith.constant 0.000000e+00 : f32
      %68 = vector.broadcast %cst_27 : f32 to vector<64x384xf32>
      %c0_28 = arith.constant 0 : index
      %c0_29 = arith.constant 0 : index
      %69 = vector.load %arg9[%c0_28, %c0_29] : memref<64x384xf32, #tpu.memory_space<vmem>>, vector<64x384xf32>
      tpu.vector_store %arg9[%c0_28, %c0_29], %68 {strides = array<i32>} : memref<64x384xf32, #tpu.memory_space<vmem>>, vector<64x384xf32>,
      %70 = tpu.iota {dimensions = array<i32: 0>} : vector<64x640xi32>
      %c0_30 = arith.constant 0 : index
      %c0_31 = arith.constant 0 : index
      %71 = vector.load %arg10[%c0_30, %c0_31] : memref<64x640xi32, #tpu.memory_space<vmem>>, vector<64x640xi32>
      tpu.vector_store %arg10[%c0_30, %c0_31], %70 {strides = array<i32>} : memref<64x640xi32, #tpu.memory_space<vmem>>, vector<64x640xi32>,
    } else {
    }
    %c0 = arith.constant 0 : index
    %c0_1 = arith.constant 0 : index
    %3 = vector.load %arg3[%c0, %c0_1] : memref<640x3xf32, #tpu.memory_space<vmem>>, vector<640x3xf32>
    %c0_2 = arith.constant 0 : index
    %c0_3 = arith.constant 0 : index
    %4 = vector.load %arg2[%c0_2, %c0_3] : memref<640x3xf32, #tpu.memory_space<vmem>>, vector<640x3xf32>
    %5 = arith.subf %3, %4 : vector<640x3xf32>
    %6 = arith.mulf %5, %5 : vector<640x3xf32>
    %cst = arith.constant dense<0.000000e+00> : vector<640xf32>
    %7 = vector.multi_reduction <add>, %6, %cst [1] : vector<640x3xf32> to vector<640xf32>
    %8 = vector.shape_cast %7 : vector<640xf32> to vector<640x1xf32>
    %9 = math.sqrt %8 : vector<640x1xf32>
    %cst_4 = arith.constant 0.000000e+00 : f32
    %10 = vector.broadcast %cst_4 : f32 to vector<640x1xf32>
    %11 = arith.cmpf ogt, %9, %10 : vector<640x1xf32>
    %cst_5 = arith.constant 1.000000e+00 : f32
    %12 = vector.broadcast %cst_5 : f32 to vector<640x1xf32>
    %13 = arith.select %11, %9, %12 : vector<640x1xi1>, vector<640x1xf32>
    %14 = vector.broadcast %13 : vector<640x1xf32> to vector<640x3xf32>
    %15 = arith.divf %5, %14 : vector<640x3xf32>
    %c0_6 = arith.constant 0 : index
    %c0_7 = arith.constant 0 : index
    %16 = vector.load %arg6[%c0_6, %c0_7] : memref<1x128xf32, #tpu.memory_space<vmem>>, vector<1x128xf32>
    %17 = vector.broadcast %9 : vector<640x1xf32> to vector<640x128xf32>
    %18 = vector.broadcast %16 : vector<1x128xf32> to vector<640x128xf32>
    %19 = arith.subf %17, %18 : vector<640x128xf32>
    %cst_8 = arith.constant -2.000000e+00 : f32
    %20 = vector.broadcast %cst_8 : f32 to vector<640x128xf32>
    %21 = arith.mulf %20, %19 : vector<640x128xf32>
    %22 = arith.mulf %21, %19 : vector<640x128xf32>
    %23 = math.exp %22 : vector<640x128xf32>
    %c0_9 = arith.constant 0 : index
    %c0_10 = arith.constant 0 : index
    %24 = vector.load %arg7[%c0_9, %c0_10] : memref<8x128xf32, #tpu.memory_space<vmem>>, vector<8x128xf32>
    %25 = arith.truncf %24 : vector<8x128xf32> to vector<8x128xbf16>
    %c0_11 = arith.constant 0 : index
    %c0_12 = arith.constant 0 : index
    %26 = vector.load %arg4[%c0_11, %c0_12] : memref<640x8xf32, #tpu.memory_space<vmem>>, vector<640x8xf32>
    %27 = arith.truncf %26 : vector<640x8xf32> to vector<640x8xbf16>
    %28 = arith.extf %27 : vector<640x8xbf16> to vector<640x8xf32>
    %29 = arith.subf %26, %28 : vector<640x8xf32>
    %30 = arith.truncf %29 : vector<640x8xf32> to vector<640x8xbf16>
    %cst_13 = arith.constant dense<0.000000e+00> : vector<640x128xf32>
    %31 = tpu.matmul %27, %25, %cst_13 {dimension_numbers = #tpu.dot_dimension_numbers<[1], [0], [0], [1], [0, 0, 1, 1], [], []>} : vector<640x8xbf16>, vector<8x128xbf16>, vector<640x128xf32> -> vector<640x128xf32>
    %cst_14 = arith.constant dense<0.000000e+00> : vector<640x128xf32>
    %32 = tpu.matmul %30, %25, %cst_14 {dimension_numbers = #tpu.dot_dimension_numbers<[1], [0], [0], [1], [0, 0, 1, 1], [], []>} : vector<640x8xbf16>, vector<8x128xbf16>, vector<640x128xf32> -> vector<640x128xf32>
    %33 = arith.addf %31, %32 : vector<640x128xf32>
    %34 = arith.mulf %23, %33 : vector<640x128xf32>
    %35 = vector.extract_strided_slice %15 {offsets = [0, 0], sizes = [640, 1], strides = [1, 1]} : vector<640x3xf32> to vector<640x1xf32>
    %36 = vector.broadcast %35 : vector<640x1xf32> to vector<640x128xf32>
    %37 = arith.mulf %36, %34 : vector<640x128xf32>
    %38 = vector.extract_strided_slice %15 {offsets = [0, 1], sizes = [640, 1], strides = [1, 1]} : vector<640x3xf32> to vector<640x1xf32>
    %39 = vector.broadcast %38 : vector<640x1xf32> to vector<640x128xf32>
    %40 = arith.mulf %39, %34 : vector<640x128xf32>
    %41 = vector.extract_strided_slice %15 {offsets = [0, 2], sizes = [640, 1], strides = [1, 1]} : vector<640x3xf32> to vector<640x1xf32>
    %42 = vector.broadcast %41 : vector<640x1xf32> to vector<640x128xf32>
    %43 = arith.mulf %42, %34 : vector<640x128xf32>
    %44 = tpu.concatenate %37, %40, %43 in 1 : vector<640x128xf32>, vector<640x128xf32>, vector<640x128xf32> -> vector<640x384xf32>
    %c0_15 = arith.constant 0 : index
    %c0_16 = arith.constant 0 : index
    %45 = vector.load %arg10[%c0_15, %c0_16] : memref<64x640xi32, #tpu.memory_space<vmem>>, vector<64x640xi32>
    %c0_17 = arith.constant 0 : index
    %c0_18 = arith.constant 0 : index
    %46 = vector.load %arg5[%c0_17, %c0_18] : memref<1x640xi32, #tpu.memory_space<vmem>>, vector<1x640xi32>
    %c64_i32 = arith.constant 64 : i32
    %47 = arith.muli %arg0, %c64_i32 : i32
    %48 = vector.broadcast %47 : i32 to vector<1x640xi32>
    %49 = arith.subi %46, %48 : vector<1x640xi32>
    %50 = vector.broadcast %49 : vector<1x640xi32> to vector<64x640xi32>
    %51 = arith.cmpi eq, %45, %50 : vector<64x640xi32>
    %52 = arith.extui %51 : vector<64x640xi1> to vector<64x640xi32>
    %53 = arith.sitofp %52 : vector<64x640xi32> to vector<64x640xf32>
    %54 = arith.truncf %53 : vector<64x640xf32> to vector<64x640xbf16>
    %55 = arith.truncf %44 : vector<640x384xf32> to vector<640x384xbf16>
    %56 = arith.extf %55 : vector<640x384xbf16> to vector<640x384xf32>
    %57 = arith.subf %44, %56 : vector<640x384xf32>
    %58 = arith.truncf %57 : vector<640x384xf32> to vector<640x384xbf16>
    %c0_19 = arith.constant 0 : index
    %c0_20 = arith.constant 0 : index
    %59 = vector.load %arg9[%c0_19, %c0_20] : memref<64x384xf32, #tpu.memory_space<vmem>>, vector<64x384xf32>
    %cst_21 = arith.constant dense<0.000000e+00> : vector<64x384xf32>
    %60 = tpu.matmul %54, %55, %cst_21 {dimension_numbers = #tpu.dot_dimension_numbers<[1], [0], [0], [1], [0, 0, 1, 1], [], []>} : vector<64x640xbf16>, vector<640x384xbf16>, vector<64x384xf32> -> vector<64x384xf32>
    %cst_22 = arith.constant dense<0.000000e+00> : vector<64x384xf32>
    %61 = tpu.matmul %54, %58, %cst_22 {dimension_numbers = #tpu.dot_dimension_numbers<[1], [0], [0], [1], [0, 0, 1, 1], [], []>} : vector<64x640xbf16>, vector<640x384xbf16>, vector<64x384xf32> -> vector<64x384xf32>
    %62 = arith.addf %60, %61 : vector<64x384xf32>
    %63 = arith.addf %59, %62 : vector<64x384xf32>
    %c0_23 = arith.constant 0 : index
    %c0_24 = arith.constant 0 : index
    %64 = vector.load %arg9[%c0_23, %c0_24] : memref<64x384xf32, #tpu.memory_space<vmem>>, vector<64x384xf32>
    tpu.vector_store %arg9[%c0_23, %c0_24], %63 {strides = array<i32>} : memref<64x384xf32, #tpu.memory_space<vmem>>, vector<64x384xf32>,
    %c0_i32_25 = arith.constant 0 : i32
    %65 = arith.cmpi eq, %arg1, %c0_i32_25 : i32
    %66 = arith.extui %65 : i1 to i32
    %c0_i32_26 = arith.constant 0 : i32
    %67 = arith.cmpi ne, %66, %c0_i32_26 : i32
    scf.if %67 {
      %c0_27 = arith.constant 0 : index
      %c0_28 = arith.constant 0 : index
      %68 = vector.load %arg9[%c0_27, %c0_28] : memref<64x384xf32, #tpu.memory_space<vmem>>, vector<64x128xf32>
      %c0_29 = arith.constant 0 : index
      %c128 = arith.constant 128 : index
      %69 = vector.load %arg9[%c0_29, %c128] : memref<64x384xf32, #tpu.memory_space<vmem>>, vector<64x128xf32>
      %c0_30 = arith.constant 0 : index
      %c256 = arith.constant 256 : index
      %70 = vector.load %arg9[%c0_30, %c256] : memref<64x384xf32, #tpu.memory_space<vmem>>, vector<64x128xf32>
      %cst_31 = arith.constant 0.707106769 : f32
      %71 = vector.broadcast %cst_31 : f32 to vector<64x128xf32>
      %72 = arith.mulf %68, %71 : vector<64x128xf32>
      %c0_32 = arith.constant 0 : index
      %c0_33 = arith.constant 0 : index
      %c0_34 = arith.constant 0 : index
      %73 = vector.load %arg8[%c0_32, %c0_33, %c0_34] : memref<6x64x128xf32, #tpu.memory_space<vmem>>, vector<1x64x128xf32>
      %74 = vector.shape_cast %73 : vector<1x64x128xf32> to vector<64x128xf32>
      %75 = vector.shape_cast %72 : vector<64x128xf32> to vector<1x64x128xf32>
      tpu.vector_store %arg8[%c0_32, %c0_33, %c0_34], %75 {strides = array<i32>} : memref<6x64x128xf32, #tpu.memory_space<vmem>>, vector<1x64x128xf32>,
      %c1 = arith.constant 1 : index
      %c0_35 = arith.constant 0 : index
      %c0_36 = arith.constant 0 : index
      %76 = vector.load %arg8[%c1, %c0_35, %c0_36] : memref<6x64x128xf32, #tpu.memory_space<vmem>>, vector<1x64x128xf32>
      %77 = vector.shape_cast %76 : vector<1x64x128xf32> to vector<64x128xf32>
      %78 = vector.shape_cast %70 : vector<64x128xf32> to vector<1x64x128xf32>
      tpu.vector_store %arg8[%c1, %c0_35, %c0_36], %78 {strides = array<i32>} : memref<6x64x128xf32, #tpu.memory_space<vmem>>, vector<1x64x128xf32>,
      %cst_37 = arith.constant 0.000000e+00 : f32
      %79 = vector.broadcast %cst_37 : f32 to vector<64x128xf32>
      %80 = arith.subf %79, %68 : vector<64x128xf32>
      %cst_38 = arith.constant 0.707106769 : f32
      %81 = vector.broadcast %cst_38 : f32 to vector<64x128xf32>
      %82 = arith.mulf %80, %81 : vector<64x128xf32>
      %c2 = arith.constant 2 : index
      %c0_39 = arith.constant 0 : index
      %c0_40 = arith.constant 0 : index
      %83 = vector.load %arg8[%c2, %c0_39, %c0_40] : memref<6x64x128xf32, #tpu.memory_space<vmem>>, vector<1x64x128xf32>
      %84 = vector.shape_cast %83 : vector<1x64x128xf32> to vector<64x128xf32>
      %85 = vector.shape_cast %82 : vector<64x128xf32> to vector<1x64x128xf32>
      tpu.vector_store %arg8[%c2, %c0_39, %c0_40], %85 {strides = array<i32>} : memref<6x64x128xf32, #tpu.memory_space<vmem>>, vector<1x64x128xf32>,
      %cst_41 = arith.constant 0.707106769 : f32
      %86 = vector.broadcast %cst_41 : f32 to vector<64x128xf32>
      %87 = arith.mulf %69, %86 : vector<64x128xf32>
      %c3 = arith.constant 3 : index
      %c0_42 = arith.constant 0 : index
      %c0_43 = arith.constant 0 : index
      %88 = vector.load %arg8[%c3, %c0_42, %c0_43] : memref<6x64x128xf32, #tpu.memory_space<vmem>>, vector<1x64x128xf32>
      %89 = vector.shape_cast %88 : vector<1x64x128xf32> to vector<64x128xf32>
      %90 = vector.shape_cast %87 : vector<64x128xf32> to vector<1x64x128xf32>
      tpu.vector_store %arg8[%c3, %c0_42, %c0_43], %90 {strides = array<i32>} : memref<6x64x128xf32, #tpu.memory_space<vmem>>, vector<1x64x128xf32>,
      %cst_44 = arith.constant 0.000000e+00 : f32
      %91 = vector.broadcast %cst_44 : f32 to vector<64x128xf32>
      %c4 = arith.constant 4 : index
      %c0_45 = arith.constant 0 : index
      %c0_46 = arith.constant 0 : index
      %92 = vector.load %arg8[%c4, %c0_45, %c0_46] : memref<6x64x128xf32, #tpu.memory_space<vmem>>, vector<1x64x128xf32>
      %93 = vector.shape_cast %92 : vector<1x64x128xf32> to vector<64x128xf32>
      %94 = vector.shape_cast %91 : vector<64x128xf32> to vector<1x64x128xf32>
      tpu.vector_store %arg8[%c4, %c0_45, %c0_46], %94 {strides = array<i32>} : memref<6x64x128xf32, #tpu.memory_space<vmem>>, vector<1x64x128xf32>,
      %cst_47 = arith.constant 0.707106769 : f32
      %95 = vector.broadcast %cst_47 : f32 to vector<64x128xf32>
      %96 = arith.mulf %69, %95 : vector<64x128xf32>
      %c5 = arith.constant 5 : index
      %c0_48 = arith.constant 0 : index
      %c0_49 = arith.constant 0 : index
      %97 = vector.load %arg8[%c5, %c0_48, %c0_49] : memref<6x64x128xf32, #tpu.memory_space<vmem>>, vector<1x64x128xf32>
      %98 = vector.shape_cast %97 : vector<1x64x128xf32> to vector<64x128xf32>
      %99 = vector.shape_cast %96 : vector<64x128xf32> to vector<1x64x128xf32>
      tpu.vector_store %arg8[%c5, %c0_48, %c0_49], %99 {strides = array<i32>} : memref<6x64x128xf32, #tpu.memory_space<vmem>>, vector<1x64x128xf32>,
    } else {
    }
    return
  }
  func.func @transform_0(%arg0: i32, %arg1: i32) -> (i32, i32) {
    %c0_i32 = arith.constant 0 : i32
    %c0_i32_0 = arith.constant 0 : i32
    return %arg1, %c0_i32 : i32, i32
  }
  func.func @transform_1(%arg0: i32, %arg1: i32) -> (i32, i32) {
    %c0_i32 = arith.constant 0 : i32
    %c0_i32_0 = arith.constant 0 : i32
    return %arg1, %c0_i32 : i32, i32
  }
  func.func @transform_2(%arg0: i32, %arg1: i32) -> (i32, i32) {
    %c0_i32 = arith.constant 0 : i32
    %c0_i32_0 = arith.constant 0 : i32
    return %arg1, %c0_i32 : i32, i32
  }
  func.func @transform_3(%arg0: i32, %arg1: i32) -> (i32, i32) {
    %c0_i32 = arith.constant 0 : i32
    %c0_i32_0 = arith.constant 0 : i32
    return %c0_i32, %arg1 : i32, i32
  }
  func.func @transform_4(%arg0: i32, %arg1: i32) -> (i32, i32) {
    %c0_i32 = arith.constant 0 : i32
    %c0_i32_0 = arith.constant 0 : i32
    %c0_i32_1 = arith.constant 0 : i32
    return %c0_i32, %c0_i32_0 : i32, i32
  }
  func.func @transform_5(%arg0: i32, %arg1: i32) -> (i32, i32) {
    %c0_i32 = arith.constant 0 : i32
    %c0_i32_0 = arith.constant 0 : i32
    %c0_i32_1 = arith.constant 0 : i32
    return %c0_i32, %c0_i32_0 : i32, i32
  }
  func.func @transform_6(%arg0: i32, %arg1: i32) -> (i32, i32, i32) {
    %c0_i32 = arith.constant 0 : i32
    %c0_i32_0 = arith.constant 0 : i32
    %c0_i32_1 = arith.constant 0 : i32
    return %c0_i32, %arg0, %c0_i32_0 : i32, i32, i32
  }
}

</mosaic_0001>

<llo_original>
// kernel: tpu_custom_call.1
$region0: #{tpu_custom_call.1}
  #allocation0 [shape = 'u32[]', space=smem, size = 0x4, offset = 0x4, fixed_abs, tag = 'smem constant byte address 0x4 - core index']
  #allocation1 [shape = 'u32[72,128]{1,0:T(1,128)}', space=vmem, size = 0x9000, scoped, tag = 'internal scratch']
  #allocation2 [shape = 'f32[64,384]{1,0:T(8,128)}', space=vmem, size = 0x18000, scoped, tag = 'scratch operand']
  #allocation3 [shape = 's32[64,640]{1,0:T(8,128)}', space=vmem, size = 0x28000, scoped, tag = 'scratch operand']
  %s0 = inlined_call_operand.vmem [shape: f32[640,3], index: 0, kind: input, shape index: {}]
  %s1 = inlined_call_operand.vmem [shape: f32[640,3], index: 1, kind: input, shape index: {}]
  %s2 = inlined_call_operand.vmem [shape: f32[640,8], index: 2, kind: input, shape index: {}]
  %s3 = inlined_call_operand.vmem [shape: s32[1,640], index: 3, kind: input, shape index: {}]
  %s4 = inlined_call_operand.vmem [shape: f32[1,128], index: 4, kind: input, shape index: {}]
  %s5 = inlined_call_operand.vmem [shape: f32[8,128], index: 5, kind: input, shape index: {}]
  %s6 = inlined_call_operand.hbm [shape: f32[6,64,128], index: 6, kind: output, shape index: {}]
  %s7 = sld [smem:[#allocation0]]
  $region42: #{tpu_custom_call.1} parent=0
    _
  %s9 = ssub.s32 1, %s7
  %s10 = scalar_select 0, %s9, %s7
  $region1: #{tpu_custom_call.1} parent=0
    #allocation4 [shape = 'u8[196608]{0}', space=vmem, size = 0x30000, scoped, tag = 'output window, operand 0, single buffered']
    #allocation5 [shape = 's32[1]{0}', space=sflag, size = 0x4, scoped, tag = 'scoped memory for tpu_custom_call.1']
    %11 = vsyncpa [#allocation5], 0
    // Predicated region
    $region2: #{tpu_custom_call.1} parent=1 // pred_check
      _
    $region3: #{tpu_custom_call.1} parent=1 // pred_check_branch
      %13 = sbr.rel (0) target = $region5
    $region4: #{tpu_custom_call.1} parent=1 // pred_region
      _
    $region5: #{tpu_custom_call.1} parent=1 // pred_fallthru
      _
    // Predicated region
    $region6: #{tpu_custom_call.1} parent=1 // pred_check
      _
    $region7: #{tpu_custom_call.1} parent=1 // pred_check_branch
      %15 = sbr.rel (0) target = $region9
    $region8: #{tpu_custom_call.1} parent=1 // pred_region
      _
    $region9: #{tpu_custom_call.1} parent=1 // pred_fallthru
      _
    // Predicated region
    $region10: #{tpu_custom_call.1} parent=1 // pred_check
      _
    $region11: #{tpu_custom_call.1} parent=1 // pred_check_branch
      %17 = sbr.rel (0) target = $region13
    $region12: #{tpu_custom_call.1} parent=1 // pred_region
      _
    $region13: #{tpu_custom_call.1} parent=1 // pred_fallthru
      _
    // Predicated region
    $region14: #{tpu_custom_call.1} parent=1 // pred_check
      _
    $region15: #{tpu_custom_call.1} parent=1 // pred_check_branch
      %19 = sbr.rel (0) target = $region17
    $region16: #{tpu_custom_call.1} parent=1 // pred_region
      _
    $region17: #{tpu_custom_call.1} parent=1 // pred_fallthru
      _
    // Predicated region
    $region18: #{tpu_custom_call.1} parent=1 // pred_check
      _
    $region19: #{tpu_custom_call.1} parent=1 // pred_check_branch
      %21 = sbr.rel (0) target = $region21
    $region20: #{tpu_custom_call.1} parent=1 // pred_region
      _
    $region21: #{tpu_custom_call.1} parent=1 // pred_fallthru
      _
    // Predicated region
    $region22: #{tpu_custom_call.1} parent=1 // pred_check
      _
    $region23: #{tpu_custom_call.1} parent=1 // pred_check_branch
      %23 = sbr.rel (0) target = $region25
    $region24: #{tpu_custom_call.1} parent=1 // pred_region
      _
    $region25: #{tpu_custom_call.1} parent=1 // pred_fallthru
      _
    %p25 = scmp.eq.s32.totalorder 0, 0
    // Predicated region
    $region26: #{tpu_custom_call.1} parent=1 // pred_check
      %p26 = pneg %p25
    $region27: #{tpu_custom_call.1} parent=1 // pred_check_branch
      %28 = sbr.rel (%p26) target = $region29
    $region28: #{tpu_custom_call.1} parent=1 // pred_region
      %29 = vst [vmem:[#allocation2] sm:$0xff] 0.0
      %30 = vst [vmem:[#allocation2 + $0x8] sm:$0xff] 0.0
      %31 = vst [vmem:[#allocation2 + $0x10] sm:$0xff] 0.0
      %32 = vst [vmem:[#allocation2 + $0x18] sm:$0xff] 0.0
      %33 = vst [vmem:[#allocation2 + $0x20] sm:$0xff] 0.0
      %34 = vst [vmem:[#allocation2 + $0x28] sm:$0xff] 0.0
      %35 = vst [vmem:[#allocation2 + $0x30] sm:$0xff] 0.0
      %36 = vst [vmem:[#allocation2 + $0x38] sm:$0xff] 0.0
      %37 = vst [vmem:[#allocation2 + $0x40] sm:$0xff] 0.0
      %38 = vst [vmem:[#allocation2 + $0x48] sm:$0xff] 0.0
      %39 = vst [vmem:[#allocation2 + $0x50] sm:$0xff] 0.0
      %40 = vst [vmem:[#allocation2 + $0x58] sm:$0xff] 0.0
      %41 = vst [vmem:[#allocation2 + $0x60] sm:$0xff] 0.0
      %42 = vst [vmem:[#allocation2 + $0x68] sm:$0xff] 0.0
      %43 = vst [vmem:[#allocation2 + $0x70] sm:$0xff] 0.0
      %44 = vst [vmem:[#allocation2 + $0x78] sm:$0xff] 0.0
      %45 = vst [vmem:[#allocation2 + $0x80] sm:$0xff] 0.0
      %46 = vst [vmem:[#allocation2 + $0x88] sm:$0xff] 0.0
      %47 = vst [vmem:[#allocation2 + $0x90] sm:$0xff] 0.0
      %48 = vst [vmem:[#allocation2 + $0x98] sm:$0xff] 0.0
      %49 = vst [vmem:[#allocation2 + $0xa0] sm:$0xff] 0.0
      %50 = vst [vmem:[#allocation2 + $0xa8] sm:$0xff] 0.0
      %51 = vst [vmem:[#allocation2 + $0xb0] sm:$0xff] 0.0
      %52 = vst [vmem:[#allocation2 + $0xb8] sm:$0xff] 0.0
      %v53 = vlaneseq
      %v54 = vshrl.u32 %v53, 7
      %v55 = vadd.s32 %v54, 8
      %v56 = vadd.s32 %v54, 16
      %v57 = vadd.s32 %v54, 24
      %v58 = vadd.s32 %v54, 32
      %v59 = vadd.s32 %v54, 40
      %v60 = vadd.s32 %v54, 48
      %v61 = vadd.s32 %v54, 56
      %62 = vst [vmem:[#allocation3] sm:$0xff] %v54
      %63 = vst [vmem:[#allocation3 + $0x8] sm:$0xff] %v54
      %64 = vst [vmem:[#allocation3 + $0x10] sm:$0xff] %v54
      %65 = vst [vmem:[#allocation3 + $0x18] sm:$0xff] %v54
      %66 = vst [vmem:[#allocation3 + $0x20] sm:$0xff] %v54
      %67 = vst [vmem:[#allocation3 + $0x28] sm:$0xff] %v55
      %68 = vst [vmem:[#allocation3 + $0x30] sm:$0xff] %v55
      %69 = vst [vmem:[#allocation3 + $0x38] sm:$0xff] %v55
      %70 = vst [vmem:[#allocation3 + $0x40] sm:$0xff] %v55
      %71 = vst [vmem:[#allocation3 + $0x48] sm:$0xff] %v55
      %72 = vst [vmem:[#allocation3 + $0x50] sm:$0xff] %v56
      %73 = vst [vmem:[#allocation3 + $0x58] sm:$0xff] %v56
      %74 = vst [vmem:[#allocation3 + $0x60] sm:$0xff] %v56
      %75 = vst [vmem:[#allocation3 + $0x68] sm:$0xff] %v56
      %76 = vst [vmem:[#allocation3 + $0x70] sm:$0xff] %v56
      %77 = vst [vmem:[#allocation3 + $0x78] sm:$0xff] %v57
      %78 = vst [vmem:[#allocation3 + $0x80] sm:$0xff] %v57
      %79 = vst [vmem:[#allocation3 + $0x88] sm:$0xff] %v57
      %80 = vst [vmem:[#allocation3 + $0x90] sm:$0xff] %v57
      %81 = vst [vmem:[#allocation3 + $0x98] sm:$0xff] %v57
      %82 = vst [vmem:[#allocation3 + $0xa0] sm:$0xff] %v58
      %83 = vst [vmem:[#allocation3 + $0xa8] sm:$0xff] %v58
      %84 = vst [vmem:[#allocation3 + $0xb0] sm:$0xff] %v58
      %85 = vst [vmem:[#allocation3 + $0xb8] sm:$0xff] %v58
      %86 = vst [vmem:[#allocation3 + $0xc0] sm:$0xff] %v58
      %87 = vst [vmem:[#allocation3 + $0xc8] sm:$0xff] %v59
      %88 = vst [vmem:[#allocation3 + $0xd0] sm:$0xff] %v59
      %89 = vst [vmem:[#allocation3 + $0xd8] sm:$0xff] %v59
      %90 = vst [vmem:[#allocation3 + $0xe0] sm:$0xff] %v59
      %91 = vst [vmem:[#allocation3 + $0xe8] sm:$0xff] %v59
      %92 = vst [vmem:[#allocation3 + $0xf0] sm:$0xff] %v60
      %93 = vst [vmem:[#allocation3 + $0xf8] sm:$0xff] %v60
      %94 = vst [vmem:[#allocation3 + $0x100] sm:$0xff] %v60
      %95 = vst [vmem:[#allocation3 + $0x108] sm:$0xff] %v60
      %96 = vst [vmem:[#allocation3 + $0x110] sm:$0xff] %v60
      %97 = vst [vmem:[#allocation3 + $0x118] sm:$0xff] %v61
      %98 = vst [vmem:[#allocation3 + $0x120] sm:$0xff] %v61
      %99 = vst [vmem:[#allocation3 + $0x128] sm:$0xff] %v61
      %100 = vst [vmem:[#allocation3 + $0x130] sm:$0xff] %v61
      %101 = vst [vmem:[#allocation3 + $0x138] sm:$0xff] %v61
    $region29: #{tpu_custom_call.1} parent=1 // pred_fallthru
      _
    %v102 = vld [vmem:[%s1] sm:$0xff]
    %v103 = vld [vmem:[%s1 + $0x8] sm:$0xff]
    %v104 = vld [vmem:[%s1 + $0x10] sm:$0xff]
    %v105 = vld [vmem:[%s1 + $0x18] sm:$0xff]
    %v106 = vld [vmem:[%s1 + $0x20] sm:$0xff]
    %v107 = vld [vmem:[%s1 + $0x28] sm:$0xff]
    %v108 = vld [vmem:[%s1 + $0x30] sm:$0xff]
    %v109 = vld [vmem:[%s1 + $0x38] sm:$0xff]
    %v110 = vld [vmem:[%s1 + $0x40] sm:$0xff]
    %v111 = vld [vmem:[%s1 + $0x48] sm:$0xff]
    %v112 = vld [vmem:[%s1 + $0x50] sm:$0xff]
    %v113 = vld [vmem:[%s1 + $0x58] sm:$0xff]
    %v114 = vld [vmem:[%s1 + $0x60] sm:$0xff]
    %v115 = vld [vmem:[%s1 + $0x68] sm:$0xff]
    %v116 = vld [vmem:[%s1 + $0x70] sm:$0xff]
    %v117 = vld [vmem:[%s1 + $0x78] sm:$0xff]
    %v118 = vld [vmem:[%s1 + $0x80] sm:$0xff]
    %v119 = vld [vmem:[%s1 + $0x88] sm:$0xff]
    %v120 = vld [vmem:[%s1 + $0x90] sm:$0xff]
    %v121 = vld [vmem:[%s1 + $0x98] sm:$0xff]
    %v122 = vld [vmem:[%s1 + $0xa0] sm:$0xff]
    %v123 = vld [vmem:[%s1 + $0xa8] sm:$0xff]
    %v124 = vld [vmem:[%s1 + $0xb0] sm:$0xff]
    %v125 = vld [vmem:[%s1 + $0xb8] sm:$0xff]
    %v126 = vld [vmem:[%s1 + $0xc0] sm:$0xff]
    %v127 = vld [vmem:[%s1 + $0xc8] sm:$0xff]
    %v128 = vld [vmem:[%s1 + $0xd0] sm:$0xff]
    %v129 = vld [vmem:[%s1 + $0xd8] sm:$0xff]
    %v130 = vld [vmem:[%s1 + $0xe0] sm:$0xff]
    %v131 = vld [vmem:[%s1 + $0xe8] sm:$0xff]
    %v132 = vld [vmem:[%s1 + $0xf0] sm:$0xff]
    %v133 = vld [vmem:[%s1 + $0xf8] sm:$0xff]
    %v134 = vld [vmem:[%s1 + $0x100] sm:$0xff]
    %v135 = vld [vmem:[%s1 + $0x108] sm:$0xff]
    %v136 = vld [vmem:[%s1 + $0x110] sm:$0xff]
    %v137 = vld [vmem:[%s1 + $0x118] sm:$0xff]
    %v138 = vld [vmem:[%s1 + $0x120] sm:$0xff]
    %v139 = vld [vmem:[%s1 + $0x128] sm:$0xff]
    %v140 = vld [vmem:[%s1 + $0x130] sm:$0xff]
    %v141 = vld [vmem:[%s1 + $0x138] sm:$0xff]
    %v142 = vld [vmem:[%s1 + $0x140] sm:$0xff]
    %v143 = vld [vmem:[%s1 + $0x148] sm:$0xff]
    %v144 = vld [vmem:[%s1 + $0x150] sm:$0xff]
    %v145 = vld [vmem:[%s1 + $0x158] sm:$0xff]
    %v146 = vld [vmem:[%s1 + $0x160] sm:$0xff]
    %v147 = vld [vmem:[%s1 + $0x168] sm:$0xff]
    %v148 = vld [vmem:[%s1 + $0x170] sm:$0xff]
    %v149 = vld [vmem:[%s1 + $0x178] sm:$0xff]
    %v150 = vld [vmem:[%s1 + $0x180] sm:$0xff]
    %v151 = vld [vmem:[%s1 + $0x188] sm:$0xff]
    %v152 = vld [vmem:[%s1 + $0x190] sm:$0xff]
    %v153 = vld [vmem:[%s1 + $0x198] sm:$0xff]
    %v154 = vld [vmem:[%s1 + $0x1a0] sm:$0xff]
    %v155 = vld [vmem:[%s1 + $0x1a8] sm:$0xff]
    %v156 = vld [vmem:[%s1 + $0x1b0] sm:$0xff]
    %v157 = vld [vmem:[%s1 + $0x1b8] sm:$0xff]
    %v158 = vld [vmem:[%s1 + $0x1c0] sm:$0xff]
    %v159 = vld [vmem:[%s1 + $0x1c8] sm:$0xff]
    %v160 = vld [vmem:[%s1 + $0x1d0] sm:$0xff]
    %v161 = vld [vmem:[%s1 + $0x1d8] sm:$0xff]
    %v162 = vld [vmem:[%s1 + $0x1e0] sm:$0xff]
    %v163 = vld [vmem:[%s1 + $0x1e8] sm:$0xff]
    %v164 = vld [vmem:[%s1 + $0x1f0] sm:$0xff]
    %v165 = vld [vmem:[%s1 + $0x1f8] sm:$0xff]
    %v166 = vld [vmem:[%s1 + $0x200] sm:$0xff]
    %v167 = vld [vmem:[%s1 + $0x208] sm:$0xff]
    %v168 = vld [vmem:[%s1 + $0x210] sm:$0xff]
    %v169 = vld [vmem:[%s1 + $0x218] sm:$0xff]
    %v170 = vld [vmem:[%s1 + $0x220] sm:$0xff]
    %v171 = vld [vmem:[%s1 + $0x228] sm:$0xff]
    %v172 = vld [vmem:[%s1 + $0x230] sm:$0xff]
    %v173 = vld [vmem:[%s1 + $0x238] sm:$0xff]
    %v174 = vld [vmem:[%s1 + $0x240] sm:$0xff]
    %v175 = vld [vmem:[%s1 + $0x248] sm:$0xff]
    %v176 = vld [vmem:[%s1 + $0x250] sm:$0xff]
    %v177 = vld [vmem:[%s1 + $0x258] sm:$0xff]
    %v178 = vld [vmem:[%s1 + $0x260] sm:$0xff]
    %v179 = vld [vmem:[%s1 + $0x268] sm:$0xff]
    %v180 = vld [vmem:[%s1 + $0x270] sm:$0xff]
    %v181 = vld [vmem:[%s1 + $0x278] sm:$0xff]
    %v182 = vld [vmem:[%s0] sm:$0xff]
    %v183 = vld [vmem:[%s0 + $0x8] sm:$0xff]
    %v184 = vld [vmem:[%s0 + $0x10] sm:$0xff]
    %v185 = vld [vmem:[%s0 + $0x18] sm:$0xff]
    %v186 = vld [vmem:[%s0 + $0x20] sm:$0xff]
    %v187 = vld [vmem:[%s0 + $0x28] sm:$0xff]
    %v188 = vld [vmem:[%s0 + $0x30] sm:$0xff]
    %v189 = vld [vmem:[%s0 + $0x38] sm:$0xff]
    %v190 = vld [vmem:[%s0 + $0x40] sm:$0xff]
    %v191 = vld [vmem:[%s0 + $0x48] sm:$0xff]
    %v192 = vld [vmem:[%s0 + $0x50] sm:$0xff]
    %v193 = vld [vmem:[%s0 + $0x58] sm:$0xff]
    %v194 = vld [vmem:[%s0 + $0x60] sm:$0xff]
    %v195 = vld [vmem:[%s0 + $0x68] sm:$0xff]
    %v196 = vld [vmem:[%s0 + $0x70] sm:$0xff]
    %v197 = vld [vmem:[%s0 + $0x78] sm:$0xff]
    %v198 = vld [vmem:[%s0 + $0x80] sm:$0xff]
    %v199 = vld [vmem:[%s0 + $0x88] sm:$0xff]
    %v200 = vld [vmem:[%s0 + $0x90] sm:$0xff]
    %v201 = vld [vmem:[%s0 + $0x98] sm:$0xff]
    %v202 = vld [vmem:[%s0 + $0xa0] sm:$0xff]
    %v203 = vld [vmem:[%s0 + $0xa8] sm:$0xff]
    %v204 = vld [vmem:[%s0 + $0xb0] sm:$0xff]
    %v205 = vld [vmem:[%s0 + $0xb8] sm:$0xff]
    %v206 = vld [vmem:[%s0 + $0xc0] sm:$0xff]
    %v207 = vld [vmem:[%s0 + $0xc8] sm:$0xff]
    %v208 = vld [vmem:[%s0 + $0xd0] sm:$0xff]
    %v209 = vld [vmem:[%s0 + $0xd8] sm:$0xff]
    %v210 = vld [vmem:[%s0 + $0xe0] sm:$0xff]
    %v211 = vld [vmem:[%s0 + $0xe8] sm:$0xff]
    %v212 = vld [vmem:[%s0 + $0xf0] sm:$0xff]
    %v213 = vld [vmem:[%s0 + $0xf8] sm:$0xff]
    %v214 = vld [vmem:[%s0 + $0x100] sm:$0xff]
    %v215 = vld [vmem:[%s0 + $0x108] sm:$0xff]
    %v216 = vld [vmem:[%s0 + $0x110] sm:$0xff]
    %v217 = vld [vmem:[%s0 + $0x118] sm:$0xff]
    %v218 = vld [vmem:[%s0 + $0x120] sm:$0xff]
    %v219 = vld [vmem:[%s0 + $0x128] sm:$0xff]
    %v220 = vld [vmem:[%s0 + $0x130] sm:$0xff]
    %v221 = vld [vmem:[%s0 + $0x138] sm:$0xff]
    %v222 = vld [vmem:[%s0 + $0x140] sm:$0xff]
    %v223 = vld [vmem:[%s0 + $0x148] sm:$0xff]
    %v224 = vld [vmem:[%s0 + $0x150] sm:$0xff]
    %v225 = vld [vmem:[%s0 + $0x158] sm:$0xff]
    %v226 = vld [vmem:[%s0 + $0x160] sm:$0xff]
    %v227 = vld [vmem:[%s0 + $0x168] sm:$0xff]
    %v228 = vld [vmem:[%s0 + $0x170] sm:$0xff]
    %v229 = vld [vmem:[%s0 + $0x178] sm:$0xff]
    %v230 = vld [vmem:[%s0 + $0x180] sm:$0xff]
    %v231 = vld [vmem:[%s0 + $0x188] sm:$0xff]
    %v232 = vld [vmem:[%s0 + $0x190] sm:$0xff]
    %v233 = vld [vmem:[%s0 + $0x198] sm:$0xff]
    %v234 = vld [vmem:[%s0 + $0x1a0] sm:$0xff]
    %v235 = vld [vmem:[%s0 + $0x1a8] sm:$0xff]
    %v236 = vld [vmem:[%s0 + $0x1b0] sm:$0xff]
    %v237 = vld [vmem:[%s0 + $0x1b8] sm:$0xff]
    %v238 = vld [vmem:[%s0 + $0x1c0] sm:$0xff]
    %v239 = vld [vmem:[%s0 + $0x1c8] sm:$0xff]
    %v240 = vld [vmem:[%s0 + $0x1d0] sm:$0xff]
    %v241 = vld [vmem:[%s0 + $0x1d8] sm:$0xff]
    %v242 = vld [vmem:[%s0 + $0x1e0] sm:$0xff]
    %v243 = vld [vmem:[%s0 + $0x1e8] sm:$0xff]
    %v244 = vld [vmem:[%s0 + $0x1f0] sm:$0xff]
    %v245 = vld [vmem:[%s0 + $0x1f8] sm:$0xff]
    %v246 = vld [vmem:[%s0 + $0x200] sm:$0xff]
    %v247 = vld [vmem:[%s0 + $0x208] sm:$0xff]
    %v248 = vld [vmem:[%s0 + $0x210] sm:$0xff]
    %v249 = vld [vmem:[%s0 + $0x218] sm:$0xff]
    %v250 = vld [vmem:[%s0 + $0x220] sm:$0xff]
    %v251 = vld [vmem:[%s0 + $0x228] sm:$0xff]
    %v252 = vld [vmem:[%s0 + $0x230] sm:$0xff]
    %v253 = vld [vmem:[%s0 + $0x238] sm:$0xff]
    %v254 = vld [vmem:[%s0 + $0x240] sm:$0xff]
    %v255 = vld [vmem:[%s0 + $0x248] sm:$0xff]
    %v256 = vld [vmem:[%s0 + $0x250] sm:$0xff]
    %v257 = vld [vmem:[%s0 + $0x258] sm:$0xff]
    %v258 = vld [vmem:[%s0 + $0x260] sm:$0xff]
    %v259 = vld [vmem:[%s0 + $0x268] sm:$0xff]
    %v260 = vld [vmem:[%s0 + $0x270] sm:$0xff]
    %v261 = vld [vmem:[%s0 + $0x278] sm:$0xff]
    %v262 = vsub.f32 %v102, %v182
    %v263 = vsub.f32 %v103, %v183
    %v264 = vsub.f32 %v104, %v184
    %v265 = vsub.f32 %v105, %v185
    %v266 = vsub.f32 %v106, %v186
    %v267 = vsub.f32 %v107, %v187
    %v268 = vsub.f32 %v108, %v188
    %v269 = vsub.f32 %v109, %v189
    %v270 = vsub.f32 %v110, %v190
    %v271 = vsub.f32 %v111, %v191
    %v272 = vsub.f32 %v112, %v192
    %v273 = vsub.f32 %v113, %v193
    %v274 = vsub.f32 %v114, %v194
    %v275 = vsub.f32 %v115, %v195
    %v276 = vsub.f32 %v116, %v196
    %v277 = vsub.f32 %v117, %v197
    %v278 = vsub.f32 %v118, %v198
    %v279 = vsub.f32 %v119, %v199
    %v280 = vsub.f32 %v120, %v200
    %v281 = vsub.f32 %v121, %v201
    %v282 = vsub.f32 %v122, %v202
    %v283 = vsub.f32 %v123, %v203
    %v284 = vsub.f32 %v124, %v204
    %v285 = vsub.f32 %v125, %v205
    %v286 = vsub.f32 %v126, %v206
    %v287 = vsub.f32 %v127, %v207
    %v288 = vsub.f32 %v128, %v208
    %v289 = vsub.f32 %v129, %v209
    %v290 = vsub.f32 %v130, %v210
    %v291 = vsub.f32 %v131, %v211
    %v292 = vsub.f32 %v132, %v212
    %v293 = vsub.f32 %v133, %v213
    %v294 = vsub.f32 %v134, %v214
    %v295 = vsub.f32 %v135, %v215
    %v296 = vsub.f32 %v136, %v216
    %v297 = vsub.f32 %v137, %v217
    %v298 = vsub.f32 %v138, %v218
    %v299 = vsub.f32 %v139, %v219
    %v300 = vsub.f32 %v140, %v220
    %v301 = vsub.f32 %v141, %v221
    %v302 = vsub.f32 %v142, %v222
    %v303 = vsub.f32 %v143, %v223
    %v304 = vsub.f32 %v144, %v224
    %v305 = vsub.f32 %v145, %v225
    %v306 = vsub.f32 %v146, %v226
    %v307 = vsub.f32 %v147, %v227
    %v308 = vsub.f32 %v148, %v228
    %v309 = vsub.f32 %v149, %v229
    %v310 = vsub.f32 %v150, %v230
    %v311 = vsub.f32 %v151, %v231
    %v312 = vsub.f32 %v152, %v232
    %v313 = vsub.f32 %v153, %v233
    %v314 = vsub.f32 %v154, %v234
    %v315 = vsub.f32 %v155, %v235
    %v316 = vsub.f32 %v156, %v236
    %v317 = vsub.f32 %v157, %v237
    %v318 = vsub.f32 %v158, %v238
    %v319 = vsub.f32 %v159, %v239
    %v320 = vsub.f32 %v160, %v240
    %v321 = vsub.f32 %v161, %v241
    %v322 = vsub.f32 %v162, %v242
    %v323 = vsub.f32 %v163, %v243
    %v324 = vsub.f32 %v164, %v244
    %v325 = vsub.f32 %v165, %v245
    %v326 = vsub.f32 %v166, %v246
    %v327 = vsub.f32 %v167, %v247
    %v328 = vsub.f32 %v168, %v248
    %v329 = vsub.f32 %v169, %v249
    %v330 = vsub.f32 %v170, %v250
    %v331 = vsub.f32 %v171, %v251
    %v332 = vsub.f32 %v172, %v252
    %v333 = vsub.f32 %v173, %v253
    %v334 = vsub.f32 %v174, %v254
    %v335 = vsub.f32 %v175, %v255
    %v336 = vsub.f32 %v176, %v256
    %v337 = vsub.f32 %v177, %v257
    %v338 = vsub.f32 %v178, %v258
    %v339 = vsub.f32 %v179, %v259
    %v340 = vsub.f32 %v180, %v260
    %v341 = vsub.f32 %v181, %v261
    %v342 = vmul.f32 %v262, %v262
    %v343 = vmul.f32 %v263, %v263
    %v344 = vmul.f32 %v264, %v264
    %v345 = vmul.f32 %v265, %v265
    %v346 = vmul.f32 %v266, %v266
    %v347 = vmul.f32 %v267, %v267
    %v348 = vmul.f32 %v268, %v268
    %v349 = vmul.f32 %v269, %v269
    %v350 = vmul.f32 %v270, %v270
    %v351 = vmul.f32 %v271, %v271
    %v352 = vmul.f32 %v272, %v272
    %v353 = vmul.f32 %v273, %v273
    %v354 = vmul.f32 %v274, %v274
    %v355 = vmul.f32 %v275, %v275
    %v356 = vmul.f32 %v276, %v276
    %v357 = vmul.f32 %v277, %v277
    %v358 = vmul.f32 %v278, %v278
    %v359 = vmul.f32 %v279, %v279
    %v360 = vmul.f32 %v280, %v280
    %v361 = vmul.f32 %v281, %v281
    %v362 = vmul.f32 %v282, %v282
    %v363 = vmul.f32 %v283, %v283
    %v364 = vmul.f32 %v284, %v284
    %v365 = vmul.f32 %v285, %v285
    %v366 = vmul.f32 %v286, %v286
    %v367 = vmul.f32 %v287, %v287
    %v368 = vmul.f32 %v288, %v288
    %v369 = vmul.f32 %v289, %v289
    %v370 = vmul.f32 %v290, %v290
    %v371 = vmul.f32 %v291, %v291
    %v372 = vmul.f32 %v292, %v292
    %v373 = vmul.f32 %v293, %v293
    %v374 = vmul.f32 %v294, %v294
    %v375 = vmul.f32 %v295, %v295
    %v376 = vmul.f32 %v296, %v296
    %v377 = vmul.f32 %v297, %v297
    %v378 = vmul.f32 %v298, %v298
    %v379 = vmul.f32 %v299, %v299
    %v380 = vmul.f32 %v300, %v300
    %v381 = vmul.f32 %v301, %v301
    %v382 = vmul.f32 %v302, %v302
    %v383 = vmul.f32 %v303, %v303
    %v384 = vmul.f32 %v304, %v304
    %v385 = vmul.f32 %v305, %v305
    %v386 = vmul.f32 %v306, %v306
    %v387 = vmul.f32 %v307, %v307
    %v388 = vmul.f32 %v308, %v308
    %v389 = vmul.f32 %v309, %v309
    %v390 = vmul.f32 %v310, %v310
    %v391 = vmul.f32 %v311, %v311
    %v392 = vmul.f32 %v312, %v312
    %v393 = vmul.f32 %v313, %v313
    %v394 = vmul.f32 %v314, %v314
    %v395 = vmul.f32 %v315, %v315
    %v396 = vmul.f32 %v316, %v316
    %v397 = vmul.f32 %v317, %v317
    %v398 = vmul.f32 %v318, %v318
    %v399 = vmul.f32 %v319, %v319
    %v400 = vmul.f32 %v320, %v320
    %v401 = vmul.f32 %v321, %v321
    %v402 = vmul.f32 %v322, %v322
    %v403 = vmul.f32 %v323, %v323
    %v404 = vmul.f32 %v324, %v324
    %v405 = vmul.f32 %v325, %v325
    %v406 = vmul.f32 %v326, %v326
    %v407 = vmul.f32 %v327, %v327
    %v408 = vmul.f32 %v328, %v328
    %v409 = vmul.f32 %v329, %v329
    %v410 = vmul.f32 %v330, %v330
    %v411 = vmul.f32 %v331, %v331
    %v412 = vmul.f32 %v332, %v332
    %v413 = vmul.f32 %v333, %v333
    %v414 = vmul.f32 %v334, %v334
    %v415 = vmul.f32 %v335, %v335
    %v416 = vmul.f32 %v336, %v336
    %v417 = vmul.f32 %v337, %v337
    %v418 = vmul.f32 %v338, %v338
    %v419 = vmul.f32 %v339, %v339
    %v420 = vmul.f32 %v340, %v340
    %v421 = vmul.f32 %v341, %v341
    %vm422 = vcmask 23552
    %v423 = vsel %vm422, %v342, 0.0
    %424 = vadd.xlane.f32.xlu0 %v423
    %v425 = vpop.xlane.xlu0 %424
    %v426 = vsel %vm422, %v343, 0.0
    %427 = vadd.xlane.f32.xlu0 %v426
    %v428 = vpop.xlane.xlu0 %427
    %v429 = vsel %vm422, %v344, 0.0
    %430 = vadd.xlane.f32.xlu0 %v429
    %v431 = vpop.xlane.xlu0 %430
    %v432 = vsel %vm422, %v345, 0.0
    %433 = vadd.xlane.f32.xlu0 %v432
    %v434 = vpop.xlane.xlu0 %433
    %v435 = vsel %vm422, %v346, 0.0
    %436 = vadd.xlane.f32.xlu0 %v435
    %v437 = vpop.xlane.xlu0 %436
    %v438 = vsel %vm422, %v347, 0.0
    %439 = vadd.xlane.f32.xlu0 %v438
    %v440 = vpop.xlane.xlu0 %439
    %v441 = vsel %vm422, %v348, 0.0
    %442 = vadd.xlane.f32.xlu0 %v441
    %v443 = vpop.xlane.xlu0 %442
    %v444 = vsel %vm422, %v349, 0.0
    %445 = vadd.xlane.f32.xlu0 %v444
    %v446 = vpop.xlane.xlu0 %445
    %v447 = vsel %vm422, %v350, 0.0
    %448 = vadd.xlane.f32.xlu0 %v447
    %v449 = vpop.xlane.xlu0 %448
    %v450 = vsel %vm422, %v351, 0.0
    %451 = vadd.xlane.f32.xlu0 %v450
    %v452 = vpop.xlane.xlu0 %451
    %v453 = vsel %vm422, %v352, 0.0
    %454 = vadd.xlane.f32.xlu0 %v453
    %v455 = vpop.xlane.xlu0 %454
    %v456 = vsel %vm422, %v353, 0.0
    %457 = vadd.xlane.f32.xlu0 %v456
    %v458 = vpop.xlane.xlu0 %457
    %v459 = vsel %vm422, %v354, 0.0
    %460 = vadd.xlane.f32.xlu0 %v459
    %v461 = vpop.xlane.xlu0 %460
    %v462 = vsel %vm422, %v355, 0.0
    %463 = vadd.xlane.f32.xlu0 %v462
    %v464 = vpop.xlane.xlu0 %463
    %v465 = vsel %vm422, %v356, 0.0
    %466 = vadd.xlane.f32.xlu0 %v465
    %v467 = vpop.xlane.xlu0 %466
    %v468 = vsel %vm422, %v357, 0.0
    %469 = vadd.xlane.f32.xlu0 %v468
    %v470 = vpop.xlane.xlu0 %469
    %v471 = vsel %vm422, %v358, 0.0
    %472 = vadd.xlane.f32.xlu0 %v471
    %v473 = vpop.xlane.xlu0 %472
    %v474 = vsel %vm422, %v359, 0.0
    %475 = vadd.xlane.f32.xlu0 %v474
    %v476 = vpop.xlane.xlu0 %475
    %v477 = vsel %vm422, %v360, 0.0
    %478 = vadd.xlane.f32.xlu0 %v477
    %v479 = vpop.xlane.xlu0 %478
    %v480 = vsel %vm422, %v361, 0.0
    %481 = vadd.xlane.f32.xlu0 %v480
    %v482 = vpop.xlane.xlu0 %481
    %v483 = vsel %vm422, %v362, 0.0
    %484 = vadd.xlane.f32.xlu0 %v483
    %v485 = vpop.xlane.xlu0 %484
    %v486 = vsel %vm422, %v363, 0.0
    %487 = vadd.xlane.f32.xlu0 %v486
    %v488 = vpop.xlane.xlu0 %487
    %v489 = vsel %vm422, %v364, 0.0
    %490 = vadd.xlane.f32.xlu0 %v489
    %v491 = vpop.xlane.xlu0 %490
    %v492 = vsel %vm422, %v365, 0.0
    %493 = vadd.xlane.f32.xlu0 %v492
    %v494 = vpop.xlane.xlu0 %493
    %v495 = vsel %vm422, %v366, 0.0
    %496 = vadd.xlane.f32.xlu0 %v495
    %v497 = vpop.xlane.xlu0 %496
    %v498 = vsel %vm422, %v367, 0.0
    %499 = vadd.xlane.f32.xlu0 %v498
    %v500 = vpop.xlane.xlu0 %499
    %v501 = vsel %vm422, %v368, 0.0
    %502 = vadd.xlane.f32.xlu0 %v501
    %v503 = vpop.xlane.xlu0 %502
    %v504 = vsel %vm422, %v369, 0.0
    %505 = vadd.xlane.f32.xlu0 %v504
    %v506 = vpop.xlane.xlu0 %505
    %v507 = vsel %vm422, %v370, 0.0
    %508 = vadd.xlane.f32.xlu0 %v507
    %v509 = vpop.xlane.xlu0 %508
    %v510 = vsel %vm422, %v371, 0.0
    %511 = vadd.xlane.f32.xlu0 %v510
    %v512 = vpop.xlane.xlu0 %511
    %v513 = vsel %vm422, %v372, 0.0
    %514 = vadd.xlane.f32.xlu0 %v513
    %v515 = vpop.xlane.xlu0 %514
    %v516 = vsel %vm422, %v373, 0.0
    %517 = vadd.xlane.f32.xlu0 %v516
    %v518 = vpop.xlane.xlu0 %517
    %v519 = vsel %vm422, %v374, 0.0
    %520 = vadd.xlane.f32.xlu0 %v519
    %v521 = vpop.xlane.xlu0 %520
    %v522 = vsel %vm422, %v375, 0.0
    %523 = vadd.xlane.f32.xlu0 %v522
    %v524 = vpop.xlane.xlu0 %523
    %v525 = vsel %vm422, %v376, 0.0
    %526 = vadd.xlane.f32.xlu0 %v525
    %v527 = vpop.xlane.xlu0 %526
    %v528 = vsel %vm422, %v377, 0.0
    %529 = vadd.xlane.f32.xlu0 %v528
    %v530 = vpop.xlane.xlu0 %529
    %v531 = vsel %vm422, %v378, 0.0
    %532 = vadd.xlane.f32.xlu0 %v531
    %v533 = vpop.xlane.xlu0 %532
    %v534 = vsel %vm422, %v379, 0.0
    %535 = vadd.xlane.f32.xlu0 %v534
    %v536 = vpop.xlane.xlu0 %535
    %v537 = vsel %vm422, %v380, 0.0
    %538 = vadd.xlane.f32.xlu0 %v537
    %v539 = vpop.xlane.xlu0 %538
    %v540 = vsel %vm422, %v381, 0.0
    %541 = vadd.xlane.f32.xlu0 %v540
    %v542 = vpop.xlane.xlu0 %541
    %v543 = vsel %vm422, %v382, 0.0
    %544 = vadd.xlane.f32.xlu0 %v543
    %v545 = vpop.xlane.xlu0 %544
    %v546 = vsel %vm422, %v383, 0.0
    %547 = vadd.xlane.f32.xlu0 %v546
    %v548 = vpop.xlane.xlu0 %547
    %v549 = vsel %vm422, %v384, 0.0
    %550 = vadd.xlane.f32.xlu0 %v549
    %v551 = vpop.xlane.xlu0 %550
    %v552 = vsel %vm422, %v385, 0.0
    %553 = vadd.xlane.f32.xlu0 %v552
    %v554 = vpop.xlane.xlu0 %553
    %v555 = vsel %vm422, %v386, 0.0
    %556 = vadd.xlane.f32.xlu0 %v555
    %v557 = vpop.xlane.xlu0 %556
    %v558 = vsel %vm422, %v387, 0.0
    %559 = vadd.xlane.f32.xlu0 %v558
    %v560 = vpop.xlane.xlu0 %559
    %v561 = vsel %vm422, %v388, 0.0
    %562 = vadd.xlane.f32.xlu0 %v561
    %v563 = vpop.xlane.xlu0 %562
    %v564 = vsel %vm422, %v389, 0.0
    %565 = vadd.xlane.f32.xlu0 %v564
    %v566 = vpop.xlane.xlu0 %565
    %v567 = vsel %vm422, %v390, 0.0
    %568 = vadd.xlane.f32.xlu0 %v567
    %v569 = vpop.xlane.xlu0 %568
    %v570 = vsel %vm422, %v391, 0.0
    %571 = vadd.xlane.f32.xlu0 %v570
    %v572 = vpop.xlane.xlu0 %571
    %v573 = vsel %vm422, %v392, 0.0
    %574 = vadd.xlane.f32.xlu0 %v573
    %v575 = vpop.xlane.xlu0 %574
    %v576 = vsel %vm422, %v393, 0.0
    %577 = vadd.xlane.f32.xlu0 %v576
    %v578 = vpop.xlane.xlu0 %577
    %v579 = vsel %vm422, %v394, 0.0
    %580 = vadd.xlane.f32.xlu0 %v579
    %v581 = vpop.xlane.xlu0 %580
    %v582 = vsel %vm422, %v395, 0.0
    %583 = vadd.xlane.f32.xlu0 %v582
    %v584 = vpop.xlane.xlu0 %583
    %v585 = vsel %vm422, %v396, 0.0
    %586 = vadd.xlane.f32.xlu0 %v585
    %v587 = vpop.xlane.xlu0 %586
    %v588 = vsel %vm422, %v397, 0.0
    %589 = vadd.xlane.f32.xlu0 %v588
    %v590 = vpop.xlane.xlu0 %589
    %v591 = vsel %vm422, %v398, 0.0
    %592 = vadd.xlane.f32.xlu0 %v591
    %v593 = vpop.xlane.xlu0 %592
    %v594 = vsel %vm422, %v399, 0.0
    %595 = vadd.xlane.f32.xlu0 %v594
    %v596 = vpop.xlane.xlu0 %595
    %v597 = vsel %vm422, %v400, 0.0
    %598 = vadd.xlane.f32.xlu0 %v597
    %v599 = vpop.xlane.xlu0 %598
    %v600 = vsel %vm422, %v401, 0.0
    %601 = vadd.xlane.f32.xlu0 %v600
    %v602 = vpop.xlane.xlu0 %601
    %v603 = vsel %vm422, %v402, 0.0
    %604 = vadd.xlane.f32.xlu0 %v603
    %v605 = vpop.xlane.xlu0 %604
    %v606 = vsel %vm422, %v403, 0.0
    %607 = vadd.xlane.f32.xlu0 %v606
    %v608 = vpop.xlane.xlu0 %607
    %v609 = vsel %vm422, %v404, 0.0
    %610 = vadd.xlane.f32.xlu0 %v609
    %v611 = vpop.xlane.xlu0 %610
    %v612 = vsel %vm422, %v405, 0.0
    %613 = vadd.xlane.f32.xlu0 %v612
    %v614 = vpop.xlane.xlu0 %613
    %v615 = vsel %vm422, %v406, 0.0
    %616 = vadd.xlane.f32.xlu0 %v615
    %v617 = vpop.xlane.xlu0 %616
    %v618 = vsel %vm422, %v407, 0.0
    %619 = vadd.xlane.f32.xlu0 %v618
    %v620 = vpop.xlane.xlu0 %619
    %v621 = vsel %vm422, %v408, 0.0
    %622 = vadd.xlane.f32.xlu0 %v621
    %v623 = vpop.xlane.xlu0 %622
    %v624 = vsel %vm422, %v409, 0.0
    %625 = vadd.xlane.f32.xlu0 %v624
    %v626 = vpop.xlane.xlu0 %625
    %v627 = vsel %vm422, %v410, 0.0
    %628 = vadd.xlane.f32.xlu0 %v627
    %v629 = vpop.xlane.xlu0 %628
    %v630 = vsel %vm422, %v411, 0.0
    %631 = vadd.xlane.f32.xlu0 %v630
    %v632 = vpop.xlane.xlu0 %631
    %v633 = vsel %vm422, %v412, 0.0
    %634 = vadd.xlane.f32.xlu0 %v633
    %v635 = vpop.xlane.xlu0 %634
    %v636 = vsel %vm422, %v413, 0.0
    %637 = vadd.xlane.f32.xlu0 %v636
    %v638 = vpop.xlane.xlu0 %637
    %v639 = vsel %vm422, %v414, 0.0
    %640 = vadd.xlane.f32.xlu0 %v639
    %v641 = vpop.xlane.xlu0 %640
    %v642 = vsel %vm422, %v415, 0.0
    %643 = vadd.xlane.f32.xlu0 %v642
    %v644 = vpop.xlane.xlu0 %643
    %v645 = vsel %vm422, %v416, 0.0
    %646 = vadd.xlane.f32.xlu0 %v645
    %v647 = vpop.xlane.xlu0 %646
    %v648 = vsel %vm422, %v417, 0.0
    %649 = vadd.xlane.f32.xlu0 %v648
    %v650 = vpop.xlane.xlu0 %649
    %v651 = vsel %vm422, %v418, 0.0
    %652 = vadd.xlane.f32.xlu0 %v651
    %v653 = vpop.xlane.xlu0 %652
    %v654 = vsel %vm422, %v419, 0.0
    %655 = vadd.xlane.f32.xlu0 %v654
    %v656 = vpop.xlane.xlu0 %655
    %v657 = vsel %vm422, %v420, 0.0
    %658 = vadd.xlane.f32.xlu0 %v657
    %v659 = vpop.xlane.xlu0 %658
    %v660 = vsel %vm422, %v421, 0.0
    %661 = vadd.xlane.f32.xlu0 %v660
    %v662 = vpop.xlane.xlu0 %661
    %v663 = vrsqrt.pop %v425
    %v664 = vmul.f32 %v663, %v425
    %v665 = vmul.f32 %v664, %v663
    %v666 = vmul.f32 0.5, %v665
    %v667 = vsub.f32 1.5, %v666
    %v668 = vmul.f32 %v663, %v667
    %v669 = vmul.f32 %v425, %v668
    %vm670 = vcmp.eq.f32.partialorder %v425, inf
    %v671 = vsel %vm670, %v425, %v669
    %vm672 = vcmp.eq.f32.partialorder %v425, 0.0
    %v673 = vand.u32 %v425, 2147483648
    %v674 = vsel %vm672, %v673, %v671
    %v675 = vrsqrt.pop %v428
    %v676 = vmul.f32 %v675, %v428
    %v677 = vmul.f32 %v676, %v675
    %v678 = vmul.f32 0.5, %v677
    %v679 = vsub.f32 1.5, %v678
    %v680 = vmul.f32 %v675, %v679
    %v681 = vmul.f32 %v428, %v680
    %vm682 = vcmp.eq.f32.partialorder %v428, inf
    %v683 = vsel %vm682, %v428, %v681
    %vm684 = vcmp.eq.f32.partialorder %v428, 0.0
    %v685 = vand.u32 %v428, 2147483648
    %v686 = vsel %vm684, %v685, %v683
    %v687 = vrsqrt.pop %v431
    %v688 = vmul.f32 %v687, %v431
    %v689 = vmul.f32 %v688, %v687
    %v690 = vmul.f32 0.5, %v689
    %v691 = vsub.f32 1.5, %v690
    %v692 = vmul.f32 %v687, %v691
    %v693 = vmul.f32 %v431, %v692
    %vm694 = vcmp.eq.f32.partialorder %v431, inf
    %v695 = vsel %vm694, %v431, %v693
    %vm696 = vcmp.eq.f32.partialorder %v431, 0.0
    %v697 = vand.u32 %v431, 2147483648
    %v698 = vsel %vm696, %v697, %v695
    %v699 = vrsqrt.pop %v434
    %v700 = vmul.f32 %v699, %v434
    %v701 = vmul.f32 %v700, %v699
    %v702 = vmul.f32 0.5, %v701
    %v703 = vsub.f32 1.5, %v702
    %v704 = vmul.f32 %v699, %v703
    %v705 = vmul.f32 %v434, %v704
    %vm706 = vcmp.eq.f32.partialorder %v434, inf
    %v707 = vsel %vm706, %v434, %v705
    %vm708 = vcmp.eq.f32.partialorder %v434, 0.0
    %v709 = vand.u32 %v434, 2147483648
    %v710 = vsel %vm708, %v709, %v707
    %v711 = vrsqrt.pop %v437
    %v712 = vmul.f32 %v711, %v437
    %v713 = vmul.f32 %v712, %v711
    %v714 = vmul.f32 0.5, %v713
    %v715 = vsub.f32 1.5, %v714
    %v716 = vmul.f32 %v711, %v715
    %v717 = vmul.f32 %v437, %v716
    %vm718 = vcmp.eq.f32.partialorder %v437, inf
    %v719 = vsel %vm718, %v437, %v717
    %vm720 = vcmp.eq.f32.partialorder %v437, 0.0
    %v721 = vand.u32 %v437, 2147483648
    %v722 = vsel %vm720, %v721, %v719
    %v723 = vrsqrt.pop %v440
    %v724 = vmul.f32 %v723, %v440
    %v725 = vmul.f32 %v724, %v723
    %v726 = vmul.f32 0.5, %v725
    %v727 = vsub.f32 1.5, %v726
    %v728 = vmul.f32 %v723, %v727
    %v729 = vmul.f32 %v440, %v728
    %vm730 = vcmp.eq.f32.partialorder %v440, inf
    %v731 = vsel %vm730, %v440, %v729
    %vm732 = vcmp.eq.f32.partialorder %v440, 0.0
    %v733 = vand.u32 %v440, 2147483648
    %v734 = vsel %vm732, %v733, %v731
    %v735 = vrsqrt.pop %v443
    %v736 = vmul.f32 %v735, %v443
    %v737 = vmul.f32 %v736, %v735
    %v738 = vmul.f32 0.5, %v737
    %v739 = vsub.f32 1.5, %v738
    %v740 = vmul.f32 %v735, %v739
    %v741 = vmul.f32 %v443, %v740
    %vm742 = vcmp.eq.f32.partialorder %v443, inf
    %v743 = vsel %vm742, %v443, %v741
    %vm744 = vcmp.eq.f32.partialorder %v443, 0.0
    %v745 = vand.u32 %v443, 2147483648
    %v746 = vsel %vm744, %v745, %v743
    %v747 = vrsqrt.pop %v446
    %v748 = vmul.f32 %v747, %v446
    %v749 = vmul.f32 %v748, %v747
    %v750 = vmul.f32 0.5, %v749
    %v751 = vsub.f32 1.5, %v750
    %v752 = vmul.f32 %v747, %v751
    %v753 = vmul.f32 %v446, %v752
    %vm754 = vcmp.eq.f32.partialorder %v446, inf
    %v755 = vsel %vm754, %v446, %v753
    %vm756 = vcmp.eq.f32.partialorder %v446, 0.0
    %v757 = vand.u32 %v446, 2147483648
    %v758 = vsel %vm756, %v757, %v755
    %v759 = vrsqrt.pop %v449
    %v760 = vmul.f32 %v759, %v449
    %v761 = vmul.f32 %v760, %v759
    %v762 = vmul.f32 0.5, %v761
    %v763 = vsub.f32 1.5, %v762
    %v764 = vmul.f32 %v759, %v763
    %v765 = vmul.f32 %v449, %v764
    %vm766 = vcmp.eq.f32.partialorder %v449, inf
    %v767 = vsel %vm766, %v449, %v765
    %vm768 = vcmp.eq.f32.partialorder %v449, 0.0
    %v769 = vand.u32 %v449, 2147483648
    %v770 = vsel %vm768, %v769, %v767
    %v771 = vrsqrt.pop %v452
    %v772 = vmul.f32 %v771, %v452
    %v773 = vmul.f32 %v772, %v771
    %v774 = vmul.f32 0.5, %v773
    %v775 = vsub.f32 1.5, %v774
    %v776 = vmul.f32 %v771, %v775
    %v777 = vmul.f32 %v452, %v776
    %vm778 = vcmp.eq.f32.partialorder %v452, inf
    %v779 = vsel %vm778, %v452, %v777
    %vm780 = vcmp.eq.f32.partialorder %v452, 0.0
    %v781 = vand.u32 %v452, 2147483648
    %v782 = vsel %vm780, %v781, %v779
    %v783 = vrsqrt.pop %v455
    %v784 = vmul.f32 %v783, %v455
    %v785 = vmul.f32 %v784, %v783
    %v786 = vmul.f32 0.5, %v785
    %v787 = vsub.f32 1.5, %v786
    %v788 = vmul.f32 %v783, %v787
    %v789 = vmul.f32 %v455, %v788
    %vm790 = vcmp.eq.f32.partialorder %v455, inf
    %v791 = vsel %vm790, %v455, %v789
    %vm792 = vcmp.eq.f32.partialorder %v455, 0.0
    %v793 = vand.u32 %v455, 2147483648
    %v794 = vsel %vm792, %v793, %v791
    %v795 = vrsqrt.pop %v458
    %v796 = vmul.f32 %v795, %v458
    %v797 = vmul.f32 %v796, %v795
    %v798 = vmul.f32 0.5, %v797
    %v799 = vsub.f32 1.5, %v798
    %v800 = vmul.f32 %v795, %v799
    %v801 = vmul.f32 %v458, %v800
    %vm802 = vcmp.eq.f32.partialorder %v458, inf
    %v803 = vsel %vm802, %v458, %v801
    %vm804 = vcmp.eq.f32.partialorder %v458, 0.0
    %v805 = vand.u32 %v458, 2147483648
    %v806 = vsel %vm804, %v805, %v803
    %v807 = vrsqrt.pop %v461
    %v808 = vmul.f32 %v807, %v461
    %v809 = vmul.f32 %v808, %v807
    %v810 = vmul.f32 0.5, %v809
    %v811 = vsub.f32 1.5, %v810
    %v812 = vmul.f32 %v807, %v811
    %v813 = vmul.f32 %v461, %v812
    %vm814 = vcmp.eq.f32.partialorder %v461, inf
    %v815 = vsel %vm814, %v461, %v813
    %vm816 = vcmp.eq.f32.partialorder %v461, 0.0
    %v817 = vand.u32 %v461, 2147483648
    %v818 = vsel %vm816, %v817, %v815
    %v819 = vrsqrt.pop %v464
    %v820 = vmul.f32 %v819, %v464
    %v821 = vmul.f32 %v820, %v819
    %v822 = vmul.f32 0.5, %v821
    %v823 = vsub.f32 1.5, %v822
    %v824 = vmul.f32 %v819, %v823
    %v825 = vmul.f32 %v464, %v824
    %vm826 = vcmp.eq.f32.partialorder %v464, inf
    %v827 = vsel %vm826, %v464, %v825
    %vm828 = vcmp.eq.f32.partialorder %v464, 0.0
    %v829 = vand.u32 %v464, 2147483648
    %v830 = vsel %vm828, %v829, %v827
    %v831 = vrsqrt.pop %v467
    %v832 = vmul.f32 %v831, %v467
    %v833 = vmul.f32 %v832, %v831
    %v834 = vmul.f32 0.5, %v833
    %v835 = vsub.f32 1.5, %v834
    %v836 = vmul.f32 %v831, %v835
    %v837 = vmul.f32 %v467, %v836
    %vm838 = vcmp.eq.f32.partialorder %v467, inf
    %v839 = vsel %vm838, %v467, %v837
    %vm840 = vcmp.eq.f32.partialorder %v467, 0.0
    %v841 = vand.u32 %v467, 2147483648
    %v842 = vsel %vm840, %v841, %v839
    %v843 = vrsqrt.pop %v470
    %v844 = vmul.f32 %v843, %v470
    %v845 = vmul.f32 %v844, %v843
    %v846 = vmul.f32 0.5, %v845
    %v847 = vsub.f32 1.5, %v846
    %v848 = vmul.f32 %v843, %v847
    %v849 = vmul.f32 %v470, %v848
    %vm850 = vcmp.eq.f32.partialorder %v470, inf
    %v851 = vsel %vm850, %v470, %v849
    %vm852 = vcmp.eq.f32.partialorder %v470, 0.0
    %v853 = vand.u32 %v470, 2147483648
    %v854 = vsel %vm852, %v853, %v851
    %v855 = vrsqrt.pop %v473
    %v856 = vmul.f32 %v855, %v473
    %v857 = vmul.f32 %v856, %v855
    %v858 = vmul.f32 0.5, %v857
    %v859 = vsub.f32 1.5, %v858
    %v860 = vmul.f32 %v855, %v859
    %v861 = vmul.f32 %v473, %v860
    %vm862 = vcmp.eq.f32.partialorder %v473, inf
    %v863 = vsel %vm862, %v473, %v861
    %vm864 = vcmp.eq.f32.partialorder %v473, 0.0
    %v865 = vand.u32 %v473, 2147483648
    %v866 = vsel %vm864, %v865, %v863
    %v867 = vrsqrt.pop %v476
    %v868 = vmul.f32 %v867, %v476
    %v869 = vmul.f32 %v868, %v867
    %v870 = vmul.f32 0.5, %v869
    %v871 = vsub.f32 1.5, %v870
    %v872 = vmul.f32 %v867, %v871
    %v873 = vmul.f32 %v476, %v872
    %vm874 = vcmp.eq.f32.partialorder %v476, inf
    %v875 = vsel %vm874, %v476, %v873
    %vm876 = vcmp.eq.f32.partialorder %v476, 0.0
    %v877 = vand.u32 %v476, 2147483648
    %v878 = vsel %vm876, %v877, %v875
    %v879 = vrsqrt.pop %v479
    %v880 = vmul.f32 %v879, %v479
    %v881 = vmul.f32 %v880, %v879
    %v882 = vmul.f32 0.5, %v881
    %v883 = vsub.f32 1.5, %v882
    %v884 = vmul.f32 %v879, %v883
    %v885 = vmul.f32 %v479, %v884
    %vm886 = vcmp.eq.f32.partialorder %v479, inf
    %v887 = vsel %vm886, %v479, %v885
    %vm888 = vcmp.eq.f32.partialorder %v479, 0.0
    %v889 = vand.u32 %v479, 2147483648
    %v890 = vsel %vm888, %v889, %v887
    %v891 = vrsqrt.pop %v482
    %v892 = vmul.f32 %v891, %v482
    %v893 = vmul.f32 %v892, %v891
    %v894 = vmul.f32 0.5, %v893
    %v895 = vsub.f32 1.5, %v894
    %v896 = vmul.f32 %v891, %v895
    %v897 = vmul.f32 %v482, %v896
    %vm898 = vcmp.eq.f32.partialorder %v482, inf
    %v899 = vsel %vm898, %v482, %v897
    %vm900 = vcmp.eq.f32.partialorder %v482, 0.0
    %v901 = vand.u32 %v482, 2147483648
    %v902 = vsel %vm900, %v901, %v899
    %v903 = vrsqrt.pop %v485
    %v904 = vmul.f32 %v903, %v485
    %v905 = vmul.f32 %v904, %v903
    %v906 = vmul.f32 0.5, %v905
    %v907 = vsub.f32 1.5, %v906
    %v908 = vmul.f32 %v903, %v907
    %v909 = vmul.f32 %v485, %v908
    %vm910 = vcmp.eq.f32.partialorder %v485, inf
    %v911 = vsel %vm910, %v485, %v909
    %vm912 = vcmp.eq.f32.partialorder %v485, 0.0
    %v913 = vand.u32 %v485, 2147483648
    %v914 = vsel %vm912, %v913, %v911
    %v915 = vrsqrt.pop %v488
    %v916 = vmul.f32 %v915, %v488
    %v917 = vmul.f32 %v916, %v915
    %v918 = vmul.f32 0.5, %v917
    %v919 = vsub.f32 1.5, %v918
    %v920 = vmul.f32 %v915, %v919
    %v921 = vmul.f32 %v488, %v920
    %vm922 = vcmp.eq.f32.partialorder %v488, inf
    %v923 = vsel %vm922, %v488, %v921
    %vm924 = vcmp.eq.f32.partialorder %v488, 0.0
    %v925 = vand.u32 %v488, 2147483648
    %v926 = vsel %vm924, %v925, %v923
    %v927 = vrsqrt.pop %v491
    %v928 = vmul.f32 %v927, %v491
    %v929 = vmul.f32 %v928, %v927
    %v930 = vmul.f32 0.5, %v929
    %v931 = vsub.f32 1.5, %v930
    %v932 = vmul.f32 %v927, %v931
    %v933 = vmul.f32 %v491, %v932
    %vm934 = vcmp.eq.f32.partialorder %v491, inf
    %v935 = vsel %vm934, %v491, %v933
    %vm936 = vcmp.eq.f32.partialorder %v491, 0.0
    %v937 = vand.u32 %v491, 2147483648
    %v938 = vsel %vm936, %v937, %v935
    %v939 = vrsqrt.pop %v494
    %v940 = vmul.f32 %v939, %v494
    %v941 = vmul.f32 %v940, %v939
    %v942 = vmul.f32 0.5, %v941
    %v943 = vsub.f32 1.5, %v942
    %v944 = vmul.f32 %v939, %v943
    %v945 = vmul.f32 %v494, %v944
    %vm946 = vcmp.eq.f32.partialorder %v494, inf
    %v947 = vsel %vm946, %v494, %v945
    %vm948 = vcmp.eq.f32.partialorder %v494, 0.0
    %v949 = vand.u32 %v494, 2147483648
    %v950 = vsel %vm948, %v949, %v947
    %v951 = vrsqrt.pop %v497
    %v952 = vmul.f32 %v951, %v497
    %v953 = vmul.f32 %v952, %v951
    %v954 = vmul.f32 0.5, %v953
    %v955 = vsub.f32 1.5, %v954
    %v956 = vmul.f32 %v951, %v955
    %v957 = vmul.f32 %v497, %v956
    %vm958 = vcmp.eq.f32.partialorder %v497, inf
    %v959 = vsel %vm958, %v497, %v957
    %vm960 = vcmp.eq.f32.partialorder %v497, 0.0
    %v961 = vand.u32 %v497, 2147483648
    %v962 = vsel %vm960, %v961, %v959
    %v963 = vrsqrt.pop %v500
    %v964 = vmul.f32 %v963, %v500
    %v965 = vmul.f32 %v964, %v963
    %v966 = vmul.f32 0.5, %v965
    %v967 = vsub.f32 1.5, %v966
    %v968 = vmul.f32 %v963, %v967
    %v969 = vmul.f32 %v500, %v968
    %vm970 = vcmp.eq.f32.partialorder %v500, inf
    %v971 = vsel %vm970, %v500, %v969
    %vm972 = vcmp.eq.f32.partialorder %v500, 0.0
    %v973 = vand.u32 %v500, 2147483648
    %v974 = vsel %vm972, %v973, %v971
    %v975 = vrsqrt.pop %v503
    %v976 = vmul.f32 %v975, %v503
    %v977 = vmul.f32 %v976, %v975
    %v978 = vmul.f32 0.5, %v977
    %v979 = vsub.f32 1.5, %v978
    %v980 = vmul.f32 %v975, %v979
    %v981 = vmul.f32 %v503, %v980
    %vm982 = vcmp.eq.f32.partialorder %v503, inf
    %v983 = vsel %vm982, %v503, %v981
    %vm984 = vcmp.eq.f32.partialorder %v503, 0.0
    %v985 = vand.u32 %v503, 2147483648
    %v986 = vsel %vm984, %v985, %v983
    %v987 = vrsqrt.pop %v506
    %v988 = vmul.f32 %v987, %v506
    %v989 = vmul.f32 %v988, %v987
    %v990 = vmul.f32 0.5, %v989
    %v991 = vsub.f32 1.5, %v990
    %v992 = vmul.f32 %v987, %v991
    %v993 = vmul.f32 %v506, %v992
    %vm994 = vcmp.eq.f32.partialorder %v506, inf
    %v995 = vsel %vm994, %v506, %v993
    %vm996 = vcmp.eq.f32.partialorder %v506, 0.0
    %v997 = vand.u32 %v506, 2147483648
    %v998 = vsel %vm996, %v997, %v995
    %v999 = vrsqrt.pop %v509
    %v1000 = vmul.f32 %v999, %v509
    %v1001 = vmul.f32 %v1000, %v999
    %v1002 = vmul.f32 0.5, %v1001
    %v1003 = vsub.f32 1.5, %v1002
    %v1004 = vmul.f32 %v999, %v1003
    %v1005 = vmul.f32 %v509, %v1004
    %vm1006 = vcmp.eq.f32.partialorder %v509, inf
    %v1007 = vsel %vm1006, %v509, %v1005
    %vm1008 = vcmp.eq.f32.partialorder %v509, 0.0
    %v1009 = vand.u32 %v509, 2147483648
    %v1010 = vsel %vm1008, %v1009, %v1007
    %v1011 = vrsqrt.pop %v512
    %v1012 = vmul.f32 %v1011, %v512
    %v1013 = vmul.f32 %v1012, %v1011
    %v1014 = vmul.f32 0.5, %v1013
    %v1015 = vsub.f32 1.5, %v1014
    %v1016 = vmul.f32 %v1011, %v1015
    %v1017 = vmul.f32 %v512, %v1016
    %vm1018 = vcmp.eq.f32.partialorder %v512, inf
    %v1019 = vsel %vm1018, %v512, %v1017
    %vm1020 = vcmp.eq.f32.partialorder %v512, 0.0
    %v1021 = vand.u32 %v512, 2147483648
    %v1022 = vsel %vm1020, %v1021, %v1019
    %v1023 = vrsqrt.pop %v515
    %v1024 = vmul.f32 %v1023, %v515
    %v1025 = vmul.f32 %v1024, %v1023
    %v1026 = vmul.f32 0.5, %v1025
    %v1027 = vsub.f32 1.5, %v1026
    %v1028 = vmul.f32 %v1023, %v1027
    %v1029 = vmul.f32 %v515, %v1028
    %vm1030 = vcmp.eq.f32.partialorder %v515, inf
    %v1031 = vsel %vm1030, %v515, %v1029
    %vm1032 = vcmp.eq.f32.partialorder %v515, 0.0
    %v1033 = vand.u32 %v515, 2147483648
    %v1034 = vsel %vm1032, %v1033, %v1031
    %v1035 = vrsqrt.pop %v518
    %v1036 = vmul.f32 %v1035, %v518
    %v1037 = vmul.f32 %v1036, %v1035
    %v1038 = vmul.f32 0.5, %v1037
    %v1039 = vsub.f32 1.5, %v1038
    %v1040 = vmul.f32 %v1035, %v1039
    %v1041 = vmul.f32 %v518, %v1040
    %vm1042 = vcmp.eq.f32.partialorder %v518, inf
    %v1043 = vsel %vm1042, %v518, %v1041
    %vm1044 = vcmp.eq.f32.partialorder %v518, 0.0
    %v1045 = vand.u32 %v518, 2147483648
    %v1046 = vsel %vm1044, %v1045, %v1043
    %v1047 = vrsqrt.pop %v521
    %v1048 = vmul.f32 %v1047, %v521
    %v1049 = vmul.f32 %v1048, %v1047
    %v1050 = vmul.f32 0.5, %v1049
    %v1051 = vsub.f32 1.5, %v1050
    %v1052 = vmul.f32 %v1047, %v1051
    %v1053 = vmul.f32 %v521, %v1052
    %vm1054 = vcmp.eq.f32.partialorder %v521, inf
    %v1055 = vsel %vm1054, %v521, %v1053
    %vm1056 = vcmp.eq.f32.partialorder %v521, 0.0
    %v1057 = vand.u32 %v521, 2147483648
    %v1058 = vsel %vm1056, %v1057, %v1055
    %v1059 = vrsqrt.pop %v524
    %v1060 = vmul.f32 %v1059, %v524
    %v1061 = vmul.f32 %v1060, %v1059
    %v1062 = vmul.f32 0.5, %v1061
    %v1063 = vsub.f32 1.5, %v1062
    %v1064 = vmul.f32 %v1059, %v1063
    %v1065 = vmul.f32 %v524, %v1064
    %vm1066 = vcmp.eq.f32.partialorder %v524, inf
    %v1067 = vsel %vm1066, %v524, %v1065
    %vm1068 = vcmp.eq.f32.partialorder %v524, 0.0
    %v1069 = vand.u32 %v524, 2147483648
    %v1070 = vsel %vm1068, %v1069, %v1067
    %v1071 = vrsqrt.pop %v527
    %v1072 = vmul.f32 %v1071, %v527
    %v1073 = vmul.f32 %v1072, %v1071
    %v1074 = vmul.f32 0.5, %v1073
    %v1075 = vsub.f32 1.5, %v1074
    %v1076 = vmul.f32 %v1071, %v1075
    %v1077 = vmul.f32 %v527, %v1076
    %vm1078 = vcmp.eq.f32.partialorder %v527, inf
    %v1079 = vsel %vm1078, %v527, %v1077
    %vm1080 = vcmp.eq.f32.partialorder %v527, 0.0
    %v1081 = vand.u32 %v527, 2147483648
    %v1082 = vsel %vm1080, %v1081, %v1079
    %v1083 = vrsqrt.pop %v530
    %v1084 = vmul.f32 %v1083, %v530
    %v1085 = vmul.f32 %v1084, %v1083
    %v1086 = vmul.f32 0.5, %v1085
    %v1087 = vsub.f32 1.5, %v1086
    %v1088 = vmul.f32 %v1083, %v1087
    %v1089 = vmul.f32 %v530, %v1088
    %vm1090 = vcmp.eq.f32.partialorder %v530, inf
    %v1091 = vsel %vm1090, %v530, %v1089
    %vm1092 = vcmp.eq.f32.partialorder %v530, 0.0
    %v1093 = vand.u32 %v530, 2147483648
    %v1094 = vsel %vm1092, %v1093, %v1091
    %v1095 = vrsqrt.pop %v533
    %v1096 = vmul.f32 %v1095, %v533
    %v1097 = vmul.f32 %v1096, %v1095
    %v1098 = vmul.f32 0.5, %v1097
    %v1099 = vsub.f32 1.5, %v1098
    %v1100 = vmul.f32 %v1095, %v1099
    %v1101 = vmul.f32 %v533, %v1100
    %vm1102 = vcmp.eq.f32.partialorder %v533, inf
    %v1103 = vsel %vm1102, %v533, %v1101
    %vm1104 = vcmp.eq.f32.partialorder %v533, 0.0
    %v1105 = vand.u32 %v533, 2147483648
    %v1106 = vsel %vm1104, %v1105, %v1103
    %v1107 = vrsqrt.pop %v536
    %v1108 = vmul.f32 %v1107, %v536
    %v1109 = vmul.f32 %v1108, %v1107
    %v1110 = vmul.f32 0.5, %v1109
    %v1111 = vsub.f32 1.5, %v1110
    %v1112 = vmul.f32 %v1107, %v1111
    %v1113 = vmul.f32 %v536, %v1112
    %vm1114 = vcmp.eq.f32.partialorder %v536, inf
    %v1115 = vsel %vm1114, %v536, %v1113
    %vm1116 = vcmp.eq.f32.partialorder %v536, 0.0
    %v1117 = vand.u32 %v536, 2147483648
    %v1118 = vsel %vm1116, %v1117, %v1115
    %v1119 = vrsqrt.pop %v539
    %v1120 = vmul.f32 %v1119, %v539
    %v1121 = vmul.f32 %v1120, %v1119
    %v1122 = vmul.f32 0.5, %v1121
    %v1123 = vsub.f32 1.5, %v1122
    %v1124 = vmul.f32 %v1119, %v1123
    %v1125 = vmul.f32 %v539, %v1124
    %vm1126 = vcmp.eq.f32.partialorder %v539, inf
    %v1127 = vsel %vm1126, %v539, %v1125
    %vm1128 = vcmp.eq.f32.partialorder %v539, 0.0
    %v1129 = vand.u32 %v539, 2147483648
    %v1130 = vsel %vm1128, %v1129, %v1127
    %v1131 = vrsqrt.pop %v542
    %v1132 = vmul.f32 %v1131, %v542
    %v1133 = vmul.f32 %v1132, %v1131
    %v1134 = vmul.f32 0.5, %v1133
    %v1135 = vsub.f32 1.5, %v1134
    %v1136 = vmul.f32 %v1131, %v1135
    %v1137 = vmul.f32 %v542, %v1136
    %vm1138 = vcmp.eq.f32.partialorder %v542, inf
    %v1139 = vsel %vm1138, %v542, %v1137
    %vm1140 = vcmp.eq.f32.partialorder %v542, 0.0
    %v1141 = vand.u32 %v542, 2147483648
    %v1142 = vsel %vm1140, %v1141, %v1139
    %v1143 = vrsqrt.pop %v545
    %v1144 = vmul.f32 %v1143, %v545
    %v1145 = vmul.f32 %v1144, %v1143
    %v1146 = vmul.f32 0.5, %v1145
    %v1147 = vsub.f32 1.5, %v1146
    %v1148 = vmul.f32 %v1143, %v1147
    %v1149 = vmul.f32 %v545, %v1148
    %vm1150 = vcmp.eq.f32.partialorder %v545, inf
    %v1151 = vsel %vm1150, %v545, %v1149
    %vm1152 = vcmp.eq.f32.partialorder %v545, 0.0
    %v1153 = vand.u32 %v545, 2147483648
    %v1154 = vsel %vm1152, %v1153, %v1151
    %v1155 = vrsqrt.pop %v548
    %v1156 = vmul.f32 %v1155, %v548
    %v1157 = vmul.f32 %v1156, %v1155
    %v1158 = vmul.f32 0.5, %v1157
    %v1159 = vsub.f32 1.5, %v1158
    %v1160 = vmul.f32 %v1155, %v1159
    %v1161 = vmul.f32 %v548, %v1160
    %vm1162 = vcmp.eq.f32.partialorder %v548, inf
    %v1163 = vsel %vm1162, %v548, %v1161
    %vm1164 = vcmp.eq.f32.partialorder %v548, 0.0
    %v1165 = vand.u32 %v548, 2147483648
    %v1166 = vsel %vm1164, %v1165, %v1163
    %v1167 = vrsqrt.pop %v551
    %v1168 = vmul.f32 %v1167, %v551
    %v1169 = vmul.f32 %v1168, %v1167
    %v1170 = vmul.f32 0.5, %v1169
    %v1171 = vsub.f32 1.5, %v1170
    %v1172 = vmul.f32 %v1167, %v1171
    %v1173 = vmul.f32 %v551, %v1172
    %vm1174 = vcmp.eq.f32.partialorder %v551, inf
    %v1175 = vsel %vm1174, %v551, %v1173
    %vm1176 = vcmp.eq.f32.partialorder %v551, 0.0
    %v1177 = vand.u32 %v551, 2147483648
    %v1178 = vsel %vm1176, %v1177, %v1175
    %v1179 = vrsqrt.pop %v554
    %v1180 = vmul.f32 %v1179, %v554
    %v1181 = vmul.f32 %v1180, %v1179
    %v1182 = vmul.f32 0.5, %v1181
    %v1183 = vsub.f32 1.5, %v1182
    %v1184 = vmul.f32 %v1179, %v1183
    %v1185 = vmul.f32 %v554, %v1184
    %vm1186 = vcmp.eq.f32.partialorder %v554, inf
    %v1187 = vsel %vm1186, %v554, %v1185
    %vm1188 = vcmp.eq.f32.partialorder %v554, 0.0
    %v1189 = vand.u32 %v554, 2147483648
    %v1190 = vsel %vm1188, %v1189, %v1187
    %v1191 = vrsqrt.pop %v557
    %v1192 = vmul.f32 %v1191, %v557
    %v1193 = vmul.f32 %v1192, %v1191
    %v1194 = vmul.f32 0.5, %v1193
    %v1195 = vsub.f32 1.5, %v1194
    %v1196 = vmul.f32 %v1191, %v1195
    %v1197 = vmul.f32 %v557, %v1196
    %vm1198 = vcmp.eq.f32.partialorder %v557, inf
    %v1199 = vsel %vm1198, %v557, %v1197
    %vm1200 = vcmp.eq.f32.partialorder %v557, 0.0
    %v1201 = vand.u32 %v557, 2147483648
    %v1202 = vsel %vm1200, %v1201, %v1199
    %v1203 = vrsqrt.pop %v560
    %v1204 = vmul.f32 %v1203, %v560
    %v1205 = vmul.f32 %v1204, %v1203
    %v1206 = vmul.f32 0.5, %v1205
    %v1207 = vsub.f32 1.5, %v1206
    %v1208 = vmul.f32 %v1203, %v1207
    %v1209 = vmul.f32 %v560, %v1208
    %vm1210 = vcmp.eq.f32.partialorder %v560, inf
    %v1211 = vsel %vm1210, %v560, %v1209
    %vm1212 = vcmp.eq.f32.partialorder %v560, 0.0
    %v1213 = vand.u32 %v560, 2147483648
    %v1214 = vsel %vm1212, %v1213, %v1211
    %v1215 = vrsqrt.pop %v563
    %v1216 = vmul.f32 %v1215, %v563
    %v1217 = vmul.f32 %v1216, %v1215
    %v1218 = vmul.f32 0.5, %v1217
    %v1219 = vsub.f32 1.5, %v1218
    %v1220 = vmul.f32 %v1215, %v1219
    %v1221 = vmul.f32 %v563, %v1220
    %vm1222 = vcmp.eq.f32.partialorder %v563, inf
    %v1223 = vsel %vm1222, %v563, %v1221
    %vm1224 = vcmp.eq.f32.partialorder %v563, 0.0
    %v1225 = vand.u32 %v563, 2147483648
    %v1226 = vsel %vm1224, %v1225, %v1223
    %v1227 = vrsqrt.pop %v566
    %v1228 = vmul.f32 %v1227, %v566
    %v1229 = vmul.f32 %v1228, %v1227
    %v1230 = vmul.f32 0.5, %v1229
    %v1231 = vsub.f32 1.5, %v1230
    %v1232 = vmul.f32 %v1227, %v1231
    %v1233 = vmul.f32 %v566, %v1232
    %vm1234 = vcmp.eq.f32.partialorder %v566, inf
    %v1235 = vsel %vm1234, %v566, %v1233
    %vm1236 = vcmp.eq.f32.partialorder %v566, 0.0
    %v1237 = vand.u32 %v566, 2147483648
    %v1238 = vsel %vm1236, %v1237, %v1235
    %v1239 = vrsqrt.pop %v569
    %v1240 = vmul.f32 %v1239, %v569
    %v1241 = vmul.f32 %v1240, %v1239
    %v1242 = vmul.f32 0.5, %v1241
    %v1243 = vsub.f32 1.5, %v1242
    %v1244 = vmul.f32 %v1239, %v1243
    %v1245 = vmul.f32 %v569, %v1244
    %vm1246 = vcmp.eq.f32.partialorder %v569, inf
    %v1247 = vsel %vm1246, %v569, %v1245
    %vm1248 = vcmp.eq.f32.partialorder %v569, 0.0
    %v1249 = vand.u32 %v569, 2147483648
    %v1250 = vsel %vm1248, %v1249, %v1247
    %v1251 = vrsqrt.pop %v572
    %v1252 = vmul.f32 %v1251, %v572
    %v1253 = vmul.f32 %v1252, %v1251
    %v1254 = vmul.f32 0.5, %v1253
    %v1255 = vsub.f32 1.5, %v1254
    %v1256 = vmul.f32 %v1251, %v1255
    %v1257 = vmul.f32 %v572, %v1256
    %vm1258 = vcmp.eq.f32.partialorder %v572, inf
    %v1259 = vsel %vm1258, %v572, %v1257
    %vm1260 = vcmp.eq.f32.partialorder %v572, 0.0
    %v1261 = vand.u32 %v572, 2147483648
    %v1262 = vsel %vm1260, %v1261, %v1259
    %v1263 = vrsqrt.pop %v575
    %v1264 = vmul.f32 %v1263, %v575
    %v1265 = vmul.f32 %v1264, %v1263
    %v1266 = vmul.f32 0.5, %v1265
    %v1267 = vsub.f32 1.5, %v1266
    %v1268 = vmul.f32 %v1263, %v1267
    %v1269 = vmul.f32 %v575, %v1268
    %vm1270 = vcmp.eq.f32.partialorder %v575, inf
    %v1271 = vsel %vm1270, %v575, %v1269
    %vm1272 = vcmp.eq.f32.partialorder %v575, 0.0
    %v1273 = vand.u32 %v575, 2147483648
    %v1274 = vsel %vm1272, %v1273, %v1271
    %v1275 = vrsqrt.pop %v578
    %v1276 = vmul.f32 %v1275, %v578
    %v1277 = vmul.f32 %v1276, %v1275
    %v1278 = vmul.f32 0.5, %v1277
    %v1279 = vsub.f32 1.5, %v1278
    %v1280 = vmul.f32 %v1275, %v1279
    %v1281 = vmul.f32 %v578, %v1280
    %vm1282 = vcmp.eq.f32.partialorder %v578, inf
    %v1283 = vsel %vm1282, %v578, %v1281
    %vm1284 = vcmp.eq.f32.partialorder %v578, 0.0
    %v1285 = vand.u32 %v578, 2147483648
    %v1286 = vsel %vm1284, %v1285, %v1283
    %v1287 = vrsqrt.pop %v581
    %v1288 = vmul.f32 %v1287, %v581
    %v1289 = vmul.f32 %v1288, %v1287
    %v1290 = vmul.f32 0.5, %v1289
    %v1291 = vsub.f32 1.5, %v1290
    %v1292 = vmul.f32 %v1287, %v1291
    %v1293 = vmul.f32 %v581, %v1292
    %vm1294 = vcmp.eq.f32.partialorder %v581, inf
    %v1295 = vsel %vm1294, %v581, %v1293
    %vm1296 = vcmp.eq.f32.partialorder %v581, 0.0
    %v1297 = vand.u32 %v581, 2147483648
    %v1298 = vsel %vm1296, %v1297, %v1295
    %v1299 = vrsqrt.pop %v584
    %v1300 = vmul.f32 %v1299, %v584
    %v1301 = vmul.f32 %v1300, %v1299
    %v1302 = vmul.f32 0.5, %v1301
    %v1303 = vsub.f32 1.5, %v1302
    %v1304 = vmul.f32 %v1299, %v1303
    %v1305 = vmul.f32 %v584, %v1304
    %vm1306 = vcmp.eq.f32.partialorder %v584, inf
    %v1307 = vsel %vm1306, %v584, %v1305
    %vm1308 = vcmp.eq.f32.partialorder %v584, 0.0
    %v1309 = vand.u32 %v584, 2147483648
    %v1310 = vsel %vm1308, %v1309, %v1307
    %v1311 = vrsqrt.pop %v587
    %v1312 = vmul.f32 %v1311, %v587
    %v1313 = vmul.f32 %v1312, %v1311
    %v1314 = vmul.f32 0.5, %v1313
    %v1315 = vsub.f32 1.5, %v1314
    %v1316 = vmul.f32 %v1311, %v1315
    %v1317 = vmul.f32 %v587, %v1316
    %vm1318 = vcmp.eq.f32.partialorder %v587, inf
    %v1319 = vsel %vm1318, %v587, %v1317
    %vm1320 = vcmp.eq.f32.partialorder %v587, 0.0
    %v1321 = vand.u32 %v587, 2147483648
    %v1322 = vsel %vm1320, %v1321, %v1319
    %v1323 = vrsqrt.pop %v590
    %v1324 = vmul.f32 %v1323, %v590
    %v1325 = vmul.f32 %v1324, %v1323
    %v1326 = vmul.f32 0.5, %v1325
    %v1327 = vsub.f32 1.5, %v1326
    %v1328 = vmul.f32 %v1323, %v1327
    %v1329 = vmul.f32 %v590, %v1328
    %vm1330 = vcmp.eq.f32.partialorder %v590, inf
    %v1331 = vsel %vm1330, %v590, %v1329
    %vm1332 = vcmp.eq.f32.partialorder %v590, 0.0
    %v1333 = vand.u32 %v590, 2147483648
    %v1334 = vsel %vm1332, %v1333, %v1331
    %v1335 = vrsqrt.pop %v593
    %v1336 = vmul.f32 %v1335, %v593
    %v1337 = vmul.f32 %v1336, %v1335
    %v1338 = vmul.f32 0.5, %v1337
    %v1339 = vsub.f32 1.5, %v1338
    %v1340 = vmul.f32 %v1335, %v1339
    %v1341 = vmul.f32 %v593, %v1340
    %vm1342 = vcmp.eq.f32.partialorder %v593, inf
    %v1343 = vsel %vm1342, %v593, %v1341
    %vm1344 = vcmp.eq.f32.partialorder %v593, 0.0
    %v1345 = vand.u32 %v593, 2147483648
    %v1346 = vsel %vm1344, %v1345, %v1343
    %v1347 = vrsqrt.pop %v596
    %v1348 = vmul.f32 %v1347, %v596
    %v1349 = vmul.f32 %v1348, %v1347
    %v1350 = vmul.f32 0.5, %v1349
    %v1351 = vsub.f32 1.5, %v1350
    %v1352 = vmul.f32 %v1347, %v1351
    %v1353 = vmul.f32 %v596, %v1352
    %vm1354 = vcmp.eq.f32.partialorder %v596, inf
    %v1355 = vsel %vm1354, %v596, %v1353
    %vm1356 = vcmp.eq.f32.partialorder %v596, 0.0
    %v1357 = vand.u32 %v596, 2147483648
    %v1358 = vsel %vm1356, %v1357, %v1355
    %v1359 = vrsqrt.pop %v599
    %v1360 = vmul.f32 %v1359, %v599
    %v1361 = vmul.f32 %v1360, %v1359
    %v1362 = vmul.f32 0.5, %v1361
    %v1363 = vsub.f32 1.5, %v1362
    %v1364 = vmul.f32 %v1359, %v1363
    %v1365 = vmul.f32 %v599, %v1364
    %vm1366 = vcmp.eq.f32.partialorder %v599, inf
    %v1367 = vsel %vm1366, %v599, %v1365
    %vm1368 = vcmp.eq.f32.partialorder %v599, 0.0
    %v1369 = vand.u32 %v599, 2147483648
    %v1370 = vsel %vm1368, %v1369, %v1367
    %v1371 = vrsqrt.pop %v602
    %v1372 = vmul.f32 %v1371, %v602
    %v1373 = vmul.f32 %v1372, %v1371
    %v1374 = vmul.f32 0.5, %v1373
    %v1375 = vsub.f32 1.5, %v1374
    %v1376 = vmul.f32 %v1371, %v1375
    %v1377 = vmul.f32 %v602, %v1376
    %vm1378 = vcmp.eq.f32.partialorder %v602, inf
    %v1379 = vsel %vm1378, %v602, %v1377
    %vm1380 = vcmp.eq.f32.partialorder %v602, 0.0
    %v1381 = vand.u32 %v602, 2147483648
    %v1382 = vsel %vm1380, %v1381, %v1379
    %v1383 = vrsqrt.pop %v605
    %v1384 = vmul.f32 %v1383, %v605
    %v1385 = vmul.f32 %v1384, %v1383
    %v1386 = vmul.f32 0.5, %v1385
    %v1387 = vsub.f32 1.5, %v1386
    %v1388 = vmul.f32 %v1383, %v1387
    %v1389 = vmul.f32 %v605, %v1388
    %vm1390 = vcmp.eq.f32.partialorder %v605, inf
    %v1391 = vsel %vm1390, %v605, %v1389
    %vm1392 = vcmp.eq.f32.partialorder %v605, 0.0
    %v1393 = vand.u32 %v605, 2147483648
    %v1394 = vsel %vm1392, %v1393, %v1391
    %v1395 = vrsqrt.pop %v608
    %v1396 = vmul.f32 %v1395, %v608
    %v1397 = vmul.f32 %v1396, %v1395
    %v1398 = vmul.f32 0.5, %v1397
    %v1399 = vsub.f32 1.5, %v1398
    %v1400 = vmul.f32 %v1395, %v1399
    %v1401 = vmul.f32 %v608, %v1400
    %vm1402 = vcmp.eq.f32.partialorder %v608, inf
    %v1403 = vsel %vm1402, %v608, %v1401
    %vm1404 = vcmp.eq.f32.partialorder %v608, 0.0
    %v1405 = vand.u32 %v608, 2147483648
    %v1406 = vsel %vm1404, %v1405, %v1403
    %v1407 = vrsqrt.pop %v611
    %v1408 = vmul.f32 %v1407, %v611
    %v1409 = vmul.f32 %v1408, %v1407
    %v1410 = vmul.f32 0.5, %v1409
    %v1411 = vsub.f32 1.5, %v1410
    %v1412 = vmul.f32 %v1407, %v1411
    %v1413 = vmul.f32 %v611, %v1412
    %vm1414 = vcmp.eq.f32.partialorder %v611, inf
    %v1415 = vsel %vm1414, %v611, %v1413
    %vm1416 = vcmp.eq.f32.partialorder %v611, 0.0
    %v1417 = vand.u32 %v611, 2147483648
    %v1418 = vsel %vm1416, %v1417, %v1415
    %v1419 = vrsqrt.pop %v614
    %v1420 = vmul.f32 %v1419, %v614
    %v1421 = vmul.f32 %v1420, %v1419
    %v1422 = vmul.f32 0.5, %v1421
    %v1423 = vsub.f32 1.5, %v1422
    %v1424 = vmul.f32 %v1419, %v1423
    %v1425 = vmul.f32 %v614, %v1424
    %vm1426 = vcmp.eq.f32.partialorder %v614, inf
    %v1427 = vsel %vm1426, %v614, %v1425
    %vm1428 = vcmp.eq.f32.partialorder %v614, 0.0
    %v1429 = vand.u32 %v614, 2147483648
    %v1430 = vsel %vm1428, %v1429, %v1427
    %v1431 = vrsqrt.pop %v617
    %v1432 = vmul.f32 %v1431, %v617
    %v1433 = vmul.f32 %v1432, %v1431
    %v1434 = vmul.f32 0.5, %v1433
    %v1435 = vsub.f32 1.5, %v1434
    %v1436 = vmul.f32 %v1431, %v1435
    %v1437 = vmul.f32 %v617, %v1436
    %vm1438 = vcmp.eq.f32.partialorder %v617, inf
    %v1439 = vsel %vm1438, %v617, %v1437
    %vm1440 = vcmp.eq.f32.partialorder %v617, 0.0
    %v1441 = vand.u32 %v617, 2147483648
    %v1442 = vsel %vm1440, %v1441, %v1439
    %v1443 = vrsqrt.pop %v620
    %v1444 = vmul.f32 %v1443, %v620
    %v1445 = vmul.f32 %v1444, %v1443
    %v1446 = vmul.f32 0.5, %v1445
    %v1447 = vsub.f32 1.5, %v1446
    %v1448 = vmul.f32 %v1443, %v1447
    %v1449 = vmul.f32 %v620, %v1448
    %vm1450 = vcmp.eq.f32.partialorder %v620, inf
    %v1451 = vsel %vm1450, %v620, %v1449
    %vm1452 = vcmp.eq.f32.partialorder %v620, 0.0
    %v1453 = vand.u32 %v620, 2147483648
    %v1454 = vsel %vm1452, %v1453, %v1451
    %v1455 = vrsqrt.pop %v623
    %v1456 = vmul.f32 %v1455, %v623
    %v1457 = vmul.f32 %v1456, %v1455
    %v1458 = vmul.f32 0.5, %v1457
    %v1459 = vsub.f32 1.5, %v1458
    %v1460 = vmul.f32 %v1455, %v1459
    %v1461 = vmul.f32 %v623, %v1460
    %vm1462 = vcmp.eq.f32.partialorder %v623, inf
    %v1463 = vsel %vm1462, %v623, %v1461
    %vm1464 = vcmp.eq.f32.partialorder %v623, 0.0
    %v1465 = vand.u32 %v623, 2147483648
    %v1466 = vsel %vm1464, %v1465, %v1463
    %v1467 = vrsqrt.pop %v626
    %v1468 = vmul.f32 %v1467, %v626
    %v1469 = vmul.f32 %v1468, %v1467
    %v1470 = vmul.f32 0.5, %v1469
    %v1471 = vsub.f32 1.5, %v1470
    %v1472 = vmul.f32 %v1467, %v1471
    %v1473 = vmul.f32 %v626, %v1472
    %vm1474 = vcmp.eq.f32.partialorder %v626, inf
    %v1475 = vsel %vm1474, %v626, %v1473
    %vm1476 = vcmp.eq.f32.partialorder %v626, 0.0
    %v1477 = vand.u32 %v626, 2147483648
    %v1478 = vsel %vm1476, %v1477, %v1475
    %v1479 = vrsqrt.pop %v629
    %v1480 = vmul.f32 %v1479, %v629
    %v1481 = vmul.f32 %v1480, %v1479
    %v1482 = vmul.f32 0.5, %v1481
    %v1483 = vsub.f32 1.5, %v1482
    %v1484 = vmul.f32 %v1479, %v1483
    %v1485 = vmul.f32 %v629, %v1484
    %vm1486 = vcmp.eq.f32.partialorder %v629, inf
    %v1487 = vsel %vm1486, %v629, %v1485
    %vm1488 = vcmp.eq.f32.partialorder %v629, 0.0
    %v1489 = vand.u32 %v629, 2147483648
    %v1490 = vsel %vm1488, %v1489, %v1487
    %v1491 = vrsqrt.pop %v632
    %v1492 = vmul.f32 %v1491, %v632
    %v1493 = vmul.f32 %v1492, %v1491
    %v1494 = vmul.f32 0.5, %v1493
    %v1495 = vsub.f32 1.5, %v1494
    %v1496 = vmul.f32 %v1491, %v1495
    %v1497 = vmul.f32 %v632, %v1496
    %vm1498 = vcmp.eq.f32.partialorder %v632, inf
    %v1499 = vsel %vm1498, %v632, %v1497
    %vm1500 = vcmp.eq.f32.partialorder %v632, 0.0
    %v1501 = vand.u32 %v632, 2147483648
    %v1502 = vsel %vm1500, %v1501, %v1499
    %v1503 = vrsqrt.pop %v635
    %v1504 = vmul.f32 %v1503, %v635
    %v1505 = vmul.f32 %v1504, %v1503
    %v1506 = vmul.f32 0.5, %v1505
    %v1507 = vsub.f32 1.5, %v1506
    %v1508 = vmul.f32 %v1503, %v1507
    %v1509 = vmul.f32 %v635, %v1508
    %vm1510 = vcmp.eq.f32.partialorder %v635, inf
    %v1511 = vsel %vm1510, %v635, %v1509
    %vm1512 = vcmp.eq.f32.partialorder %v635, 0.0
    %v1513 = vand.u32 %v635, 2147483648
    %v1514 = vsel %vm1512, %v1513, %v1511
    %v1515 = vrsqrt.pop %v638
    %v1516 = vmul.f32 %v1515, %v638
    %v1517 = vmul.f32 %v1516, %v1515
    %v1518 = vmul.f32 0.5, %v1517
    %v1519 = vsub.f32 1.5, %v1518
    %v1520 = vmul.f32 %v1515, %v1519
    %v1521 = vmul.f32 %v638, %v1520
    %vm1522 = vcmp.eq.f32.partialorder %v638, inf
    %v1523 = vsel %vm1522, %v638, %v1521
    %vm1524 = vcmp.eq.f32.partialorder %v638, 0.0
    %v1525 = vand.u32 %v638, 2147483648
    %v1526 = vsel %vm1524, %v1525, %v1523
    %v1527 = vrsqrt.pop %v641
    %v1528 = vmul.f32 %v1527, %v641
    %v1529 = vmul.f32 %v1528, %v1527
    %v1530 = vmul.f32 0.5, %v1529
    %v1531 = vsub.f32 1.5, %v1530
    %v1532 = vmul.f32 %v1527, %v1531
    %v1533 = vmul.f32 %v641, %v1532
    %vm1534 = vcmp.eq.f32.partialorder %v641, inf
    %v1535 = vsel %vm1534, %v641, %v1533
    %vm1536 = vcmp.eq.f32.partialorder %v641, 0.0
    %v1537 = vand.u32 %v641, 2147483648
    %v1538 = vsel %vm1536, %v1537, %v1535
    %v1539 = vrsqrt.pop %v644
    %v1540 = vmul.f32 %v1539, %v644
    %v1541 = vmul.f32 %v1540, %v1539
    %v1542 = vmul.f32 0.5, %v1541
    %v1543 = vsub.f32 1.5, %v1542
    %v1544 = vmul.f32 %v1539, %v1543
    %v1545 = vmul.f32 %v644, %v1544
    %vm1546 = vcmp.eq.f32.partialorder %v644, inf
    %v1547 = vsel %vm1546, %v644, %v1545
    %vm1548 = vcmp.eq.f32.partialorder %v644, 0.0
    %v1549 = vand.u32 %v644, 2147483648
    %v1550 = vsel %vm1548, %v1549, %v1547
    %v1551 = vrsqrt.pop %v647
    %v1552 = vmul.f32 %v1551, %v647
    %v1553 = vmul.f32 %v1552, %v1551
    %v1554 = vmul.f32 0.5, %v1553
    %v1555 = vsub.f32 1.5, %v1554
    %v1556 = vmul.f32 %v1551, %v1555
    %v1557 = vmul.f32 %v647, %v1556
    %vm1558 = vcmp.eq.f32.partialorder %v647, inf
    %v1559 = vsel %vm1558, %v647, %v1557
    %vm1560 = vcmp.eq.f32.partialorder %v647, 0.0
    %v1561 = vand.u32 %v647, 2147483648
    %v1562 = vsel %vm1560, %v1561, %v1559
    %v1563 = vrsqrt.pop %v650
    %v1564 = vmul.f32 %v1563, %v650
    %v1565 = vmul.f32 %v1564, %v1563
    %v1566 = vmul.f32 0.5, %v1565
    %v1567 = vsub.f32 1.5, %v1566
    %v1568 = vmul.f32 %v1563, %v1567
    %v1569 = vmul.f32 %v650, %v1568
    %vm1570 = vcmp.eq.f32.partialorder %v650, inf
    %v1571 = vsel %vm1570, %v650, %v1569
    %vm1572 = vcmp.eq.f32.partialorder %v650, 0.0
    %v1573 = vand.u32 %v650, 2147483648
    %v1574 = vsel %vm1572, %v1573, %v1571
    %v1575 = vrsqrt.pop %v653
    %v1576 = vmul.f32 %v1575, %v653
    %v1577 = vmul.f32 %v1576, %v1575
    %v1578 = vmul.f32 0.5, %v1577
    %v1579 = vsub.f32 1.5, %v1578
    %v1580 = vmul.f32 %v1575, %v1579
    %v1581 = vmul.f32 %v653, %v1580
    %vm1582 = vcmp.eq.f32.partialorder %v653, inf
    %v1583 = vsel %vm1582, %v653, %v1581
    %vm1584 = vcmp.eq.f32.partialorder %v653, 0.0
    %v1585 = vand.u32 %v653, 2147483648
    %v1586 = vsel %vm1584, %v1585, %v1583
    %v1587 = vrsqrt.pop %v656
    %v1588 = vmul.f32 %v1587, %v656
    %v1589 = vmul.f32 %v1588, %v1587
    %v1590 = vmul.f32 0.5, %v1589
    %v1591 = vsub.f32 1.5, %v1590
    %v1592 = vmul.f32 %v1587, %v1591
    %v1593 = vmul.f32 %v656, %v1592
    %vm1594 = vcmp.eq.f32.partialorder %v656, inf
    %v1595 = vsel %vm1594, %v656, %v1593
    %vm1596 = vcmp.eq.f32.partialorder %v656, 0.0
    %v1597 = vand.u32 %v656, 2147483648
    %v1598 = vsel %vm1596, %v1597, %v1595
    %v1599 = vrsqrt.pop %v659
    %v1600 = vmul.f32 %v1599, %v659
    %v1601 = vmul.f32 %v1600, %v1599
    %v1602 = vmul.f32 0.5, %v1601
    %v1603 = vsub.f32 1.5, %v1602
    %v1604 = vmul.f32 %v1599, %v1603
    %v1605 = vmul.f32 %v659, %v1604
    %vm1606 = vcmp.eq.f32.partialorder %v659, inf
    %v1607 = vsel %vm1606, %v659, %v1605
    %vm1608 = vcmp.eq.f32.partialorder %v659, 0.0
    %v1609 = vand.u32 %v659, 2147483648
    %v1610 = vsel %vm1608, %v1609, %v1607
    %v1611 = vrsqrt.pop %v662
    %v1612 = vmul.f32 %v1611, %v662
    %v1613 = vmul.f32 %v1612, %v1611
    %v1614 = vmul.f32 0.5, %v1613
    %v1615 = vsub.f32 1.5, %v1614
    %v1616 = vmul.f32 %v1611, %v1615
    %v1617 = vmul.f32 %v662, %v1616
    %vm1618 = vcmp.eq.f32.partialorder %v662, inf
    %v1619 = vsel %vm1618, %v662, %v1617
    %vm1620 = vcmp.eq.f32.partialorder %v662, 0.0
    %v1621 = vand.u32 %v662, 2147483648
    %v1622 = vsel %vm1620, %v1621, %v1619
    %vm1623 = vcmp.gt.f32.partialorder %v674, 0.0
    %vm1624 = vcmp.gt.f32.partialorder %v686, 0.0
    %vm1625 = vcmp.gt.f32.partialorder %v698, 0.0
    %vm1626 = vcmp.gt.f32.partialorder %v710, 0.0
    %vm1627 = vcmp.gt.f32.partialorder %v722, 0.0
    %vm1628 = vcmp.gt.f32.partialorder %v734, 0.0
    %vm1629 = vcmp.gt.f32.partialorder %v746, 0.0
    %vm1630 = vcmp.gt.f32.partialorder %v758, 0.0
    %vm1631 = vcmp.gt.f32.partialorder %v770, 0.0
    %vm1632 = vcmp.gt.f32.partialorder %v782, 0.0
    %vm1633 = vcmp.gt.f32.partialorder %v794, 0.0
    %vm1634 = vcmp.gt.f32.partialorder %v806, 0.0
    %vm1635 = vcmp.gt.f32.partialorder %v818, 0.0
    %vm1636 = vcmp.gt.f32.partialorder %v830, 0.0
    %vm1637 = vcmp.gt.f32.partialorder %v842, 0.0
    %vm1638 = vcmp.gt.f32.partialorder %v854, 0.0
    %vm1639 = vcmp.gt.f32.partialorder %v866, 0.0
    %vm1640 = vcmp.gt.f32.partialorder %v878, 0.0
    %vm1641 = vcmp.gt.f32.partialorder %v890, 0.0
    %vm1642 = vcmp.gt.f32.partialorder %v902, 0.0
    %vm1643 = vcmp.gt.f32.partialorder %v914, 0.0
    %vm1644 = vcmp.gt.f32.partialorder %v926, 0.0
    %vm1645 = vcmp.gt.f32.partialorder %v938, 0.0
    %vm1646 = vcmp.gt.f32.partialorder %v950, 0.0
    %vm1647 = vcmp.gt.f32.partialorder %v962, 0.0
    %vm1648 = vcmp.gt.f32.partialorder %v974, 0.0
    %vm1649 = vcmp.gt.f32.partialorder %v986, 0.0
    %vm1650 = vcmp.gt.f32.partialorder %v998, 0.0
    %vm1651 = vcmp.gt.f32.partialorder %v1010, 0.0
    %vm1652 = vcmp.gt.f32.partialorder %v1022, 0.0
    %vm1653 = vcmp.gt.f32.partialorder %v1034, 0.0
    %vm1654 = vcmp.gt.f32.partialorder %v1046, 0.0
    %vm1655 = vcmp.gt.f32.partialorder %v1058, 0.0
    %vm1656 = vcmp.gt.f32.partialorder %v1070, 0.0
    %vm1657 = vcmp.gt.f32.partialorder %v1082, 0.0
    %vm1658 = vcmp.gt.f32.partialorder %v1094, 0.0
    %vm1659 = vcmp.gt.f32.partialorder %v1106, 0.0
    %vm1660 = vcmp.gt.f32.partialorder %v1118, 0.0
    %vm1661 = vcmp.gt.f32.partialorder %v1130, 0.0
    %vm1662 = vcmp.gt.f32.partialorder %v1142, 0.0
    %vm1663 = vcmp.gt.f32.partialorder %v1154, 0.0
    %vm1664 = vcmp.gt.f32.partialorder %v1166, 0.0
    %vm1665 = vcmp.gt.f32.partialorder %v1178, 0.0
    %vm1666 = vcmp.gt.f32.partialorder %v1190, 0.0
    %vm1667 = vcmp.gt.f32.partialorder %v1202, 0.0
    %vm1668 = vcmp.gt.f32.partialorder %v1214, 0.0
    %vm1669 = vcmp.gt.f32.partialorder %v1226, 0.0
    %vm1670 = vcmp.gt.f32.partialorder %v1238, 0.0
    %vm1671 = vcmp.gt.f32.partialorder %v1250, 0.0
    %vm1672 = vcmp.gt.f32.partialorder %v1262, 0.0
    %vm1673 = vcmp.gt.f32.partialorder %v1274, 0.0
    %vm1674 = vcmp.gt.f32.partialorder %v1286, 0.0
    %vm1675 = vcmp.gt.f32.partialorder %v1298, 0.0
    %vm1676 = vcmp.gt.f32.partialorder %v1310, 0.0
    %vm1677 = vcmp.gt.f32.partialorder %v1322, 0.0
    %vm1678 = vcmp.gt.f32.partialorder %v1334, 0.0
    %vm1679 = vcmp.gt.f32.partialorder %v1346, 0.0
    %vm1680 = vcmp.gt.f32.partialorder %v1358, 0.0
    %vm1681 = vcmp.gt.f32.partialorder %v1370, 0.0
    %vm1682 = vcmp.gt.f32.partialorder %v1382, 0.0
    %vm1683 = vcmp.gt.f32.partialorder %v1394, 0.0
    %vm1684 = vcmp.gt.f32.partialorder %v1406, 0.0
    %vm1685 = vcmp.gt.f32.partialorder %v1418, 0.0
    %vm1686 = vcmp.gt.f32.partialorder %v1430, 0.0
    %vm1687 = vcmp.gt.f32.partialorder %v1442, 0.0
    %vm1688 = vcmp.gt.f32.partialorder %v1454, 0.0
    %vm1689 = vcmp.gt.f32.partialorder %v1466, 0.0
    %vm1690 = vcmp.gt.f32.partialorder %v1478, 0.0
    %vm1691 = vcmp.gt.f32.partialorder %v1490, 0.0
    %vm1692 = vcmp.gt.f32.partialorder %v1502, 0.0
    %vm1693 = vcmp.gt.f32.partialorder %v1514, 0.0
    %vm1694 = vcmp.gt.f32.partialorder %v1526, 0.0
    %vm1695 = vcmp.gt.f32.partialorder %v1538, 0.0
    %vm1696 = vcmp.gt.f32.partialorder %v1550, 0.0
    %vm1697 = vcmp.gt.f32.partialorder %v1562, 0.0
    %vm1698 = vcmp.gt.f32.partialorder %v1574, 0.0
    %vm1699 = vcmp.gt.f32.partialorder %v1586, 0.0
    %vm1700 = vcmp.gt.f32.partialorder %v1598, 0.0
    %vm1701 = vcmp.gt.f32.partialorder %v1610, 0.0
    %vm1702 = vcmp.gt.f32.partialorder %v1622, 0.0
    %v1703 = vsel %vm1623, %v674, 1.0
    %v1704 = vsel %vm1624, %v686, 1.0
    %v1705 = vsel %vm1625, %v698, 1.0
    %v1706 = vsel %vm1626, %v710, 1.0
    %v1707 = vsel %vm1627, %v722, 1.0
    %v1708 = vsel %vm1628, %v734, 1.0
    %v1709 = vsel %vm1629, %v746, 1.0
    %v1710 = vsel %vm1630, %v758, 1.0
    %v1711 = vsel %vm1631, %v770, 1.0
    %v1712 = vsel %vm1632, %v782, 1.0
    %v1713 = vsel %vm1633, %v794, 1.0
    %v1714 = vsel %vm1634, %v806, 1.0
    %v1715 = vsel %vm1635, %v818, 1.0
    %v1716 = vsel %vm1636, %v830, 1.0
    %v1717 = vsel %vm1637, %v842, 1.0
    %v1718 = vsel %vm1638, %v854, 1.0
    %v1719 = vsel %vm1639, %v866, 1.0
    %v1720 = vsel %vm1640, %v878, 1.0
    %v1721 = vsel %vm1641, %v890, 1.0
    %v1722 = vsel %vm1642, %v902, 1.0
    %v1723 = vsel %vm1643, %v914, 1.0
    %v1724 = vsel %vm1644, %v926, 1.0
    %v1725 = vsel %vm1645, %v938, 1.0
    %v1726 = vsel %vm1646, %v950, 1.0
    %v1727 = vsel %vm1647, %v962, 1.0
    %v1728 = vsel %vm1648, %v974, 1.0
    %v1729 = vsel %vm1649, %v986, 1.0
    %v1730 = vsel %vm1650, %v998, 1.0
    %v1731 = vsel %vm1651, %v1010, 1.0
    %v1732 = vsel %vm1652, %v1022, 1.0
    %v1733 = vsel %vm1653, %v1034, 1.0
    %v1734 = vsel %vm1654, %v1046, 1.0
    %v1735 = vsel %vm1655, %v1058, 1.0
    %v1736 = vsel %vm1656, %v1070, 1.0
    %v1737 = vsel %vm1657, %v1082, 1.0
    %v1738 = vsel %vm1658, %v1094, 1.0
    %v1739 = vsel %vm1659, %v1106, 1.0
    %v1740 = vsel %vm1660, %v1118, 1.0
    %v1741 = vsel %vm1661, %v1130, 1.0
    %v1742 = vsel %vm1662, %v1142, 1.0
    %v1743 = vsel %vm1663, %v1154, 1.0
    %v1744 = vsel %vm1664, %v1166, 1.0
    %v1745 = vsel %vm1665, %v1178, 1.0
    %v1746 = vsel %vm1666, %v1190, 1.0
    %v1747 = vsel %vm1667, %v1202, 1.0
    %v1748 = vsel %vm1668, %v1214, 1.0
    %v1749 = vsel %vm1669, %v1226, 1.0
    %v1750 = vsel %vm1670, %v1238, 1.0
    %v1751 = vsel %vm1671, %v1250, 1.0
    %v1752 = vsel %vm1672, %v1262, 1.0
    %v1753 = vsel %vm1673, %v1274, 1.0
    %v1754 = vsel %vm1674, %v1286, 1.0
    %v1755 = vsel %vm1675, %v1298, 1.0
    %v1756 = vsel %vm1676, %v1310, 1.0
    %v1757 = vsel %vm1677, %v1322, 1.0
    %v1758 = vsel %vm1678, %v1334, 1.0
    %v1759 = vsel %vm1679, %v1346, 1.0
    %v1760 = vsel %vm1680, %v1358, 1.0
    %v1761 = vsel %vm1681, %v1370, 1.0
    %v1762 = vsel %vm1682, %v1382, 1.0
    %v1763 = vsel %vm1683, %v1394, 1.0
    %v1764 = vsel %vm1684, %v1406, 1.0
    %v1765 = vsel %vm1685, %v1418, 1.0
    %v1766 = vsel %vm1686, %v1430, 1.0
    %v1767 = vsel %vm1687, %v1442, 1.0
    %v1768 = vsel %vm1688, %v1454, 1.0
    %v1769 = vsel %vm1689, %v1466, 1.0
    %v1770 = vsel %vm1690, %v1478, 1.0
    %v1771 = vsel %vm1691, %v1490, 1.0
    %v1772 = vsel %vm1692, %v1502, 1.0
    %v1773 = vsel %vm1693, %v1514, 1.0
    %v1774 = vsel %vm1694, %v1526, 1.0
    %v1775 = vsel %vm1695, %v1538, 1.0
    %v1776 = vsel %vm1696, %v1550, 1.0
    %v1777 = vsel %vm1697, %v1562, 1.0
    %v1778 = vsel %vm1698, %v1574, 1.0
    %v1779 = vsel %vm1699, %v1586, 1.0
    %v1780 = vsel %vm1700, %v1598, 1.0
    %v1781 = vsel %vm1701, %v1610, 1.0
    %v1782 = vsel %vm1702, %v1622, 1.0
    %v1783 = vrcp.pop %v1703
    %v1784 = vmul.f32 %v1703, %v1783
    %v1785 = vsub.f32 1.0, %v1784
    %v1786 = vmul.f32 %v1783, %v1785
    %v1787 = vadd.f32 %v1783, %v1786
    %vm1788 = vweird.f32 %v1703
    %vm1789 = vweird.f32 %v1783
    %vm1790 = vmor %vm1788, %vm1789
    %v1791 = vsel %vm1790, %v1783, %v1787
    %v1792 = vand.u32 2147483647, %v1703
    %vm1793 = vcmp.eq.f32.partialorder %v1792, 8.507059e+37
    %v1794 = vand.u32 %v1703, 2147483648
    %v1795 = vor.u32 1.1754944e-38, %v1794
    %v1796 = vsel %vm1793, %v1795, %v1791
    %v1797 = vmul.f32 %v262, %v1796
    %v1798 = vrcp.pop %v1704
    %v1799 = vmul.f32 %v1704, %v1798
    %v1800 = vsub.f32 1.0, %v1799
    %v1801 = vmul.f32 %v1798, %v1800
    %v1802 = vadd.f32 %v1798, %v1801
    %vm1803 = vweird.f32 %v1704
    %vm1804 = vweird.f32 %v1798
    %vm1805 = vmor %vm1803, %vm1804
    %v1806 = vsel %vm1805, %v1798, %v1802
    %v1807 = vand.u32 2147483647, %v1704
    %vm1808 = vcmp.eq.f32.partialorder %v1807, 8.507059e+37
    %v1809 = vand.u32 %v1704, 2147483648
    %v1810 = vor.u32 1.1754944e-38, %v1809
    %v1811 = vsel %vm1808, %v1810, %v1806
    %v1812 = vmul.f32 %v263, %v1811
    %v1813 = vrcp.pop %v1705
    %v1814 = vmul.f32 %v1705, %v1813
    %v1815 = vsub.f32 1.0, %v1814
    %v1816 = vmul.f32 %v1813, %v1815
    %v1817 = vadd.f32 %v1813, %v1816
    %vm1818 = vweird.f32 %v1705
    %vm1819 = vweird.f32 %v1813
    %vm1820 = vmor %vm1818, %vm1819
    %v1821 = vsel %vm1820, %v1813, %v1817
    %v1822 = vand.u32 2147483647, %v1705
    %vm1823 = vcmp.eq.f32.partialorder %v1822, 8.507059e+37
    %v1824 = vand.u32 %v1705, 2147483648
    %v1825 = vor.u32 1.1754944e-38, %v1824
    %v1826 = vsel %vm1823, %v1825, %v1821
    %v1827 = vmul.f32 %v264, %v1826
    %v1828 = vrcp.pop %v1706
    %v1829 = vmul.f32 %v1706, %v1828
    %v1830 = vsub.f32 1.0, %v1829
    %v1831 = vmul.f32 %v1828, %v1830
    %v1832 = vadd.f32 %v1828, %v1831
    %vm1833 = vweird.f32 %v1706
    %vm1834 = vweird.f32 %v1828
    %vm1835 = vmor %vm1833, %vm1834
    %v1836 = vsel %vm1835, %v1828, %v1832
    %v1837 = vand.u32 2147483647, %v1706
    %vm1838 = vcmp.eq.f32.partialorder %v1837, 8.507059e+37
    %v1839 = vand.u32 %v1706, 2147483648
    %v1840 = vor.u32 1.1754944e-38, %v1839
    %v1841 = vsel %vm1838, %v1840, %v1836
    %v1842 = vmul.f32 %v265, %v1841
    %v1843 = vrcp.pop %v1707
    %v1844 = vmul.f32 %v1707, %v1843
    %v1845 = vsub.f32 1.0, %v1844
    %v1846 = vmul.f32 %v1843, %v1845
    %v1847 = vadd.f32 %v1843, %v1846
    %vm1848 = vweird.f32 %v1707
    %vm1849 = vweird.f32 %v1843
    %vm1850 = vmor %vm1848, %vm1849
    %v1851 = vsel %vm1850, %v1843, %v1847
    %v1852 = vand.u32 2147483647, %v1707
    %vm1853 = vcmp.eq.f32.partialorder %v1852, 8.507059e+37
    %v1854 = vand.u32 %v1707, 2147483648
    %v1855 = vor.u32 1.1754944e-38, %v1854
    %v1856 = vsel %vm1853, %v1855, %v1851
    %v1857 = vmul.f32 %v266, %v1856
    %v1858 = vrcp.pop %v1708
    %v1859 = vmul.f32 %v1708, %v1858
    %v1860 = vsub.f32 1.0, %v1859
    %v1861 = vmul.f32 %v1858, %v1860
    %v1862 = vadd.f32 %v1858, %v1861
    %vm1863 = vweird.f32 %v1708
    %vm1864 = vweird.f32 %v1858
    %vm1865 = vmor %vm1863, %vm1864
    %v1866 = vsel %vm1865, %v1858, %v1862
    %v1867 = vand.u32 2147483647, %v1708
    %vm1868 = vcmp.eq.f32.partialorder %v1867, 8.507059e+37
    %v1869 = vand.u32 %v1708, 2147483648
    %v1870 = vor.u32 1.1754944e-38, %v1869
    %v1871 = vsel %vm1868, %v1870, %v1866
    %v1872 = vmul.f32 %v267, %v1871
    %v1873 = vrcp.pop %v1709
    %v1874 = vmul.f32 %v1709, %v1873
    %v1875 = vsub.f32 1.0, %v1874
    %v1876 = vmul.f32 %v1873, %v1875
    %v1877 = vadd.f32 %v1873, %v1876
    %vm1878 = vweird.f32 %v1709
    %vm1879 = vweird.f32 %v1873
    %vm1880 = vmor %vm1878, %vm1879
    %v1881 = vsel %vm1880, %v1873, %v1877
    %v1882 = vand.u32 2147483647, %v1709
    %vm1883 = vcmp.eq.f32.partialorder %v1882, 8.507059e+37
    %v1884 = vand.u32 %v1709, 2147483648
    %v1885 = vor.u32 1.1754944e-38, %v1884
    %v1886 = vsel %vm1883, %v1885, %v1881
    %v1887 = vmul.f32 %v268, %v1886
    %v1888 = vrcp.pop %v1710
    %v1889 = vmul.f32 %v1710, %v1888
    %v1890 = vsub.f32 1.0, %v1889
    %v1891 = vmul.f32 %v1888, %v1890
    %v1892 = vadd.f32 %v1888, %v1891
    %vm1893 = vweird.f32 %v1710
    %vm1894 = vweird.f32 %v1888
    %vm1895 = vmor %vm1893, %vm1894
    %v1896 = vsel %vm1895, %v1888, %v1892
    %v1897 = vand.u32 2147483647, %v1710
    %vm1898 = vcmp.eq.f32.partialorder %v1897, 8.507059e+37
    %v1899 = vand.u32 %v1710, 2147483648
    %v1900 = vor.u32 1.1754944e-38, %v1899
    %v1901 = vsel %vm1898, %v1900, %v1896
    %v1902 = vmul.f32 %v269, %v1901
    %v1903 = vrcp.pop %v1711
    %v1904 = vmul.f32 %v1711, %v1903
    %v1905 = vsub.f32 1.0, %v1904
    %v1906 = vmul.f32 %v1903, %v1905
    %v1907 = vadd.f32 %v1903, %v1906
    %vm1908 = vweird.f32 %v1711
    %vm1909 = vweird.f32 %v1903
    %vm1910 = vmor %vm1908, %vm1909
    %v1911 = vsel %vm1910, %v1903, %v1907
    %v1912 = vand.u32 2147483647, %v1711
    %vm1913 = vcmp.eq.f32.partialorder %v1912, 8.507059e+37
    %v1914 = vand.u32 %v1711, 2147483648
    %v1915 = vor.u32 1.1754944e-38, %v1914
    %v1916 = vsel %vm1913, %v1915, %v1911
    %v1917 = vmul.f32 %v270, %v1916
    %v1918 = vrcp.pop %v1712
    %v1919 = vmul.f32 %v1712, %v1918
    %v1920 = vsub.f32 1.0, %v1919
    %v1921 = vmul.f32 %v1918, %v1920
    %v1922 = vadd.f32 %v1918, %v1921
    %vm1923 = vweird.f32 %v1712
    %vm1924 = vweird.f32 %v1918
    %vm1925 = vmor %vm1923, %vm1924
    %v1926 = vsel %vm1925, %v1918, %v1922
    %v1927 = vand.u32 2147483647, %v1712
    %vm1928 = vcmp.eq.f32.partialorder %v1927, 8.507059e+37
    %v1929 = vand.u32 %v1712, 2147483648
    %v1930 = vor.u32 1.1754944e-38, %v1929
    %v1931 = vsel %vm1928, %v1930, %v1926
    %v1932 = vmul.f32 %v271, %v1931
    %v1933 = vrcp.pop %v1713
    %v1934 = vmul.f32 %v1713, %v1933
    %v1935 = vsub.f32 1.0, %v1934
    %v1936 = vmul.f32 %v1933, %v1935
    %v1937 = vadd.f32 %v1933, %v1936
    %vm1938 = vweird.f32 %v1713
    %vm1939 = vweird.f32 %v1933
    %vm1940 = vmor %vm1938, %vm1939
    %v1941 = vsel %vm1940, %v1933, %v1937
    %v1942 = vand.u32 2147483647, %v1713
    %vm1943 = vcmp.eq.f32.partialorder %v1942, 8.507059e+37
    %v1944 = vand.u32 %v1713, 2147483648
    %v1945 = vor.u32 1.1754944e-38, %v1944
    %v1946 = vsel %vm1943, %v1945, %v1941
    %v1947 = vmul.f32 %v272, %v1946
    %v1948 = vrcp.pop %v1714
    %v1949 = vmul.f32 %v1714, %v1948
    %v1950 = vsub.f32 1.0, %v1949
    %v1951 = vmul.f32 %v1948, %v1950
    %v1952 = vadd.f32 %v1948, %v1951
    %vm1953 = vweird.f32 %v1714
    %vm1954 = vweird.f32 %v1948
    %vm1955 = vmor %vm1953, %vm1954
    %v1956 = vsel %vm1955, %v1948, %v1952
    %v1957 = vand.u32 2147483647, %v1714
    %vm1958 = vcmp.eq.f32.partialorder %v1957, 8.507059e+37
    %v1959 = vand.u32 %v1714, 2147483648
    %v1960 = vor.u32 1.1754944e-38, %v1959
    %v1961 = vsel %vm1958, %v1960, %v1956
    %v1962 = vmul.f32 %v273, %v1961
    %v1963 = vrcp.pop %v1715
    %v1964 = vmul.f32 %v1715, %v1963
    %v1965 = vsub.f32 1.0, %v1964
    %v1966 = vmul.f32 %v1963, %v1965
    %v1967 = vadd.f32 %v1963, %v1966
    %vm1968 = vweird.f32 %v1715
    %vm1969 = vweird.f32 %v1963
    %vm1970 = vmor %vm1968, %vm1969
    %v1971 = vsel %vm1970, %v1963, %v1967
    %v1972 = vand.u32 2147483647, %v1715
    %vm1973 = vcmp.eq.f32.partialorder %v1972, 8.507059e+37
    %v1974 = vand.u32 %v1715, 2147483648
    %v1975 = vor.u32 1.1754944e-38, %v1974
    %v1976 = vsel %vm1973, %v1975, %v1971
    %v1977 = vmul.f32 %v274, %v1976
    %v1978 = vrcp.pop %v1716
    %v1979 = vmul.f32 %v1716, %v1978
    %v1980 = vsub.f32 1.0, %v1979
    %v1981 = vmul.f32 %v1978, %v1980
    %v1982 = vadd.f32 %v1978, %v1981
    %vm1983 = vweird.f32 %v1716
    %vm1984 = vweird.f32 %v1978
    %vm1985 = vmor %vm1983, %vm1984
    %v1986 = vsel %vm1985, %v1978, %v1982
    %v1987 = vand.u32 2147483647, %v1716
    %vm1988 = vcmp.eq.f32.partialorder %v1987, 8.507059e+37
    %v1989 = vand.u32 %v1716, 2147483648
    %v1990 = vor.u32 1.1754944e-38, %v1989
    %v1991 = vsel %vm1988, %v1990, %v1986
    %v1992 = vmul.f32 %v275, %v1991
    %v1993 = vrcp.pop %v1717
    %v1994 = vmul.f32 %v1717, %v1993
    %v1995 = vsub.f32 1.0, %v1994
    %v1996 = vmul.f32 %v1993, %v1995
    %v1997 = vadd.f32 %v1993, %v1996
    %vm1998 = vweird.f32 %v1717
    %vm1999 = vweird.f32 %v1993
    %vm2000 = vmor %vm1998, %vm1999
    %v2001 = vsel %vm2000, %v1993, %v1997
    %v2002 = vand.u32 2147483647, %v1717
    %vm2003 = vcmp.eq.f32.partialorder %v2002, 8.507059e+37
    %v2004 = vand.u32 %v1717, 2147483648
    %v2005 = vor.u32 1.1754944e-38, %v2004
    %v2006 = vsel %vm2003, %v2005, %v2001
    %v2007 = vmul.f32 %v276, %v2006
    %v2008 = vrcp.pop %v1718
    %v2009 = vmul.f32 %v1718, %v2008
    %v2010 = vsub.f32 1.0, %v2009
    %v2011 = vmul.f32 %v2008, %v2010
    %v2012 = vadd.f32 %v2008, %v2011
    %vm2013 = vweird.f32 %v1718
    %vm2014 = vweird.f32 %v2008
    %vm2015 = vmor %vm2013, %vm2014
    %v2016 = vsel %vm2015, %v2008, %v2012
    %v2017 = vand.u32 2147483647, %v1718
    %vm2018 = vcmp.eq.f32.partialorder %v2017, 8.507059e+37
    %v2019 = vand.u32 %v1718, 2147483648
    %v2020 = vor.u32 1.1754944e-38, %v2019
    %v2021 = vsel %vm2018, %v2020, %v2016
    %v2022 = vmul.f32 %v277, %v2021
    %v2023 = vrcp.pop %v1719
    %v2024 = vmul.f32 %v1719, %v2023
    %v2025 = vsub.f32 1.0, %v2024
    %v2026 = vmul.f32 %v2023, %v2025
    %v2027 = vadd.f32 %v2023, %v2026
    %vm2028 = vweird.f32 %v1719
    %vm2029 = vweird.f32 %v2023
    %vm2030 = vmor %vm2028, %vm2029
    %v2031 = vsel %vm2030, %v2023, %v2027
    %v2032 = vand.u32 2147483647, %v1719
    %vm2033 = vcmp.eq.f32.partialorder %v2032, 8.507059e+37
    %v2034 = vand.u32 %v1719, 2147483648
    %v2035 = vor.u32 1.1754944e-38, %v2034
    %v2036 = vsel %vm2033, %v2035, %v2031
    %v2037 = vmul.f32 %v278, %v2036
    %v2038 = vrcp.pop %v1720
    %v2039 = vmul.f32 %v1720, %v2038
    %v2040 = vsub.f32 1.0, %v2039
    %v2041 = vmul.f32 %v2038, %v2040
    %v2042 = vadd.f32 %v2038, %v2041
    %vm2043 = vweird.f32 %v1720
    %vm2044 = vweird.f32 %v2038
    %vm2045 = vmor %vm2043, %vm2044
    %v2046 = vsel %vm2045, %v2038, %v2042
    %v2047 = vand.u32 2147483647, %v1720
    %vm2048 = vcmp.eq.f32.partialorder %v2047, 8.507059e+37
    %v2049 = vand.u32 %v1720, 2147483648
    %v2050 = vor.u32 1.1754944e-38, %v2049
    %v2051 = vsel %vm2048, %v2050, %v2046
    %v2052 = vmul.f32 %v279, %v2051
    %v2053 = vrcp.pop %v1721
    %v2054 = vmul.f32 %v1721, %v2053
    %v2055 = vsub.f32 1.0, %v2054
    %v2056 = vmul.f32 %v2053, %v2055
    %v2057 = vadd.f32 %v2053, %v2056
    %vm2058 = vweird.f32 %v1721
    %vm2059 = vweird.f32 %v2053
    %vm2060 = vmor %vm2058, %vm2059
    %v2061 = vsel %vm2060, %v2053, %v2057
    %v2062 = vand.u32 2147483647, %v1721
    %vm2063 = vcmp.eq.f32.partialorder %v2062, 8.507059e+37
    %v2064 = vand.u32 %v1721, 2147483648
    %v2065 = vor.u32 1.1754944e-38, %v2064
    %v2066 = vsel %vm2063, %v2065, %v2061
    %v2067 = vmul.f32 %v280, %v2066
    %v2068 = vrcp.pop %v1722
    %v2069 = vmul.f32 %v1722, %v2068
    %v2070 = vsub.f32 1.0, %v2069
    %v2071 = vmul.f32 %v2068, %v2070
    %v2072 = vadd.f32 %v2068, %v2071
    %vm2073 = vweird.f32 %v1722
    %vm2074 = vweird.f32 %v2068
    %vm2075 = vmor %vm2073, %vm2074
    %v2076 = vsel %vm2075, %v2068, %v2072
    %v2077 = vand.u32 2147483647, %v1722
    %vm2078 = vcmp.eq.f32.partialorder %v2077, 8.507059e+37
    %v2079 = vand.u32 %v1722, 2147483648
    %v2080 = vor.u32 1.1754944e-38, %v2079
    %v2081 = vsel %vm2078, %v2080, %v2076
    %v2082 = vmul.f32 %v281, %v2081
    %v2083 = vrcp.pop %v1723
    %v2084 = vmul.f32 %v1723, %v2083
    %v2085 = vsub.f32 1.0, %v2084
    %v2086 = vmul.f32 %v2083, %v2085
    %v2087 = vadd.f32 %v2083, %v2086
    %vm2088 = vweird.f32 %v1723
    %vm2089 = vweird.f32 %v2083
    %vm2090 = vmor %vm2088, %vm2089
    %v2091 = vsel %vm2090, %v2083, %v2087
    %v2092 = vand.u32 2147483647, %v1723
    %vm2093 = vcmp.eq.f32.partialorder %v2092, 8.507059e+37
    %v2094 = vand.u32 %v1723, 2147483648
    %v2095 = vor.u32 1.1754944e-38, %v2094
    %v2096 = vsel %vm2093, %v2095, %v2091
    %v2097 = vmul.f32 %v282, %v2096
    %v2098 = vrcp.pop %v1724
    %v2099 = vmul.f32 %v1724, %v2098
    %v2100 = vsub.f32 1.0, %v2099
    %v2101 = vmul.f32 %v2098, %v2100
    %v2102 = vadd.f32 %v2098, %v2101
    %vm2103 = vweird.f32 %v1724
    %vm2104 = vweird.f32 %v2098
    %vm2105 = vmor %vm2103, %vm2104
    %v2106 = vsel %vm2105, %v2098, %v2102
    %v2107 = vand.u32 2147483647, %v1724
    %vm2108 = vcmp.eq.f32.partialorder %v2107, 8.507059e+37
    %v2109 = vand.u32 %v1724, 2147483648
    %v2110 = vor.u32 1.1754944e-38, %v2109
    %v2111 = vsel %vm2108, %v2110, %v2106
    %v2112 = vmul.f32 %v283, %v2111
    %v2113 = vrcp.pop %v1725
    %v2114 = vmul.f32 %v1725, %v2113
    %v2115 = vsub.f32 1.0, %v2114
    %v2116 = vmul.f32 %v2113, %v2115
    %v2117 = vadd.f32 %v2113, %v2116
    %vm2118 = vweird.f32 %v1725
    %vm2119 = vweird.f32 %v2113
    %vm2120 = vmor %vm2118, %vm2119
    %v2121 = vsel %vm2120, %v2113, %v2117
    %v2122 = vand.u32 2147483647, %v1725
    %vm2123 = vcmp.eq.f32.partialorder %v2122, 8.507059e+37
    %v2124 = vand.u32 %v1725, 2147483648
    %v2125 = vor.u32 1.1754944e-38, %v2124
    %v2126 = vsel %vm2123, %v2125, %v2121
    %v2127 = vmul.f32 %v284, %v2126
    %v2128 = vrcp.pop %v1726
    %v2129 = vmul.f32 %v1726, %v2128
    %v2130 = vsub.f32 1.0, %v2129
    %v2131 = vmul.f32 %v2128, %v2130
    %v2132 = vadd.f32 %v2128, %v2131
    %vm2133 = vweird.f32 %v1726
    %vm2134 = vweird.f32 %v2128
    %vm2135 = vmor %vm2133, %vm2134
    %v2136 = vsel %vm2135, %v2128, %v2132
    %v2137 = vand.u32 2147483647, %v1726
    %vm2138 = vcmp.eq.f32.partialorder %v2137, 8.507059e+37
    %v2139 = vand.u32 %v1726, 2147483648
    %v2140 = vor.u32 1.1754944e-38, %v2139
    %v2141 = vsel %vm2138, %v2140, %v2136
    %v2142 = vmul.f32 %v285, %v2141
    %v2143 = vrcp.pop %v1727
    %v2144 = vmul.f32 %v1727, %v2143
    %v2145 = vsub.f32 1.0, %v2144
    %v2146 = vmul.f32 %v2143, %v2145
    %v2147 = vadd.f32 %v2143, %v2146
    %vm2148 = vweird.f32 %v1727
    %vm2149 = vweird.f32 %v2143
    %vm2150 = vmor %vm2148, %vm2149
    %v2151 = vsel %vm2150, %v2143, %v2147
    %v2152 = vand.u32 2147483647, %v1727
    %vm2153 = vcmp.eq.f32.partialorder %v2152, 8.507059e+37
    %v2154 = vand.u32 %v1727, 2147483648
    %v2155 = vor.u32 1.1754944e-38, %v2154
    %v2156 = vsel %vm2153, %v2155, %v2151
    %v2157 = vmul.f32 %v286, %v2156
    %v2158 = vrcp.pop %v1728
    %v2159 = vmul.f32 %v1728, %v2158
    %v2160 = vsub.f32 1.0, %v2159
    %v2161 = vmul.f32 %v2158, %v2160
    %v2162 = vadd.f32 %v2158, %v2161
    %vm2163 = vweird.f32 %v1728
    %vm2164 = vweird.f32 %v2158
    %vm2165 = vmor %vm2163, %vm2164
    %v2166 = vsel %vm2165, %v2158, %v2162
    %v2167 = vand.u32 2147483647, %v1728
    %vm2168 = vcmp.eq.f32.partialorder %v2167, 8.507059e+37
    %v2169 = vand.u32 %v1728, 2147483648
    %v2170 = vor.u32 1.1754944e-38, %v2169
    %v2171 = vsel %vm2168, %v2170, %v2166
    %v2172 = vmul.f32 %v287, %v2171
    %v2173 = vrcp.pop %v1729
    %v2174 = vmul.f32 %v1729, %v2173
    %v2175 = vsub.f32 1.0, %v2174
    %v2176 = vmul.f32 %v2173, %v2175
    %v2177 = vadd.f32 %v2173, %v2176
    %vm2178 = vweird.f32 %v1729
    %vm2179 = vweird.f32 %v2173
    %vm2180 = vmor %vm2178, %vm2179
    %v2181 = vsel %vm2180, %v2173, %v2177
    %v2182 = vand.u32 2147483647, %v1729
    %vm2183 = vcmp.eq.f32.partialorder %v2182, 8.507059e+37
    %v2184 = vand.u32 %v1729, 2147483648
    %v2185 = vor.u32 1.1754944e-38, %v2184
    %v2186 = vsel %vm2183, %v2185, %v2181
    %v2187 = vmul.f32 %v288, %v2186
    %v2188 = vrcp.pop %v1730
    %v2189 = vmul.f32 %v1730, %v2188
    %v2190 = vsub.f32 1.0, %v2189
    %v2191 = vmul.f32 %v2188, %v2190
    %v2192 = vadd.f32 %v2188, %v2191
    %vm2193 = vweird.f32 %v1730
    %vm2194 = vweird.f32 %v2188
    %vm2195 = vmor %vm2193, %vm2194
    %v2196 = vsel %vm2195, %v2188, %v2192
    %v2197 = vand.u32 2147483647, %v1730
    %vm2198 = vcmp.eq.f32.partialorder %v2197, 8.507059e+37
    %v2199 = vand.u32 %v1730, 2147483648
    %v2200 = vor.u32 1.1754944e-38, %v2199
    %v2201 = vsel %vm2198, %v2200, %v2196
    %v2202 = vmul.f32 %v289, %v2201
    %v2203 = vrcp.pop %v1731
    %v2204 = vmul.f32 %v1731, %v2203
    %v2205 = vsub.f32 1.0, %v2204
    %v2206 = vmul.f32 %v2203, %v2205
    %v2207 = vadd.f32 %v2203, %v2206
    %vm2208 = vweird.f32 %v1731
    %vm2209 = vweird.f32 %v2203
    %vm2210 = vmor %vm2208, %vm2209
    %v2211 = vsel %vm2210, %v2203, %v2207
    %v2212 = vand.u32 2147483647, %v1731
    %vm2213 = vcmp.eq.f32.partialorder %v2212, 8.507059e+37
    %v2214 = vand.u32 %v1731, 2147483648
    %v2215 = vor.u32 1.1754944e-38, %v2214
    %v2216 = vsel %vm2213, %v2215, %v2211
    %v2217 = vmul.f32 %v290, %v2216
    %v2218 = vrcp.pop %v1732
    %v2219 = vmul.f32 %v1732, %v2218
    %v2220 = vsub.f32 1.0, %v2219
    %v2221 = vmul.f32 %v2218, %v2220
    %v2222 = vadd.f32 %v2218, %v2221
    %vm2223 = vweird.f32 %v1732
    %vm2224 = vweird.f32 %v2218
    %vm2225 = vmor %vm2223, %vm2224
    %v2226 = vsel %vm2225, %v2218, %v2222
    %v2227 = vand.u32 2147483647, %v1732
    %vm2228 = vcmp.eq.f32.partialorder %v2227, 8.507059e+37
    %v2229 = vand.u32 %v1732, 2147483648
    %v2230 = vor.u32 1.1754944e-38, %v2229
    %v2231 = vsel %vm2228, %v2230, %v2226
    %v2232 = vmul.f32 %v291, %v2231
    %v2233 = vrcp.pop %v1733
    %v2234 = vmul.f32 %v1733, %v2233
    %v2235 = vsub.f32 1.0, %v2234
    %v2236 = vmul.f32 %v2233, %v2235
    %v2237 = vadd.f32 %v2233, %v2236
    %vm2238 = vweird.f32 %v1733
    %vm2239 = vweird.f32 %v2233
    %vm2240 = vmor %vm2238, %vm2239
    %v2241 = vsel %vm2240, %v2233, %v2237
    %v2242 = vand.u32 2147483647, %v1733
    %vm2243 = vcmp.eq.f32.partialorder %v2242, 8.507059e+37
    %v2244 = vand.u32 %v1733, 2147483648
    %v2245 = vor.u32 1.1754944e-38, %v2244
    %v2246 = vsel %vm2243, %v2245, %v2241
    %v2247 = vmul.f32 %v292, %v2246
    %v2248 = vrcp.pop %v1734
    %v2249 = vmul.f32 %v1734, %v2248
    %v2250 = vsub.f32 1.0, %v2249
    %v2251 = vmul.f32 %v2248, %v2250
    %v2252 = vadd.f32 %v2248, %v2251
    %vm2253 = vweird.f32 %v1734
    %vm2254 = vweird.f32 %v2248
    %vm2255 = vmor %vm2253, %vm2254
    %v2256 = vsel %vm2255, %v2248, %v2252
    %v2257 = vand.u32 2147483647, %v1734
    %vm2258 = vcmp.eq.f32.partialorder %v2257, 8.507059e+37
    %v2259 = vand.u32 %v1734, 2147483648
    %v2260 = vor.u32 1.1754944e-38, %v2259
    %v2261 = vsel %vm2258, %v2260, %v2256
    %v2262 = vmul.f32 %v293, %v2261
    %v2263 = vrcp.pop %v1735
    %v2264 = vmul.f32 %v1735, %v2263
    %v2265 = vsub.f32 1.0, %v2264
    %v2266 = vmul.f32 %v2263, %v2265
    %v2267 = vadd.f32 %v2263, %v2266
    %vm2268 = vweird.f32 %v1735
    %vm2269 = vweird.f32 %v2263
    %vm2270 = vmor %vm2268, %vm2269
    %v2271 = vsel %vm2270, %v2263, %v2267
    %v2272 = vand.u32 2147483647, %v1735
    %vm2273 = vcmp.eq.f32.partialorder %v2272, 8.507059e+37
    %v2274 = vand.u32 %v1735, 2147483648
    %v2275 = vor.u32 1.1754944e-38, %v2274
    %v2276 = vsel %vm2273, %v2275, %v2271
    %v2277 = vmul.f32 %v294, %v2276
    %v2278 = vrcp.pop %v1736
    %v2279 = vmul.f32 %v1736, %v2278
    %v2280 = vsub.f32 1.0, %v2279
    %v2281 = vmul.f32 %v2278, %v2280
    %v2282 = vadd.f32 %v2278, %v2281
    %vm2283 = vweird.f32 %v1736
    %vm2284 = vweird.f32 %v2278
    %vm2285 = vmor %vm2283, %vm2284
    %v2286 = vsel %vm2285, %v2278, %v2282
    %v2287 = vand.u32 2147483647, %v1736
    %vm2288 = vcmp.eq.f32.partialorder %v2287, 8.507059e+37
    %v2289 = vand.u32 %v1736, 2147483648
    %v2290 = vor.u32 1.1754944e-38, %v2289
    %v2291 = vsel %vm2288, %v2290, %v2286
    %v2292 = vmul.f32 %v295, %v2291
    %v2293 = vrcp.pop %v1737
    %v2294 = vmul.f32 %v1737, %v2293
    %v2295 = vsub.f32 1.0, %v2294
    %v2296 = vmul.f32 %v2293, %v2295
    %v2297 = vadd.f32 %v2293, %v2296
    %vm2298 = vweird.f32 %v1737
    %vm2299 = vweird.f32 %v2293
    %vm2300 = vmor %vm2298, %vm2299
    %v2301 = vsel %vm2300, %v2293, %v2297
    %v2302 = vand.u32 2147483647, %v1737
    %vm2303 = vcmp.eq.f32.partialorder %v2302, 8.507059e+37
    %v2304 = vand.u32 %v1737, 2147483648
    %v2305 = vor.u32 1.1754944e-38, %v2304
    %v2306 = vsel %vm2303, %v2305, %v2301
    %v2307 = vmul.f32 %v296, %v2306
    %v2308 = vrcp.pop %v1738
    %v2309 = vmul.f32 %v1738, %v2308
    %v2310 = vsub.f32 1.0, %v2309
    %v2311 = vmul.f32 %v2308, %v2310
    %v2312 = vadd.f32 %v2308, %v2311
    %vm2313 = vweird.f32 %v1738
    %vm2314 = vweird.f32 %v2308
    %vm2315 = vmor %vm2313, %vm2314
    %v2316 = vsel %vm2315, %v2308, %v2312
    %v2317 = vand.u32 2147483647, %v1738
    %vm2318 = vcmp.eq.f32.partialorder %v2317, 8.507059e+37
    %v2319 = vand.u32 %v1738, 2147483648
    %v2320 = vor.u32 1.1754944e-38, %v2319
    %v2321 = vsel %vm2318, %v2320, %v2316
    %v2322 = vmul.f32 %v297, %v2321
    %v2323 = vrcp.pop %v1739
    %v2324 = vmul.f32 %v1739, %v2323
    %v2325 = vsub.f32 1.0, %v2324
    %v2326 = vmul.f32 %v2323, %v2325
    %v2327 = vadd.f32 %v2323, %v2326
    %vm2328 = vweird.f32 %v1739
    %vm2329 = vweird.f32 %v2323
    %vm2330 = vmor %vm2328, %vm2329
    %v2331 = vsel %vm2330, %v2323, %v2327
    %v2332 = vand.u32 2147483647, %v1739
    %vm2333 = vcmp.eq.f32.partialorder %v2332, 8.507059e+37
    %v2334 = vand.u32 %v1739, 2147483648
    %v2335 = vor.u32 1.1754944e-38, %v2334
    %v2336 = vsel %vm2333, %v2335, %v2331
    %v2337 = vmul.f32 %v298, %v2336
    %v2338 = vrcp.pop %v1740
    %v2339 = vmul.f32 %v1740, %v2338
    %v2340 = vsub.f32 1.0, %v2339
    %v2341 = vmul.f32 %v2338, %v2340
    %v2342 = vadd.f32 %v2338, %v2341
    %vm2343 = vweird.f32 %v1740
    %vm2344 = vweird.f32 %v2338
    %vm2345 = vmor %vm2343, %vm2344
    %v2346 = vsel %vm2345, %v2338, %v2342
    %v2347 = vand.u32 2147483647, %v1740
    %vm2348 = vcmp.eq.f32.partialorder %v2347, 8.507059e+37
    %v2349 = vand.u32 %v1740, 2147483648
    %v2350 = vor.u32 1.1754944e-38, %v2349
    %v2351 = vsel %vm2348, %v2350, %v2346
    %v2352 = vmul.f32 %v299, %v2351
    %v2353 = vrcp.pop %v1741
    %v2354 = vmul.f32 %v1741, %v2353
    %v2355 = vsub.f32 1.0, %v2354
    %v2356 = vmul.f32 %v2353, %v2355
    %v2357 = vadd.f32 %v2353, %v2356
    %vm2358 = vweird.f32 %v1741
    %vm2359 = vweird.f32 %v2353
    %vm2360 = vmor %vm2358, %vm2359
    %v2361 = vsel %vm2360, %v2353, %v2357
    %v2362 = vand.u32 2147483647, %v1741
    %vm2363 = vcmp.eq.f32.partialorder %v2362, 8.507059e+37
    %v2364 = vand.u32 %v1741, 2147483648
    %v2365 = vor.u32 1.1754944e-38, %v2364
    %v2366 = vsel %vm2363, %v2365, %v2361
    %v2367 = vmul.f32 %v300, %v2366
    %v2368 = vrcp.pop %v1742
    %v2369 = vmul.f32 %v1742, %v2368
    %v2370 = vsub.f32 1.0, %v2369
    %v2371 = vmul.f32 %v2368, %v2370
    %v2372 = vadd.f32 %v2368, %v2371
    %vm2373 = vweird.f32 %v1742
    %vm2374 = vweird.f32 %v2368
    %vm2375 = vmor %vm2373, %vm2374
    %v2376 = vsel %vm2375, %v2368, %v2372
    %v2377 = vand.u32 2147483647, %v1742
    %vm2378 = vcmp.eq.f32.partialorder %v2377, 8.507059e+37
    %v2379 = vand.u32 %v1742, 2147483648
    %v2380 = vor.u32 1.1754944e-38, %v2379
    %v2381 = vsel %vm2378, %v2380, %v2376
    %v2382 = vmul.f32 %v301, %v2381
    %v2383 = vrcp.pop %v1743
    %v2384 = vmul.f32 %v1743, %v2383
    %v2385 = vsub.f32 1.0, %v2384
    %v2386 = vmul.f32 %v2383, %v2385
    %v2387 = vadd.f32 %v2383, %v2386
    %vm2388 = vweird.f32 %v1743
    %vm2389 = vweird.f32 %v2383
    %vm2390 = vmor %vm2388, %vm2389
    %v2391 = vsel %vm2390, %v2383, %v2387
    %v2392 = vand.u32 2147483647, %v1743
    %vm2393 = vcmp.eq.f32.partialorder %v2392, 8.507059e+37
    %v2394 = vand.u32 %v1743, 2147483648
    %v2395 = vor.u32 1.1754944e-38, %v2394
    %v2396 = vsel %vm2393, %v2395, %v2391
    %v2397 = vmul.f32 %v302, %v2396
    %v2398 = vrcp.pop %v1744
    %v2399 = vmul.f32 %v1744, %v2398
    %v2400 = vsub.f32 1.0, %v2399
    %v2401 = vmul.f32 %v2398, %v2400
    %v2402 = vadd.f32 %v2398, %v2401
    %vm2403 = vweird.f32 %v1744
    %vm2404 = vweird.f32 %v2398
    %vm2405 = vmor %vm2403, %vm2404
    %v2406 = vsel %vm2405, %v2398, %v2402
    %v2407 = vand.u32 2147483647, %v1744
    %vm2408 = vcmp.eq.f32.partialorder %v2407, 8.507059e+37
    %v2409 = vand.u32 %v1744, 2147483648
    %v2410 = vor.u32 1.1754944e-38, %v2409
    %v2411 = vsel %vm2408, %v2410, %v2406
    %v2412 = vmul.f32 %v303, %v2411
    %v2413 = vrcp.pop %v1745
    %v2414 = vmul.f32 %v1745, %v2413
    %v2415 = vsub.f32 1.0, %v2414
    %v2416 = vmul.f32 %v2413, %v2415
    %v2417 = vadd.f32 %v2413, %v2416
    %vm2418 = vweird.f32 %v1745
    %vm2419 = vweird.f32 %v2413
    %vm2420 = vmor %vm2418, %vm2419
    %v2421 = vsel %vm2420, %v2413, %v2417
    %v2422 = vand.u32 2147483647, %v1745
    %vm2423 = vcmp.eq.f32.partialorder %v2422, 8.507059e+37
    %v2424 = vand.u32 %v1745, 2147483648
    %v2425 = vor.u32 1.1754944e-38, %v2424
    %v2426 = vsel %vm2423, %v2425, %v2421
    %v2427 = vmul.f32 %v304, %v2426
    %v2428 = vrcp.pop %v1746
    %v2429 = vmul.f32 %v1746, %v2428
    %v2430 = vsub.f32 1.0, %v2429
    %v2431 = vmul.f32 %v2428, %v2430
    %v2432 = vadd.f32 %v2428, %v2431
    %vm2433 = vweird.f32 %v1746
    %vm2434 = vweird.f32 %v2428
    %vm2435 = vmor %vm2433, %vm2434
    %v2436 = vsel %vm2435, %v2428, %v2432
    %v2437 = vand.u32 2147483647, %v1746
    %vm2438 = vcmp.eq.f32.partialorder %v2437, 8.507059e+37
    %v2439 = vand.u32 %v1746, 2147483648
    %v2440 = vor.u32 1.1754944e-38, %v2439
    %v2441 = vsel %vm2438, %v2440, %v2436
    %v2442 = vmul.f32 %v305, %v2441
    %v2443 = vrcp.pop %v1747
    %v2444 = vmul.f32 %v1747, %v2443
    %v2445 = vsub.f32 1.0, %v2444
    %v2446 = vmul.f32 %v2443, %v2445
    %v2447 = vadd.f32 %v2443, %v2446
    %vm2448 = vweird.f32 %v1747
    %vm2449 = vweird.f32 %v2443
    %vm2450 = vmor %vm2448, %vm2449
    %v2451 = vsel %vm2450, %v2443, %v2447
    %v2452 = vand.u32 2147483647, %v1747
    %vm2453 = vcmp.eq.f32.partialorder %v2452, 8.507059e+37
    %v2454 = vand.u32 %v1747, 2147483648
    %v2455 = vor.u32 1.1754944e-38, %v2454
    %v2456 = vsel %vm2453, %v2455, %v2451
    %v2457 = vmul.f32 %v306, %v2456
    %v2458 = vrcp.pop %v1748
    %v2459 = vmul.f32 %v1748, %v2458
    %v2460 = vsub.f32 1.0, %v2459
    %v2461 = vmul.f32 %v2458, %v2460
    %v2462 = vadd.f32 %v2458, %v2461
    %vm2463 = vweird.f32 %v1748
    %vm2464 = vweird.f32 %v2458
    %vm2465 = vmor %vm2463, %vm2464
    %v2466 = vsel %vm2465, %v2458, %v2462
    %v2467 = vand.u32 2147483647, %v1748
    %vm2468 = vcmp.eq.f32.partialorder %v2467, 8.507059e+37
    %v2469 = vand.u32 %v1748, 2147483648
    %v2470 = vor.u32 1.1754944e-38, %v2469
    %v2471 = vsel %vm2468, %v2470, %v2466
    %v2472 = vmul.f32 %v307, %v2471
    %v2473 = vrcp.pop %v1749
    %v2474 = vmul.f32 %v1749, %v2473
    %v2475 = vsub.f32 1.0, %v2474
    %v2476 = vmul.f32 %v2473, %v2475
    %v2477 = vadd.f32 %v2473, %v2476
    %vm2478 = vweird.f32 %v1749
    %vm2479 = vweird.f32 %v2473
    %vm2480 = vmor %vm2478, %vm2479
    %v2481 = vsel %vm2480, %v2473, %v2477
    %v2482 = vand.u32 2147483647, %v1749
    %vm2483 = vcmp.eq.f32.partialorder %v2482, 8.507059e+37
    %v2484 = vand.u32 %v1749, 2147483648
    %v2485 = vor.u32 1.1754944e-38, %v2484
    %v2486 = vsel %vm2483, %v2485, %v2481
    %v2487 = vmul.f32 %v308, %v2486
    %v2488 = vrcp.pop %v1750
    %v2489 = vmul.f32 %v1750, %v2488
    %v2490 = vsub.f32 1.0, %v2489
    %v2491 = vmul.f32 %v2488, %v2490
    %v2492 = vadd.f32 %v2488, %v2491
    %vm2493 = vweird.f32 %v1750
    %vm2494 = vweird.f32 %v2488
    %vm2495 = vmor %vm2493, %vm2494
    %v2496 = vsel %vm2495, %v2488, %v2492
    %v2497 = vand.u32 2147483647, %v1750
    %vm2498 = vcmp.eq.f32.partialorder %v2497, 8.507059e+37
    %v2499 = vand.u32 %v1750, 2147483648
    %v2500 = vor.u32 1.1754944e-38, %v2499
    %v2501 = vsel %vm2498, %v2500, %v2496
    %v2502 = vmul.f32 %v309, %v2501
    %v2503 = vrcp.pop %v1751
    %v2504 = vmul.f32 %v1751, %v2503
    %v2505 = vsub.f32 1.0, %v2504
    %v2506 = vmul.f32 %v2503, %v2505
    %v2507 = vadd.f32 %v2503, %v2506
    %vm2508 = vweird.f32 %v1751
    %vm2509 = vweird.f32 %v2503
    %vm2510 = vmor %vm2508, %vm2509
    %v2511 = vsel %vm2510, %v2503, %v2507
    %v2512 = vand.u32 2147483647, %v1751
    %vm2513 = vcmp.eq.f32.partialorder %v2512, 8.507059e+37
    %v2514 = vand.u32 %v1751, 2147483648
    %v2515 = vor.u32 1.1754944e-38, %v2514
    %v2516 = vsel %vm2513, %v2515, %v2511
    %v2517 = vmul.f32 %v310, %v2516
    %v2518 = vrcp.pop %v1752
    %v2519 = vmul.f32 %v1752, %v2518
    %v2520 = vsub.f32 1.0, %v2519
    %v2521 = vmul.f32 %v2518, %v2520
    %v2522 = vadd.f32 %v2518, %v2521
    %vm2523 = vweird.f32 %v1752
    %vm2524 = vweird.f32 %v2518
    %vm2525 = vmor %vm2523, %vm2524
    %v2526 = vsel %vm2525, %v2518, %v2522
    %v2527 = vand.u32 2147483647, %v1752
    %vm2528 = vcmp.eq.f32.partialorder %v2527, 8.507059e+37
    %v2529 = vand.u32 %v1752, 2147483648
    %v2530 = vor.u32 1.1754944e-38, %v2529
    %v2531 = vsel %vm2528, %v2530, %v2526
    %v2532 = vmul.f32 %v311, %v2531
    %v2533 = vrcp.pop %v1753
    %v2534 = vmul.f32 %v1753, %v2533
    %v2535 = vsub.f32 1.0, %v2534
    %v2536 = vmul.f32 %v2533, %v2535
    %v2537 = vadd.f32 %v2533, %v2536
    %vm2538 = vweird.f32 %v1753
    %vm2539 = vweird.f32 %v2533
    %vm2540 = vmor %vm2538, %vm2539
    %v2541 = vsel %vm2540, %v2533, %v2537
    %v2542 = vand.u32 2147483647, %v1753
    %vm2543 = vcmp.eq.f32.partialorder %v2542, 8.507059e+37
    %v2544 = vand.u32 %v1753, 2147483648
    %v2545 = vor.u32 1.1754944e-38, %v2544
    %v2546 = vsel %vm2543, %v2545, %v2541
    %v2547 = vmul.f32 %v312, %v2546
    %v2548 = vrcp.pop %v1754
    %v2549 = vmul.f32 %v1754, %v2548
    %v2550 = vsub.f32 1.0, %v2549
    %v2551 = vmul.f32 %v2548, %v2550
    %v2552 = vadd.f32 %v2548, %v2551
    %vm2553 = vweird.f32 %v1754
    %vm2554 = vweird.f32 %v2548
    %vm2555 = vmor %vm2553, %vm2554
    %v2556 = vsel %vm2555, %v2548, %v2552
    %v2557 = vand.u32 2147483647, %v1754
    %vm2558 = vcmp.eq.f32.partialorder %v2557, 8.507059e+37
    %v2559 = vand.u32 %v1754, 2147483648
    %v2560 = vor.u32 1.1754944e-38, %v2559
    %v2561 = vsel %vm2558, %v2560, %v2556
    %v2562 = vmul.f32 %v313, %v2561
    %v2563 = vrcp.pop %v1755
    %v2564 = vmul.f32 %v1755, %v2563
    %v2565 = vsub.f32 1.0, %v2564
    %v2566 = vmul.f32 %v2563, %v2565
    %v2567 = vadd.f32 %v2563, %v2566
    %vm2568 = vweird.f32 %v1755
    %vm2569 = vweird.f32 %v2563
    %vm2570 = vmor %vm2568, %vm2569
    %v2571 = vsel %vm2570, %v2563, %v2567
    %v2572 = vand.u32 2147483647, %v1755
    %vm2573 = vcmp.eq.f32.partialorder %v2572, 8.507059e+37
    %v2574 = vand.u32 %v1755, 2147483648
    %v2575 = vor.u32 1.1754944e-38, %v2574
    %v2576 = vsel %vm2573, %v2575, %v2571
    %v2577 = vmul.f32 %v314, %v2576
    %v2578 = vrcp.pop %v1756
    %v2579 = vmul.f32 %v1756, %v2578
    %v2580 = vsub.f32 1.0, %v2579
    %v2581 = vmul.f32 %v2578, %v2580
    %v2582 = vadd.f32 %v2578, %v2581
    %vm2583 = vweird.f32 %v1756
    %vm2584 = vweird.f32 %v2578
    %vm2585 = vmor %vm2583, %vm2584
    %v2586 = vsel %vm2585, %v2578, %v2582
    %v2587 = vand.u32 2147483647, %v1756
    %vm2588 = vcmp.eq.f32.partialorder %v2587, 8.507059e+37
    %v2589 = vand.u32 %v1756, 2147483648
    %v2590 = vor.u32 1.1754944e-38, %v2589
    %v2591 = vsel %vm2588, %v2590, %v2586
    %v2592 = vmul.f32 %v315, %v2591
    %v2593 = vrcp.pop %v1757
    %v2594 = vmul.f32 %v1757, %v2593
    %v2595 = vsub.f32 1.0, %v2594
    %v2596 = vmul.f32 %v2593, %v2595
    %v2597 = vadd.f32 %v2593, %v2596
    %vm2598 = vweird.f32 %v1757
    %vm2599 = vweird.f32 %v2593
    %vm2600 = vmor %vm2598, %vm2599
    %v2601 = vsel %vm2600, %v2593, %v2597
    %v2602 = vand.u32 2147483647, %v1757
    %vm2603 = vcmp.eq.f32.partialorder %v2602, 8.507059e+37
    %v2604 = vand.u32 %v1757, 2147483648
    %v2605 = vor.u32 1.1754944e-38, %v2604
    %v2606 = vsel %vm2603, %v2605, %v2601
    %v2607 = vmul.f32 %v316, %v2606
    %v2608 = vrcp.pop %v1758
    %v2609 = vmul.f32 %v1758, %v2608
    %v2610 = vsub.f32 1.0, %v2609
    %v2611 = vmul.f32 %v2608, %v2610
    %v2612 = vadd.f32 %v2608, %v2611
    %vm2613 = vweird.f32 %v1758
    %vm2614 = vweird.f32 %v2608
    %vm2615 = vmor %vm2613, %vm2614
    %v2616 = vsel %vm2615, %v2608, %v2612
    %v2617 = vand.u32 2147483647, %v1758
    %vm2618 = vcmp.eq.f32.partialorder %v2617, 8.507059e+37
    %v2619 = vand.u32 %v1758, 2147483648
    %v2620 = vor.u32 1.1754944e-38, %v2619
    %v2621 = vsel %vm2618, %v2620, %v2616
    %v2622 = vmul.f32 %v317, %v2621
    %v2623 = vrcp.pop %v1759
    %v2624 = vmul.f32 %v1759, %v2623
    %v2625 = vsub.f32 1.0, %v2624
    %v2626 = vmul.f32 %v2623, %v2625
    %v2627 = vadd.f32 %v2623, %v2626
    %vm2628 = vweird.f32 %v1759
    %vm2629 = vweird.f32 %v2623
    %vm2630 = vmor %vm2628, %vm2629
    %v2631 = vsel %vm2630, %v2623, %v2627
    %v2632 = vand.u32 2147483647, %v1759
    %vm2633 = vcmp.eq.f32.partialorder %v2632, 8.507059e+37
    %v2634 = vand.u32 %v1759, 2147483648
    %v2635 = vor.u32 1.1754944e-38, %v2634
    %v2636 = vsel %vm2633, %v2635, %v2631
    %v2637 = vmul.f32 %v318, %v2636
    %v2638 = vrcp.pop %v1760
    %v2639 = vmul.f32 %v1760, %v2638
    %v2640 = vsub.f32 1.0, %v2639
    %v2641 = vmul.f32 %v2638, %v2640
    %v2642 = vadd.f32 %v2638, %v2641
    %vm2643 = vweird.f32 %v1760
    %vm2644 = vweird.f32 %v2638
    %vm2645 = vmor %vm2643, %vm2644
    %v2646 = vsel %vm2645, %v2638, %v2642
    %v2647 = vand.u32 2147483647, %v1760
    %vm2648 = vcmp.eq.f32.partialorder %v2647, 8.507059e+37
    %v2649 = vand.u32 %v1760, 2147483648
    %v2650 = vor.u32 1.1754944e-38, %v2649
    %v2651 = vsel %vm2648, %v2650, %v2646
    %v2652 = vmul.f32 %v319, %v2651
    %v2653 = vrcp.pop %v1761
    %v2654 = vmul.f32 %v1761, %v2653
    %v2655 = vsub.f32 1.0, %v2654
    %v2656 = vmul.f32 %v2653, %v2655
    %v2657 = vadd.f32 %v2653, %v2656
    %vm2658 = vweird.f32 %v1761
    %vm2659 = vweird.f32 %v2653
    %vm2660 = vmor %vm2658, %vm2659
    %v2661 = vsel %vm2660, %v2653, %v2657
    %v2662 = vand.u32 2147483647, %v1761
    %vm2663 = vcmp.eq.f32.partialorder %v2662, 8.507059e+37
    %v2664 = vand.u32 %v1761, 2147483648
    %v2665 = vor.u32 1.1754944e-38, %v2664
    %v2666 = vsel %vm2663, %v2665, %v2661
    %v2667 = vmul.f32 %v320, %v2666
    %v2668 = vrcp.pop %v1762
    %v2669 = vmul.f32 %v1762, %v2668
    %v2670 = vsub.f32 1.0, %v2669
    %v2671 = vmul.f32 %v2668, %v2670
    %v2672 = vadd.f32 %v2668, %v2671
    %vm2673 = vweird.f32 %v1762
    %vm2674 = vweird.f32 %v2668
    %vm2675 = vmor %vm2673, %vm2674
    %v2676 = vsel %vm2675, %v2668, %v2672
    %v2677 = vand.u32 2147483647, %v1762
    %vm2678 = vcmp.eq.f32.partialorder %v2677, 8.507059e+37
    %v2679 = vand.u32 %v1762, 2147483648
    %v2680 = vor.u32 1.1754944e-38, %v2679
    %v2681 = vsel %vm2678, %v2680, %v2676
    %v2682 = vmul.f32 %v321, %v2681
    %v2683 = vrcp.pop %v1763
    %v2684 = vmul.f32 %v1763, %v2683
    %v2685 = vsub.f32 1.0, %v2684
    %v2686 = vmul.f32 %v2683, %v2685
    %v2687 = vadd.f32 %v2683, %v2686
    %vm2688 = vweird.f32 %v1763
    %vm2689 = vweird.f32 %v2683
    %vm2690 = vmor %vm2688, %vm2689
    %v2691 = vsel %vm2690, %v2683, %v2687
    %v2692 = vand.u32 2147483647, %v1763
    %vm2693 = vcmp.eq.f32.partialorder %v2692, 8.507059e+37
    %v2694 = vand.u32 %v1763, 2147483648
    %v2695 = vor.u32 1.1754944e-38, %v2694
    %v2696 = vsel %vm2693, %v2695, %v2691
    %v2697 = vmul.f32 %v322, %v2696
    %v2698 = vrcp.pop %v1764
    %v2699 = vmul.f32 %v1764, %v2698
    %v2700 = vsub.f32 1.0, %v2699
    %v2701 = vmul.f32 %v2698, %v2700
    %v2702 = vadd.f32 %v2698, %v2701
    %vm2703 = vweird.f32 %v1764
    %vm2704 = vweird.f32 %v2698
    %vm2705 = vmor %vm2703, %vm2704
    %v2706 = vsel %vm2705, %v2698, %v2702
    %v2707 = vand.u32 2147483647, %v1764
    %vm2708 = vcmp.eq.f32.partialorder %v2707, 8.507059e+37
    %v2709 = vand.u32 %v1764, 2147483648
    %v2710 = vor.u32 1.1754944e-38, %v2709
    %v2711 = vsel %vm2708, %v2710, %v2706
    %v2712 = vmul.f32 %v323, %v2711
    %v2713 = vrcp.pop %v1765
    %v2714 = vmul.f32 %v1765, %v2713
    %v2715 = vsub.f32 1.0, %v2714
    %v2716 = vmul.f32 %v2713, %v2715
    %v2717 = vadd.f32 %v2713, %v2716
    %vm2718 = vweird.f32 %v1765
    %vm2719 = vweird.f32 %v2713
    %vm2720 = vmor %vm2718, %vm2719
    %v2721 = vsel %vm2720, %v2713, %v2717
    %v2722 = vand.u32 2147483647, %v1765
    %vm2723 = vcmp.eq.f32.partialorder %v2722, 8.507059e+37
    %v2724 = vand.u32 %v1765, 2147483648
    %v2725 = vor.u32 1.1754944e-38, %v2724
    %v2726 = vsel %vm2723, %v2725, %v2721
    %v2727 = vmul.f32 %v324, %v2726
    %v2728 = vrcp.pop %v1766
    %v2729 = vmul.f32 %v1766, %v2728
    %v2730 = vsub.f32 1.0, %v2729
    %v2731 = vmul.f32 %v2728, %v2730
    %v2732 = vadd.f32 %v2728, %v2731
    %vm2733 = vweird.f32 %v1766
    %vm2734 = vweird.f32 %v2728
    %vm2735 = vmor %vm2733, %vm2734
    %v2736 = vsel %vm2735, %v2728, %v2732
    %v2737 = vand.u32 2147483647, %v1766
    %vm2738 = vcmp.eq.f32.partialorder %v2737, 8.507059e+37
    %v2739 = vand.u32 %v1766, 2147483648
    %v2740 = vor.u32 1.1754944e-38, %v2739
    %v2741 = vsel %vm2738, %v2740, %v2736
    %v2742 = vmul.f32 %v325, %v2741
    %v2743 = vrcp.pop %v1767
    %v2744 = vmul.f32 %v1767, %v2743
    %v2745 = vsub.f32 1.0, %v2744
    %v2746 = vmul.f32 %v2743, %v2745
    %v2747 = vadd.f32 %v2743, %v2746
    %vm2748 = vweird.f32 %v1767
    %vm2749 = vweird.f32 %v2743
    %vm2750 = vmor %vm2748, %vm2749
    %v2751 = vsel %vm2750, %v2743, %v2747
    %v2752 = vand.u32 2147483647, %v1767
    %vm2753 = vcmp.eq.f32.partialorder %v2752, 8.507059e+37
    %v2754 = vand.u32 %v1767, 2147483648
    %v2755 = vor.u32 1.1754944e-38, %v2754
    %v2756 = vsel %vm2753, %v2755, %v2751
    %v2757 = vmul.f32 %v326, %v2756
    %v2758 = vrcp.pop %v1768
    %v2759 = vmul.f32 %v1768, %v2758
    %v2760 = vsub.f32 1.0, %v2759
    %v2761 = vmul.f32 %v2758, %v2760
    %v2762 = vadd.f32 %v2758, %v2761
    %vm2763 = vweird.f32 %v1768
    %vm2764 = vweird.f32 %v2758
    %vm2765 = vmor %vm2763, %vm2764
    %v2766 = vsel %vm2765, %v2758, %v2762
    %v2767 = vand.u32 2147483647, %v1768
    %vm2768 = vcmp.eq.f32.partialorder %v2767, 8.507059e+37
    %v2769 = vand.u32 %v1768, 2147483648
    %v2770 = vor.u32 1.1754944e-38, %v2769
    %v2771 = vsel %vm2768, %v2770, %v2766
    %v2772 = vmul.f32 %v327, %v2771
    %v2773 = vrcp.pop %v1769
    %v2774 = vmul.f32 %v1769, %v2773
    %v2775 = vsub.f32 1.0, %v2774
    %v2776 = vmul.f32 %v2773, %v2775
    %v2777 = vadd.f32 %v2773, %v2776
    %vm2778 = vweird.f32 %v1769
    %vm2779 = vweird.f32 %v2773
    %vm2780 = vmor %vm2778, %vm2779
    %v2781 = vsel %vm2780, %v2773, %v2777
    %v2782 = vand.u32 2147483647, %v1769
    %vm2783 = vcmp.eq.f32.partialorder %v2782, 8.507059e+37
    %v2784 = vand.u32 %v1769, 2147483648
    %v2785 = vor.u32 1.1754944e-38, %v2784
    %v2786 = vsel %vm2783, %v2785, %v2781
    %v2787 = vmul.f32 %v328, %v2786
    %v2788 = vrcp.pop %v1770
    %v2789 = vmul.f32 %v1770, %v2788
    %v2790 = vsub.f32 1.0, %v2789
    %v2791 = vmul.f32 %v2788, %v2790
    %v2792 = vadd.f32 %v2788, %v2791
    %vm2793 = vweird.f32 %v1770
    %vm2794 = vweird.f32 %v2788
    %vm2795 = vmor %vm2793, %vm2794
    %v2796 = vsel %vm2795, %v2788, %v2792
    %v2797 = vand.u32 2147483647, %v1770
    %vm2798 = vcmp.eq.f32.partialorder %v2797, 8.507059e+37
    %v2799 = vand.u32 %v1770, 2147483648
    %v2800 = vor.u32 1.1754944e-38, %v2799
    %v2801 = vsel %vm2798, %v2800, %v2796
    %v2802 = vmul.f32 %v329, %v2801
    %v2803 = vrcp.pop %v1771
    %v2804 = vmul.f32 %v1771, %v2803
    %v2805 = vsub.f32 1.0, %v2804
    %v2806 = vmul.f32 %v2803, %v2805
    %v2807 = vadd.f32 %v2803, %v2806
    %vm2808 = vweird.f32 %v1771
    %vm2809 = vweird.f32 %v2803
    %vm2810 = vmor %vm2808, %vm2809
    %v2811 = vsel %vm2810, %v2803, %v2807
    %v2812 = vand.u32 2147483647, %v1771
    %vm2813 = vcmp.eq.f32.partialorder %v2812, 8.507059e+37
    %v2814 = vand.u32 %v1771, 2147483648
    %v2815 = vor.u32 1.1754944e-38, %v2814
    %v2816 = vsel %vm2813, %v2815, %v2811
    %v2817 = vmul.f32 %v330, %v2816
    %v2818 = vrcp.pop %v1772
    %v2819 = vmul.f32 %v1772, %v2818
    %v2820 = vsub.f32 1.0, %v2819
    %v2821 = vmul.f32 %v2818, %v2820
    %v2822 = vadd.f32 %v2818, %v2821
    %vm2823 = vweird.f32 %v1772
    %vm2824 = vweird.f32 %v2818
    %vm2825 = vmor %vm2823, %vm2824
    %v2826 = vsel %vm2825, %v2818, %v2822
    %v2827 = vand.u32 2147483647, %v1772
    %vm2828 = vcmp.eq.f32.partialorder %v2827, 8.507059e+37
    %v2829 = vand.u32 %v1772, 2147483648
    %v2830 = vor.u32 1.1754944e-38, %v2829
    %v2831 = vsel %vm2828, %v2830, %v2826
    %v2832 = vmul.f32 %v331, %v2831
    %v2833 = vrcp.pop %v1773
    %v2834 = vmul.f32 %v1773, %v2833
    %v2835 = vsub.f32 1.0, %v2834
    %v2836 = vmul.f32 %v2833, %v2835
    %v2837 = vadd.f32 %v2833, %v2836
    %vm2838 = vweird.f32 %v1773
    %vm2839 = vweird.f32 %v2833
    %vm2840 = vmor %vm2838, %vm2839
    %v2841 = vsel %vm2840, %v2833, %v2837
    %v2842 = vand.u32 2147483647, %v1773
    %vm2843 = vcmp.eq.f32.partialorder %v2842, 8.507059e+37
    %v2844 = vand.u32 %v1773, 2147483648
    %v2845 = vor.u32 1.1754944e-38, %v2844
    %v2846 = vsel %vm2843, %v2845, %v2841
    %v2847 = vmul.f32 %v332, %v2846
    %v2848 = vrcp.pop %v1774
    %v2849 = vmul.f32 %v1774, %v2848
    %v2850 = vsub.f32 1.0, %v2849
    %v2851 = vmul.f32 %v2848, %v2850
    %v2852 = vadd.f32 %v2848, %v2851
    %vm2853 = vweird.f32 %v1774
    %vm2854 = vweird.f32 %v2848
    %vm2855 = vmor %vm2853, %vm2854
    %v2856 = vsel %vm2855, %v2848, %v2852
    %v2857 = vand.u32 2147483647, %v1774
    %vm2858 = vcmp.eq.f32.partialorder %v2857, 8.507059e+37
    %v2859 = vand.u32 %v1774, 2147483648
    %v2860 = vor.u32 1.1754944e-38, %v2859
    %v2861 = vsel %vm2858, %v2860, %v2856
    %v2862 = vmul.f32 %v333, %v2861
    %v2863 = vrcp.pop %v1775
    %v2864 = vmul.f32 %v1775, %v2863
    %v2865 = vsub.f32 1.0, %v2864
    %v2866 = vmul.f32 %v2863, %v2865
    %v2867 = vadd.f32 %v2863, %v2866
    %vm2868 = vweird.f32 %v1775
    %vm2869 = vweird.f32 %v2863
    %vm2870 = vmor %vm2868, %vm2869
    %v2871 = vsel %vm2870, %v2863, %v2867
    %v2872 = vand.u32 2147483647, %v1775
    %vm2873 = vcmp.eq.f32.partialorder %v2872, 8.507059e+37
    %v2874 = vand.u32 %v1775, 2147483648
    %v2875 = vor.u32 1.1754944e-38, %v2874
    %v2876 = vsel %vm2873, %v2875, %v2871
    %v2877 = vmul.f32 %v334, %v2876
    %v2878 = vrcp.pop %v1776
    %v2879 = vmul.f32 %v1776, %v2878
    %v2880 = vsub.f32 1.0, %v2879
    %v2881 = vmul.f32 %v2878, %v2880
    %v2882 = vadd.f32 %v2878, %v2881
    %vm2883 = vweird.f32 %v1776
    %vm2884 = vweird.f32 %v2878
    %vm2885 = vmor %vm2883, %vm2884
    %v2886 = vsel %vm2885, %v2878, %v2882
    %v2887 = vand.u32 2147483647, %v1776
    %vm2888 = vcmp.eq.f32.partialorder %v2887, 8.507059e+37
    %v2889 = vand.u32 %v1776, 2147483648
    %v2890 = vor.u32 1.1754944e-38, %v2889
    %v2891 = vsel %vm2888, %v2890, %v2886
    %v2892 = vmul.f32 %v335, %v2891
    %v2893 = vrcp.pop %v1777
    %v2894 = vmul.f32 %v1777, %v2893
    %v2895 = vsub.f32 1.0, %v2894
    %v2896 = vmul.f32 %v2893, %v2895
    %v2897 = vadd.f32 %v2893, %v2896
    %vm2898 = vweird.f32 %v1777
    %vm2899 = vweird.f32 %v2893
    %vm2900 = vmor %vm2898, %vm2899
    %v2901 = vsel %vm2900, %v2893, %v2897
    %v2902 = vand.u32 2147483647, %v1777
    %vm2903 = vcmp.eq.f32.partialorder %v2902, 8.507059e+37
    %v2904 = vand.u32 %v1777, 2147483648
    %v2905 = vor.u32 1.1754944e-38, %v2904
    %v2906 = vsel %vm2903, %v2905, %v2901
    %v2907 = vmul.f32 %v336, %v2906
    %v2908 = vrcp.pop %v1778
    %v2909 = vmul.f32 %v1778, %v2908
    %v2910 = vsub.f32 1.0, %v2909
    %v2911 = vmul.f32 %v2908, %v2910
    %v2912 = vadd.f32 %v2908, %v2911
    %vm2913 = vweird.f32 %v1778
    %vm2914 = vweird.f32 %v2908
    %vm2915 = vmor %vm2913, %vm2914
    %v2916 = vsel %vm2915, %v2908, %v2912
    %v2917 = vand.u32 2147483647, %v1778
    %vm2918 = vcmp.eq.f32.partialorder %v2917, 8.507059e+37
    %v2919 = vand.u32 %v1778, 2147483648
    %v2920 = vor.u32 1.1754944e-38, %v2919
    %v2921 = vsel %vm2918, %v2920, %v2916
    %v2922 = vmul.f32 %v337, %v2921
    %v2923 = vrcp.pop %v1779
    %v2924 = vmul.f32 %v1779, %v2923
    %v2925 = vsub.f32 1.0, %v2924
    %v2926 = vmul.f32 %v2923, %v2925
    %v2927 = vadd.f32 %v2923, %v2926
    %vm2928 = vweird.f32 %v1779
    %vm2929 = vweird.f32 %v2923
    %vm2930 = vmor %vm2928, %vm2929
    %v2931 = vsel %vm2930, %v2923, %v2927
    %v2932 = vand.u32 2147483647, %v1779
    %vm2933 = vcmp.eq.f32.partialorder %v2932, 8.507059e+37
    %v2934 = vand.u32 %v1779, 2147483648
    %v2935 = vor.u32 1.1754944e-38, %v2934
    %v2936 = vsel %vm2933, %v2935, %v2931
    %v2937 = vmul.f32 %v338, %v2936
    %v2938 = vrcp.pop %v1780
    %v2939 = vmul.f32 %v1780, %v2938
    %v2940 = vsub.f32 1.0, %v2939
    %v2941 = vmul.f32 %v2938, %v2940
    %v2942 = vadd.f32 %v2938, %v2941
    %vm2943 = vweird.f32 %v1780
    %vm2944 = vweird.f32 %v2938
    %vm2945 = vmor %vm2943, %vm2944
    %v2946 = vsel %vm2945, %v2938, %v2942
    %v2947 = vand.u32 2147483647, %v1780
    %vm2948 = vcmp.eq.f32.partialorder %v2947, 8.507059e+37
    %v2949 = vand.u32 %v1780, 2147483648
    %v2950 = vor.u32 1.1754944e-38, %v2949
    %v2951 = vsel %vm2948, %v2950, %v2946
    %v2952 = vmul.f32 %v339, %v2951
    %v2953 = vrcp.pop %v1781
    %v2954 = vmul.f32 %v1781, %v2953
    %v2955 = vsub.f32 1.0, %v2954
    %v2956 = vmul.f32 %v2953, %v2955
    %v2957 = vadd.f32 %v2953, %v2956
    %vm2958 = vweird.f32 %v1781
    %vm2959 = vweird.f32 %v2953
    %vm2960 = vmor %vm2958, %vm2959
    %v2961 = vsel %vm2960, %v2953, %v2957
    %v2962 = vand.u32 2147483647, %v1781
    %vm2963 = vcmp.eq.f32.partialorder %v2962, 8.507059e+37
    %v2964 = vand.u32 %v1781, 2147483648
    %v2965 = vor.u32 1.1754944e-38, %v2964
    %v2966 = vsel %vm2963, %v2965, %v2961
    %v2967 = vmul.f32 %v340, %v2966
    %v2968 = vrcp.pop %v1782
    %v2969 = vmul.f32 %v1782, %v2968
    %v2970 = vsub.f32 1.0, %v2969
    %v2971 = vmul.f32 %v2968, %v2970
    %v2972 = vadd.f32 %v2968, %v2971
    %vm2973 = vweird.f32 %v1782
    %vm2974 = vweird.f32 %v2968
    %vm2975 = vmor %vm2973, %vm2974
    %v2976 = vsel %vm2975, %v2968, %v2972
    %v2977 = vand.u32 2147483647, %v1782
    %vm2978 = vcmp.eq.f32.partialorder %v2977, 8.507059e+37
    %v2979 = vand.u32 %v1782, 2147483648
    %v2980 = vor.u32 1.1754944e-38, %v2979
    %v2981 = vsel %vm2978, %v2980, %v2976
    %v2982 = vmul.f32 %v341, %v2981
    %v2983 = vld [vmem:[%s4] sm:$0x1]
    %v2985 = vperm.slane %v2983, 0
    %v2987 = vsub.f32 %v674, %v2985
    %v2988 = vsub.f32 %v686, %v2985
    %v2989 = vsub.f32 %v698, %v2985
    %v2990 = vsub.f32 %v710, %v2985
    %v2991 = vsub.f32 %v722, %v2985
    %v2992 = vsub.f32 %v734, %v2985
    %v2993 = vsub.f32 %v746, %v2985
    %v2994 = vsub.f32 %v758, %v2985
    %v2995 = vsub.f32 %v770, %v2985
    %v2996 = vsub.f32 %v782, %v2985
    %v2997 = vsub.f32 %v794, %v2985
    %v2998 = vsub.f32 %v806, %v2985
    %v2999 = vsub.f32 %v818, %v2985
    %v3000 = vsub.f32 %v830, %v2985
    %v3001 = vsub.f32 %v842, %v2985
    %v3002 = vsub.f32 %v854, %v2985
    %v3003 = vsub.f32 %v866, %v2985
    %v3004 = vsub.f32 %v878, %v2985
    %v3005 = vsub.f32 %v890, %v2985
    %v3006 = vsub.f32 %v902, %v2985
    %v3007 = vsub.f32 %v914, %v2985
    %v3008 = vsub.f32 %v926, %v2985
    %v3009 = vsub.f32 %v938, %v2985
    %v3010 = vsub.f32 %v950, %v2985
    %v3011 = vsub.f32 %v962, %v2985
    %v3012 = vsub.f32 %v974, %v2985
    %v3013 = vsub.f32 %v986, %v2985
    %v3014 = vsub.f32 %v998, %v2985
    %v3015 = vsub.f32 %v1010, %v2985
    %v3016 = vsub.f32 %v1022, %v2985
    %v3017 = vsub.f32 %v1034, %v2985
    %v3018 = vsub.f32 %v1046, %v2985
    %v3019 = vsub.f32 %v1058, %v2985
    %v3020 = vsub.f32 %v1070, %v2985
    %v3021 = vsub.f32 %v1082, %v2985
    %v3022 = vsub.f32 %v1094, %v2985
    %v3023 = vsub.f32 %v1106, %v2985
    %v3024 = vsub.f32 %v1118, %v2985
    %v3025 = vsub.f32 %v1130, %v2985
    %v3026 = vsub.f32 %v1142, %v2985
    %v3027 = vsub.f32 %v1154, %v2985
    %v3028 = vsub.f32 %v1166, %v2985
    %v3029 = vsub.f32 %v1178, %v2985
    %v3030 = vsub.f32 %v1190, %v2985
    %v3031 = vsub.f32 %v1202, %v2985
    %v3032 = vsub.f32 %v1214, %v2985
    %v3033 = vsub.f32 %v1226, %v2985
    %v3034 = vsub.f32 %v1238, %v2985
    %v3035 = vsub.f32 %v1250, %v2985
    %v3036 = vsub.f32 %v1262, %v2985
    %v3037 = vsub.f32 %v1274, %v2985
    %v3038 = vsub.f32 %v1286, %v2985
    %v3039 = vsub.f32 %v1298, %v2985
    %v3040 = vsub.f32 %v1310, %v2985
    %v3041 = vsub.f32 %v1322, %v2985
    %v3042 = vsub.f32 %v1334, %v2985
    %v3043 = vsub.f32 %v1346, %v2985
    %v3044 = vsub.f32 %v1358, %v2985
    %v3045 = vsub.f32 %v1370, %v2985
    %v3046 = vsub.f32 %v1382, %v2985
    %v3047 = vsub.f32 %v1394, %v2985
    %v3048 = vsub.f32 %v1406, %v2985
    %v3049 = vsub.f32 %v1418, %v2985
    %v3050 = vsub.f32 %v1430, %v2985
    %v3051 = vsub.f32 %v1442, %v2985
    %v3052 = vsub.f32 %v1454, %v2985
    %v3053 = vsub.f32 %v1466, %v2985
    %v3054 = vsub.f32 %v1478, %v2985
    %v3055 = vsub.f32 %v1490, %v2985
    %v3056 = vsub.f32 %v1502, %v2985
    %v3057 = vsub.f32 %v1514, %v2985
    %v3058 = vsub.f32 %v1526, %v2985
    %v3059 = vsub.f32 %v1538, %v2985
    %v3060 = vsub.f32 %v1550, %v2985
    %v3061 = vsub.f32 %v1562, %v2985
    %v3062 = vsub.f32 %v1574, %v2985
    %v3063 = vsub.f32 %v1586, %v2985
    %v3064 = vsub.f32 %v1598, %v2985
    %v3065 = vsub.f32 %v1610, %v2985
    %v3066 = vsub.f32 %v1622, %v2985
    %v3067 = vmul.f32 %v2987, -2.0
    %v3068 = vmul.f32 %v2988, -2.0
    %v3069 = vmul.f32 %v2989, -2.0
    %v3070 = vmul.f32 %v2990, -2.0
    %v3071 = vmul.f32 %v2991, -2.0
    %v3072 = vmul.f32 %v2992, -2.0
    %v3073 = vmul.f32 %v2993, -2.0
    %v3074 = vmul.f32 %v2994, -2.0
    %v3075 = vmul.f32 %v2995, -2.0
    %v3076 = vmul.f32 %v2996, -2.0
    %v3077 = vmul.f32 %v2997, -2.0
    %v3078 = vmul.f32 %v2998, -2.0
    %v3079 = vmul.f32 %v2999, -2.0
    %v3080 = vmul.f32 %v3000, -2.0
    %v3081 = vmul.f32 %v3001, -2.0
    %v3082 = vmul.f32 %v3002, -2.0
    %v3083 = vmul.f32 %v3003, -2.0
    %v3084 = vmul.f32 %v3004, -2.0
    %v3085 = vmul.f32 %v3005, -2.0
    %v3086 = vmul.f32 %v3006, -2.0
    %v3087 = vmul.f32 %v3007, -2.0
    %v3088 = vmul.f32 %v3008, -2.0
    %v3089 = vmul.f32 %v3009, -2.0
    %v3090 = vmul.f32 %v3010, -2.0
    %v3091 = vmul.f32 %v3011, -2.0
    %v3092 = vmul.f32 %v3012, -2.0
    %v3093 = vmul.f32 %v3013, -2.0
    %v3094 = vmul.f32 %v3014, -2.0
    %v3095 = vmul.f32 %v3015, -2.0
    %v3096 = vmul.f32 %v3016, -2.0
    %v3097 = vmul.f32 %v3017, -2.0
    %v3098 = vmul.f32 %v3018, -2.0
    %v3099 = vmul.f32 %v3019, -2.0
    %v3100 = vmul.f32 %v3020, -2.0
    %v3101 = vmul.f32 %v3021, -2.0
    %v3102 = vmul.f32 %v3022, -2.0
    %v3103 = vmul.f32 %v3023, -2.0
    %v3104 = vmul.f32 %v3024, -2.0
    %v3105 = vmul.f32 %v3025, -2.0
    %v3106 = vmul.f32 %v3026, -2.0
    %v3107 = vmul.f32 %v3027, -2.0
    %v3108 = vmul.f32 %v3028, -2.0
    %v3109 = vmul.f32 %v3029, -2.0
    %v3110 = vmul.f32 %v3030, -2.0
    %v3111 = vmul.f32 %v3031, -2.0
    %v3112 = vmul.f32 %v3032, -2.0
    %v3113 = vmul.f32 %v3033, -2.0
    %v3114 = vmul.f32 %v3034, -2.0
    %v3115 = vmul.f32 %v3035, -2.0
    %v3116 = vmul.f32 %v3036, -2.0
    %v3117 = vmul.f32 %v3037, -2.0
    %v3118 = vmul.f32 %v3038, -2.0
    %v3119 = vmul.f32 %v3039, -2.0
    %v3120 = vmul.f32 %v3040, -2.0
    %v3121 = vmul.f32 %v3041, -2.0
    %v3122 = vmul.f32 %v3042, -2.0
    %v3123 = vmul.f32 %v3043, -2.0
    %v3124 = vmul.f32 %v3044, -2.0
    %v3125 = vmul.f32 %v3045, -2.0
    %v3126 = vmul.f32 %v3046, -2.0
    %v3127 = vmul.f32 %v3047, -2.0
    %v3128 = vmul.f32 %v3048, -2.0
    %v3129 = vmul.f32 %v3049, -2.0
    %v3130 = vmul.f32 %v3050, -2.0
    %v3131 = vmul.f32 %v3051, -2.0
    %v3132 = vmul.f32 %v3052, -2.0
    %v3133 = vmul.f32 %v3053, -2.0
    %v3134 = vmul.f32 %v3054, -2.0
    %v3135 = vmul.f32 %v3055, -2.0
    %v3136 = vmul.f32 %v3056, -2.0
    %v3137 = vmul.f32 %v3057, -2.0
    %v3138 = vmul.f32 %v3058, -2.0
    %v3139 = vmul.f32 %v3059, -2.0
    %v3140 = vmul.f32 %v3060, -2.0
    %v3141 = vmul.f32 %v3061, -2.0
    %v3142 = vmul.f32 %v3062, -2.0
    %v3143 = vmul.f32 %v3063, -2.0
    %v3144 = vmul.f32 %v3064, -2.0
    %v3145 = vmul.f32 %v3065, -2.0
    %v3146 = vmul.f32 %v3066, -2.0
    %v3147 = vmul.f32 %v3067, %v2987
    %v3148 = vmul.f32 %v3068, %v2988
    %v3149 = vmul.f32 %v3069, %v2989
    %v3150 = vmul.f32 %v3070, %v2990
    %v3151 = vmul.f32 %v3071, %v2991
    %v3152 = vmul.f32 %v3072, %v2992
    %v3153 = vmul.f32 %v3073, %v2993
    %v3154 = vmul.f32 %v3074, %v2994
    %v3155 = vmul.f32 %v3075, %v2995
    %v3156 = vmul.f32 %v3076, %v2996
    %v3157 = vmul.f32 %v3077, %v2997
    %v3158 = vmul.f32 %v3078, %v2998
    %v3159 = vmul.f32 %v3079, %v2999
    %v3160 = vmul.f32 %v3080, %v3000
    %v3161 = vmul.f32 %v3081, %v3001
    %v3162 = vmul.f32 %v3082, %v3002
    %v3163 = vmul.f32 %v3083, %v3003
    %v3164 = vmul.f32 %v3084, %v3004
    %v3165 = vmul.f32 %v3085, %v3005
    %v3166 = vmul.f32 %v3086, %v3006
    %v3167 = vmul.f32 %v3087, %v3007
    %v3168 = vmul.f32 %v3088, %v3008
    %v3169 = vmul.f32 %v3089, %v3009
    %v3170 = vmul.f32 %v3090, %v3010
    %v3171 = vmul.f32 %v3091, %v3011
    %v3172 = vmul.f32 %v3092, %v3012
    %v3173 = vmul.f32 %v3093, %v3013
    %v3174 = vmul.f32 %v3094, %v3014
    %v3175 = vmul.f32 %v3095, %v3015
    %v3176 = vmul.f32 %v3096, %v3016
    %v3177 = vmul.f32 %v3097, %v3017
    %v3178 = vmul.f32 %v3098, %v3018
    %v3179 = vmul.f32 %v3099, %v3019
    %v3180 = vmul.f32 %v3100, %v3020
    %v3181 = vmul.f32 %v3101, %v3021
    %v3182 = vmul.f32 %v3102, %v3022
    %v3183 = vmul.f32 %v3103, %v3023
    %v3184 = vmul.f32 %v3104, %v3024
    %v3185 = vmul.f32 %v3105, %v3025
    %v3186 = vmul.f32 %v3106, %v3026
    %v3187 = vmul.f32 %v3107, %v3027
    %v3188 = vmul.f32 %v3108, %v3028
    %v3189 = vmul.f32 %v3109, %v3029
    %v3190 = vmul.f32 %v3110, %v3030
    %v3191 = vmul.f32 %v3111, %v3031
    %v3192 = vmul.f32 %v3112, %v3032
    %v3193 = vmul.f32 %v3113, %v3033
    %v3194 = vmul.f32 %v3114, %v3034
    %v3195 = vmul.f32 %v3115, %v3035
    %v3196 = vmul.f32 %v3116, %v3036
    %v3197 = vmul.f32 %v3117, %v3037
    %v3198 = vmul.f32 %v3118, %v3038
    %v3199 = vmul.f32 %v3119, %v3039
    %v3200 = vmul.f32 %v3120, %v3040
    %v3201 = vmul.f32 %v3121, %v3041
    %v3202 = vmul.f32 %v3122, %v3042
    %v3203 = vmul.f32 %v3123, %v3043
    %v3204 = vmul.f32 %v3124, %v3044
    %v3205 = vmul.f32 %v3125, %v3045
    %v3206 = vmul.f32 %v3126, %v3046
    %v3207 = vmul.f32 %v3127, %v3047
    %v3208 = vmul.f32 %v3128, %v3048
    %v3209 = vmul.f32 %v3129, %v3049
    %v3210 = vmul.f32 %v3130, %v3050
    %v3211 = vmul.f32 %v3131, %v3051
    %v3212 = vmul.f32 %v3132, %v3052
    %v3213 = vmul.f32 %v3133, %v3053
    %v3214 = vmul.f32 %v3134, %v3054
    %v3215 = vmul.f32 %v3135, %v3055
    %v3216 = vmul.f32 %v3136, %v3056
    %v3217 = vmul.f32 %v3137, %v3057
    %v3218 = vmul.f32 %v3138, %v3058
    %v3219 = vmul.f32 %v3139, %v3059
    %v3220 = vmul.f32 %v3140, %v3060
    %v3221 = vmul.f32 %v3141, %v3061
    %v3222 = vmul.f32 %v3142, %v3062
    %v3223 = vmul.f32 %v3143, %v3063
    %v3224 = vmul.f32 %v3144, %v3064
    %v3225 = vmul.f32 %v3145, %v3065
    %v3226 = vmul.f32 %v3146, %v3066
    %v3227 = vmul.f32 %v3147, 1.442695
    %v3228 = vpow.pop %v3227
    %v3229 = vmul.f32 %v3148, 1.442695
    %v3230 = vpow.pop %v3229
    %v3231 = vmul.f32 %v3149, 1.442695
    %v3232 = vpow.pop %v3231
    %v3233 = vmul.f32 %v3150, 1.442695
    %v3234 = vpow.pop %v3233
    %v3235 = vmul.f32 %v3151, 1.442695
    %v3236 = vpow.pop %v3235
    %v3237 = vmul.f32 %v3152, 1.442695
    %v3238 = vpow.pop %v3237
    %v3239 = vmul.f32 %v3153, 1.442695
    %v3240 = vpow.pop %v3239
    %v3241 = vmul.f32 %v3154, 1.442695
    %v3242 = vpow.pop %v3241
    %v3243 = vmul.f32 %v3155, 1.442695
    %v3244 = vpow.pop %v3243
    %v3245 = vmul.f32 %v3156, 1.442695
    %v3246 = vpow.pop %v3245
    %v3247 = vmul.f32 %v3157, 1.442695
    %v3248 = vpow.pop %v3247
    %v3249 = vmul.f32 %v3158, 1.442695
    %v3250 = vpow.pop %v3249
    %v3251 = vmul.f32 %v3159, 1.442695
    %v3252 = vpow.pop %v3251
    %v3253 = vmul.f32 %v3160, 1.442695
    %v3254 = vpow.pop %v3253
    %v3255 = vmul.f32 %v3161, 1.442695
    %v3256 = vpow.pop %v3255
    %v3257 = vmul.f32 %v3162, 1.442695
    %v3258 = vpow.pop %v3257
    %v3259 = vmul.f32 %v3163, 1.442695
    %v3260 = vpow.pop %v3259
    %v3261 = vmul.f32 %v3164, 1.442695
    %v3262 = vpow.pop %v3261
    %v3263 = vmul.f32 %v3165, 1.442695
    %v3264 = vpow.pop %v3263
    %v3265 = vmul.f32 %v3166, 1.442695
    %v3266 = vpow.pop %v3265
    %v3267 = vmul.f32 %v3167, 1.442695
    %v3268 = vpow.pop %v3267
    %v3269 = vmul.f32 %v3168, 1.442695
    %v3270 = vpow.pop %v3269
    %v3271 = vmul.f32 %v3169, 1.442695
    %v3272 = vpow.pop %v3271
    %v3273 = vmul.f32 %v3170, 1.442695
    %v3274 = vpow.pop %v3273
    %v3275 = vmul.f32 %v3171, 1.442695
    %v3276 = vpow.pop %v3275
    %v3277 = vmul.f32 %v3172, 1.442695
    %v3278 = vpow.pop %v3277
    %v3279 = vmul.f32 %v3173, 1.442695
    %v3280 = vpow.pop %v3279
    %v3281 = vmul.f32 %v3174, 1.442695
    %v3282 = vpow.pop %v3281
    %v3283 = vmul.f32 %v3175, 1.442695
    %v3284 = vpow.pop %v3283
    %v3285 = vmul.f32 %v3176, 1.442695
    %v3286 = vpow.pop %v3285
    %v3287 = vmul.f32 %v3177, 1.442695
    %v3288 = vpow.pop %v3287
    %v3289 = vmul.f32 %v3178, 1.442695
    %v3290 = vpow.pop %v3289
    %v3291 = vmul.f32 %v3179, 1.442695
    %v3292 = vpow.pop %v3291
    %v3293 = vmul.f32 %v3180, 1.442695
    %v3294 = vpow.pop %v3293
    %v3295 = vmul.f32 %v3181, 1.442695
    %v3296 = vpow.pop %v3295
    %v3297 = vmul.f32 %v3182, 1.442695
    %v3298 = vpow.pop %v3297
    %v3299 = vmul.f32 %v3183, 1.442695
    %v3300 = vpow.pop %v3299
    %v3301 = vmul.f32 %v3184, 1.442695
    %v3302 = vpow.pop %v3301
    %v3303 = vmul.f32 %v3185, 1.442695
    %v3304 = vpow.pop %v3303
    %v3305 = vmul.f32 %v3186, 1.442695
    %v3306 = vpow.pop %v3305
    %v3307 = vmul.f32 %v3187, 1.442695
    %v3308 = vpow.pop %v3307
    %v3309 = vmul.f32 %v3188, 1.442695
    %v3310 = vpow.pop %v3309
    %v3311 = vmul.f32 %v3189, 1.442695
    %v3312 = vpow.pop %v3311
    %v3313 = vmul.f32 %v3190, 1.442695
    %v3314 = vpow.pop %v3313
    %v3315 = vmul.f32 %v3191, 1.442695
    %v3316 = vpow.pop %v3315
    %v3317 = vmul.f32 %v3192, 1.442695
    %v3318 = vpow.pop %v3317
    %v3319 = vmul.f32 %v3193, 1.442695
    %v3320 = vpow.pop %v3319
    %v3321 = vmul.f32 %v3194, 1.442695
    %v3322 = vpow.pop %v3321
    %v3323 = vmul.f32 %v3195, 1.442695
    %v3324 = vpow.pop %v3323
    %v3325 = vmul.f32 %v3196, 1.442695
    %v3326 = vpow.pop %v3325
    %v3327 = vmul.f32 %v3197, 1.442695
    %v3328 = vpow.pop %v3327
    %v3329 = vmul.f32 %v3198, 1.442695
    %v3330 = vpow.pop %v3329
    %v3331 = vmul.f32 %v3199, 1.442695
    %v3332 = vpow.pop %v3331
    %v3333 = vmul.f32 %v3200, 1.442695
    %v3334 = vpow.pop %v3333
    %v3335 = vmul.f32 %v3201, 1.442695
    %v3336 = vpow.pop %v3335
    %v3337 = vmul.f32 %v3202, 1.442695
    %v3338 = vpow.pop %v3337
    %v3339 = vmul.f32 %v3203, 1.442695
    %v3340 = vpow.pop %v3339
    %v3341 = vmul.f32 %v3204, 1.442695
    %v3342 = vpow.pop %v3341
    %v3343 = vmul.f32 %v3205, 1.442695
    %v3344 = vpow.pop %v3343
    %v3345 = vmul.f32 %v3206, 1.442695
    %v3346 = vpow.pop %v3345
    %v3347 = vmul.f32 %v3207, 1.442695
    %v3348 = vpow.pop %v3347
    %v3349 = vmul.f32 %v3208, 1.442695
    %v3350 = vpow.pop %v3349
    %v3351 = vmul.f32 %v3209, 1.442695
    %v3352 = vpow.pop %v3351
    %v3353 = vmul.f32 %v3210, 1.442695
    %v3354 = vpow.pop %v3353
    %v3355 = vmul.f32 %v3211, 1.442695
    %v3356 = vpow.pop %v3355
    %v3357 = vmul.f32 %v3212, 1.442695
    %v3358 = vpow.pop %v3357
    %v3359 = vmul.f32 %v3213, 1.442695
    %v3360 = vpow.pop %v3359
    %v3361 = vmul.f32 %v3214, 1.442695
    %v3362 = vpow.pop %v3361
    %v3363 = vmul.f32 %v3215, 1.442695
    %v3364 = vpow.pop %v3363
    %v3365 = vmul.f32 %v3216, 1.442695
    %v3366 = vpow.pop %v3365
    %v3367 = vmul.f32 %v3217, 1.442695
    %v3368 = vpow.pop %v3367
    %v3369 = vmul.f32 %v3218, 1.442695
    %v3370 = vpow.pop %v3369
    %v3371 = vmul.f32 %v3219, 1.442695
    %v3372 = vpow.pop %v3371
    %v3373 = vmul.f32 %v3220, 1.442695
    %v3374 = vpow.pop %v3373
    %v3375 = vmul.f32 %v3221, 1.442695
    %v3376 = vpow.pop %v3375
    %v3377 = vmul.f32 %v3222, 1.442695
    %v3378 = vpow.pop %v3377
    %v3379 = vmul.f32 %v3223, 1.442695
    %v3380 = vpow.pop %v3379
    %v3381 = vmul.f32 %v3224, 1.442695
    %v3382 = vpow.pop %v3381
    %v3383 = vmul.f32 %v3225, 1.442695
    %v3384 = vpow.pop %v3383
    %v3385 = vmul.f32 %v3226, 1.442695
    %v3386 = vpow.pop %v3385
    %v3387 = vld [vmem:[%s5] sm:$0xff]
    %v3388 = vpack.c.bf16 %v3387, %v3387
    %v3389 = vld [vmem:[%s2] sm:$0xff]
    %v3390 = vld [vmem:[%s2 + $0x8] sm:$0xff]
    %v3391 = vld [vmem:[%s2 + $0x10] sm:$0xff]
    %v3392 = vld [vmem:[%s2 + $0x18] sm:$0xff]
    %v3393 = vld [vmem:[%s2 + $0x20] sm:$0xff]
    %v3394 = vld [vmem:[%s2 + $0x28] sm:$0xff]
    %v3395 = vld [vmem:[%s2 + $0x30] sm:$0xff]
    %v3396 = vld [vmem:[%s2 + $0x38] sm:$0xff]
    %v3397 = vld [vmem:[%s2 + $0x40] sm:$0xff]
    %v3398 = vld [vmem:[%s2 + $0x48] sm:$0xff]
    %v3399 = vld [vmem:[%s2 + $0x50] sm:$0xff]
    %v3400 = vld [vmem:[%s2 + $0x58] sm:$0xff]
    %v3401 = vld [vmem:[%s2 + $0x60] sm:$0xff]
    %v3402 = vld [vmem:[%s2 + $0x68] sm:$0xff]
    %v3403 = vld [vmem:[%s2 + $0x70] sm:$0xff]
    %v3404 = vld [vmem:[%s2 + $0x78] sm:$0xff]
    %v3405 = vld [vmem:[%s2 + $0x80] sm:$0xff]
    %v3406 = vld [vmem:[%s2 + $0x88] sm:$0xff]
    %v3407 = vld [vmem:[%s2 + $0x90] sm:$0xff]
    %v3408 = vld [vmem:[%s2 + $0x98] sm:$0xff]
    %v3409 = vld [vmem:[%s2 + $0xa0] sm:$0xff]
    %v3410 = vld [vmem:[%s2 + $0xa8] sm:$0xff]
    %v3411 = vld [vmem:[%s2 + $0xb0] sm:$0xff]
    %v3412 = vld [vmem:[%s2 + $0xb8] sm:$0xff]
    %v3413 = vld [vmem:[%s2 + $0xc0] sm:$0xff]
    %v3414 = vld [vmem:[%s2 + $0xc8] sm:$0xff]
    %v3415 = vld [vmem:[%s2 + $0xd0] sm:$0xff]
    %v3416 = vld [vmem:[%s2 + $0xd8] sm:$0xff]
    %v3417 = vld [vmem:[%s2 + $0xe0] sm:$0xff]
    %v3418 = vld [vmem:[%s2 + $0xe8] sm:$0xff]
    %v3419 = vld [vmem:[%s2 + $0xf0] sm:$0xff]
    %v3420 = vld [vmem:[%s2 + $0xf8] sm:$0xff]
    %v3421 = vld [vmem:[%s2 + $0x100] sm:$0xff]
    %v3422 = vld [vmem:[%s2 + $0x108] sm:$0xff]
    %v3423 = vld [vmem:[%s2 + $0x110] sm:$0xff]
    %v3424 = vld [vmem:[%s2 + $0x118] sm:$0xff]
    %v3425 = vld [vmem:[%s2 + $0x120] sm:$0xff]
    %v3426 = vld [vmem:[%s2 + $0x128] sm:$0xff]
    %v3427 = vld [vmem:[%s2 + $0x130] sm:$0xff]
    %v3428 = vld [vmem:[%s2 + $0x138] sm:$0xff]
    %v3429 = vld [vmem:[%s2 + $0x140] sm:$0xff]
    %v3430 = vld [vmem:[%s2 + $0x148] sm:$0xff]
    %v3431 = vld [vmem:[%s2 + $0x150] sm:$0xff]
    %v3432 = vld [vmem:[%s2 + $0x158] sm:$0xff]
    %v3433 = vld [vmem:[%s2 + $0x160] sm:$0xff]
    %v3434 = vld [vmem:[%s2 + $0x168] sm:$0xff]
    %v3435 = vld [vmem:[%s2 + $0x170] sm:$0xff]
    %v3436 = vld [vmem:[%s2 + $0x178] sm:$0xff]
    %v3437 = vld [vmem:[%s2 + $0x180] sm:$0xff]
    %v3438 = vld [vmem:[%s2 + $0x188] sm:$0xff]
    %v3439 = vld [vmem:[%s2 + $0x190] sm:$0xff]
    %v3440 = vld [vmem:[%s2 + $0x198] sm:$0xff]
    %v3441 = vld [vmem:[%s2 + $0x1a0] sm:$0xff]
    %v3442 = vld [vmem:[%s2 + $0x1a8] sm:$0xff]
    %v3443 = vld [vmem:[%s2 + $0x1b0] sm:$0xff]
    %v3444 = vld [vmem:[%s2 + $0x1b8] sm:$0xff]
    %v3445 = vld [vmem:[%s2 + $0x1c0] sm:$0xff]
    %v3446 = vld [vmem:[%s2 + $0x1c8] sm:$0xff]
    %v3447 = vld [vmem:[%s2 + $0x1d0] sm:$0xff]
    %v3448 = vld [vmem:[%s2 + $0x1d8] sm:$0xff]
    %v3449 = vld [vmem:[%s2 + $0x1e0] sm:$0xff]
    %v3450 = vld [vmem:[%s2 + $0x1e8] sm:$0xff]
    %v3451 = vld [vmem:[%s2 + $0x1f0] sm:$0xff]
    %v3452 = vld [vmem:[%s2 + $0x1f8] sm:$0xff]
    %v3453 = vld [vmem:[%s2 + $0x200] sm:$0xff]
    %v3454 = vld [vmem:[%s2 + $0x208] sm:$0xff]
    %v3455 = vld [vmem:[%s2 + $0x210] sm:$0xff]
    %v3456 = vld [vmem:[%s2 + $0x218] sm:$0xff]
    %v3457 = vld [vmem:[%s2 + $0x220] sm:$0xff]
    %v3458 = vld [vmem:[%s2 + $0x228] sm:$0xff]
    %v3459 = vld [vmem:[%s2 + $0x230] sm:$0xff]
    %v3460 = vld [vmem:[%s2 + $0x238] sm:$0xff]
    %v3461 = vld [vmem:[%s2 + $0x240] sm:$0xff]
    %v3462 = vld [vmem:[%s2 + $0x248] sm:$0xff]
    %v3463 = vld [vmem:[%s2 + $0x250] sm:$0xff]
    %v3464 = vld [vmem:[%s2 + $0x258] sm:$0xff]
    %v3465 = vld [vmem:[%s2 + $0x260] sm:$0xff]
    %v3466 = vld [vmem:[%s2 + $0x268] sm:$0xff]
    %v3467 = vld [vmem:[%s2 + $0x270] sm:$0xff]
    %v3468 = vld [vmem:[%s2 + $0x278] sm:$0xff]
    %v3469 = vpack.c.bf16 %v3389, %v3389
    %v3470 = vpack.c.bf16 %v3390, %v3390
    %v3471 = vpack.c.bf16 %v3391, %v3391
    %v3472 = vpack.c.bf16 %v3392, %v3392
    %v3473 = vpack.c.bf16 %v3393, %v3393
    %v3474 = vpack.c.bf16 %v3394, %v3394
    %v3475 = vpack.c.bf16 %v3395, %v3395
    %v3476 = vpack.c.bf16 %v3396, %v3396
    %v3477 = vpack.c.bf16 %v3397, %v3397
    %v3478 = vpack.c.bf16 %v3398, %v3398
    %v3479 = vpack.c.bf16 %v3399, %v3399
    %v3480 = vpack.c.bf16 %v3400, %v3400
    %v3481 = vpack.c.bf16 %v3401, %v3401
    %v3482 = vpack.c.bf16 %v3402, %v3402
    %v3483 = vpack.c.bf16 %v3403, %v3403
    %v3484 = vpack.c.bf16 %v3404, %v3404
    %v3485 = vpack.c.bf16 %v3405, %v3405
    %v3486 = vpack.c.bf16 %v3406, %v3406
    %v3487 = vpack.c.bf16 %v3407, %v3407
    %v3488 = vpack.c.bf16 %v3408, %v3408
    %v3489 = vpack.c.bf16 %v3409, %v3409
    %v3490 = vpack.c.bf16 %v3410, %v3410
    %v3491 = vpack.c.bf16 %v3411, %v3411
    %v3492 = vpack.c.bf16 %v3412, %v3412
    %v3493 = vpack.c.bf16 %v3413, %v3413
    %v3494 = vpack.c.bf16 %v3414, %v3414
    %v3495 = vpack.c.bf16 %v3415, %v3415
    %v3496 = vpack.c.bf16 %v3416, %v3416
    %v3497 = vpack.c.bf16 %v3417, %v3417
    %v3498 = vpack.c.bf16 %v3418, %v3418
    %v3499 = vpack.c.bf16 %v3419, %v3419
    %v3500 = vpack.c.bf16 %v3420, %v3420
    %v3501 = vpack.c.bf16 %v3421, %v3421
    %v3502 = vpack.c.bf16 %v3422, %v3422
    %v3503 = vpack.c.bf16 %v3423, %v3423
    %v3504 = vpack.c.bf16 %v3424, %v3424
    %v3505 = vpack.c.bf16 %v3425, %v3425
    %v3506 = vpack.c.bf16 %v3426, %v3426
    %v3507 = vpack.c.bf16 %v3427, %v3427
    %v3508 = vpack.c.bf16 %v3428, %v3428
    %v3509 = vpack.c.bf16 %v3429, %v3429
    %v3510 = vpack.c.bf16 %v3430, %v3430
    %v3511 = vpack.c.bf16 %v3431, %v3431
    %v3512 = vpack.c.bf16 %v3432, %v3432
    %v3513 = vpack.c.bf16 %v3433, %v3433
    %v3514 = vpack.c.bf16 %v3434, %v3434
    %v3515 = vpack.c.bf16 %v3435, %v3435
    %v3516 = vpack.c.bf16 %v3436, %v3436
    %v3517 = vpack.c.bf16 %v3437, %v3437
    %v3518 = vpack.c.bf16 %v3438, %v3438
    %v3519 = vpack.c.bf16 %v3439, %v3439
    %v3520 = vpack.c.bf16 %v3440, %v3440
    %v3521 = vpack.c.bf16 %v3441, %v3441
    %v3522 = vpack.c.bf16 %v3442, %v3442
    %v3523 = vpack.c.bf16 %v3443, %v3443
    %v3524 = vpack.c.bf16 %v3444, %v3444
    %v3525 = vpack.c.bf16 %v3445, %v3445
    %v3526 = vpack.c.bf16 %v3446, %v3446
    %v3527 = vpack.c.bf16 %v3447, %v3447
    %v3528 = vpack.c.bf16 %v3448, %v3448
    %v3529 = vpack.c.bf16 %v3449, %v3449
    %v3530 = vpack.c.bf16 %v3450, %v3450
    %v3531 = vpack.c.bf16 %v3451, %v3451
    %v3532 = vpack.c.bf16 %v3452, %v3452
    %v3533 = vpack.c.bf16 %v3453, %v3453
    %v3534 = vpack.c.bf16 %v3454, %v3454
    %v3535 = vpack.c.bf16 %v3455, %v3455
    %v3536 = vpack.c.bf16 %v3456, %v3456
    %v3537 = vpack.c.bf16 %v3457, %v3457
    %v3538 = vpack.c.bf16 %v3458, %v3458
    %v3539 = vpack.c.bf16 %v3459, %v3459
    %v3540 = vpack.c.bf16 %v3460, %v3460
    %v3541 = vpack.c.bf16 %v3461, %v3461
    %v3542 = vpack.c.bf16 %v3462, %v3462
    %v3543 = vpack.c.bf16 %v3463, %v3463
    %v3544 = vpack.c.bf16 %v3464, %v3464
    %v3545 = vpack.c.bf16 %v3465, %v3465
    %v3546 = vpack.c.bf16 %v3466, %v3466
    %v3547 = vpack.c.bf16 %v3467, %v3467
    %v3548 = vpack.c.bf16 %v3468, %v3468
    %v3549 = vunpack.c.l.bf16 %v3469
    %v3550 = vunpack.c.l.bf16 %v3470
    %v3551 = vunpack.c.l.bf16 %v3471
    %v3552 = vunpack.c.l.bf16 %v3472
    %v3553 = vunpack.c.l.bf16 %v3473
    %v3554 = vunpack.c.l.bf16 %v3474
    %v3555 = vunpack.c.l.bf16 %v3475
    %v3556 = vunpack.c.l.bf16 %v3476
    %v3557 = vunpack.c.l.bf16 %v3477
    %v3558 = vunpack.c.l.bf16 %v3478
    %v3559 = vunpack.c.l.bf16 %v3479
    %v3560 = vunpack.c.l.bf16 %v3480
    %v3561 = vunpack.c.l.bf16 %v3481
    %v3562 = vunpack.c.l.bf16 %v3482
    %v3563 = vunpack.c.l.bf16 %v3483
    %v3564 = vunpack.c.l.bf16 %v3484
    %v3565 = vunpack.c.l.bf16 %v3485
    %v3566 = vunpack.c.l.bf16 %v3486
    %v3567 = vunpack.c.l.bf16 %v3487
    %v3568 = vunpack.c.l.bf16 %v3488
    %v3569 = vunpack.c.l.bf16 %v3489
    %v3570 = vunpack.c.l.bf16 %v3490
    %v3571 = vunpack.c.l.bf16 %v3491
    %v3572 = vunpack.c.l.bf16 %v3492
    %v3573 = vunpack.c.l.bf16 %v3493
    %v3574 = vunpack.c.l.bf16 %v3494
    %v3575 = vunpack.c.l.bf16 %v3495
    %v3576 = vunpack.c.l.bf16 %v3496
    %v3577 = vunpack.c.l.bf16 %v3497
    %v3578 = vunpack.c.l.bf16 %v3498
    %v3579 = vunpack.c.l.bf16 %v3499
    %v3580 = vunpack.c.l.bf16 %v3500
    %v3581 = vunpack.c.l.bf16 %v3501
    %v3582 = vunpack.c.l.bf16 %v3502
    %v3583 = vunpack.c.l.bf16 %v3503
    %v3584 = vunpack.c.l.bf16 %v3504
    %v3585 = vunpack.c.l.bf16 %v3505
    %v3586 = vunpack.c.l.bf16 %v3506
    %v3587 = vunpack.c.l.bf16 %v3507
    %v3588 = vunpack.c.l.bf16 %v3508
    %v3589 = vunpack.c.l.bf16 %v3509
    %v3590 = vunpack.c.l.bf16 %v3510
    %v3591 = vunpack.c.l.bf16 %v3511
    %v3592 = vunpack.c.l.bf16 %v3512
    %v3593 = vunpack.c.l.bf16 %v3513
    %v3594 = vunpack.c.l.bf16 %v3514
    %v3595 = vunpack.c.l.bf16 %v3515
    %v3596 = vunpack.c.l.bf16 %v3516
    %v3597 = vunpack.c.l.bf16 %v3517
    %v3598 = vunpack.c.l.bf16 %v3518
    %v3599 = vunpack.c.l.bf16 %v3519
    %v3600 = vunpack.c.l.bf16 %v3520
    %v3601 = vunpack.c.l.bf16 %v3521
    %v3602 = vunpack.c.l.bf16 %v3522
    %v3603 = vunpack.c.l.bf16 %v3523
    %v3604 = vunpack.c.l.bf16 %v3524
    %v3605 = vunpack.c.l.bf16 %v3525
    %v3606 = vunpack.c.l.bf16 %v3526
    %v3607 = vunpack.c.l.bf16 %v3527
    %v3608 = vunpack.c.l.bf16 %v3528
    %v3609 = vunpack.c.l.bf16 %v3529
    %v3610 = vunpack.c.l.bf16 %v3530
    %v3611 = vunpack.c.l.bf16 %v3531
    %v3612 = vunpack.c.l.bf16 %v3532
    %v3613 = vunpack.c.l.bf16 %v3533
    %v3614 = vunpack.c.l.bf16 %v3534
    %v3615 = vunpack.c.l.bf16 %v3535
    %v3616 = vunpack.c.l.bf16 %v3536
    %v3617 = vunpack.c.l.bf16 %v3537
    %v3618 = vunpack.c.l.bf16 %v3538
    %v3619 = vunpack.c.l.bf16 %v3539
    %v3620 = vunpack.c.l.bf16 %v3540
    %v3621 = vunpack.c.l.bf16 %v3541
    %v3622 = vunpack.c.l.bf16 %v3542
    %v3623 = vunpack.c.l.bf16 %v3543
    %v3624 = vunpack.c.l.bf16 %v3544
    %v3625 = vunpack.c.l.bf16 %v3545
    %v3626 = vunpack.c.l.bf16 %v3546
    %v3627 = vunpack.c.l.bf16 %v3547
    %v3628 = vunpack.c.l.bf16 %v3548
    %v3629 = vsub.f32 %v3389, %v3549
    %v3630 = vsub.f32 %v3390, %v3550
    %v3631 = vsub.f32 %v3391, %v3551
    %v3632 = vsub.f32 %v3392, %v3552
    %v3633 = vsub.f32 %v3393, %v3553
    %v3634 = vsub.f32 %v3394, %v3554
    %v3635 = vsub.f32 %v3395, %v3555
    %v3636 = vsub.f32 %v3396, %v3556
    %v3637 = vsub.f32 %v3397, %v3557
    %v3638 = vsub.f32 %v3398, %v3558
    %v3639 = vsub.f32 %v3399, %v3559
    %v3640 = vsub.f32 %v3400, %v3560
    %v3641 = vsub.f32 %v3401, %v3561
    %v3642 = vsub.f32 %v3402, %v3562
    %v3643 = vsub.f32 %v3403, %v3563
    %v3644 = vsub.f32 %v3404, %v3564
    %v3645 = vsub.f32 %v3405, %v3565
    %v3646 = vsub.f32 %v3406, %v3566
    %v3647 = vsub.f32 %v3407, %v3567
    %v3648 = vsub.f32 %v3408, %v3568
    %v3649 = vsub.f32 %v3409, %v3569
    %v3650 = vsub.f32 %v3410, %v3570
    %v3651 = vsub.f32 %v3411, %v3571
    %v3652 = vsub.f32 %v3412, %v3572
    %v3653 = vsub.f32 %v3413, %v3573
    %v3654 = vsub.f32 %v3414, %v3574
    %v3655 = vsub.f32 %v3415, %v3575
    %v3656 = vsub.f32 %v3416, %v3576
    %v3657 = vsub.f32 %v3417, %v3577
    %v3658 = vsub.f32 %v3418, %v3578
    %v3659 = vsub.f32 %v3419, %v3579
    %v3660 = vsub.f32 %v3420, %v3580
    %v3661 = vsub.f32 %v3421, %v3581
    %v3662 = vsub.f32 %v3422, %v3582
    %v3663 = vsub.f32 %v3423, %v3583
    %v3664 = vsub.f32 %v3424, %v3584
    %v3665 = vsub.f32 %v3425, %v3585
    %v3666 = vsub.f32 %v3426, %v3586
    %v3667 = vsub.f32 %v3427, %v3587
    %v3668 = vsub.f32 %v3428, %v3588
    %v3669 = vsub.f32 %v3429, %v3589
    %v3670 = vsub.f32 %v3430, %v3590
    %v3671 = vsub.f32 %v3431, %v3591
    %v3672 = vsub.f32 %v3432, %v3592
    %v3673 = vsub.f32 %v3433, %v3593
    %v3674 = vsub.f32 %v3434, %v3594
    %v3675 = vsub.f32 %v3435, %v3595
    %v3676 = vsub.f32 %v3436, %v3596
    %v3677 = vsub.f32 %v3437, %v3597
    %v3678 = vsub.f32 %v3438, %v3598
    %v3679 = vsub.f32 %v3439, %v3599
    %v3680 = vsub.f32 %v3440, %v3600
    %v3681 = vsub.f32 %v3441, %v3601
    %v3682 = vsub.f32 %v3442, %v3602
    %v3683 = vsub.f32 %v3443, %v3603
    %v3684 = vsub.f32 %v3444, %v3604
    %v3685 = vsub.f32 %v3445, %v3605
    %v3686 = vsub.f32 %v3446, %v3606
    %v3687 = vsub.f32 %v3447, %v3607
    %v3688 = vsub.f32 %v3448, %v3608
    %v3689 = vsub.f32 %v3449, %v3609
    %v3690 = vsub.f32 %v3450, %v3610
    %v3691 = vsub.f32 %v3451, %v3611
    %v3692 = vsub.f32 %v3452, %v3612
    %v3693 = vsub.f32 %v3453, %v3613
    %v3694 = vsub.f32 %v3454, %v3614
    %v3695 = vsub.f32 %v3455, %v3615
    %v3696 = vsub.f32 %v3456, %v3616
    %v3697 = vsub.f32 %v3457, %v3617
    %v3698 = vsub.f32 %v3458, %v3618
    %v3699 = vsub.f32 %v3459, %v3619
    %v3700 = vsub.f32 %v3460, %v3620
    %v3701 = vsub.f32 %v3461, %v3621
    %v3702 = vsub.f32 %v3462, %v3622
    %v3703 = vsub.f32 %v3463, %v3623
    %v3704 = vsub.f32 %v3464, %v3624
    %v3705 = vsub.f32 %v3465, %v3625
    %v3706 = vsub.f32 %v3466, %v3626
    %v3707 = vsub.f32 %v3467, %v3627
    %v3708 = vsub.f32 %v3468, %v3628
    %v3709 = vpack.c.bf16 %v3630, %v3629
    %v3710 = vpack.c.bf16 %v3632, %v3631
    %v3711 = vpack.c.bf16 %v3634, %v3633
    %v3712 = vpack.c.bf16 %v3636, %v3635
    %v3713 = vpack.c.bf16 %v3638, %v3637
    %v3714 = vpack.c.bf16 %v3640, %v3639
    %v3715 = vpack.c.bf16 %v3642, %v3641
    %v3716 = vpack.c.bf16 %v3644, %v3643
    %v3717 = vpack.c.bf16 %v3646, %v3645
    %v3718 = vpack.c.bf16 %v3648, %v3647
    %v3719 = vpack.c.bf16 %v3650, %v3649
    %v3720 = vpack.c.bf16 %v3652, %v3651
    %v3721 = vpack.c.bf16 %v3654, %v3653
    %v3722 = vpack.c.bf16 %v3656, %v3655
    %v3723 = vpack.c.bf16 %v3658, %v3657
    %v3724 = vpack.c.bf16 %v3660, %v3659
    %v3725 = vpack.c.bf16 %v3662, %v3661
    %v3726 = vpack.c.bf16 %v3664, %v3663
    %v3727 = vpack.c.bf16 %v3666, %v3665
    %v3728 = vpack.c.bf16 %v3668, %v3667
    %v3729 = vpack.c.bf16 %v3670, %v3669
    %v3730 = vpack.c.bf16 %v3672, %v3671
    %v3731 = vpack.c.bf16 %v3674, %v3673
    %v3732 = vpack.c.bf16 %v3676, %v3675
    %v3733 = vpack.c.bf16 %v3678, %v3677
    %v3734 = vpack.c.bf16 %v3680, %v3679
    %v3735 = vpack.c.bf16 %v3682, %v3681
    %v3736 = vpack.c.bf16 %v3684, %v3683
    %v3737 = vpack.c.bf16 %v3686, %v3685
    %v3738 = vpack.c.bf16 %v3688, %v3687
    %v3739 = vpack.c.bf16 %v3690, %v3689
    %v3740 = vpack.c.bf16 %v3692, %v3691
    %v3741 = vpack.c.bf16 %v3694, %v3693
    %v3742 = vpack.c.bf16 %v3696, %v3695
    %v3743 = vpack.c.bf16 %v3698, %v3697
    %v3744 = vpack.c.bf16 %v3700, %v3699
    %v3745 = vpack.c.bf16 %v3702, %v3701
    %v3746 = vpack.c.bf16 %v3704, %v3703
    %v3747 = vpack.c.bf16 %v3706, %v3705
    %v3748 = vpack.c.bf16 %v3708, %v3707
    %vm3749 = vcmask 64512
    %v3751 = vsel %vm3749, %v3709, 0
    %v3754 = vsel %vm3749, %v3710, 0
    %v3757 = vsel %vm3749, %v3711, 0
    %v3760 = vsel %vm3749, %v3712, 0
    %v3763 = vsel %vm3749, %v3713, 0
    %v3766 = vsel %vm3749, %v3714, 0
    %v3769 = vsel %vm3749, %v3715, 0
    %v3772 = vsel %vm3749, %v3716, 0
    %v3775 = vsel %vm3749, %v3717, 0
    %v3778 = vsel %vm3749, %v3718, 0
    %v3781 = vsel %vm3749, %v3719, 0
    %v3784 = vsel %vm3749, %v3720, 0
    %v3787 = vsel %vm3749, %v3721, 0
    %v3790 = vsel %vm3749, %v3722, 0
    %v3793 = vsel %vm3749, %v3723, 0
    %v3796 = vsel %vm3749, %v3724, 0
    %v3799 = vsel %vm3749, %v3725, 0
    %v3802 = vsel %vm3749, %v3726, 0
    %v3805 = vsel %vm3749, %v3727, 0
    %v3808 = vsel %vm3749, %v3728, 0
    %v3811 = vsel %vm3749, %v3729, 0
    %v3814 = vsel %vm3749, %v3730, 0
    %v3817 = vsel %vm3749, %v3731, 0
    %v3820 = vsel %vm3749, %v3732, 0
    %v3823 = vsel %vm3749, %v3733, 0
    %v3826 = vsel %vm3749, %v3734, 0
    %v3829 = vsel %vm3749, %v3735, 0
    %v3832 = vsel %vm3749, %v3736, 0
    %v3835 = vsel %vm3749, %v3737, 0
    %v3838 = vsel %vm3749, %v3738, 0
    %v3841 = vsel %vm3749, %v3739, 0
    %v3844 = vsel %vm3749, %v3740, 0
    %v3847 = vsel %vm3749, %v3741, 0
    %v3850 = vsel %vm3749, %v3742, 0
    %v3853 = vsel %vm3749, %v3743, 0
    %v3856 = vsel %vm3749, %v3744, 0
    %v3859 = vsel %vm3749, %v3745, 0
    %v3862 = vsel %vm3749, %v3746, 0
    %v3865 = vsel %vm3749, %v3747, 0
    %v3868 = vsel %vm3749, %v3748, 0
    %vm3870 = vcmask 1043456
    %v3872 = vsel %vm3870, %v3388, 0
    %3874 = vmatpush.bf16.msra.mxu0 0
    %3875 = vmatpush.bf16.msra.mxu0 0
    %3876 = vmatpush.bf16.msra.mxu0 0
    %3877 = vmatpush.bf16.msra.mxu0 0
    %3878 = vmatpush.bf16.msra.mxu0 0
    %3879 = vmatpush.bf16.msra.mxu0 0
    %3880 = vmatpush.bf16.msra.mxu0 0
    %3881 = vmatpush.bf16.msra.mxu0 %v3872
    %3882 = vmatmul.bf16.gmra.mxu0 %v3751
    %v3883 = vpop.f32.mrf.mxu0
    %v3884 = vadd.f32 0.0, %v3883
    %v3885 = vpop.f32.mrf.mxu0
    %v3886 = vadd.f32 0.0, %v3885
    %3887 = vmatmul.bf16.gmra.mxu0 %v3754
    %v3888 = vpop.f32.mrf.mxu0
    %v3889 = vadd.f32 0.0, %v3888
    %v3890 = vpop.f32.mrf.mxu0
    %v3891 = vadd.f32 0.0, %v3890
    %3892 = vmatmul.bf16.gmra.mxu0 %v3757
    %v3893 = vpop.f32.mrf.mxu0
    %v3894 = vadd.f32 0.0, %v3893
    %v3895 = vpop.f32.mrf.mxu0
    %v3896 = vadd.f32 0.0, %v3895
    %3897 = vmatmul.bf16.gmra.mxu0 %v3760
    %v3898 = vpop.f32.mrf.mxu0
    %v3899 = vadd.f32 0.0, %v3898
    %v3900 = vpop.f32.mrf.mxu0
    %v3901 = vadd.f32 0.0, %v3900
    %3902 = vmatmul.bf16.gmra.mxu0 %v3763
    %v3903 = vpop.f32.mrf.mxu0
    %v3904 = vadd.f32 0.0, %v3903
    %v3905 = vpop.f32.mrf.mxu0
    %v3906 = vadd.f32 0.0, %v3905
    %3907 = vmatmul.bf16.gmra.mxu0 %v3766
    %v3908 = vpop.f32.mrf.mxu0
    %v3909 = vadd.f32 0.0, %v3908
    %v3910 = vpop.f32.mrf.mxu0
    %v3911 = vadd.f32 0.0, %v3910
    %3912 = vmatmul.bf16.gmra.mxu0 %v3769
    %v3913 = vpop.f32.mrf.mxu0
    %v3914 = vadd.f32 0.0, %v3913
    %v3915 = vpop.f32.mrf.mxu0
    %v3916 = vadd.f32 0.0, %v3915
    %3917 = vmatmul.bf16.gmra.mxu0 %v3772
    %v3918 = vpop.f32.mrf.mxu0
    %v3919 = vadd.f32 0.0, %v3918
    %v3920 = vpop.f32.mrf.mxu0
    %v3921 = vadd.f32 0.0, %v3920
    %3922 = vmatmul.bf16.gmra.mxu0 %v3775
    %v3923 = vpop.f32.mrf.mxu0
    %v3924 = vadd.f32 0.0, %v3923
    %v3925 = vpop.f32.mrf.mxu0
    %v3926 = vadd.f32 0.0, %v3925
    %3927 = vmatmul.bf16.gmra.mxu0 %v3778
    %v3928 = vpop.f32.mrf.mxu0
    %v3929 = vadd.f32 0.0, %v3928
    %v3930 = vpop.f32.mrf.mxu0
    %v3931 = vadd.f32 0.0, %v3930
    %3932 = vmatmul.bf16.gmra.mxu0 %v3781
    %v3933 = vpop.f32.mrf.mxu0
    %v3934 = vadd.f32 0.0, %v3933
    %v3935 = vpop.f32.mrf.mxu0
    %v3936 = vadd.f32 0.0, %v3935
    %3937 = vmatmul.bf16.gmra.mxu0 %v3784
    %v3938 = vpop.f32.mrf.mxu0
    %v3939 = vadd.f32 0.0, %v3938
    %v3940 = vpop.f32.mrf.mxu0
    %v3941 = vadd.f32 0.0, %v3940
    %3942 = vmatmul.bf16.gmra.mxu0 %v3787
    %v3943 = vpop.f32.mrf.mxu0
    %v3944 = vadd.f32 0.0, %v3943
    %v3945 = vpop.f32.mrf.mxu0
    %v3946 = vadd.f32 0.0, %v3945
    %3947 = vmatmul.bf16.gmra.mxu0 %v3790
    %v3948 = vpop.f32.mrf.mxu0
    %v3949 = vadd.f32 0.0, %v3948
    %v3950 = vpop.f32.mrf.mxu0
    %v3951 = vadd.f32 0.0, %v3950
    %3952 = vmatmul.bf16.gmra.mxu0 %v3793
    %v3953 = vpop.f32.mrf.mxu0
    %v3954 = vadd.f32 0.0, %v3953
    %v3955 = vpop.f32.mrf.mxu0
    %v3956 = vadd.f32 0.0, %v3955
    %3957 = vmatmul.bf16.gmra.mxu0 %v3796
    %v3958 = vpop.f32.mrf.mxu0
    %v3959 = vadd.f32 0.0, %v3958
    %v3960 = vpop.f32.mrf.mxu0
    %v3961 = vadd.f32 0.0, %v3960
    %3962 = vmatmul.bf16.gmra.mxu0 %v3799
    %v3963 = vpop.f32.mrf.mxu0
    %v3964 = vadd.f32 0.0, %v3963
    %v3965 = vpop.f32.mrf.mxu0
    %v3966 = vadd.f32 0.0, %v3965
    %3967 = vmatmul.bf16.gmra.mxu0 %v3802
    %v3968 = vpop.f32.mrf.mxu0
    %v3969 = vadd.f32 0.0, %v3968
    %v3970 = vpop.f32.mrf.mxu0
    %v3971 = vadd.f32 0.0, %v3970
    %3972 = vmatmul.bf16.gmra.mxu0 %v3805
    %v3973 = vpop.f32.mrf.mxu0
    %v3974 = vadd.f32 0.0, %v3973
    %v3975 = vpop.f32.mrf.mxu0
    %v3976 = vadd.f32 0.0, %v3975
    %3977 = vmatmul.bf16.gmra.mxu0 %v3808
    %v3978 = vpop.f32.mrf.mxu0
    %v3979 = vadd.f32 0.0, %v3978
    %v3980 = vpop.f32.mrf.mxu0
    %v3981 = vadd.f32 0.0, %v3980
    %3982 = vmatmul.bf16.gmra.mxu0 %v3811
    %v3983 = vpop.f32.mrf.mxu0
    %v3984 = vadd.f32 0.0, %v3983
    %v3985 = vpop.f32.mrf.mxu0
    %v3986 = vadd.f32 0.0, %v3985
    %3987 = vmatmul.bf16.gmra.mxu0 %v3814
    %v3988 = vpop.f32.mrf.mxu0
    %v3989 = vadd.f32 0.0, %v3988
    %v3990 = vpop.f32.mrf.mxu0
    %v3991 = vadd.f32 0.0, %v3990
    %3992 = vmatmul.bf16.gmra.mxu0 %v3817
    %v3993 = vpop.f32.mrf.mxu0
    %v3994 = vadd.f32 0.0, %v3993
    %v3995 = vpop.f32.mrf.mxu0
    %v3996 = vadd.f32 0.0, %v3995
    %3997 = vmatmul.bf16.gmra.mxu0 %v3820
    %v3998 = vpop.f32.mrf.mxu0
    %v3999 = vadd.f32 0.0, %v3998
    %v4000 = vpop.f32.mrf.mxu0
    %v4001 = vadd.f32 0.0, %v4000
    %4002 = vmatmul.bf16.gmra.mxu0 %v3823
    %v4003 = vpop.f32.mrf.mxu0
    %v4004 = vadd.f32 0.0, %v4003
    %v4005 = vpop.f32.mrf.mxu0
    %v4006 = vadd.f32 0.0, %v4005
    %4007 = vmatmul.bf16.gmra.mxu0 %v3826
    %v4008 = vpop.f32.mrf.mxu0
    %v4009 = vadd.f32 0.0, %v4008
    %v4010 = vpop.f32.mrf.mxu0
    %v4011 = vadd.f32 0.0, %v4010
    %4012 = vmatmul.bf16.gmra.mxu0 %v3829
    %v4013 = vpop.f32.mrf.mxu0
    %v4014 = vadd.f32 0.0, %v4013
    %v4015 = vpop.f32.mrf.mxu0
    %v4016 = vadd.f32 0.0, %v4015
    %4017 = vmatmul.bf16.gmra.mxu0 %v3832
    %v4018 = vpop.f32.mrf.mxu0
    %v4019 = vadd.f32 0.0, %v4018
    %v4020 = vpop.f32.mrf.mxu0
    %v4021 = vadd.f32 0.0, %v4020
    %4022 = vmatmul.bf16.gmra.mxu0 %v3835
    %v4023 = vpop.f32.mrf.mxu0
    %v4024 = vadd.f32 0.0, %v4023
    %v4025 = vpop.f32.mrf.mxu0
    %v4026 = vadd.f32 0.0, %v4025
    %4027 = vmatmul.bf16.gmra.mxu0 %v3838
    %v4028 = vpop.f32.mrf.mxu0
    %v4029 = vadd.f32 0.0, %v4028
    %v4030 = vpop.f32.mrf.mxu0
    %v4031 = vadd.f32 0.0, %v4030
    %4032 = vmatmul.bf16.gmra.mxu0 %v3841
    %v4033 = vpop.f32.mrf.mxu0
    %v4034 = vadd.f32 0.0, %v4033
    %v4035 = vpop.f32.mrf.mxu0
    %v4036 = vadd.f32 0.0, %v4035
    %4037 = vmatmul.bf16.gmra.mxu0 %v3844
    %v4038 = vpop.f32.mrf.mxu0
    %v4039 = vadd.f32 0.0, %v4038
    %v4040 = vpop.f32.mrf.mxu0
    %v4041 = vadd.f32 0.0, %v4040
    %4042 = vmatmul.bf16.gmra.mxu0 %v3847
    %v4043 = vpop.f32.mrf.mxu0
    %v4044 = vadd.f32 0.0, %v4043
    %v4045 = vpop.f32.mrf.mxu0
    %v4046 = vadd.f32 0.0, %v4045
    %4047 = vmatmul.bf16.gmra.mxu0 %v3850
    %v4048 = vpop.f32.mrf.mxu0
    %v4049 = vadd.f32 0.0, %v4048
    %v4050 = vpop.f32.mrf.mxu0
    %v4051 = vadd.f32 0.0, %v4050
    %4052 = vmatmul.bf16.gmra.mxu0 %v3853
    %v4053 = vpop.f32.mrf.mxu0
    %v4054 = vadd.f32 0.0, %v4053
    %v4055 = vpop.f32.mrf.mxu0
    %v4056 = vadd.f32 0.0, %v4055
    %4057 = vmatmul.bf16.gmra.mxu0 %v3856
    %v4058 = vpop.f32.mrf.mxu0
    %v4059 = vadd.f32 0.0, %v4058
    %v4060 = vpop.f32.mrf.mxu0
    %v4061 = vadd.f32 0.0, %v4060
    %4062 = vmatmul.bf16.gmra.mxu0 %v3859
    %v4063 = vpop.f32.mrf.mxu0
    %v4064 = vadd.f32 0.0, %v4063
    %v4065 = vpop.f32.mrf.mxu0
    %v4066 = vadd.f32 0.0, %v4065
    %4067 = vmatmul.bf16.gmra.mxu0 %v3862
    %v4068 = vpop.f32.mrf.mxu0
    %v4069 = vadd.f32 0.0, %v4068
    %v4070 = vpop.f32.mrf.mxu0
    %v4071 = vadd.f32 0.0, %v4070
    %4072 = vmatmul.bf16.gmra.mxu0 %v3865
    %v4073 = vpop.f32.mrf.mxu0
    %v4074 = vadd.f32 0.0, %v4073
    %v4075 = vpop.f32.mrf.mxu0
    %v4076 = vadd.f32 0.0, %v4075
    %4077 = vmatmul.bf16.gmra.mxu0 %v3868
    %v4078 = vpop.f32.mrf.mxu0
    %v4079 = vadd.f32 0.0, %v4078
    %v4080 = vpop.f32.mrf.mxu0
    %v4081 = vadd.f32 0.0, %v4080
    %4082 = vdwg.mxu0
    %v4163 = vunpack.c.l.b16 %v3469
    %v4164 = vunpack.c.l.b16 %v3470
    %v4165 = vunpack.c.l.b16 %v3471
    %v4166 = vunpack.c.l.b16 %v3472
    %v4167 = vunpack.c.l.b16 %v3473
    %v4168 = vunpack.c.l.b16 %v3474
    %v4169 = vunpack.c.l.b16 %v3475
    %v4170 = vunpack.c.l.b16 %v3476
    %v4171 = vunpack.c.l.b16 %v3477
    %v4172 = vunpack.c.l.b16 %v3478
    %v4173 = vunpack.c.l.b16 %v3479
    %v4174 = vunpack.c.l.b16 %v3480
    %v4175 = vunpack.c.l.b16 %v3481
    %v4176 = vunpack.c.l.b16 %v3482
    %v4177 = vunpack.c.l.b16 %v3483
    %v4178 = vunpack.c.l.b16 %v3484
    %v4179 = vunpack.c.l.b16 %v3485
    %v4180 = vunpack.c.l.b16 %v3486
    %v4181 = vunpack.c.l.b16 %v3487
    %v4182 = vunpack.c.l.b16 %v3488
    %v4183 = vunpack.c.l.b16 %v3489
    %v4184 = vunpack.c.l.b16 %v3490
    %v4185 = vunpack.c.l.b16 %v3491
    %v4186 = vunpack.c.l.b16 %v3492
    %v4187 = vunpack.c.l.b16 %v3493
    %v4188 = vunpack.c.l.b16 %v3494
    %v4189 = vunpack.c.l.b16 %v3495
    %v4190 = vunpack.c.l.b16 %v3496
    %v4191 = vunpack.c.l.b16 %v3497
    %v4192 = vunpack.c.l.b16 %v3498
    %v4193 = vunpack.c.l.b16 %v3499
    %v4194 = vunpack.c.l.b16 %v3500
    %v4195 = vunpack.c.l.b16 %v3501
    %v4196 = vunpack.c.l.b16 %v3502
    %v4197 = vunpack.c.l.b16 %v3503
    %v4198 = vunpack.c.l.b16 %v3504
    %v4199 = vunpack.c.l.b16 %v3505
    %v4200 = vunpack.c.l.b16 %v3506
    %v4201 = vunpack.c.l.b16 %v3507
    %v4202 = vunpack.c.l.b16 %v3508
    %v4203 = vunpack.c.l.b16 %v3509
    %v4204 = vunpack.c.l.b16 %v3510
    %v4205 = vunpack.c.l.b16 %v3511
    %v4206 = vunpack.c.l.b16 %v3512
    %v4207 = vunpack.c.l.b16 %v3513
    %v4208 = vunpack.c.l.b16 %v3514
    %v4209 = vunpack.c.l.b16 %v3515
    %v4210 = vunpack.c.l.b16 %v3516
    %v4211 = vunpack.c.l.b16 %v3517
    %v4212 = vunpack.c.l.b16 %v3518
    %v4213 = vunpack.c.l.b16 %v3519
    %v4214 = vunpack.c.l.b16 %v3520
    %v4215 = vunpack.c.l.b16 %v3521
    %v4216 = vunpack.c.l.b16 %v3522
    %v4217 = vunpack.c.l.b16 %v3523
    %v4218 = vunpack.c.l.b16 %v3524
    %v4219 = vunpack.c.l.b16 %v3525
    %v4220 = vunpack.c.l.b16 %v3526
    %v4221 = vunpack.c.l.b16 %v3527
    %v4222 = vunpack.c.l.b16 %v3528
    %v4223 = vunpack.c.l.b16 %v3529
    %v4224 = vunpack.c.l.b16 %v3530
    %v4225 = vunpack.c.l.b16 %v3531
    %v4226 = vunpack.c.l.b16 %v3532
    %v4227 = vunpack.c.l.b16 %v3533
    %v4228 = vunpack.c.l.b16 %v3534
    %v4229 = vunpack.c.l.b16 %v3535
    %v4230 = vunpack.c.l.b16 %v3536
    %v4231 = vunpack.c.l.b16 %v3537
    %v4232 = vunpack.c.l.b16 %v3538
    %v4233 = vunpack.c.l.b16 %v3539
    %v4234 = vunpack.c.l.b16 %v3540
    %v4235 = vunpack.c.l.b16 %v3541
    %v4236 = vunpack.c.l.b16 %v3542
    %v4237 = vunpack.c.l.b16 %v3543
    %v4238 = vunpack.c.l.b16 %v3544
    %v4239 = vunpack.c.l.b16 %v3545
    %v4240 = vunpack.c.l.b16 %v3546
    %v4241 = vunpack.c.l.b16 %v3547
    %v4242 = vunpack.c.l.b16 %v3548
    %v4243 = vpack.c.b16 %v4164, %v4163
    %v4244 = vpack.c.b16 %v4166, %v4165
    %v4245 = vpack.c.b16 %v4168, %v4167
    %v4246 = vpack.c.b16 %v4170, %v4169
    %v4247 = vpack.c.b16 %v4172, %v4171
    %v4248 = vpack.c.b16 %v4174, %v4173
    %v4249 = vpack.c.b16 %v4176, %v4175
    %v4250 = vpack.c.b16 %v4178, %v4177
    %v4251 = vpack.c.b16 %v4180, %v4179
    %v4252 = vpack.c.b16 %v4182, %v4181
    %v4253 = vpack.c.b16 %v4184, %v4183
    %v4254 = vpack.c.b16 %v4186, %v4185
    %v4255 = vpack.c.b16 %v4188, %v4187
    %v4256 = vpack.c.b16 %v4190, %v4189
    %v4257 = vpack.c.b16 %v4192, %v4191
    %v4258 = vpack.c.b16 %v4194, %v4193
    %v4259 = vpack.c.b16 %v4196, %v4195
    %v4260 = vpack.c.b16 %v4198, %v4197
    %v4261 = vpack.c.b16 %v4200, %v4199
    %v4262 = vpack.c.b16 %v4202, %v4201
    %v4263 = vpack.c.b16 %v4204, %v4203
    %v4264 = vpack.c.b16 %v4206, %v4205
    %v4265 = vpack.c.b16 %v4208, %v4207
    %v4266 = vpack.c.b16 %v4210, %v4209
    %v4267 = vpack.c.b16 %v4212, %v4211
    %v4268 = vpack.c.b16 %v4214, %v4213
    %v4269 = vpack.c.b16 %v4216, %v4215
    %v4270 = vpack.c.b16 %v4218, %v4217
    %v4271 = vpack.c.b16 %v4220, %v4219
    %v4272 = vpack.c.b16 %v4222, %v4221
    %v4273 = vpack.c.b16 %v4224, %v4223
    %v4274 = vpack.c.b16 %v4226, %v4225
    %v4275 = vpack.c.b16 %v4228, %v4227
    %v4276 = vpack.c.b16 %v4230, %v4229
    %v4277 = vpack.c.b16 %v4232, %v4231
    %v4278 = vpack.c.b16 %v4234, %v4233
    %v4279 = vpack.c.b16 %v4236, %v4235
    %v4280 = vpack.c.b16 %v4238, %v4237
    %v4281 = vpack.c.b16 %v4240, %v4239
    %v4282 = vpack.c.b16 %v4242, %v4241
    %v4284 = vsel %vm3749, %v4243, 0
    %v4287 = vsel %vm3749, %v4244, 0
    %v4290 = vsel %vm3749, %v4245, 0
    %v4293 = vsel %vm3749, %v4246, 0
    %v4296 = vsel %vm3749, %v4247, 0
    %v4299 = vsel %vm3749, %v4248, 0
    %v4302 = vsel %vm3749, %v4249, 0
    %v4305 = vsel %vm3749, %v4250, 0
    %v4308 = vsel %vm3749, %v4251, 0
    %v4311 = vsel %vm3749, %v4252, 0
    %v4314 = vsel %vm3749, %v4253, 0
    %v4317 = vsel %vm3749, %v4254, 0
    %v4320 = vsel %vm3749, %v4255, 0
    %v4323 = vsel %vm3749, %v4256, 0
    %v4326 = vsel %vm3749, %v4257, 0
    %v4329 = vsel %vm3749, %v4258, 0
    %v4332 = vsel %vm3749, %v4259, 0
    %v4335 = vsel %vm3749, %v4260, 0
    %v4338 = vsel %vm3749, %v4261, 0
    %v4341 = vsel %vm3749, %v4262, 0
    %v4344 = vsel %vm3749, %v4263, 0
    %v4347 = vsel %vm3749, %v4264, 0
    %v4350 = vsel %vm3749, %v4265, 0
    %v4353 = vsel %vm3749, %v4266, 0
    %v4356 = vsel %vm3749, %v4267, 0
    %v4359 = vsel %vm3749, %v4268, 0
    %v4362 = vsel %vm3749, %v4269, 0
    %v4365 = vsel %vm3749, %v4270, 0
    %v4368 = vsel %vm3749, %v4271, 0
    %v4371 = vsel %vm3749, %v4272, 0
    %v4374 = vsel %vm3749, %v4273, 0
    %v4377 = vsel %vm3749, %v4274, 0
    %v4380 = vsel %vm3749, %v4275, 0
    %v4383 = vsel %vm3749, %v4276, 0
    %v4386 = vsel %vm3749, %v4277, 0
    %v4389 = vsel %vm3749, %v4278, 0
    %v4392 = vsel %vm3749, %v4279, 0
    %v4395 = vsel %vm3749, %v4280, 0
    %v4398 = vsel %vm3749, %v4281, 0
    %v4401 = vsel %vm3749, %v4282, 0
    %4403 = vmatpush.bf16.msra.mxu0 0
    %4404 = vmatpush.bf16.msra.mxu0 0
    %4405 = vmatpush.bf16.msra.mxu0 0
    %4406 = vmatpush.bf16.msra.mxu0 0
    %4407 = vmatpush.bf16.msra.mxu0 0
    %4408 = vmatpush.bf16.msra.mxu0 0
    %4409 = vmatpush.bf16.msra.mxu0 0
    %4410 = vmatpush.bf16.msra.mxu0 %v3872
    %4411 = vmatmul.bf16.gmra.mxu0 %v4284
    %v4412 = vpop.f32.mrf.mxu0
    %v4413 = vadd.f32 %v3884, %v4412
    %v4414 = vpop.f32.mrf.mxu0
    %v4415 = vadd.f32 %v3886, %v4414
    %4416 = vmatmul.bf16.gmra.mxu0 %v4287
    %v4417 = vpop.f32.mrf.mxu0
    %v4418 = vadd.f32 %v3889, %v4417
    %v4419 = vpop.f32.mrf.mxu0
    %v4420 = vadd.f32 %v3891, %v4419
    %4421 = vmatmul.bf16.gmra.mxu0 %v4290
    %v4422 = vpop.f32.mrf.mxu0
    %v4423 = vadd.f32 %v3894, %v4422
    %v4424 = vpop.f32.mrf.mxu0
    %v4425 = vadd.f32 %v3896, %v4424
    %4426 = vmatmul.bf16.gmra.mxu0 %v4293
    %v4427 = vpop.f32.mrf.mxu0
    %v4428 = vadd.f32 %v3899, %v4427
    %v4429 = vpop.f32.mrf.mxu0
    %v4430 = vadd.f32 %v3901, %v4429
    %4431 = vmatmul.bf16.gmra.mxu0 %v4296
    %v4432 = vpop.f32.mrf.mxu0
    %v4433 = vadd.f32 %v3904, %v4432
    %v4434 = vpop.f32.mrf.mxu0
    %v4435 = vadd.f32 %v3906, %v4434
    %4436 = vmatmul.bf16.gmra.mxu0 %v4299
    %v4437 = vpop.f32.mrf.mxu0
    %v4438 = vadd.f32 %v3909, %v4437
    %v4439 = vpop.f32.mrf.mxu0
    %v4440 = vadd.f32 %v3911, %v4439
    %4441 = vmatmul.bf16.gmra.mxu0 %v4302
    %v4442 = vpop.f32.mrf.mxu0
    %v4443 = vadd.f32 %v3914, %v4442
    %v4444 = vpop.f32.mrf.mxu0
    %v4445 = vadd.f32 %v3916, %v4444
    %4446 = vmatmul.bf16.gmra.mxu0 %v4305
    %v4447 = vpop.f32.mrf.mxu0
    %v4448 = vadd.f32 %v3919, %v4447
    %v4449 = vpop.f32.mrf.mxu0
    %v4450 = vadd.f32 %v3921, %v4449
    %4451 = vmatmul.bf16.gmra.mxu0 %v4308
    %v4452 = vpop.f32.mrf.mxu0
    %v4453 = vadd.f32 %v3924, %v4452
    %v4454 = vpop.f32.mrf.mxu0
    %v4455 = vadd.f32 %v3926, %v4454
    %4456 = vmatmul.bf16.gmra.mxu0 %v4311
    %v4457 = vpop.f32.mrf.mxu0
    %v4458 = vadd.f32 %v3929, %v4457
    %v4459 = vpop.f32.mrf.mxu0
    %v4460 = vadd.f32 %v3931, %v4459
    %4461 = vmatmul.bf16.gmra.mxu0 %v4314
    %v4462 = vpop.f32.mrf.mxu0
    %v4463 = vadd.f32 %v3934, %v4462
    %v4464 = vpop.f32.mrf.mxu0
    %v4465 = vadd.f32 %v3936, %v4464
    %4466 = vmatmul.bf16.gmra.mxu0 %v4317
    %v4467 = vpop.f32.mrf.mxu0
    %v4468 = vadd.f32 %v3939, %v4467
    %v4469 = vpop.f32.mrf.mxu0
    %v4470 = vadd.f32 %v3941, %v4469
    %4471 = vmatmul.bf16.gmra.mxu0 %v4320
    %v4472 = vpop.f32.mrf.mxu0
    %v4473 = vadd.f32 %v3944, %v4472
    %v4474 = vpop.f32.mrf.mxu0
    %v4475 = vadd.f32 %v3946, %v4474
    %4476 = vmatmul.bf16.gmra.mxu0 %v4323
    %v4477 = vpop.f32.mrf.mxu0
    %v4478 = vadd.f32 %v3949, %v4477
    %v4479 = vpop.f32.mrf.mxu0
    %v4480 = vadd.f32 %v3951, %v4479
    %4481 = vmatmul.bf16.gmra.mxu0 %v4326
    %v4482 = vpop.f32.mrf.mxu0
    %v4483 = vadd.f32 %v3954, %v4482
    %v4484 = vpop.f32.mrf.mxu0
    %v4485 = vadd.f32 %v3956, %v4484
    %4486 = vmatmul.bf16.gmra.mxu0 %v4329
    %v4487 = vpop.f32.mrf.mxu0
    %v4488 = vadd.f32 %v3959, %v4487
    %v4489 = vpop.f32.mrf.mxu0
    %v4490 = vadd.f32 %v3961, %v4489
    %4491 = vmatmul.bf16.gmra.mxu0 %v4332
    %v4492 = vpop.f32.mrf.mxu0
    %v4493 = vadd.f32 %v3964, %v4492
    %v4494 = vpop.f32.mrf.mxu0
    %v4495 = vadd.f32 %v3966, %v4494
    %4496 = vmatmul.bf16.gmra.mxu0 %v4335
    %v4497 = vpop.f32.mrf.mxu0
    %v4498 = vadd.f32 %v3969, %v4497
    %v4499 = vpop.f32.mrf.mxu0
    %v4500 = vadd.f32 %v3971, %v4499
    %4501 = vmatmul.bf16.gmra.mxu0 %v4338
    %v4502 = vpop.f32.mrf.mxu0
    %v4503 = vadd.f32 %v3974, %v4502
    %v4504 = vpop.f32.mrf.mxu0
    %v4505 = vadd.f32 %v3976, %v4504
    %4506 = vmatmul.bf16.gmra.mxu0 %v4341
    %v4507 = vpop.f32.mrf.mxu0
    %v4508 = vadd.f32 %v3979, %v4507
    %v4509 = vpop.f32.mrf.mxu0
    %v4510 = vadd.f32 %v3981, %v4509
    %4511 = vmatmul.bf16.gmra.mxu0 %v4344
    %v4512 = vpop.f32.mrf.mxu0
    %v4513 = vadd.f32 %v3984, %v4512
    %v4514 = vpop.f32.mrf.mxu0
    %v4515 = vadd.f32 %v3986, %v4514
    %4516 = vmatmul.bf16.gmra.mxu0 %v4347
    %v4517 = vpop.f32.mrf.mxu0
    %v4518 = vadd.f32 %v3989, %v4517
    %v4519 = vpop.f32.mrf.mxu0
    %v4520 = vadd.f32 %v3991, %v4519
    %4521 = vmatmul.bf16.gmra.mxu0 %v4350
    %v4522 = vpop.f32.mrf.mxu0
    %v4523 = vadd.f32 %v3994, %v4522
    %v4524 = vpop.f32.mrf.mxu0
    %v4525 = vadd.f32 %v3996, %v4524
    %4526 = vmatmul.bf16.gmra.mxu0 %v4353
    %v4527 = vpop.f32.mrf.mxu0
    %v4528 = vadd.f32 %v3999, %v4527
    %v4529 = vpop.f32.mrf.mxu0
    %v4530 = vadd.f32 %v4001, %v4529
    %4531 = vmatmul.bf16.gmra.mxu0 %v4356
    %v4532 = vpop.f32.mrf.mxu0
    %v4533 = vadd.f32 %v4004, %v4532
    %v4534 = vpop.f32.mrf.mxu0
    %v4535 = vadd.f32 %v4006, %v4534
    %4536 = vmatmul.bf16.gmra.mxu0 %v4359
    %v4537 = vpop.f32.mrf.mxu0
    %v4538 = vadd.f32 %v4009, %v4537
    %v4539 = vpop.f32.mrf.mxu0
    %v4540 = vadd.f32 %v4011, %v4539
    %4541 = vmatmul.bf16.gmra.mxu0 %v4362
    %v4542 = vpop.f32.mrf.mxu0
    %v4543 = vadd.f32 %v4014, %v4542
    %v4544 = vpop.f32.mrf.mxu0
    %v4545 = vadd.f32 %v4016, %v4544
    %4546 = vmatmul.bf16.gmra.mxu0 %v4365
    %v4547 = vpop.f32.mrf.mxu0
    %v4548 = vadd.f32 %v4019, %v4547
    %v4549 = vpop.f32.mrf.mxu0
    %v4550 = vadd.f32 %v4021, %v4549
    %4551 = vmatmul.bf16.gmra.mxu0 %v4368
    %v4552 = vpop.f32.mrf.mxu0
    %v4553 = vadd.f32 %v4024, %v4552
    %v4554 = vpop.f32.mrf.mxu0
    %v4555 = vadd.f32 %v4026, %v4554
    %4556 = vmatmul.bf16.gmra.mxu0 %v4371
    %v4557 = vpop.f32.mrf.mxu0
    %v4558 = vadd.f32 %v4029, %v4557
    %v4559 = vpop.f32.mrf.mxu0
    %v4560 = vadd.f32 %v4031, %v4559
    %4561 = vmatmul.bf16.gmra.mxu0 %v4374
    %v4562 = vpop.f32.mrf.mxu0
    %v4563 = vadd.f32 %v4034, %v4562
    %v4564 = vpop.f32.mrf.mxu0
    %v4565 = vadd.f32 %v4036, %v4564
    %4566 = vmatmul.bf16.gmra.mxu0 %v4377
    %v4567 = vpop.f32.mrf.mxu0
    %v4568 = vadd.f32 %v4039, %v4567
    %v4569 = vpop.f32.mrf.mxu0
    %v4570 = vadd.f32 %v4041, %v4569
    %4571 = vmatmul.bf16.gmra.mxu0 %v4380
    %v4572 = vpop.f32.mrf.mxu0
    %v4573 = vadd.f32 %v4044, %v4572
    %v4574 = vpop.f32.mrf.mxu0
    %v4575 = vadd.f32 %v4046, %v4574
    %4576 = vmatmul.bf16.gmra.mxu0 %v4383
    %v4577 = vpop.f32.mrf.mxu0
    %v4578 = vadd.f32 %v4049, %v4577
    %v4579 = vpop.f32.mrf.mxu0
    %v4580 = vadd.f32 %v4051, %v4579
    %4581 = vmatmul.bf16.gmra.mxu0 %v4386
    %v4582 = vpop.f32.mrf.mxu0
    %v4583 = vadd.f32 %v4054, %v4582
    %v4584 = vpop.f32.mrf.mxu0
    %v4585 = vadd.f32 %v4056, %v4584
    %4586 = vmatmul.bf16.gmra.mxu0 %v4389
    %v4587 = vpop.f32.mrf.mxu0
    %v4588 = vadd.f32 %v4059, %v4587
    %v4589 = vpop.f32.mrf.mxu0
    %v4590 = vadd.f32 %v4061, %v4589
    %4591 = vmatmul.bf16.gmra.mxu0 %v4392
    %v4592 = vpop.f32.mrf.mxu0
    %v4593 = vadd.f32 %v4064, %v4592
    %v4594 = vpop.f32.mrf.mxu0
    %v4595 = vadd.f32 %v4066, %v4594
    %4596 = vmatmul.bf16.gmra.mxu0 %v4395
    %v4597 = vpop.f32.mrf.mxu0
    %v4598 = vadd.f32 %v4069, %v4597
    %v4599 = vpop.f32.mrf.mxu0
    %v4600 = vadd.f32 %v4071, %v4599
    %4601 = vmatmul.bf16.gmra.mxu0 %v4398
    %v4602 = vpop.f32.mrf.mxu0
    %v4603 = vadd.f32 %v4074, %v4602
    %v4604 = vpop.f32.mrf.mxu0
    %v4605 = vadd.f32 %v4076, %v4604
    %4606 = vmatmul.bf16.gmra.mxu0 %v4401
    %v4607 = vpop.f32.mrf.mxu0
    %v4608 = vadd.f32 %v4079, %v4607
    %v4609 = vpop.f32.mrf.mxu0
    %v4610 = vadd.f32 %v4081, %v4609
    %4611 = vdwg.mxu0
    %v4612 = vmul.f32 %v3228, %v4413
    %v4613 = vmul.f32 %v3230, %v4415
    %v4614 = vmul.f32 %v3232, %v4418
    %v4615 = vmul.f32 %v3234, %v4420
    %v4616 = vmul.f32 %v3236, %v4423
    %v4617 = vmul.f32 %v3238, %v4425
    %v4618 = vmul.f32 %v3240, %v4428
    %v4619 = vmul.f32 %v3242, %v4430
    %v4620 = vmul.f32 %v3244, %v4433
    %v4621 = vmul.f32 %v3246, %v4435
    %v4622 = vmul.f32 %v3248, %v4438
    %v4623 = vmul.f32 %v3250, %v4440
    %v4624 = vmul.f32 %v3252, %v4443
    %v4625 = vmul.f32 %v3254, %v4445
    %v4626 = vmul.f32 %v3256, %v4448
    %v4627 = vmul.f32 %v3258, %v4450
    %v4628 = vmul.f32 %v3260, %v4453
    %v4629 = vmul.f32 %v3262, %v4455
    %v4630 = vmul.f32 %v3264, %v4458
    %v4631 = vmul.f32 %v3266, %v4460
    %v4632 = vmul.f32 %v3268, %v4463
    %v4633 = vmul.f32 %v3270, %v4465
    %v4634 = vmul.f32 %v3272, %v4468
    %v4635 = vmul.f32 %v3274, %v4470
    %v4636 = vmul.f32 %v3276, %v4473
    %v4637 = vmul.f32 %v3278, %v4475
    %v4638 = vmul.f32 %v3280, %v4478
    %v4639 = vmul.f32 %v3282, %v4480
    %v4640 = vmul.f32 %v3284, %v4483
    %v4641 = vmul.f32 %v3286, %v4485
    %v4642 = vmul.f32 %v3288, %v4488
    %v4643 = vmul.f32 %v3290, %v4490
    %v4644 = vmul.f32 %v3292, %v4493
    %v4645 = vmul.f32 %v3294, %v4495
    %v4646 = vmul.f32 %v3296, %v4498
    %v4647 = vmul.f32 %v3298, %v4500
    %v4648 = vmul.f32 %v3300, %v4503
    %v4649 = vmul.f32 %v3302, %v4505
    %v4650 = vmul.f32 %v3304, %v4508
    %v4651 = vmul.f32 %v3306, %v4510
    %v4652 = vmul.f32 %v3308, %v4513
    %v4653 = vmul.f32 %v3310, %v4515
    %v4654 = vmul.f32 %v3312, %v4518
    %v4655 = vmul.f32 %v3314, %v4520
    %v4656 = vmul.f32 %v3316, %v4523
    %v4657 = vmul.f32 %v3318, %v4525
    %v4658 = vmul.f32 %v3320, %v4528
    %v4659 = vmul.f32 %v3322, %v4530
    %v4660 = vmul.f32 %v3324, %v4533
    %v4661 = vmul.f32 %v3326, %v4535
    %v4662 = vmul.f32 %v3328, %v4538
    %v4663 = vmul.f32 %v3330, %v4540
    %v4664 = vmul.f32 %v3332, %v4543
    %v4665 = vmul.f32 %v3334, %v4545
    %v4666 = vmul.f32 %v3336, %v4548
    %v4667 = vmul.f32 %v3338, %v4550
    %v4668 = vmul.f32 %v3340, %v4553
    %v4669 = vmul.f32 %v3342, %v4555
    %v4670 = vmul.f32 %v3344, %v4558
    %v4671 = vmul.f32 %v3346, %v4560
    %v4672 = vmul.f32 %v3348, %v4563
    %v4673 = vmul.f32 %v3350, %v4565
    %v4674 = vmul.f32 %v3352, %v4568
    %v4675 = vmul.f32 %v3354, %v4570
    %v4676 = vmul.f32 %v3356, %v4573
    %v4677 = vmul.f32 %v3358, %v4575
    %v4678 = vmul.f32 %v3360, %v4578
    %v4679 = vmul.f32 %v3362, %v4580
    %v4680 = vmul.f32 %v3364, %v4583
    %v4681 = vmul.f32 %v3366, %v4585
    %v4682 = vmul.f32 %v3368, %v4588
    %v4683 = vmul.f32 %v3370, %v4590
    %v4684 = vmul.f32 %v3372, %v4593
    %v4685 = vmul.f32 %v3374, %v4595
    %v4686 = vmul.f32 %v3376, %v4598
    %v4687 = vmul.f32 %v3378, %v4600
    %v4688 = vmul.f32 %v3380, %v4603
    %v4689 = vmul.f32 %v3382, %v4605
    %v4690 = vmul.f32 %v3384, %v4608
    %v4691 = vmul.f32 %v3386, %v4610
    %4693 = vset.pattern.permute.xlu0 0
    %4694 = vperm.xlu0 %4693, %v1797
    %v4695 = vpop.permute.xlu0 %4694
    %4698 = vset.pattern.permute.xlu0 0
    %4699 = vperm.xlu0 %4698, %v1812
    %v4700 = vpop.permute.xlu0 %4699
    %4703 = vset.pattern.permute.xlu0 0
    %4704 = vperm.xlu0 %4703, %v1827
    %v4705 = vpop.permute.xlu0 %4704
    %4708 = vset.pattern.permute.xlu0 0
    %4709 = vperm.xlu0 %4708, %v1842
    %v4710 = vpop.permute.xlu0 %4709
    %4713 = vset.pattern.permute.xlu0 0
    %4714 = vperm.xlu0 %4713, %v1857
    %v4715 = vpop.permute.xlu0 %4714
    %4718 = vset.pattern.permute.xlu0 0
    %4719 = vperm.xlu0 %4718, %v1872
    %v4720 = vpop.permute.xlu0 %4719
    %4723 = vset.pattern.permute.xlu0 0
    %4724 = vperm.xlu0 %4723, %v1887
    %v4725 = vpop.permute.xlu0 %4724
    %4728 = vset.pattern.permute.xlu0 0
    %4729 = vperm.xlu0 %4728, %v1902
    %v4730 = vpop.permute.xlu0 %4729
    %4733 = vset.pattern.permute.xlu0 0
    %4734 = vperm.xlu0 %4733, %v1917
    %v4735 = vpop.permute.xlu0 %4734
    %4738 = vset.pattern.permute.xlu0 0
    %4739 = vperm.xlu0 %4738, %v1932
    %v4740 = vpop.permute.xlu0 %4739
    %4743 = vset.pattern.permute.xlu0 0
    %4744 = vperm.xlu0 %4743, %v1947
    %v4745 = vpop.permute.xlu0 %4744
    %4748 = vset.pattern.permute.xlu0 0
    %4749 = vperm.xlu0 %4748, %v1962
    %v4750 = vpop.permute.xlu0 %4749
    %4753 = vset.pattern.permute.xlu0 0
    %4754 = vperm.xlu0 %4753, %v1977
    %v4755 = vpop.permute.xlu0 %4754
    %4758 = vset.pattern.permute.xlu0 0
    %4759 = vperm.xlu0 %4758, %v1992
    %v4760 = vpop.permute.xlu0 %4759
    %4763 = vset.pattern.permute.xlu0 0
    %4764 = vperm.xlu0 %4763, %v2007
    %v4765 = vpop.permute.xlu0 %4764
    %4768 = vset.pattern.permute.xlu0 0
    %4769 = vperm.xlu0 %4768, %v2022
    %v4770 = vpop.permute.xlu0 %4769
    %4773 = vset.pattern.permute.xlu0 0
    %4774 = vperm.xlu0 %4773, %v2037
    %v4775 = vpop.permute.xlu0 %4774
    %4778 = vset.pattern.permute.xlu0 0
    %4779 = vperm.xlu0 %4778, %v2052
    %v4780 = vpop.permute.xlu0 %4779
    %4783 = vset.pattern.permute.xlu0 0
    %4784 = vperm.xlu0 %4783, %v2067
    %v4785 = vpop.permute.xlu0 %4784
    %4788 = vset.pattern.permute.xlu0 0
    %4789 = vperm.xlu0 %4788, %v2082
    %v4790 = vpop.permute.xlu0 %4789
    %4793 = vset.pattern.permute.xlu0 0
    %4794 = vperm.xlu0 %4793, %v2097
    %v4795 = vpop.permute.xlu0 %4794
    %4798 = vset.pattern.permute.xlu0 0
    %4799 = vperm.xlu0 %4798, %v2112
    %v4800 = vpop.permute.xlu0 %4799
    %4803 = vset.pattern.permute.xlu0 0
    %4804 = vperm.xlu0 %4803, %v2127
    %v4805 = vpop.permute.xlu0 %4804
    %4808 = vset.pattern.permute.xlu0 0
    %4809 = vperm.xlu0 %4808, %v2142
    %v4810 = vpop.permute.xlu0 %4809
    %4813 = vset.pattern.permute.xlu0 0
    %4814 = vperm.xlu0 %4813, %v2157
    %v4815 = vpop.permute.xlu0 %4814
    %4818 = vset.pattern.permute.xlu0 0
    %4819 = vperm.xlu0 %4818, %v2172
    %v4820 = vpop.permute.xlu0 %4819
    %4823 = vset.pattern.permute.xlu0 0
    %4824 = vperm.xlu0 %4823, %v2187
    %v4825 = vpop.permute.xlu0 %4824
    %4828 = vset.pattern.permute.xlu0 0
    %4829 = vperm.xlu0 %4828, %v2202
    %v4830 = vpop.permute.xlu0 %4829
    %4833 = vset.pattern.permute.xlu0 0
    %4834 = vperm.xlu0 %4833, %v2217
    %v4835 = vpop.permute.xlu0 %4834
    %4838 = vset.pattern.permute.xlu0 0
    %4839 = vperm.xlu0 %4838, %v2232
    %v4840 = vpop.permute.xlu0 %4839
    %4843 = vset.pattern.permute.xlu0 0
    %4844 = vperm.xlu0 %4843, %v2247
    %v4845 = vpop.permute.xlu0 %4844
    %4848 = vset.pattern.permute.xlu0 0
    %4849 = vperm.xlu0 %4848, %v2262
    %v4850 = vpop.permute.xlu0 %4849
    %4853 = vset.pattern.permute.xlu0 0
    %4854 = vperm.xlu0 %4853, %v2277
    %v4855 = vpop.permute.xlu0 %4854
    %4858 = vset.pattern.permute.xlu0 0
    %4859 = vperm.xlu0 %4858, %v2292
    %v4860 = vpop.permute.xlu0 %4859
    %4863 = vset.pattern.permute.xlu0 0
    %4864 = vperm.xlu0 %4863, %v2307
    %v4865 = vpop.permute.xlu0 %4864
    %4868 = vset.pattern.permute.xlu0 0
    %4869 = vperm.xlu0 %4868, %v2322
    %v4870 = vpop.permute.xlu0 %4869
    %4873 = vset.pattern.permute.xlu0 0
    %4874 = vperm.xlu0 %4873, %v2337
    %v4875 = vpop.permute.xlu0 %4874
    %4878 = vset.pattern.permute.xlu0 0
    %4879 = vperm.xlu0 %4878, %v2352
    %v4880 = vpop.permute.xlu0 %4879
    %4883 = vset.pattern.permute.xlu0 0
    %4884 = vperm.xlu0 %4883, %v2367
    %v4885 = vpop.permute.xlu0 %4884
    %4888 = vset.pattern.permute.xlu0 0
    %4889 = vperm.xlu0 %4888, %v2382
    %v4890 = vpop.permute.xlu0 %4889
    %4893 = vset.pattern.permute.xlu0 0
    %4894 = vperm.xlu0 %4893, %v2397
    %v4895 = vpop.permute.xlu0 %4894
    %4898 = vset.pattern.permute.xlu0 0
    %4899 = vperm.xlu0 %4898, %v2412
    %v4900 = vpop.permute.xlu0 %4899
    %4903 = vset.pattern.permute.xlu0 0
    %4904 = vperm.xlu0 %4903, %v2427
    %v4905 = vpop.permute.xlu0 %4904
    %4908 = vset.pattern.permute.xlu0 0
    %4909 = vperm.xlu0 %4908, %v2442
    %v4910 = vpop.permute.xlu0 %4909
    %4913 = vset.pattern.permute.xlu0 0
    %4914 = vperm.xlu0 %4913, %v2457
    %v4915 = vpop.permute.xlu0 %4914
    %4918 = vset.pattern.permute.xlu0 0
    %4919 = vperm.xlu0 %4918, %v2472
    %v4920 = vpop.permute.xlu0 %4919
    %4923 = vset.pattern.permute.xlu0 0
    %4924 = vperm.xlu0 %4923, %v2487
    %v4925 = vpop.permute.xlu0 %4924
    %4928 = vset.pattern.permute.xlu0 0
    %4929 = vperm.xlu0 %4928, %v2502
    %v4930 = vpop.permute.xlu0 %4929
    %4933 = vset.pattern.permute.xlu0 0
    %4934 = vperm.xlu0 %4933, %v2517
    %v4935 = vpop.permute.xlu0 %4934
    %4938 = vset.pattern.permute.xlu0 0
    %4939 = vperm.xlu0 %4938, %v2532
    %v4940 = vpop.permute.xlu0 %4939
    %4943 = vset.pattern.permute.xlu0 0
    %4944 = vperm.xlu0 %4943, %v2547
    %v4945 = vpop.permute.xlu0 %4944
    %4948 = vset.pattern.permute.xlu0 0
    %4949 = vperm.xlu0 %4948, %v2562
    %v4950 = vpop.permute.xlu0 %4949
    %4953 = vset.pattern.permute.xlu0 0
    %4954 = vperm.xlu0 %4953, %v2577
    %v4955 = vpop.permute.xlu0 %4954
    %4958 = vset.pattern.permute.xlu0 0
    %4959 = vperm.xlu0 %4958, %v2592
    %v4960 = vpop.permute.xlu0 %4959
    %4963 = vset.pattern.permute.xlu0 0
    %4964 = vperm.xlu0 %4963, %v2607
    %v4965 = vpop.permute.xlu0 %4964
    %4968 = vset.pattern.permute.xlu0 0
    %4969 = vperm.xlu0 %4968, %v2622
    %v4970 = vpop.permute.xlu0 %4969
    %4973 = vset.pattern.permute.xlu0 0
    %4974 = vperm.xlu0 %4973, %v2637
    %v4975 = vpop.permute.xlu0 %4974
    %4978 = vset.pattern.permute.xlu0 0
    %4979 = vperm.xlu0 %4978, %v2652
    %v4980 = vpop.permute.xlu0 %4979
    %4983 = vset.pattern.permute.xlu0 0
    %4984 = vperm.xlu0 %4983, %v2667
    %v4985 = vpop.permute.xlu0 %4984
    %4988 = vset.pattern.permute.xlu0 0
    %4989 = vperm.xlu0 %4988, %v2682
    %v4990 = vpop.permute.xlu0 %4989
    %4993 = vset.pattern.permute.xlu0 0
    %4994 = vperm.xlu0 %4993, %v2697
    %v4995 = vpop.permute.xlu0 %4994
    %4998 = vset.pattern.permute.xlu0 0
    %4999 = vperm.xlu0 %4998, %v2712
    %v5000 = vpop.permute.xlu0 %4999
    %5003 = vset.pattern.permute.xlu0 0
    %5004 = vperm.xlu0 %5003, %v2727
    %v5005 = vpop.permute.xlu0 %5004
    %5008 = vset.pattern.permute.xlu0 0
    %5009 = vperm.xlu0 %5008, %v2742
    %v5010 = vpop.permute.xlu0 %5009
    %5013 = vset.pattern.permute.xlu0 0
    %5014 = vperm.xlu0 %5013, %v2757
    %v5015 = vpop.permute.xlu0 %5014
    %5018 = vset.pattern.permute.xlu0 0
    %5019 = vperm.xlu0 %5018, %v2772
    %v5020 = vpop.permute.xlu0 %5019
    %5023 = vset.pattern.permute.xlu0 0
    %5024 = vperm.xlu0 %5023, %v2787
    %v5025 = vpop.permute.xlu0 %5024
    %5028 = vset.pattern.permute.xlu0 0
    %5029 = vperm.xlu0 %5028, %v2802
    %v5030 = vpop.permute.xlu0 %5029
    %5033 = vset.pattern.permute.xlu0 0
    %5034 = vperm.xlu0 %5033, %v2817
    %v5035 = vpop.permute.xlu0 %5034
    %5038 = vset.pattern.permute.xlu0 0
    %5039 = vperm.xlu0 %5038, %v2832
    %v5040 = vpop.permute.xlu0 %5039
    %5043 = vset.pattern.permute.xlu0 0
    %5044 = vperm.xlu0 %5043, %v2847
    %v5045 = vpop.permute.xlu0 %5044
    %5048 = vset.pattern.permute.xlu0 0
    %5049 = vperm.xlu0 %5048, %v2862
    %v5050 = vpop.permute.xlu0 %5049
    %5053 = vset.pattern.permute.xlu0 0
    %5054 = vperm.xlu0 %5053, %v2877
    %v5055 = vpop.permute.xlu0 %5054
    %5058 = vset.pattern.permute.xlu0 0
    %5059 = vperm.xlu0 %5058, %v2892
    %v5060 = vpop.permute.xlu0 %5059
    %5063 = vset.pattern.permute.xlu0 0
    %5064 = vperm.xlu0 %5063, %v2907
    %v5065 = vpop.permute.xlu0 %5064
    %5068 = vset.pattern.permute.xlu0 0
    %5069 = vperm.xlu0 %5068, %v2922
    %v5070 = vpop.permute.xlu0 %5069
    %5073 = vset.pattern.permute.xlu0 0
    %5074 = vperm.xlu0 %5073, %v2937
    %v5075 = vpop.permute.xlu0 %5074
    %5078 = vset.pattern.permute.xlu0 0
    %5079 = vperm.xlu0 %5078, %v2952
    %v5080 = vpop.permute.xlu0 %5079
    %5083 = vset.pattern.permute.xlu0 0
    %5084 = vperm.xlu0 %5083, %v2967
    %v5085 = vpop.permute.xlu0 %5084
    %5088 = vset.pattern.permute.xlu0 0
    %5089 = vperm.xlu0 %5088, %v2982
    %v5090 = vpop.permute.xlu0 %5089
    %v5092 = vmul.f32 %v4695, %v4612
    %v5093 = vmul.f32 %v4700, %v4613
    %v5094 = vmul.f32 %v4705, %v4614
    %v5095 = vmul.f32 %v4710, %v4615
    %v5096 = vmul.f32 %v4715, %v4616
    %v5097 = vmul.f32 %v4720, %v4617
    %v5098 = vmul.f32 %v4725, %v4618
    %v5099 = vmul.f32 %v4730, %v4619
    %v5100 = vmul.f32 %v4735, %v4620
    %v5101 = vmul.f32 %v4740, %v4621
    %v5102 = vmul.f32 %v4745, %v4622
    %v5103 = vmul.f32 %v4750, %v4623
    %v5104 = vmul.f32 %v4755, %v4624
    %v5105 = vmul.f32 %v4760, %v4625
    %v5106 = vmul.f32 %v4765, %v4626
    %v5107 = vmul.f32 %v4770, %v4627
    %v5108 = vmul.f32 %v4775, %v4628
    %v5109 = vmul.f32 %v4780, %v4629
    %v5110 = vmul.f32 %v4785, %v4630
    %v5111 = vmul.f32 %v4790, %v4631
    %v5112 = vmul.f32 %v4795, %v4632
    %v5113 = vmul.f32 %v4800, %v4633
    %v5114 = vmul.f32 %v4805, %v4634
    %v5115 = vmul.f32 %v4810, %v4635
    %v5116 = vmul.f32 %v4815, %v4636
    %v5117 = vmul.f32 %v4820, %v4637
    %v5118 = vmul.f32 %v4825, %v4638
    %v5119 = vmul.f32 %v4830, %v4639
    %v5120 = vmul.f32 %v4835, %v4640
    %v5121 = vmul.f32 %v4840, %v4641
    %v5122 = vmul.f32 %v4845, %v4642
    %v5123 = vmul.f32 %v4850, %v4643
    %v5124 = vmul.f32 %v4855, %v4644
    %v5125 = vmul.f32 %v4860, %v4645
    %v5126 = vmul.f32 %v4865, %v4646
    %v5127 = vmul.f32 %v4870, %v4647
    %v5128 = vmul.f32 %v4875, %v4648
    %v5129 = vmul.f32 %v4880, %v4649
    %v5130 = vmul.f32 %v4885, %v4650
    %v5131 = vmul.f32 %v4890, %v4651
    %v5132 = vmul.f32 %v4895, %v4652
    %v5133 = vmul.f32 %v4900, %v4653
    %v5134 = vmul.f32 %v4905, %v4654
    %v5135 = vmul.f32 %v4910, %v4655
    %v5136 = vmul.f32 %v4915, %v4656
    %v5137 = vmul.f32 %v4920, %v4657
    %v5138 = vmul.f32 %v4925, %v4658
    %v5139 = vmul.f32 %v4930, %v4659
    %v5140 = vmul.f32 %v4935, %v4660
    %v5141 = vmul.f32 %v4940, %v4661
    %v5142 = vmul.f32 %v4945, %v4662
    %v5143 = vmul.f32 %v4950, %v4663
    %v5144 = vmul.f32 %v4955, %v4664
    %v5145 = vmul.f32 %v4960, %v4665
    %v5146 = vmul.f32 %v4965, %v4666
    %v5147 = vmul.f32 %v4970, %v4667
    %v5148 = vmul.f32 %v4975, %v4668
    %v5149 = vmul.f32 %v4980, %v4669
    %v5150 = vmul.f32 %v4985, %v4670
    %v5151 = vmul.f32 %v4990, %v4671
    %v5152 = vmul.f32 %v4995, %v4672
    %v5153 = vmul.f32 %v5000, %v4673
    %v5154 = vmul.f32 %v5005, %v4674
    %v5155 = vmul.f32 %v5010, %v4675
    %v5156 = vmul.f32 %v5015, %v4676
    %v5157 = vmul.f32 %v5020, %v4677
    %v5158 = vmul.f32 %v5025, %v4678
    %v5159 = vmul.f32 %v5030, %v4679
    %v5160 = vmul.f32 %v5035, %v4680
    %v5161 = vmul.f32 %v5040, %v4681
    %v5162 = vmul.f32 %v5045, %v4682
    %v5163 = vmul.f32 %v5050, %v4683
    %v5164 = vmul.f32 %v5055, %v4684
    %v5165 = vmul.f32 %v5060, %v4685
    %v5166 = vmul.f32 %v5065, %v4686
    %v5167 = vmul.f32 %v5070, %v4687
    %v5168 = vmul.f32 %v5075, %v4688
    %v5169 = vmul.f32 %v5080, %v4689
    %v5170 = vmul.f32 %v5085, %v4690
    %v5171 = vmul.f32 %v5090, %v4691
    %5172 = vset.pattern.permute.xlu0 1
    %5173 = vperm.xlu0 %5172, %v1797
    %v5174 = vpop.permute.xlu0 %5173
    %5176 = vset.pattern.permute.xlu0 1
    %5177 = vperm.xlu0 %5176, %v1812
    %v5178 = vpop.permute.xlu0 %5177
    %5180 = vset.pattern.permute.xlu0 1
    %5181 = vperm.xlu0 %5180, %v1827
    %v5182 = vpop.permute.xlu0 %5181
    %5184 = vset.pattern.permute.xlu0 1
    %5185 = vperm.xlu0 %5184, %v1842
    %v5186 = vpop.permute.xlu0 %5185
    %5188 = vset.pattern.permute.xlu0 1
    %5189 = vperm.xlu0 %5188, %v1857
    %v5190 = vpop.permute.xlu0 %5189
    %5192 = vset.pattern.permute.xlu0 1
    %5193 = vperm.xlu0 %5192, %v1872
    %v5194 = vpop.permute.xlu0 %5193
    %5196 = vset.pattern.permute.xlu0 1
    %5197 = vperm.xlu0 %5196, %v1887
    %v5198 = vpop.permute.xlu0 %5197
    %5200 = vset.pattern.permute.xlu0 1
    %5201 = vperm.xlu0 %5200, %v1902
    %v5202 = vpop.permute.xlu0 %5201
    %5204 = vset.pattern.permute.xlu0 1
    %5205 = vperm.xlu0 %5204, %v1917
    %v5206 = vpop.permute.xlu0 %5205
    %5208 = vset.pattern.permute.xlu0 1
    %5209 = vperm.xlu0 %5208, %v1932
    %v5210 = vpop.permute.xlu0 %5209
    %5212 = vset.pattern.permute.xlu0 1
    %5213 = vperm.xlu0 %5212, %v1947
    %v5214 = vpop.permute.xlu0 %5213
    %5216 = vset.pattern.permute.xlu0 1
    %5217 = vperm.xlu0 %5216, %v1962
    %v5218 = vpop.permute.xlu0 %5217
    %5220 = vset.pattern.permute.xlu0 1
    %5221 = vperm.xlu0 %5220, %v1977
    %v5222 = vpop.permute.xlu0 %5221
    %5224 = vset.pattern.permute.xlu0 1
    %5225 = vperm.xlu0 %5224, %v1992
    %v5226 = vpop.permute.xlu0 %5225
    %5228 = vset.pattern.permute.xlu0 1
    %5229 = vperm.xlu0 %5228, %v2007
    %v5230 = vpop.permute.xlu0 %5229
    %5232 = vset.pattern.permute.xlu0 1
    %5233 = vperm.xlu0 %5232, %v2022
    %v5234 = vpop.permute.xlu0 %5233
    %5236 = vset.pattern.permute.xlu0 1
    %5237 = vperm.xlu0 %5236, %v2037
    %v5238 = vpop.permute.xlu0 %5237
    %5240 = vset.pattern.permute.xlu0 1
    %5241 = vperm.xlu0 %5240, %v2052
    %v5242 = vpop.permute.xlu0 %5241
    %5244 = vset.pattern.permute.xlu0 1
    %5245 = vperm.xlu0 %5244, %v2067
    %v5246 = vpop.permute.xlu0 %5245
    %5248 = vset.pattern.permute.xlu0 1
    %5249 = vperm.xlu0 %5248, %v2082
    %v5250 = vpop.permute.xlu0 %5249
    %5252 = vset.pattern.permute.xlu0 1
    %5253 = vperm.xlu0 %5252, %v2097
    %v5254 = vpop.permute.xlu0 %5253
    %5256 = vset.pattern.permute.xlu0 1
    %5257 = vperm.xlu0 %5256, %v2112
    %v5258 = vpop.permute.xlu0 %5257
    %5260 = vset.pattern.permute.xlu0 1
    %5261 = vperm.xlu0 %5260, %v2127
    %v5262 = vpop.permute.xlu0 %5261
    %5264 = vset.pattern.permute.xlu0 1
    %5265 = vperm.xlu0 %5264, %v2142
    %v5266 = vpop.permute.xlu0 %5265
    %5268 = vset.pattern.permute.xlu0 1
    %5269 = vperm.xlu0 %5268, %v2157
    %v5270 = vpop.permute.xlu0 %5269
    %5272 = vset.pattern.permute.xlu0 1
    %5273 = vperm.xlu0 %5272, %v2172
    %v5274 = vpop.permute.xlu0 %5273
    %5276 = vset.pattern.permute.xlu0 1
    %5277 = vperm.xlu0 %5276, %v2187
    %v5278 = vpop.permute.xlu0 %5277
    %5280 = vset.pattern.permute.xlu0 1
    %5281 = vperm.xlu0 %5280, %v2202
    %v5282 = vpop.permute.xlu0 %5281
    %5284 = vset.pattern.permute.xlu0 1
    %5285 = vperm.xlu0 %5284, %v2217
    %v5286 = vpop.permute.xlu0 %5285
    %5288 = vset.pattern.permute.xlu0 1
    %5289 = vperm.xlu0 %5288, %v2232
    %v5290 = vpop.permute.xlu0 %5289
    %5292 = vset.pattern.permute.xlu0 1
    %5293 = vperm.xlu0 %5292, %v2247
    %v5294 = vpop.permute.xlu0 %5293
    %5296 = vset.pattern.permute.xlu0 1
    %5297 = vperm.xlu0 %5296, %v2262
    %v5298 = vpop.permute.xlu0 %5297
    %5300 = vset.pattern.permute.xlu0 1
    %5301 = vperm.xlu0 %5300, %v2277
    %v5302 = vpop.permute.xlu0 %5301
    %5304 = vset.pattern.permute.xlu0 1
    %5305 = vperm.xlu0 %5304, %v2292
    %v5306 = vpop.permute.xlu0 %5305
    %5308 = vset.pattern.permute.xlu0 1
    %5309 = vperm.xlu0 %5308, %v2307
    %v5310 = vpop.permute.xlu0 %5309
    %5312 = vset.pattern.permute.xlu0 1
    %5313 = vperm.xlu0 %5312, %v2322
    %v5314 = vpop.permute.xlu0 %5313
    %5316 = vset.pattern.permute.xlu0 1
    %5317 = vperm.xlu0 %5316, %v2337
    %v5318 = vpop.permute.xlu0 %5317
    %5320 = vset.pattern.permute.xlu0 1
    %5321 = vperm.xlu0 %5320, %v2352
    %v5322 = vpop.permute.xlu0 %5321
    %5324 = vset.pattern.permute.xlu0 1
    %5325 = vperm.xlu0 %5324, %v2367
    %v5326 = vpop.permute.xlu0 %5325
    %5328 = vset.pattern.permute.xlu0 1
    %5329 = vperm.xlu0 %5328, %v2382
    %v5330 = vpop.permute.xlu0 %5329
    %5332 = vset.pattern.permute.xlu0 1
    %5333 = vperm.xlu0 %5332, %v2397
    %v5334 = vpop.permute.xlu0 %5333
    %5336 = vset.pattern.permute.xlu0 1
    %5337 = vperm.xlu0 %5336, %v2412
    %v5338 = vpop.permute.xlu0 %5337
    %5340 = vset.pattern.permute.xlu0 1
    %5341 = vperm.xlu0 %5340, %v2427
    %v5342 = vpop.permute.xlu0 %5341
    %5344 = vset.pattern.permute.xlu0 1
    %5345 = vperm.xlu0 %5344, %v2442
    %v5346 = vpop.permute.xlu0 %5345
    %5348 = vset.pattern.permute.xlu0 1
    %5349 = vperm.xlu0 %5348, %v2457
    %v5350 = vpop.permute.xlu0 %5349
    %5352 = vset.pattern.permute.xlu0 1
    %5353 = vperm.xlu0 %5352, %v2472
    %v5354 = vpop.permute.xlu0 %5353
    %5356 = vset.pattern.permute.xlu0 1
    %5357 = vperm.xlu0 %5356, %v2487
    %v5358 = vpop.permute.xlu0 %5357
    %5360 = vset.pattern.permute.xlu0 1
    %5361 = vperm.xlu0 %5360, %v2502
    %v5362 = vpop.permute.xlu0 %5361
    %5364 = vset.pattern.permute.xlu0 1
    %5365 = vperm.xlu0 %5364, %v2517
    %v5366 = vpop.permute.xlu0 %5365
    %5368 = vset.pattern.permute.xlu0 1
    %5369 = vperm.xlu0 %5368, %v2532
    %v5370 = vpop.permute.xlu0 %5369
    %5372 = vset.pattern.permute.xlu0 1
    %5373 = vperm.xlu0 %5372, %v2547
    %v5374 = vpop.permute.xlu0 %5373
    %5376 = vset.pattern.permute.xlu0 1
    %5377 = vperm.xlu0 %5376, %v2562
    %v5378 = vpop.permute.xlu0 %5377
    %5380 = vset.pattern.permute.xlu0 1
    %5381 = vperm.xlu0 %5380, %v2577
    %v5382 = vpop.permute.xlu0 %5381
    %5384 = vset.pattern.permute.xlu0 1
    %5385 = vperm.xlu0 %5384, %v2592
    %v5386 = vpop.permute.xlu0 %5385
    %5388 = vset.pattern.permute.xlu0 1
    %5389 = vperm.xlu0 %5388, %v2607
    %v5390 = vpop.permute.xlu0 %5389
    %5392 = vset.pattern.permute.xlu0 1
    %5393 = vperm.xlu0 %5392, %v2622
    %v5394 = vpop.permute.xlu0 %5393
    %5396 = vset.pattern.permute.xlu0 1
    %5397 = vperm.xlu0 %5396, %v2637
    %v5398 = vpop.permute.xlu0 %5397
    %5400 = vset.pattern.permute.xlu0 1
    %5401 = vperm.xlu0 %5400, %v2652
    %v5402 = vpop.permute.xlu0 %5401
    %5404 = vset.pattern.permute.xlu0 1
    %5405 = vperm.xlu0 %5404, %v2667
    %v5406 = vpop.permute.xlu0 %5405
    %5408 = vset.pattern.permute.xlu0 1
    %5409 = vperm.xlu0 %5408, %v2682
    %v5410 = vpop.permute.xlu0 %5409
    %5412 = vset.pattern.permute.xlu0 1
    %5413 = vperm.xlu0 %5412, %v2697
    %v5414 = vpop.permute.xlu0 %5413
    %5416 = vset.pattern.permute.xlu0 1
    %5417 = vperm.xlu0 %5416, %v2712
    %v5418 = vpop.permute.xlu0 %5417
    %5420 = vset.pattern.permute.xlu0 1
    %5421 = vperm.xlu0 %5420, %v2727
    %v5422 = vpop.permute.xlu0 %5421
    %5424 = vset.pattern.permute.xlu0 1
    %5425 = vperm.xlu0 %5424, %v2742
    %v5426 = vpop.permute.xlu0 %5425
    %5428 = vset.pattern.permute.xlu0 1
    %5429 = vperm.xlu0 %5428, %v2757
    %v5430 = vpop.permute.xlu0 %5429
    %5432 = vset.pattern.permute.xlu0 1
    %5433 = vperm.xlu0 %5432, %v2772
    %v5434 = vpop.permute.xlu0 %5433
    %5436 = vset.pattern.permute.xlu0 1
    %5437 = vperm.xlu0 %5436, %v2787
    %v5438 = vpop.permute.xlu0 %5437
    %5440 = vset.pattern.permute.xlu0 1
    %5441 = vperm.xlu0 %5440, %v2802
    %v5442 = vpop.permute.xlu0 %5441
    %5444 = vset.pattern.permute.xlu0 1
    %5445 = vperm.xlu0 %5444, %v2817
    %v5446 = vpop.permute.xlu0 %5445
    %5448 = vset.pattern.permute.xlu0 1
    %5449 = vperm.xlu0 %5448, %v2832
    %v5450 = vpop.permute.xlu0 %5449
    %5452 = vset.pattern.permute.xlu0 1
    %5453 = vperm.xlu0 %5452, %v2847
    %v5454 = vpop.permute.xlu0 %5453
    %5456 = vset.pattern.permute.xlu0 1
    %5457 = vperm.xlu0 %5456, %v2862
    %v5458 = vpop.permute.xlu0 %5457
    %5460 = vset.pattern.permute.xlu0 1
    %5461 = vperm.xlu0 %5460, %v2877
    %v5462 = vpop.permute.xlu0 %5461
    %5464 = vset.pattern.permute.xlu0 1
    %5465 = vperm.xlu0 %5464, %v2892
    %v5466 = vpop.permute.xlu0 %5465
    %5468 = vset.pattern.permute.xlu0 1
    %5469 = vperm.xlu0 %5468, %v2907
    %v5470 = vpop.permute.xlu0 %5469
    %5472 = vset.pattern.permute.xlu0 1
    %5473 = vperm.xlu0 %5472, %v2922
    %v5474 = vpop.permute.xlu0 %5473
    %5476 = vset.pattern.permute.xlu0 1
    %5477 = vperm.xlu0 %5476, %v2937
    %v5478 = vpop.permute.xlu0 %5477
    %5480 = vset.pattern.permute.xlu0 1
    %5481 = vperm.xlu0 %5480, %v2952
    %v5482 = vpop.permute.xlu0 %5481
    %5484 = vset.pattern.permute.xlu0 1
    %5485 = vperm.xlu0 %5484, %v2967
    %v5486 = vpop.permute.xlu0 %5485
    %5488 = vset.pattern.permute.xlu0 1
    %5489 = vperm.xlu0 %5488, %v2982
    %v5490 = vpop.permute.xlu0 %5489
    %v5492 = vmul.f32 %v5174, %v4612
    %v5493 = vmul.f32 %v5178, %v4613
    %v5494 = vmul.f32 %v5182, %v4614
    %v5495 = vmul.f32 %v5186, %v4615
    %v5496 = vmul.f32 %v5190, %v4616
    %v5497 = vmul.f32 %v5194, %v4617
    %v5498 = vmul.f32 %v5198, %v4618
    %v5499 = vmul.f32 %v5202, %v4619
    %v5500 = vmul.f32 %v5206, %v4620
    %v5501 = vmul.f32 %v5210, %v4621
    %v5502 = vmul.f32 %v5214, %v4622
    %v5503 = vmul.f32 %v5218, %v4623
    %v5504 = vmul.f32 %v5222, %v4624
    %v5505 = vmul.f32 %v5226, %v4625
    %v5506 = vmul.f32 %v5230, %v4626
    %v5507 = vmul.f32 %v5234, %v4627
    %v5508 = vmul.f32 %v5238, %v4628
    %v5509 = vmul.f32 %v5242, %v4629
    %v5510 = vmul.f32 %v5246, %v4630
    %v5511 = vmul.f32 %v5250, %v4631
    %v5512 = vmul.f32 %v5254, %v4632
    %v5513 = vmul.f32 %v5258, %v4633
    %v5514 = vmul.f32 %v5262, %v4634
    %v5515 = vmul.f32 %v5266, %v4635
    %v5516 = vmul.f32 %v5270, %v4636
    %v5517 = vmul.f32 %v5274, %v4637
    %v5518 = vmul.f32 %v5278, %v4638
    %v5519 = vmul.f32 %v5282, %v4639
    %v5520 = vmul.f32 %v5286, %v4640
    %v5521 = vmul.f32 %v5290, %v4641
    %v5522 = vmul.f32 %v5294, %v4642
    %v5523 = vmul.f32 %v5298, %v4643
    %v5524 = vmul.f32 %v5302, %v4644
    %v5525 = vmul.f32 %v5306, %v4645
    %v5526 = vmul.f32 %v5310, %v4646
    %v5527 = vmul.f32 %v5314, %v4647
    %v5528 = vmul.f32 %v5318, %v4648
    %v5529 = vmul.f32 %v5322, %v4649
    %v5530 = vmul.f32 %v5326, %v4650
    %v5531 = vmul.f32 %v5330, %v4651
    %v5532 = vmul.f32 %v5334, %v4652
    %v5533 = vmul.f32 %v5338, %v4653
    %v5534 = vmul.f32 %v5342, %v4654
    %v5535 = vmul.f32 %v5346, %v4655
    %v5536 = vmul.f32 %v5350, %v4656
    %v5537 = vmul.f32 %v5354, %v4657
    %v5538 = vmul.f32 %v5358, %v4658
    %v5539 = vmul.f32 %v5362, %v4659
    %v5540 = vmul.f32 %v5366, %v4660
    %v5541 = vmul.f32 %v5370, %v4661
    %v5542 = vmul.f32 %v5374, %v4662
    %v5543 = vmul.f32 %v5378, %v4663
    %v5544 = vmul.f32 %v5382, %v4664
    %v5545 = vmul.f32 %v5386, %v4665
    %v5546 = vmul.f32 %v5390, %v4666
    %v5547 = vmul.f32 %v5394, %v4667
    %v5548 = vmul.f32 %v5398, %v4668
    %v5549 = vmul.f32 %v5402, %v4669
    %v5550 = vmul.f32 %v5406, %v4670
    %v5551 = vmul.f32 %v5410, %v4671
    %v5552 = vmul.f32 %v5414, %v4672
    %v5553 = vmul.f32 %v5418, %v4673
    %v5554 = vmul.f32 %v5422, %v4674
    %v5555 = vmul.f32 %v5426, %v4675
    %v5556 = vmul.f32 %v5430, %v4676
    %v5557 = vmul.f32 %v5434, %v4677
    %v5558 = vmul.f32 %v5438, %v4678
    %v5559 = vmul.f32 %v5442, %v4679
    %v5560 = vmul.f32 %v5446, %v4680
    %v5561 = vmul.f32 %v5450, %v4681
    %v5562 = vmul.f32 %v5454, %v4682
    %v5563 = vmul.f32 %v5458, %v4683
    %v5564 = vmul.f32 %v5462, %v4684
    %v5565 = vmul.f32 %v5466, %v4685
    %v5566 = vmul.f32 %v5470, %v4686
    %v5567 = vmul.f32 %v5474, %v4687
    %v5568 = vmul.f32 %v5478, %v4688
    %v5569 = vmul.f32 %v5482, %v4689
    %v5570 = vmul.f32 %v5486, %v4690
    %v5571 = vmul.f32 %v5490, %v4691
    %5572 = vset.pattern.permute.xlu0 2
    %5573 = vperm.xlu0 %5572, %v1797
    %v5574 = vpop.permute.xlu0 %5573
    %5576 = vset.pattern.permute.xlu0 2
    %5577 = vperm.xlu0 %5576, %v1812
    %v5578 = vpop.permute.xlu0 %5577
    %5580 = vset.pattern.permute.xlu0 2
    %5581 = vperm.xlu0 %5580, %v1827
    %v5582 = vpop.permute.xlu0 %5581
    %5584 = vset.pattern.permute.xlu0 2
    %5585 = vperm.xlu0 %5584, %v1842
    %v5586 = vpop.permute.xlu0 %5585
    %5588 = vset.pattern.permute.xlu0 2
    %5589 = vperm.xlu0 %5588, %v1857
    %v5590 = vpop.permute.xlu0 %5589
    %5592 = vset.pattern.permute.xlu0 2
    %5593 = vperm.xlu0 %5592, %v1872
    %v5594 = vpop.permute.xlu0 %5593
    %5596 = vset.pattern.permute.xlu0 2
    %5597 = vperm.xlu0 %5596, %v1887
    %v5598 = vpop.permute.xlu0 %5597
    %5600 = vset.pattern.permute.xlu0 2
    %5601 = vperm.xlu0 %5600, %v1902
    %v5602 = vpop.permute.xlu0 %5601
    %5604 = vset.pattern.permute.xlu0 2
    %5605 = vperm.xlu0 %5604, %v1917
    %v5606 = vpop.permute.xlu0 %5605
    %5608 = vset.pattern.permute.xlu0 2
    %5609 = vperm.xlu0 %5608, %v1932
    %v5610 = vpop.permute.xlu0 %5609
    %5612 = vset.pattern.permute.xlu0 2
    %5613 = vperm.xlu0 %5612, %v1947
    %v5614 = vpop.permute.xlu0 %5613
    %5616 = vset.pattern.permute.xlu0 2
    %5617 = vperm.xlu0 %5616, %v1962
    %v5618 = vpop.permute.xlu0 %5617
    %5620 = vset.pattern.permute.xlu0 2
    %5621 = vperm.xlu0 %5620, %v1977
    %v5622 = vpop.permute.xlu0 %5621
    %5624 = vset.pattern.permute.xlu0 2
    %5625 = vperm.xlu0 %5624, %v1992
    %v5626 = vpop.permute.xlu0 %5625
    %5628 = vset.pattern.permute.xlu0 2
    %5629 = vperm.xlu0 %5628, %v2007
    %v5630 = vpop.permute.xlu0 %5629
    %5632 = vset.pattern.permute.xlu0 2
    %5633 = vperm.xlu0 %5632, %v2022
    %v5634 = vpop.permute.xlu0 %5633
    %5636 = vset.pattern.permute.xlu0 2
    %5637 = vperm.xlu0 %5636, %v2037
    %v5638 = vpop.permute.xlu0 %5637
    %5640 = vset.pattern.permute.xlu0 2
    %5641 = vperm.xlu0 %5640, %v2052
    %v5642 = vpop.permute.xlu0 %5641
    %5644 = vset.pattern.permute.xlu0 2
    %5645 = vperm.xlu0 %5644, %v2067
    %v5646 = vpop.permute.xlu0 %5645
    %5648 = vset.pattern.permute.xlu0 2
    %5649 = vperm.xlu0 %5648, %v2082
    %v5650 = vpop.permute.xlu0 %5649
    %5652 = vset.pattern.permute.xlu0 2
    %5653 = vperm.xlu0 %5652, %v2097
    %v5654 = vpop.permute.xlu0 %5653
    %5656 = vset.pattern.permute.xlu0 2
    %5657 = vperm.xlu0 %5656, %v2112
    %v5658 = vpop.permute.xlu0 %5657
    %5660 = vset.pattern.permute.xlu0 2
    %5661 = vperm.xlu0 %5660, %v2127
    %v5662 = vpop.permute.xlu0 %5661
    %5664 = vset.pattern.permute.xlu0 2
    %5665 = vperm.xlu0 %5664, %v2142
    %v5666 = vpop.permute.xlu0 %5665
    %5668 = vset.pattern.permute.xlu0 2
    %5669 = vperm.xlu0 %5668, %v2157
    %v5670 = vpop.permute.xlu0 %5669
    %5672 = vset.pattern.permute.xlu0 2
    %5673 = vperm.xlu0 %5672, %v2172
    %v5674 = vpop.permute.xlu0 %5673
    %5676 = vset.pattern.permute.xlu0 2
    %5677 = vperm.xlu0 %5676, %v2187
    %v5678 = vpop.permute.xlu0 %5677
    %5680 = vset.pattern.permute.xlu0 2
    %5681 = vperm.xlu0 %5680, %v2202
    %v5682 = vpop.permute.xlu0 %5681
    %5684 = vset.pattern.permute.xlu0 2
    %5685 = vperm.xlu0 %5684, %v2217
    %v5686 = vpop.permute.xlu0 %5685
    %5688 = vset.pattern.permute.xlu0 2
    %5689 = vperm.xlu0 %5688, %v2232
    %v5690 = vpop.permute.xlu0 %5689
    %5692 = vset.pattern.permute.xlu0 2
    %5693 = vperm.xlu0 %5692, %v2247
    %v5694 = vpop.permute.xlu0 %5693
    %5696 = vset.pattern.permute.xlu0 2
    %5697 = vperm.xlu0 %5696, %v2262
    %v5698 = vpop.permute.xlu0 %5697
    %5700 = vset.pattern.permute.xlu0 2
    %5701 = vperm.xlu0 %5700, %v2277
    %v5702 = vpop.permute.xlu0 %5701
    %5704 = vset.pattern.permute.xlu0 2
    %5705 = vperm.xlu0 %5704, %v2292
    %v5706 = vpop.permute.xlu0 %5705
    %5708 = vset.pattern.permute.xlu0 2
    %5709 = vperm.xlu0 %5708, %v2307
    %v5710 = vpop.permute.xlu0 %5709
    %5712 = vset.pattern.permute.xlu0 2
    %5713 = vperm.xlu0 %5712, %v2322
    %v5714 = vpop.permute.xlu0 %5713
    %5716 = vset.pattern.permute.xlu0 2
    %5717 = vperm.xlu0 %5716, %v2337
    %v5718 = vpop.permute.xlu0 %5717
    %5720 = vset.pattern.permute.xlu0 2
    %5721 = vperm.xlu0 %5720, %v2352
    %v5722 = vpop.permute.xlu0 %5721
    %5724 = vset.pattern.permute.xlu0 2
    %5725 = vperm.xlu0 %5724, %v2367
    %v5726 = vpop.permute.xlu0 %5725
    %5728 = vset.pattern.permute.xlu0 2
    %5729 = vperm.xlu0 %5728, %v2382
    %v5730 = vpop.permute.xlu0 %5729
    %5732 = vset.pattern.permute.xlu0 2
    %5733 = vperm.xlu0 %5732, %v2397
    %v5734 = vpop.permute.xlu0 %5733
    %5736 = vset.pattern.permute.xlu0 2
    %5737 = vperm.xlu0 %5736, %v2412
    %v5738 = vpop.permute.xlu0 %5737
    %5740 = vset.pattern.permute.xlu0 2
    %5741 = vperm.xlu0 %5740, %v2427
    %v5742 = vpop.permute.xlu0 %5741
    %5744 = vset.pattern.permute.xlu0 2
    %5745 = vperm.xlu0 %5744, %v2442
    %v5746 = vpop.permute.xlu0 %5745
    %5748 = vset.pattern.permute.xlu0 2
    %5749 = vperm.xlu0 %5748, %v2457
    %v5750 = vpop.permute.xlu0 %5749
    %5752 = vset.pattern.permute.xlu0 2
    %5753 = vperm.xlu0 %5752, %v2472
    %v5754 = vpop.permute.xlu0 %5753
    %5756 = vset.pattern.permute.xlu0 2
    %5757 = vperm.xlu0 %5756, %v2487
    %v5758 = vpop.permute.xlu0 %5757
    %5760 = vset.pattern.permute.xlu0 2
    %5761 = vperm.xlu0 %5760, %v2502
    %v5762 = vpop.permute.xlu0 %5761
    %5764 = vset.pattern.permute.xlu0 2
    %5765 = vperm.xlu0 %5764, %v2517
    %v5766 = vpop.permute.xlu0 %5765
    %5768 = vset.pattern.permute.xlu0 2
    %5769 = vperm.xlu0 %5768, %v2532
    %v5770 = vpop.permute.xlu0 %5769
    %5772 = vset.pattern.permute.xlu0 2
    %5773 = vperm.xlu0 %5772, %v2547
    %v5774 = vpop.permute.xlu0 %5773
    %5776 = vset.pattern.permute.xlu0 2
    %5777 = vperm.xlu0 %5776, %v2562
    %v5778 = vpop.permute.xlu0 %5777
    %5780 = vset.pattern.permute.xlu0 2
    %5781 = vperm.xlu0 %5780, %v2577
    %v5782 = vpop.permute.xlu0 %5781
    %5784 = vset.pattern.permute.xlu0 2
    %5785 = vperm.xlu0 %5784, %v2592
    %v5786 = vpop.permute.xlu0 %5785
    %5788 = vset.pattern.permute.xlu0 2
    %5789 = vperm.xlu0 %5788, %v2607
    %v5790 = vpop.permute.xlu0 %5789
    %5792 = vset.pattern.permute.xlu0 2
    %5793 = vperm.xlu0 %5792, %v2622
    %v5794 = vpop.permute.xlu0 %5793
    %5796 = vset.pattern.permute.xlu0 2
    %5797 = vperm.xlu0 %5796, %v2637
    %v5798 = vpop.permute.xlu0 %5797
    %5800 = vset.pattern.permute.xlu0 2
    %5801 = vperm.xlu0 %5800, %v2652
    %v5802 = vpop.permute.xlu0 %5801
    %5804 = vset.pattern.permute.xlu0 2
    %5805 = vperm.xlu0 %5804, %v2667
    %v5806 = vpop.permute.xlu0 %5805
    %5808 = vset.pattern.permute.xlu0 2
    %5809 = vperm.xlu0 %5808, %v2682
    %v5810 = vpop.permute.xlu0 %5809
    %5812 = vset.pattern.permute.xlu0 2
    %5813 = vperm.xlu0 %5812, %v2697
    %v5814 = vpop.permute.xlu0 %5813
    %5816 = vset.pattern.permute.xlu0 2
    %5817 = vperm.xlu0 %5816, %v2712
    %v5818 = vpop.permute.xlu0 %5817
    %5820 = vset.pattern.permute.xlu0 2
    %5821 = vperm.xlu0 %5820, %v2727
    %v5822 = vpop.permute.xlu0 %5821
    %5824 = vset.pattern.permute.xlu0 2
    %5825 = vperm.xlu0 %5824, %v2742
    %v5826 = vpop.permute.xlu0 %5825
    %5828 = vset.pattern.permute.xlu0 2
    %5829 = vperm.xlu0 %5828, %v2757
    %v5830 = vpop.permute.xlu0 %5829
    %5832 = vset.pattern.permute.xlu0 2
    %5833 = vperm.xlu0 %5832, %v2772
    %v5834 = vpop.permute.xlu0 %5833
    %5836 = vset.pattern.permute.xlu0 2
    %5837 = vperm.xlu0 %5836, %v2787
    %v5838 = vpop.permute.xlu0 %5837
    %5840 = vset.pattern.permute.xlu0 2
    %5841 = vperm.xlu0 %5840, %v2802
    %v5842 = vpop.permute.xlu0 %5841
    %5844 = vset.pattern.permute.xlu0 2
    %5845 = vperm.xlu0 %5844, %v2817
    %v5846 = vpop.permute.xlu0 %5845
    %5848 = vset.pattern.permute.xlu0 2
    %5849 = vperm.xlu0 %5848, %v2832
    %v5850 = vpop.permute.xlu0 %5849
    %5852 = vset.pattern.permute.xlu0 2
    %5853 = vperm.xlu0 %5852, %v2847
    %v5854 = vpop.permute.xlu0 %5853
    %5856 = vset.pattern.permute.xlu0 2
    %5857 = vperm.xlu0 %5856, %v2862
    %v5858 = vpop.permute.xlu0 %5857
    %5860 = vset.pattern.permute.xlu0 2
    %5861 = vperm.xlu0 %5860, %v2877
    %v5862 = vpop.permute.xlu0 %5861
    %5864 = vset.pattern.permute.xlu0 2
    %5865 = vperm.xlu0 %5864, %v2892
    %v5866 = vpop.permute.xlu0 %5865
    %5868 = vset.pattern.permute.xlu0 2
    %5869 = vperm.xlu0 %5868, %v2907
    %v5870 = vpop.permute.xlu0 %5869
    %5872 = vset.pattern.permute.xlu0 2
    %5873 = vperm.xlu0 %5872, %v2922
    %v5874 = vpop.permute.xlu0 %5873
    %5876 = vset.pattern.permute.xlu0 2
    %5877 = vperm.xlu0 %5876, %v2937
    %v5878 = vpop.permute.xlu0 %5877
    %5880 = vset.pattern.permute.xlu0 2
    %5881 = vperm.xlu0 %5880, %v2952
    %v5882 = vpop.permute.xlu0 %5881
    %5884 = vset.pattern.permute.xlu0 2
    %5885 = vperm.xlu0 %5884, %v2967
    %v5886 = vpop.permute.xlu0 %5885
    %5888 = vset.pattern.permute.xlu0 2
    %5889 = vperm.xlu0 %5888, %v2982
    %v5890 = vpop.permute.xlu0 %5889
    %v5892 = vmul.f32 %v5574, %v4612
    %v5893 = vmul.f32 %v5578, %v4613
    %v5894 = vmul.f32 %v5582, %v4614
    %v5895 = vmul.f32 %v5586, %v4615
    %v5896 = vmul.f32 %v5590, %v4616
    %v5897 = vmul.f32 %v5594, %v4617
    %v5898 = vmul.f32 %v5598, %v4618
    %v5899 = vmul.f32 %v5602, %v4619
    %v5900 = vmul.f32 %v5606, %v4620
    %v5901 = vmul.f32 %v5610, %v4621
    %v5902 = vmul.f32 %v5614, %v4622
    %v5903 = vmul.f32 %v5618, %v4623
    %v5904 = vmul.f32 %v5622, %v4624
    %v5905 = vmul.f32 %v5626, %v4625
    %v5906 = vmul.f32 %v5630, %v4626
    %v5907 = vmul.f32 %v5634, %v4627
    %v5908 = vmul.f32 %v5638, %v4628
    %v5909 = vmul.f32 %v5642, %v4629
    %v5910 = vmul.f32 %v5646, %v4630
    %v5911 = vmul.f32 %v5650, %v4631
    %v5912 = vmul.f32 %v5654, %v4632
    %v5913 = vmul.f32 %v5658, %v4633
    %v5914 = vmul.f32 %v5662, %v4634
    %v5915 = vmul.f32 %v5666, %v4635
    %v5916 = vmul.f32 %v5670, %v4636
    %v5917 = vmul.f32 %v5674, %v4637
    %v5918 = vmul.f32 %v5678, %v4638
    %v5919 = vmul.f32 %v5682, %v4639
    %v5920 = vmul.f32 %v5686, %v4640
    %v5921 = vmul.f32 %v5690, %v4641
    %v5922 = vmul.f32 %v5694, %v4642
    %v5923 = vmul.f32 %v5698, %v4643
    %v5924 = vmul.f32 %v5702, %v4644
    %v5925 = vmul.f32 %v5706, %v4645
    %v5926 = vmul.f32 %v5710, %v4646
    %v5927 = vmul.f32 %v5714, %v4647
    %v5928 = vmul.f32 %v5718, %v4648
    %v5929 = vmul.f32 %v5722, %v4649
    %v5930 = vmul.f32 %v5726, %v4650
    %v5931 = vmul.f32 %v5730, %v4651
    %v5932 = vmul.f32 %v5734, %v4652
    %v5933 = vmul.f32 %v5738, %v4653
    %v5934 = vmul.f32 %v5742, %v4654
    %v5935 = vmul.f32 %v5746, %v4655
    %v5936 = vmul.f32 %v5750, %v4656
    %v5937 = vmul.f32 %v5754, %v4657
    %v5938 = vmul.f32 %v5758, %v4658
    %v5939 = vmul.f32 %v5762, %v4659
    %v5940 = vmul.f32 %v5766, %v4660
    %v5941 = vmul.f32 %v5770, %v4661
    %v5942 = vmul.f32 %v5774, %v4662
    %v5943 = vmul.f32 %v5778, %v4663
    %v5944 = vmul.f32 %v5782, %v4664
    %v5945 = vmul.f32 %v5786, %v4665
    %v5946 = vmul.f32 %v5790, %v4666
    %v5947 = vmul.f32 %v5794, %v4667
    %v5948 = vmul.f32 %v5798, %v4668
    %v5949 = vmul.f32 %v5802, %v4669
    %v5950 = vmul.f32 %v5806, %v4670
    %v5951 = vmul.f32 %v5810, %v4671
    %v5952 = vmul.f32 %v5814, %v4672
    %v5953 = vmul.f32 %v5818, %v4673
    %v5954 = vmul.f32 %v5822, %v4674
    %v5955 = vmul.f32 %v5826, %v4675
    %v5956 = vmul.f32 %v5830, %v4676
    %v5957 = vmul.f32 %v5834, %v4677
    %v5958 = vmul.f32 %v5838, %v4678
    %v5959 = vmul.f32 %v5842, %v4679
    %v5960 = vmul.f32 %v5846, %v4680
    %v5961 = vmul.f32 %v5850, %v4681
    %v5962 = vmul.f32 %v5854, %v4682
    %v5963 = vmul.f32 %v5858, %v4683
    %v5964 = vmul.f32 %v5862, %v4684
    %v5965 = vmul.f32 %v5866, %v4685
    %v5966 = vmul.f32 %v5870, %v4686
    %v5967 = vmul.f32 %v5874, %v4687
    %v5968 = vmul.f32 %v5878, %v4688
    %v5969 = vmul.f32 %v5882, %v4689
    %v5970 = vmul.f32 %v5886, %v4690
    %v5971 = vmul.f32 %v5890, %v4691
    %v5972 = vld [vmem:[#allocation3] sm:$0xff]
    %v5973 = vld [vmem:[#allocation3 + $0x8] sm:$0xff]
    %v5974 = vld [vmem:[#allocation3 + $0x10] sm:$0xff]
    %v5975 = vld [vmem:[#allocation3 + $0x18] sm:$0xff]
    %v5976 = vld [vmem:[#allocation3 + $0x20] sm:$0xff]
    %v5977 = vld [vmem:[#allocation3 + $0x28] sm:$0xff]
    %v5978 = vld [vmem:[#allocation3 + $0x30] sm:$0xff]
    %v5979 = vld [vmem:[#allocation3 + $0x38] sm:$0xff]
    %v5980 = vld [vmem:[#allocation3 + $0x40] sm:$0xff]
    %v5981 = vld [vmem:[#allocation3 + $0x48] sm:$0xff]
    %v5982 = vld [vmem:[#allocation3 + $0x50] sm:$0xff]
    %v5983 = vld [vmem:[#allocation3 + $0x58] sm:$0xff]
    %v5984 = vld [vmem:[#allocation3 + $0x60] sm:$0xff]
    %v5985 = vld [vmem:[#allocation3 + $0x68] sm:$0xff]
    %v5986 = vld [vmem:[#allocation3 + $0x70] sm:$0xff]
    %v5987 = vld [vmem:[#allocation3 + $0x78] sm:$0xff]
    %v5988 = vld [vmem:[#allocation3 + $0x80] sm:$0xff]
    %v5989 = vld [vmem:[#allocation3 + $0x88] sm:$0xff]
    %v5990 = vld [vmem:[#allocation3 + $0x90] sm:$0xff]
    %v5991 = vld [vmem:[#allocation3 + $0x98] sm:$0xff]
    %v5992 = vld [vmem:[#allocation3 + $0xa0] sm:$0xff]
    %v5993 = vld [vmem:[#allocation3 + $0xa8] sm:$0xff]
    %v5994 = vld [vmem:[#allocation3 + $0xb0] sm:$0xff]
    %v5995 = vld [vmem:[#allocation3 + $0xb8] sm:$0xff]
    %v5996 = vld [vmem:[#allocation3 + $0xc0] sm:$0xff]
    %v5997 = vld [vmem:[#allocation3 + $0xc8] sm:$0xff]
    %v5998 = vld [vmem:[#allocation3 + $0xd0] sm:$0xff]
    %v5999 = vld [vmem:[#allocation3 + $0xd8] sm:$0xff]
    %v6000 = vld [vmem:[#allocation3 + $0xe0] sm:$0xff]
    %v6001 = vld [vmem:[#allocation3 + $0xe8] sm:$0xff]
    %v6002 = vld [vmem:[#allocation3 + $0xf0] sm:$0xff]
    %v6003 = vld [vmem:[#allocation3 + $0xf8] sm:$0xff]
    %v6004 = vld [vmem:[#allocation3 + $0x100] sm:$0xff]
    %v6005 = vld [vmem:[#allocation3 + $0x108] sm:$0xff]
    %v6006 = vld [vmem:[#allocation3 + $0x110] sm:$0xff]
    %v6007 = vld [vmem:[#allocation3 + $0x118] sm:$0xff]
    %v6008 = vld [vmem:[#allocation3 + $0x120] sm:$0xff]
    %v6009 = vld [vmem:[#allocation3 + $0x128] sm:$0xff]
    %v6010 = vld [vmem:[#allocation3 + $0x130] sm:$0xff]
    %v6011 = vld [vmem:[#allocation3 + $0x138] sm:$0xff]
    %v6012 = vld [vmem:[%s3] sm:$0x1f]
    %s6013 = smul.u32 0, 64
    %v6014 = vstv %s6013
    %v6015 = vsub.s32 %v6012, %v6014
    %v6016 = vperm.slane %v6015, 0
    %v6017 = vperm.slane %v6015, 1
    %v6018 = vperm.slane %v6015, 2
    %v6019 = vperm.slane %v6015, 3
    %v6020 = vperm.slane %v6015, 4
    %vm6021 = vcmp.eq.s32.totalorder %v5972, %v6016
    %vm6022 = vcmp.eq.s32.totalorder %v5973, %v6017
    %vm6023 = vcmp.eq.s32.totalorder %v5974, %v6018
    %vm6024 = vcmp.eq.s32.totalorder %v5975, %v6019
    %vm6025 = vcmp.eq.s32.totalorder %v5976, %v6020
    %vm6026 = vcmp.eq.s32.totalorder %v5977, %v6016
    %vm6027 = vcmp.eq.s32.totalorder %v5978, %v6017
    %vm6028 = vcmp.eq.s32.totalorder %v5979, %v6018
    %vm6029 = vcmp.eq.s32.totalorder %v5980, %v6019
    %vm6030 = vcmp.eq.s32.totalorder %v5981, %v6020
    %vm6031 = vcmp.eq.s32.totalorder %v5982, %v6016
    %vm6032 = vcmp.eq.s32.totalorder %v5983, %v6017
    %vm6033 = vcmp.eq.s32.totalorder %v5984, %v6018
    %vm6034 = vcmp.eq.s32.totalorder %v5985, %v6019
    %vm6035 = vcmp.eq.s32.totalorder %v5986, %v6020
    %vm6036 = vcmp.eq.s32.totalorder %v5987, %v6016
    %vm6037 = vcmp.eq.s32.totalorder %v5988, %v6017
    %vm6038 = vcmp.eq.s32.totalorder %v5989, %v6018
    %vm6039 = vcmp.eq.s32.totalorder %v5990, %v6019
    %vm6040 = vcmp.eq.s32.totalorder %v5991, %v6020
    %vm6041 = vcmp.eq.s32.totalorder %v5992, %v6016
    %vm6042 = vcmp.eq.s32.totalorder %v5993, %v6017
    %vm6043 = vcmp.eq.s32.totalorder %v5994, %v6018
    %vm6044 = vcmp.eq.s32.totalorder %v5995, %v6019
    %vm6045 = vcmp.eq.s32.totalorder %v5996, %v6020
    %vm6046 = vcmp.eq.s32.totalorder %v5997, %v6016
    %vm6047 = vcmp.eq.s32.totalorder %v5998, %v6017
    %vm6048 = vcmp.eq.s32.totalorder %v5999, %v6018
    %vm6049 = vcmp.eq.s32.totalorder %v6000, %v6019
    %vm6050 = vcmp.eq.s32.totalorder %v6001, %v6020
    %vm6051 = vcmp.eq.s32.totalorder %v6002, %v6016
    %vm6052 = vcmp.eq.s32.totalorder %v6003, %v6017
    %vm6053 = vcmp.eq.s32.totalorder %v6004, %v6018
    %vm6054 = vcmp.eq.s32.totalorder %v6005, %v6019
    %vm6055 = vcmp.eq.s32.totalorder %v6006, %v6020
    %vm6056 = vcmp.eq.s32.totalorder %v6007, %v6016
    %vm6057 = vcmp.eq.s32.totalorder %v6008, %v6017
    %vm6058 = vcmp.eq.s32.totalorder %v6009, %v6018
    %vm6059 = vcmp.eq.s32.totalorder %v6010, %v6019
    %vm6060 = vcmp.eq.s32.totalorder %v6011, %v6020
    %v6061 = vsel %vm6021, 1, 0
    %v6062 = vsel %vm6022, 1, 0
    %v6063 = vsel %vm6023, 1, 0
    %v6064 = vsel %vm6024, 1, 0
    %v6065 = vsel %vm6025, 1, 0
    %v6066 = vsel %vm6026, 1, 0
    %v6067 = vsel %vm6027, 1, 0
    %v6068 = vsel %vm6028, 1, 0
    %v6069 = vsel %vm6029, 1, 0
    %v6070 = vsel %vm6030, 1, 0
    %v6071 = vsel %vm6031, 1, 0
    %v6072 = vsel %vm6032, 1, 0
    %v6073 = vsel %vm6033, 1, 0
    %v6074 = vsel %vm6034, 1, 0
    %v6075 = vsel %vm6035, 1, 0
    %v6076 = vsel %vm6036, 1, 0
    %v6077 = vsel %vm6037, 1, 0
    %v6078 = vsel %vm6038, 1, 0
    %v6079 = vsel %vm6039, 1, 0
    %v6080 = vsel %vm6040, 1, 0
    %v6081 = vsel %vm6041, 1, 0
    %v6082 = vsel %vm6042, 1, 0
    %v6083 = vsel %vm6043, 1, 0
    %v6084 = vsel %vm6044, 1, 0
    %v6085 = vsel %vm6045, 1, 0
    %v6086 = vsel %vm6046, 1, 0
    %v6087 = vsel %vm6047, 1, 0
    %v6088 = vsel %vm6048, 1, 0
    %v6089 = vsel %vm6049, 1, 0
    %v6090 = vsel %vm6050, 1, 0
    %v6091 = vsel %vm6051, 1, 0
    %v6092 = vsel %vm6052, 1, 0
    %v6093 = vsel %vm6053, 1, 0
    %v6094 = vsel %vm6054, 1, 0
    %v6095 = vsel %vm6055, 1, 0
    %v6096 = vsel %vm6056, 1, 0
    %v6097 = vsel %vm6057, 1, 0
    %v6098 = vsel %vm6058, 1, 0
    %v6099 = vsel %vm6059, 1, 0
    %v6100 = vsel %vm6060, 1, 0
    %v6101 = vcvt.s32.f32 %v6061
    %v6102 = vcvt.s32.f32 %v6062
    %v6103 = vcvt.s32.f32 %v6063
    %v6104 = vcvt.s32.f32 %v6064
    %v6105 = vcvt.s32.f32 %v6065
    %v6106 = vcvt.s32.f32 %v6066
    %v6107 = vcvt.s32.f32 %v6067
    %v6108 = vcvt.s32.f32 %v6068
    %v6109 = vcvt.s32.f32 %v6069
    %v6110 = vcvt.s32.f32 %v6070
    %v6111 = vcvt.s32.f32 %v6071
    %v6112 = vcvt.s32.f32 %v6072
    %v6113 = vcvt.s32.f32 %v6073
    %v6114 = vcvt.s32.f32 %v6074
    %v6115 = vcvt.s32.f32 %v6075
    %v6116 = vcvt.s32.f32 %v6076
    %v6117 = vcvt.s32.f32 %v6077
    %v6118 = vcvt.s32.f32 %v6078
    %v6119 = vcvt.s32.f32 %v6079
    %v6120 = vcvt.s32.f32 %v6080
    %v6121 = vcvt.s32.f32 %v6081
    %v6122 = vcvt.s32.f32 %v6082
    %v6123 = vcvt.s32.f32 %v6083
    %v6124 = vcvt.s32.f32 %v6084
    %v6125 = vcvt.s32.f32 %v6085
    %v6126 = vcvt.s32.f32 %v6086
    %v6127 = vcvt.s32.f32 %v6087
    %v6128 = vcvt.s32.f32 %v6088
    %v6129 = vcvt.s32.f32 %v6089
    %v6130 = vcvt.s32.f32 %v6090
    %v6131 = vcvt.s32.f32 %v6091
    %v6132 = vcvt.s32.f32 %v6092
    %v6133 = vcvt.s32.f32 %v6093
    %v6134 = vcvt.s32.f32 %v6094
    %v6135 = vcvt.s32.f32 %v6095
    %v6136 = vcvt.s32.f32 %v6096
    %v6137 = vcvt.s32.f32 %v6097
    %v6138 = vcvt.s32.f32 %v6098
    %v6139 = vcvt.s32.f32 %v6099
    %v6140 = vcvt.s32.f32 %v6100
    %v6141 = vpack.c.bf16 %v6106, %v6101
    %v6142 = vpack.c.bf16 %v6107, %v6102
    %v6143 = vpack.c.bf16 %v6108, %v6103
    %v6144 = vpack.c.bf16 %v6109, %v6104
    %v6145 = vpack.c.bf16 %v6110, %v6105
    %v6146 = vpack.c.bf16 %v6116, %v6111
    %v6147 = vpack.c.bf16 %v6117, %v6112
    %v6148 = vpack.c.bf16 %v6118, %v6113
    %v6149 = vpack.c.bf16 %v6119, %v6114
    %v6150 = vpack.c.bf16 %v6120, %v6115
    %v6151 = vpack.c.bf16 %v6126, %v6121
    %v6152 = vpack.c.bf16 %v6127, %v6122
    %v6153 = vpack.c.bf16 %v6128, %v6123
    %v6154 = vpack.c.bf16 %v6129, %v6124
    %v6155 = vpack.c.bf16 %v6130, %v6125
    %v6156 = vpack.c.bf16 %v6136, %v6131
    %v6157 = vpack.c.bf16 %v6137, %v6132
    %v6158 = vpack.c.bf16 %v6138, %v6133
    %v6159 = vpack.c.bf16 %v6139, %v6134
    %v6160 = vpack.c.bf16 %v6140, %v6135
    %v6161 = vpack.c.bf16 %v5492, %v5092
    %v6162 = vpack.c.bf16 %v5892, %v5892
    %v6163 = vpack.c.bf16 %v5493, %v5093
    %v6164 = vpack.c.bf16 %v5893, %v5893
    %v6165 = vpack.c.bf16 %v5494, %v5094
    %v6166 = vpack.c.bf16 %v5894, %v5894
    %v6167 = vpack.c.bf16 %v5495, %v5095
    %v6168 = vpack.c.bf16 %v5895, %v5895
    %v6169 = vpack.c.bf16 %v5496, %v5096
    %v6170 = vpack.c.bf16 %v5896, %v5896
    %v6171 = vpack.c.bf16 %v5497, %v5097
    %v6172 = vpack.c.bf16 %v5897, %v5897
    %v6173 = vpack.c.bf16 %v5498, %v5098
    %v6174 = vpack.c.bf16 %v5898, %v5898
    %v6175 = vpack.c.bf16 %v5499, %v5099
    %v6176 = vpack.c.bf16 %v5899, %v5899
    %v6177 = vpack.c.bf16 %v5500, %v5100
    %v6178 = vpack.c.bf16 %v5900, %v5900
    %v6179 = vpack.c.bf16 %v5501, %v5101
    %v6180 = vpack.c.bf16 %v5901, %v5901
    %v6181 = vpack.c.bf16 %v5502, %v5102
    %v6182 = vpack.c.bf16 %v5902, %v5902
    %v6183 = vpack.c.bf16 %v5503, %v5103
    %v6184 = vpack.c.bf16 %v5903, %v5903
    %v6185 = vpack.c.bf16 %v5504, %v5104
    %v6186 = vpack.c.bf16 %v5904, %v5904
    %v6187 = vpack.c.bf16 %v5505, %v5105
    %v6188 = vpack.c.bf16 %v5905, %v5905
    %v6189 = vpack.c.bf16 %v5506, %v5106
    %v6190 = vpack.c.bf16 %v5906, %v5906
    %v6191 = vpack.c.bf16 %v5507, %v5107
    %v6192 = vpack.c.bf16 %v5907, %v5907
    %v6193 = vpack.c.bf16 %v5508, %v5108
    %v6194 = vpack.c.bf16 %v5908, %v5908
    %v6195 = vpack.c.bf16 %v5509, %v5109
    %v6196 = vpack.c.bf16 %v5909, %v5909
    %v6197 = vpack.c.bf16 %v5510, %v5110
    %v6198 = vpack.c.bf16 %v5910, %v5910
    %v6199 = vpack.c.bf16 %v5511, %v5111
    %v6200 = vpack.c.bf16 %v5911, %v5911
    %v6201 = vpack.c.bf16 %v5512, %v5112
    %v6202 = vpack.c.bf16 %v5912, %v5912
    %v6203 = vpack.c.bf16 %v5513, %v5113
    %v6204 = vpack.c.bf16 %v5913, %v5913
    %v6205 = vpack.c.bf16 %v5514, %v5114
    %v6206 = vpack.c.bf16 %v5914, %v5914
    %v6207 = vpack.c.bf16 %v5515, %v5115
    %v6208 = vpack.c.bf16 %v5915, %v5915
    %v6209 = vpack.c.bf16 %v5516, %v5116
    %v6210 = vpack.c.bf16 %v5916, %v5916
    %v6211 = vpack.c.bf16 %v5517, %v5117
    %v6212 = vpack.c.bf16 %v5917, %v5917
    %v6213 = vpack.c.bf16 %v5518, %v5118
    %v6214 = vpack.c.bf16 %v5918, %v5918
    %v6215 = vpack.c.bf16 %v5519, %v5119
    %v6216 = vpack.c.bf16 %v5919, %v5919
    %v6217 = vpack.c.bf16 %v5520, %v5120
    %v6218 = vpack.c.bf16 %v5920, %v5920
    %v6219 = vpack.c.bf16 %v5521, %v5121
    %v6220 = vpack.c.bf16 %v5921, %v5921
    %v6221 = vpack.c.bf16 %v5522, %v5122
    %v6222 = vpack.c.bf16 %v5922, %v5922
    %v6223 = vpack.c.bf16 %v5523, %v5123
    %v6224 = vpack.c.bf16 %v5923, %v5923
    %v6225 = vpack.c.bf16 %v5524, %v5124
    %v6226 = vpack.c.bf16 %v5924, %v5924
    %v6227 = vpack.c.bf16 %v5525, %v5125
    %v6228 = vpack.c.bf16 %v5925, %v5925
    %v6229 = vpack.c.bf16 %v5526, %v5126
    %v6230 = vpack.c.bf16 %v5926, %v5926
    %v6231 = vpack.c.bf16 %v5527, %v5127
    %v6232 = vpack.c.bf16 %v5927, %v5927
    %v6233 = vpack.c.bf16 %v5528, %v5128
    %v6234 = vpack.c.bf16 %v5928, %v5928
    %v6235 = vpack.c.bf16 %v5529, %v5129
    %v6236 = vpack.c.bf16 %v5929, %v5929
    %v6237 = vpack.c.bf16 %v5530, %v5130
    %v6238 = vpack.c.bf16 %v5930, %v5930
    %v6239 = vpack.c.bf16 %v5531, %v5131
    %v6240 = vpack.c.bf16 %v5931, %v5931
    %v6241 = vpack.c.bf16 %v5532, %v5132
    %v6242 = vpack.c.bf16 %v5932, %v5932
    %v6243 = vpack.c.bf16 %v5533, %v5133
    %v6244 = vpack.c.bf16 %v5933, %v5933
    %v6245 = vpack.c.bf16 %v5534, %v5134
    %v6246 = vpack.c.bf16 %v5934, %v5934
    %v6247 = vpack.c.bf16 %v5535, %v5135
    %v6248 = vpack.c.bf16 %v5935, %v5935
    %v6249 = vpack.c.bf16 %v5536, %v5136
    %v6250 = vpack.c.bf16 %v5936, %v5936
    %v6251 = vpack.c.bf16 %v5537, %v5137
    %v6252 = vpack.c.bf16 %v5937, %v5937
    %v6253 = vpack.c.bf16 %v5538, %v5138
    %v6254 = vpack.c.bf16 %v5938, %v5938
    %v6255 = vpack.c.bf16 %v5539, %v5139
    %v6256 = vpack.c.bf16 %v5939, %v5939
    %v6257 = vpack.c.bf16 %v5540, %v5140
    %v6258 = vpack.c.bf16 %v5940, %v5940
    %v6259 = vpack.c.bf16 %v5541, %v5141
    %v6260 = vpack.c.bf16 %v5941, %v5941
    %v6261 = vpack.c.bf16 %v5542, %v5142
    %v6262 = vpack.c.bf16 %v5942, %v5942
    %v6263 = vpack.c.bf16 %v5543, %v5143
    %v6264 = vpack.c.bf16 %v5943, %v5943
    %v6265 = vpack.c.bf16 %v5544, %v5144
    %v6266 = vpack.c.bf16 %v5944, %v5944
    %v6267 = vpack.c.bf16 %v5545, %v5145
    %v6268 = vpack.c.bf16 %v5945, %v5945
    %v6269 = vpack.c.bf16 %v5546, %v5146
    %v6270 = vpack.c.bf16 %v5946, %v5946
    %v6271 = vpack.c.bf16 %v5547, %v5147
    %v6272 = vpack.c.bf16 %v5947, %v5947
    %v6273 = vpack.c.bf16 %v5548, %v5148
    %v6274 = vpack.c.bf16 %v5948, %v5948
    %v6275 = vpack.c.bf16 %v5549, %v5149
    %v6276 = vpack.c.bf16 %v5949, %v5949
    %v6277 = vpack.c.bf16 %v5550, %v5150
    %v6278 = vpack.c.bf16 %v5950, %v5950
    %v6279 = vpack.c.bf16 %v5551, %v5151
    %v6280 = vpack.c.bf16 %v5951, %v5951
    %v6281 = vpack.c.bf16 %v5552, %v5152
    %v6282 = vpack.c.bf16 %v5952, %v5952
    %v6283 = vpack.c.bf16 %v5553, %v5153
    %v6284 = vpack.c.bf16 %v5953, %v5953
    %v6285 = vpack.c.bf16 %v5554, %v5154
    %v6286 = vpack.c.bf16 %v5954, %v5954
    %v6287 = vpack.c.bf16 %v5555, %v5155
    %v6288 = vpack.c.bf16 %v5955, %v5955
    %v6289 = vpack.c.bf16 %v5556, %v5156
    %v6290 = vpack.c.bf16 %v5956, %v5956
    %v6291 = vpack.c.bf16 %v5557, %v5157
    %v6292 = vpack.c.bf16 %v5957, %v5957
    %v6293 = vpack.c.bf16 %v5558, %v5158
    %v6294 = vpack.c.bf16 %v5958, %v5958
    %v6295 = vpack.c.bf16 %v5559, %v5159
    %v6296 = vpack.c.bf16 %v5959, %v5959
    %v6297 = vpack.c.bf16 %v5560, %v5160
    %v6298 = vpack.c.bf16 %v5960, %v5960
    %v6299 = vpack.c.bf16 %v5561, %v5161
    %v6300 = vpack.c.bf16 %v5961, %v5961
    %v6301 = vpack.c.bf16 %v5562, %v5162
    %v6302 = vpack.c.bf16 %v5962, %v5962
    %v6303 = vpack.c.bf16 %v5563, %v5163
    %v6304 = vpack.c.bf16 %v5963, %v5963
    %v6305 = vpack.c.bf16 %v5564, %v5164
    %v6306 = vpack.c.bf16 %v5964, %v5964
    %v6307 = vpack.c.bf16 %v5565, %v5165
    %v6308 = vpack.c.bf16 %v5965, %v5965
    %v6309 = vpack.c.bf16 %v5566, %v5166
    %v6310 = vpack.c.bf16 %v5966, %v5966
    %v6311 = vpack.c.bf16 %v5567, %v5167
    %v6312 = vpack.c.bf16 %v5967, %v5967
    %v6313 = vpack.c.bf16 %v5568, %v5168
    %v6314 = vpack.c.bf16 %v5968, %v5968
    %v6315 = vpack.c.bf16 %v5569, %v5169
    %v6316 = vpack.c.bf16 %v5969, %v5969
    %v6317 = vpack.c.bf16 %v5570, %v5170
    %v6318 = vpack.c.bf16 %v5970, %v5970
    %v6319 = vpack.c.bf16 %v5571, %v5171
    %v6320 = vpack.c.bf16 %v5971, %v5971
    %v6321 = vunpack.c.l.bf16 %v6161
    %v6322 = vunpack.c.h.bf16 %v6161
    %v6323 = vunpack.c.l.bf16 %v6162
    %v6324 = vunpack.c.l.bf16 %v6163
    %v6325 = vunpack.c.h.bf16 %v6163
    %v6326 = vunpack.c.l.bf16 %v6164
    %v6327 = vunpack.c.l.bf16 %v6165
    %v6328 = vunpack.c.h.bf16 %v6165
    %v6329 = vunpack.c.l.bf16 %v6166
    %v6330 = vunpack.c.l.bf16 %v6167
    %v6331 = vunpack.c.h.bf16 %v6167
    %v6332 = vunpack.c.l.bf16 %v6168
    %v6333 = vunpack.c.l.bf16 %v6169
    %v6334 = vunpack.c.h.bf16 %v6169
    %v6335 = vunpack.c.l.bf16 %v6170
    %v6336 = vunpack.c.l.bf16 %v6171
    %v6337 = vunpack.c.h.bf16 %v6171
    %v6338 = vunpack.c.l.bf16 %v6172
    %v6339 = vunpack.c.l.bf16 %v6173
    %v6340 = vunpack.c.h.bf16 %v6173
    %v6341 = vunpack.c.l.bf16 %v6174
    %v6342 = vunpack.c.l.bf16 %v6175
    %v6343 = vunpack.c.h.bf16 %v6175
    %v6344 = vunpack.c.l.bf16 %v6176
    %v6345 = vunpack.c.l.bf16 %v6177
    %v6346 = vunpack.c.h.bf16 %v6177
    %v6347 = vunpack.c.l.bf16 %v6178
    %v6348 = vunpack.c.l.bf16 %v6179
    %v6349 = vunpack.c.h.bf16 %v6179
    %v6350 = vunpack.c.l.bf16 %v6180
    %v6351 = vunpack.c.l.bf16 %v6181
    %v6352 = vunpack.c.h.bf16 %v6181
    %v6353 = vunpack.c.l.bf16 %v6182
    %v6354 = vunpack.c.l.bf16 %v6183
    %v6355 = vunpack.c.h.bf16 %v6183
    %v6356 = vunpack.c.l.bf16 %v6184
    %v6357 = vunpack.c.l.bf16 %v6185
    %v6358 = vunpack.c.h.bf16 %v6185
    %v6359 = vunpack.c.l.bf16 %v6186
    %v6360 = vunpack.c.l.bf16 %v6187
    %v6361 = vunpack.c.h.bf16 %v6187
    %v6362 = vunpack.c.l.bf16 %v6188
    %v6363 = vunpack.c.l.bf16 %v6189
    %v6364 = vunpack.c.h.bf16 %v6189
    %v6365 = vunpack.c.l.bf16 %v6190
    %v6366 = vunpack.c.l.bf16 %v6191
    %v6367 = vunpack.c.h.bf16 %v6191
    %v6368 = vunpack.c.l.bf16 %v6192
    %v6369 = vunpack.c.l.bf16 %v6193
    %v6370 = vunpack.c.h.bf16 %v6193
    %v6371 = vunpack.c.l.bf16 %v6194
    %v6372 = vunpack.c.l.bf16 %v6195
    %v6373 = vunpack.c.h.bf16 %v6195
    %v6374 = vunpack.c.l.bf16 %v6196
    %v6375 = vunpack.c.l.bf16 %v6197
    %v6376 = vunpack.c.h.bf16 %v6197
    %v6377 = vunpack.c.l.bf16 %v6198
    %v6378 = vunpack.c.l.bf16 %v6199
    %v6379 = vunpack.c.h.bf16 %v6199
    %v6380 = vunpack.c.l.bf16 %v6200
    %v6381 = vunpack.c.l.bf16 %v6201
    %v6382 = vunpack.c.h.bf16 %v6201
    %v6383 = vunpack.c.l.bf16 %v6202
    %v6384 = vunpack.c.l.bf16 %v6203
    %v6385 = vunpack.c.h.bf16 %v6203
    %v6386 = vunpack.c.l.bf16 %v6204
    %v6387 = vunpack.c.l.bf16 %v6205
    %v6388 = vunpack.c.h.bf16 %v6205
    %v6389 = vunpack.c.l.bf16 %v6206
    %v6390 = vunpack.c.l.bf16 %v6207
    %v6391 = vunpack.c.h.bf16 %v6207
    %v6392 = vunpack.c.l.bf16 %v6208
    %v6393 = vunpack.c.l.bf16 %v6209
    %v6394 = vunpack.c.h.bf16 %v6209
    %v6395 = vunpack.c.l.bf16 %v6210
    %v6396 = vunpack.c.l.bf16 %v6211
    %v6397 = vunpack.c.h.bf16 %v6211
    %v6398 = vunpack.c.l.bf16 %v6212
    %v6399 = vunpack.c.l.bf16 %v6213
    %v6400 = vunpack.c.h.bf16 %v6213
    %v6401 = vunpack.c.l.bf16 %v6214
    %v6402 = vunpack.c.l.bf16 %v6215
    %v6403 = vunpack.c.h.bf16 %v6215
    %v6404 = vunpack.c.l.bf16 %v6216
    %v6405 = vunpack.c.l.bf16 %v6217
    %v6406 = vunpack.c.h.bf16 %v6217
    %v6407 = vunpack.c.l.bf16 %v6218
    %v6408 = vunpack.c.l.bf16 %v6219
    %v6409 = vunpack.c.h.bf16 %v6219
    %v6410 = vunpack.c.l.bf16 %v6220
    %v6411 = vunpack.c.l.bf16 %v6221
    %v6412 = vunpack.c.h.bf16 %v6221
    %v6413 = vunpack.c.l.bf16 %v6222
    %v6414 = vunpack.c.l.bf16 %v6223
    %v6415 = vunpack.c.h.bf16 %v6223
    %v6416 = vunpack.c.l.bf16 %v6224
    %v6417 = vunpack.c.l.bf16 %v6225
    %v6418 = vunpack.c.h.bf16 %v6225
    %v6419 = vunpack.c.l.bf16 %v6226
    %v6420 = vunpack.c.l.bf16 %v6227
    %v6421 = vunpack.c.h.bf16 %v6227
    %v6422 = vunpack.c.l.bf16 %v6228
    %v6423 = vunpack.c.l.bf16 %v6229
    %v6424 = vunpack.c.h.bf16 %v6229
    %v6425 = vunpack.c.l.bf16 %v6230
    %v6426 = vunpack.c.l.bf16 %v6231
    %v6427 = vunpack.c.h.bf16 %v6231
    %v6428 = vunpack.c.l.bf16 %v6232
    %v6429 = vunpack.c.l.bf16 %v6233
    %v6430 = vunpack.c.h.bf16 %v6233
    %v6431 = vunpack.c.l.bf16 %v6234
    %v6432 = vunpack.c.l.bf16 %v6235
    %v6433 = vunpack.c.h.bf16 %v6235
    %v6434 = vunpack.c.l.bf16 %v6236
    %v6435 = vunpack.c.l.bf16 %v6237
    %v6436 = vunpack.c.h.bf16 %v6237
    %v6437 = vunpack.c.l.bf16 %v6238
    %v6438 = vunpack.c.l.bf16 %v6239
    %v6439 = vunpack.c.h.bf16 %v6239
    %v6440 = vunpack.c.l.bf16 %v6240
    %v6441 = vunpack.c.l.bf16 %v6241
    %v6442 = vunpack.c.h.bf16 %v6241
    %v6443 = vunpack.c.l.bf16 %v6242
    %v6444 = vunpack.c.l.bf16 %v6243
    %v6445 = vunpack.c.h.bf16 %v6243
    %v6446 = vunpack.c.l.bf16 %v6244
    %v6447 = vunpack.c.l.bf16 %v6245
    %v6448 = vunpack.c.h.bf16 %v6245
    %v6449 = vunpack.c.l.bf16 %v6246
    %v6450 = vunpack.c.l.bf16 %v6247
    %v6451 = vunpack.c.h.bf16 %v6247
    %v6452 = vunpack.c.l.bf16 %v6248
    %v6453 = vunpack.c.l.bf16 %v6249
    %v6454 = vunpack.c.h.bf16 %v6249
    %v6455 = vunpack.c.l.bf16 %v6250
    %v6456 = vunpack.c.l.bf16 %v6251
    %v6457 = vunpack.c.h.bf16 %v6251
    %v6458 = vunpack.c.l.bf16 %v6252
    %v6459 = vunpack.c.l.bf16 %v6253
    %v6460 = vunpack.c.h.bf16 %v6253
    %v6461 = vunpack.c.l.bf16 %v6254
    %v6462 = vunpack.c.l.bf16 %v6255
    %v6463 = vunpack.c.h.bf16 %v6255
    %v6464 = vunpack.c.l.bf16 %v6256
    %v6465 = vunpack.c.l.bf16 %v6257
    %v6466 = vunpack.c.h.bf16 %v6257
    %v6467 = vunpack.c.l.bf16 %v6258
    %v6468 = vunpack.c.l.bf16 %v6259
    %v6469 = vunpack.c.h.bf16 %v6259
    %v6470 = vunpack.c.l.bf16 %v6260
    %v6471 = vunpack.c.l.bf16 %v6261
    %v6472 = vunpack.c.h.bf16 %v6261
    %v6473 = vunpack.c.l.bf16 %v6262
    %v6474 = vunpack.c.l.bf16 %v6263
    %v6475 = vunpack.c.h.bf16 %v6263
    %v6476 = vunpack.c.l.bf16 %v6264
    %v6477 = vunpack.c.l.bf16 %v6265
    %v6478 = vunpack.c.h.bf16 %v6265
    %v6479 = vunpack.c.l.bf16 %v6266
    %v6480 = vunpack.c.l.bf16 %v6267
    %v6481 = vunpack.c.h.bf16 %v6267
    %v6482 = vunpack.c.l.bf16 %v6268
    %v6483 = vunpack.c.l.bf16 %v6269
    %v6484 = vunpack.c.h.bf16 %v6269
    %v6485 = vunpack.c.l.bf16 %v6270
    %v6486 = vunpack.c.l.bf16 %v6271
    %v6487 = vunpack.c.h.bf16 %v6271
    %v6488 = vunpack.c.l.bf16 %v6272
    %v6489 = vunpack.c.l.bf16 %v6273
    %v6490 = vunpack.c.h.bf16 %v6273
    %v6491 = vunpack.c.l.bf16 %v6274
    %v6492 = vunpack.c.l.bf16 %v6275
    %v6493 = vunpack.c.h.bf16 %v6275
    %v6494 = vunpack.c.l.bf16 %v6276
    %v6495 = vunpack.c.l.bf16 %v6277
    %v6496 = vunpack.c.h.bf16 %v6277
    %v6497 = vunpack.c.l.bf16 %v6278
    %v6498 = vunpack.c.l.bf16 %v6279
    %v6499 = vunpack.c.h.bf16 %v6279
    %v6500 = vunpack.c.l.bf16 %v6280
    %v6501 = vunpack.c.l.bf16 %v6281
    %v6502 = vunpack.c.h.bf16 %v6281
    %v6503 = vunpack.c.l.bf16 %v6282
    %v6504 = vunpack.c.l.bf16 %v6283
    %v6505 = vunpack.c.h.bf16 %v6283
    %v6506 = vunpack.c.l.bf16 %v6284
    %v6507 = vunpack.c.l.bf16 %v6285
    %v6508 = vunpack.c.h.bf16 %v6285
    %v6509 = vunpack.c.l.bf16 %v6286
    %v6510 = vunpack.c.l.bf16 %v6287
    %v6511 = vunpack.c.h.bf16 %v6287
    %v6512 = vunpack.c.l.bf16 %v6288
    %v6513 = vunpack.c.l.bf16 %v6289
    %v6514 = vunpack.c.h.bf16 %v6289
    %v6515 = vunpack.c.l.bf16 %v6290
    %v6516 = vunpack.c.l.bf16 %v6291
    %v6517 = vunpack.c.h.bf16 %v6291
    %v6518 = vunpack.c.l.bf16 %v6292
    %v6519 = vunpack.c.l.bf16 %v6293
    %v6520 = vunpack.c.h.bf16 %v6293
    %v6521 = vunpack.c.l.bf16 %v6294
    %v6522 = vunpack.c.l.bf16 %v6295
    %v6523 = vunpack.c.h.bf16 %v6295
    %v6524 = vunpack.c.l.bf16 %v6296
    %v6525 = vunpack.c.l.bf16 %v6297
    %v6526 = vunpack.c.h.bf16 %v6297
    %v6527 = vunpack.c.l.bf16 %v6298
    %v6528 = vunpack.c.l.bf16 %v6299
    %v6529 = vunpack.c.h.bf16 %v6299
    %v6530 = vunpack.c.l.bf16 %v6300
    %v6531 = vunpack.c.l.bf16 %v6301
    %v6532 = vunpack.c.h.bf16 %v6301
    %v6533 = vunpack.c.l.bf16 %v6302
    %v6534 = vunpack.c.l.bf16 %v6303
    %v6535 = vunpack.c.h.bf16 %v6303
    %v6536 = vunpack.c.l.bf16 %v6304
    %v6537 = vunpack.c.l.bf16 %v6305
    %v6538 = vunpack.c.h.bf16 %v6305
    %v6539 = vunpack.c.l.bf16 %v6306
    %v6540 = vunpack.c.l.bf16 %v6307
    %v6541 = vunpack.c.h.bf16 %v6307
    %v6542 = vunpack.c.l.bf16 %v6308
    %v6543 = vunpack.c.l.bf16 %v6309
    %v6544 = vunpack.c.h.bf16 %v6309
    %v6545 = vunpack.c.l.bf16 %v6310
    %v6546 = vunpack.c.l.bf16 %v6311
    %v6547 = vunpack.c.h.bf16 %v6311
    %v6548 = vunpack.c.l.bf16 %v6312
    %v6549 = vunpack.c.l.bf16 %v6313
    %v6550 = vunpack.c.h.bf16 %v6313
    %v6551 = vunpack.c.l.bf16 %v6314
    %v6552 = vunpack.c.l.bf16 %v6315
    %v6553 = vunpack.c.h.bf16 %v6315
    %v6554 = vunpack.c.l.bf16 %v6316
    %v6555 = vunpack.c.l.bf16 %v6317
    %v6556 = vunpack.c.h.bf16 %v6317
    %v6557 = vunpack.c.l.bf16 %v6318
    %v6558 = vunpack.c.l.bf16 %v6319
    %v6559 = vunpack.c.h.bf16 %v6319
    %v6560 = vunpack.c.l.bf16 %v6320
    %v6561 = vsub.f32 %v5092, %v6321
    %v6562 = vsub.f32 %v5492, %v6322
    %v6563 = vsub.f32 %v5892, %v6323
    %v6564 = vsub.f32 %v5093, %v6324
    %v6565 = vsub.f32 %v5493, %v6325
    %v6566 = vsub.f32 %v5893, %v6326
    %v6567 = vsub.f32 %v5094, %v6327
    %v6568 = vsub.f32 %v5494, %v6328
    %v6569 = vsub.f32 %v5894, %v6329
    %v6570 = vsub.f32 %v5095, %v6330
    %v6571 = vsub.f32 %v5495, %v6331
    %v6572 = vsub.f32 %v5895, %v6332
    %v6573 = vsub.f32 %v5096, %v6333
    %v6574 = vsub.f32 %v5496, %v6334
    %v6575 = vsub.f32 %v5896, %v6335
    %v6576 = vsub.f32 %v5097, %v6336
    %v6577 = vsub.f32 %v5497, %v6337
    %v6578 = vsub.f32 %v5897, %v6338
    %v6579 = vsub.f32 %v5098, %v6339
    %v6580 = vsub.f32 %v5498, %v6340
    %v6581 = vsub.f32 %v5898, %v6341
    %v6582 = vsub.f32 %v5099, %v6342
    %v6583 = vsub.f32 %v5499, %v6343
    %v6584 = vsub.f32 %v5899, %v6344
    %v6585 = vsub.f32 %v5100, %v6345
    %v6586 = vsub.f32 %v5500, %v6346
    %v6587 = vsub.f32 %v5900, %v6347
    %v6588 = vsub.f32 %v5101, %v6348
    %v6589 = vsub.f32 %v5501, %v6349
    %v6590 = vsub.f32 %v5901, %v6350
    %v6591 = vsub.f32 %v5102, %v6351
    %v6592 = vsub.f32 %v5502, %v6352
    %v6593 = vsub.f32 %v5902, %v6353
    %v6594 = vsub.f32 %v5103, %v6354
    %v6595 = vsub.f32 %v5503, %v6355
    %v6596 = vsub.f32 %v5903, %v6356
    %v6597 = vsub.f32 %v5104, %v6357
    %v6598 = vsub.f32 %v5504, %v6358
    %v6599 = vsub.f32 %v5904, %v6359
    %v6600 = vsub.f32 %v5105, %v6360
    %v6601 = vsub.f32 %v5505, %v6361
    %v6602 = vsub.f32 %v5905, %v6362
    %v6603 = vsub.f32 %v5106, %v6363
    %v6604 = vsub.f32 %v5506, %v6364
    %v6605 = vsub.f32 %v5906, %v6365
    %v6606 = vsub.f32 %v5107, %v6366
    %v6607 = vsub.f32 %v5507, %v6367
    %v6608 = vsub.f32 %v5907, %v6368
    %v6609 = vsub.f32 %v5108, %v6369
    %v6610 = vsub.f32 %v5508, %v6370
    %v6611 = vsub.f32 %v5908, %v6371
    %v6612 = vsub.f32 %v5109, %v6372
    %v6613 = vsub.f32 %v5509, %v6373
    %v6614 = vsub.f32 %v5909, %v6374
    %v6615 = vsub.f32 %v5110, %v6375
    %v6616 = vsub.f32 %v5510, %v6376
    %v6617 = vsub.f32 %v5910, %v6377
    %v6618 = vsub.f32 %v5111, %v6378
    %v6619 = vsub.f32 %v5511, %v6379
    %v6620 = vsub.f32 %v5911, %v6380
    %v6621 = vsub.f32 %v5112, %v6381
    %v6622 = vsub.f32 %v5512, %v6382
    %v6623 = vsub.f32 %v5912, %v6383
    %v6624 = vsub.f32 %v5113, %v6384
    %v6625 = vsub.f32 %v5513, %v6385
    %v6626 = vsub.f32 %v5913, %v6386
    %v6627 = vsub.f32 %v5114, %v6387
    %v6628 = vsub.f32 %v5514, %v6388
    %v6629 = vsub.f32 %v5914, %v6389
    %v6630 = vsub.f32 %v5115, %v6390
    %v6631 = vsub.f32 %v5515, %v6391
    %v6632 = vsub.f32 %v5915, %v6392
    %v6633 = vsub.f32 %v5116, %v6393
    %v6634 = vsub.f32 %v5516, %v6394
    %v6635 = vsub.f32 %v5916, %v6395
    %v6636 = vsub.f32 %v5117, %v6396
    %v6637 = vsub.f32 %v5517, %v6397
    %v6638 = vsub.f32 %v5917, %v6398
    %v6639 = vsub.f32 %v5118, %v6399
    %v6640 = vsub.f32 %v5518, %v6400
    %v6641 = vsub.f32 %v5918, %v6401
    %v6642 = vsub.f32 %v5119, %v6402
    %v6643 = vsub.f32 %v5519, %v6403
    %v6644 = vsub.f32 %v5919, %v6404
    %v6645 = vsub.f32 %v5120, %v6405
    %v6646 = vsub.f32 %v5520, %v6406
    %v6647 = vsub.f32 %v5920, %v6407
    %v6648 = vsub.f32 %v5121, %v6408
    %v6649 = vsub.f32 %v5521, %v6409
    %v6650 = vsub.f32 %v5921, %v6410
    %v6651 = vsub.f32 %v5122, %v6411
    %v6652 = vsub.f32 %v5522, %v6412
    %v6653 = vsub.f32 %v5922, %v6413
    %v6654 = vsub.f32 %v5123, %v6414
    %v6655 = vsub.f32 %v5523, %v6415
    %v6656 = vsub.f32 %v5923, %v6416
    %v6657 = vsub.f32 %v5124, %v6417
    %v6658 = vsub.f32 %v5524, %v6418
    %v6659 = vsub.f32 %v5924, %v6419
    %v6660 = vsub.f32 %v5125, %v6420
    %v6661 = vsub.f32 %v5525, %v6421
    %v6662 = vsub.f32 %v5925, %v6422
    %v6663 = vsub.f32 %v5126, %v6423
    %v6664 = vsub.f32 %v5526, %v6424
    %v6665 = vsub.f32 %v5926, %v6425
    %v6666 = vsub.f32 %v5127, %v6426
    %v6667 = vsub.f32 %v5527, %v6427
    %v6668 = vsub.f32 %v5927, %v6428
    %v6669 = vsub.f32 %v5128, %v6429
    %v6670 = vsub.f32 %v5528, %v6430
    %v6671 = vsub.f32 %v5928, %v6431
    %v6672 = vsub.f32 %v5129, %v6432
    %v6673 = vsub.f32 %v5529, %v6433
    %v6674 = vsub.f32 %v5929, %v6434
    %v6675 = vsub.f32 %v5130, %v6435
    %v6676 = vsub.f32 %v5530, %v6436
    %v6677 = vsub.f32 %v5930, %v6437
    %v6678 = vsub.f32 %v5131, %v6438
    %v6679 = vsub.f32 %v5531, %v6439
    %v6680 = vsub.f32 %v5931, %v6440
    %v6681 = vsub.f32 %v5132, %v6441
    %v6682 = vsub.f32 %v5532, %v6442
    %v6683 = vsub.f32 %v5932, %v6443
    %v6684 = vsub.f32 %v5133, %v6444
    %v6685 = vsub.f32 %v5533, %v6445
    %v6686 = vsub.f32 %v5933, %v6446
    %v6687 = vsub.f32 %v5134, %v6447
    %v6688 = vsub.f32 %v5534, %v6448
    %v6689 = vsub.f32 %v5934, %v6449
    %v6690 = vsub.f32 %v5135, %v6450
    %v6691 = vsub.f32 %v5535, %v6451
    %v6692 = vsub.f32 %v5935, %v6452
    %v6693 = vsub.f32 %v5136, %v6453
    %v6694 = vsub.f32 %v5536, %v6454
    %v6695 = vsub.f32 %v5936, %v6455
    %v6696 = vsub.f32 %v5137, %v6456
    %v6697 = vsub.f32 %v5537, %v6457
    %v6698 = vsub.f32 %v5937, %v6458
    %v6699 = vsub.f32 %v5138, %v6459
    %v6700 = vsub.f32 %v5538, %v6460
    %v6701 = vsub.f32 %v5938, %v6461
    %v6702 = vsub.f32 %v5139, %v6462
    %v6703 = vsub.f32 %v5539, %v6463
    %v6704 = vsub.f32 %v5939, %v6464
    %v6705 = vsub.f32 %v5140, %v6465
    %v6706 = vsub.f32 %v5540, %v6466
    %v6707 = vsub.f32 %v5940, %v6467
    %v6708 = vsub.f32 %v5141, %v6468
    %v6709 = vsub.f32 %v5541, %v6469
    %v6710 = vsub.f32 %v5941, %v6470
    %v6711 = vsub.f32 %v5142, %v6471
    %v6712 = vsub.f32 %v5542, %v6472
    %v6713 = vsub.f32 %v5942, %v6473
    %v6714 = vsub.f32 %v5143, %v6474
    %v6715 = vsub.f32 %v5543, %v6475
    %v6716 = vsub.f32 %v5943, %v6476
    %v6717 = vsub.f32 %v5144, %v6477
    %v6718 = vsub.f32 %v5544, %v6478
    %v6719 = vsub.f32 %v5944, %v6479
    %v6720 = vsub.f32 %v5145, %v6480
    %v6721 = vsub.f32 %v5545, %v6481
    %v6722 = vsub.f32 %v5945, %v6482
    %v6723 = vsub.f32 %v5146, %v6483
    %v6724 = vsub.f32 %v5546, %v6484
    %v6725 = vsub.f32 %v5946, %v6485
    %v6726 = vsub.f32 %v5147, %v6486
    %v6727 = vsub.f32 %v5547, %v6487
    %v6728 = vsub.f32 %v5947, %v6488
    %v6729 = vsub.f32 %v5148, %v6489
    %v6730 = vsub.f32 %v5548, %v6490
    %v6731 = vsub.f32 %v5948, %v6491
    %v6732 = vsub.f32 %v5149, %v6492
    %v6733 = vsub.f32 %v5549, %v6493
    %v6734 = vsub.f32 %v5949, %v6494
    %v6735 = vsub.f32 %v5150, %v6495
    %v6736 = vsub.f32 %v5550, %v6496
    %v6737 = vsub.f32 %v5950, %v6497
    %v6738 = vsub.f32 %v5151, %v6498
    %v6739 = vsub.f32 %v5551, %v6499
    %v6740 = vsub.f32 %v5951, %v6500
    %v6741 = vsub.f32 %v5152, %v6501
    %v6742 = vsub.f32 %v5552, %v6502
    %v6743 = vsub.f32 %v5952, %v6503
    %v6744 = vsub.f32 %v5153, %v6504
    %v6745 = vsub.f32 %v5553, %v6505
    %v6746 = vsub.f32 %v5953, %v6506
    %v6747 = vsub.f32 %v5154, %v6507
    %v6748 = vsub.f32 %v5554, %v6508
    %v6749 = vsub.f32 %v5954, %v6509
    %v6750 = vsub.f32 %v5155, %v6510
    %v6751 = vsub.f32 %v5555, %v6511
    %v6752 = vsub.f32 %v5955, %v6512
    %v6753 = vsub.f32 %v5156, %v6513
    %v6754 = vsub.f32 %v5556, %v6514
    %v6755 = vsub.f32 %v5956, %v6515
    %v6756 = vsub.f32 %v5157, %v6516
    %v6757 = vsub.f32 %v5557, %v6517
    %v6758 = vsub.f32 %v5957, %v6518
    %v6759 = vsub.f32 %v5158, %v6519
    %v6760 = vsub.f32 %v5558, %v6520
    %v6761 = vsub.f32 %v5958, %v6521
    %v6762 = vsub.f32 %v5159, %v6522
    %v6763 = vsub.f32 %v5559, %v6523
    %v6764 = vsub.f32 %v5959, %v6524
    %v6765 = vsub.f32 %v5160, %v6525
    %v6766 = vsub.f32 %v5560, %v6526
    %v6767 = vsub.f32 %v5960, %v6527
    %v6768 = vsub.f32 %v5161, %v6528
    %v6769 = vsub.f32 %v5561, %v6529
    %v6770 = vsub.f32 %v5961, %v6530
    %v6771 = vsub.f32 %v5162, %v6531
    %v6772 = vsub.f32 %v5562, %v6532
    %v6773 = vsub.f32 %v5962, %v6533
    %v6774 = vsub.f32 %v5163, %v6534
    %v6775 = vsub.f32 %v5563, %v6535
    %v6776 = vsub.f32 %v5963, %v6536
    %v6777 = vsub.f32 %v5164, %v6537
    %v6778 = vsub.f32 %v5564, %v6538
    %v6779 = vsub.f32 %v5964, %v6539
    %v6780 = vsub.f32 %v5165, %v6540
    %v6781 = vsub.f32 %v5565, %v6541
    %v6782 = vsub.f32 %v5965, %v6542
    %v6783 = vsub.f32 %v5166, %v6543
    %v6784 = vsub.f32 %v5566, %v6544
    %v6785 = vsub.f32 %v5966, %v6545
    %v6786 = vsub.f32 %v5167, %v6546
    %v6787 = vsub.f32 %v5567, %v6547
    %v6788 = vsub.f32 %v5967, %v6548
    %v6789 = vsub.f32 %v5168, %v6549
    %v6790 = vsub.f32 %v5568, %v6550
    %v6791 = vsub.f32 %v5968, %v6551
    %v6792 = vsub.f32 %v5169, %v6552
    %v6793 = vsub.f32 %v5569, %v6553
    %v6794 = vsub.f32 %v5969, %v6554
    %v6795 = vsub.f32 %v5170, %v6555
    %v6796 = vsub.f32 %v5570, %v6556
    %v6797 = vsub.f32 %v5970, %v6557
    %v6798 = vsub.f32 %v5171, %v6558
    %v6799 = vsub.f32 %v5571, %v6559
    %v6800 = vsub.f32 %v5971, %v6560
    %v6801 = vpack.c.bf16 %v6564, %v6561
    %v6802 = vpack.c.bf16 %v6565, %v6562
    %v6803 = vpack.c.bf16 %v6566, %v6563
    %v6804 = vpack.c.bf16 %v6570, %v6567
    %v6805 = vpack.c.bf16 %v6571, %v6568
    %v6806 = vpack.c.bf16 %v6572, %v6569
    %v6807 = vpack.c.bf16 %v6576, %v6573
    %v6808 = vpack.c.bf16 %v6577, %v6574
    %v6809 = vpack.c.bf16 %v6578, %v6575
    %v6810 = vpack.c.bf16 %v6582, %v6579
    %v6811 = vpack.c.bf16 %v6583, %v6580
    %v6812 = vpack.c.bf16 %v6584, %v6581
    %v6813 = vpack.c.bf16 %v6588, %v6585
    %v6814 = vpack.c.bf16 %v6589, %v6586
    %v6815 = vpack.c.bf16 %v6590, %v6587
    %v6816 = vpack.c.bf16 %v6594, %v6591
    %v6817 = vpack.c.bf16 %v6595, %v6592
    %v6818 = vpack.c.bf16 %v6596, %v6593
    %v6819 = vpack.c.bf16 %v6600, %v6597
    %v6820 = vpack.c.bf16 %v6601, %v6598
    %v6821 = vpack.c.bf16 %v6602, %v6599
    %v6822 = vpack.c.bf16 %v6606, %v6603
    %v6823 = vpack.c.bf16 %v6607, %v6604
    %v6824 = vpack.c.bf16 %v6608, %v6605
    %v6825 = vpack.c.bf16 %v6612, %v6609
    %v6826 = vpack.c.bf16 %v6613, %v6610
    %v6827 = vpack.c.bf16 %v6614, %v6611
    %v6828 = vpack.c.bf16 %v6618, %v6615
    %v6829 = vpack.c.bf16 %v6619, %v6616
    %v6830 = vpack.c.bf16 %v6620, %v6617
    %v6831 = vpack.c.bf16 %v6624, %v6621
    %v6832 = vpack.c.bf16 %v6625, %v6622
    %v6833 = vpack.c.bf16 %v6626, %v6623
    %v6834 = vpack.c.bf16 %v6630, %v6627
    %v6835 = vpack.c.bf16 %v6631, %v6628
    %v6836 = vpack.c.bf16 %v6632, %v6629
    %v6837 = vpack.c.bf16 %v6636, %v6633
    %v6838 = vpack.c.bf16 %v6637, %v6634
    %v6839 = vpack.c.bf16 %v6638, %v6635
    %v6840 = vpack.c.bf16 %v6642, %v6639
    %v6841 = vpack.c.bf16 %v6643, %v6640
    %v6842 = vpack.c.bf16 %v6644, %v6641
    %v6843 = vpack.c.bf16 %v6648, %v6645
    %v6844 = vpack.c.bf16 %v6649, %v6646
    %v6845 = vpack.c.bf16 %v6650, %v6647
    %v6846 = vpack.c.bf16 %v6654, %v6651
    %v6847 = vpack.c.bf16 %v6655, %v6652
    %v6848 = vpack.c.bf16 %v6656, %v6653
    %v6849 = vpack.c.bf16 %v6660, %v6657
    %v6850 = vpack.c.bf16 %v6661, %v6658
    %v6851 = vpack.c.bf16 %v6662, %v6659
    %v6852 = vpack.c.bf16 %v6666, %v6663
    %v6853 = vpack.c.bf16 %v6667, %v6664
    %v6854 = vpack.c.bf16 %v6668, %v6665
    %v6855 = vpack.c.bf16 %v6672, %v6669
    %v6856 = vpack.c.bf16 %v6673, %v6670
    %v6857 = vpack.c.bf16 %v6674, %v6671
    %v6858 = vpack.c.bf16 %v6678, %v6675
    %v6859 = vpack.c.bf16 %v6679, %v6676
    %v6860 = vpack.c.bf16 %v6680, %v6677
    %v6861 = vpack.c.bf16 %v6684, %v6681
    %v6862 = vpack.c.bf16 %v6685, %v6682
    %v6863 = vpack.c.bf16 %v6686, %v6683
    %v6864 = vpack.c.bf16 %v6690, %v6687
    %v6865 = vpack.c.bf16 %v6691, %v6688
    %v6866 = vpack.c.bf16 %v6692, %v6689
    %v6867 = vpack.c.bf16 %v6696, %v6693
    %v6868 = vpack.c.bf16 %v6697, %v6694
    %v6869 = vpack.c.bf16 %v6698, %v6695
    %v6870 = vpack.c.bf16 %v6702, %v6699
    %v6871 = vpack.c.bf16 %v6703, %v6700
    %v6872 = vpack.c.bf16 %v6704, %v6701
    %v6873 = vpack.c.bf16 %v6708, %v6705
    %v6874 = vpack.c.bf16 %v6709, %v6706
    %v6875 = vpack.c.bf16 %v6710, %v6707
    %v6876 = vpack.c.bf16 %v6714, %v6711
    %v6877 = vpack.c.bf16 %v6715, %v6712
    %v6878 = vpack.c.bf16 %v6716, %v6713
    %v6879 = vpack.c.bf16 %v6720, %v6717
    %v6880 = vpack.c.bf16 %v6721, %v6718
    %v6881 = vpack.c.bf16 %v6722, %v6719
    %v6882 = vpack.c.bf16 %v6726, %v6723
    %v6883 = vpack.c.bf16 %v6727, %v6724
    %v6884 = vpack.c.bf16 %v6728, %v6725
    %v6885 = vpack.c.bf16 %v6732, %v6729
    %v6886 = vpack.c.bf16 %v6733, %v6730
    %v6887 = vpack.c.bf16 %v6734, %v6731
    %v6888 = vpack.c.bf16 %v6738, %v6735
    %v6889 = vpack.c.bf16 %v6739, %v6736
    %v6890 = vpack.c.bf16 %v6740, %v6737
    %v6891 = vpack.c.bf16 %v6744, %v6741
    %v6892 = vpack.c.bf16 %v6745, %v6742
    %v6893 = vpack.c.bf16 %v6746, %v6743
    %v6894 = vpack.c.bf16 %v6750, %v6747
    %v6895 = vpack.c.bf16 %v6751, %v6748
    %v6896 = vpack.c.bf16 %v6752, %v6749
    %v6897 = vpack.c.bf16 %v6756, %v6753
    %v6898 = vpack.c.bf16 %v6757, %v6754
    %v6899 = vpack.c.bf16 %v6758, %v6755
    %v6900 = vpack.c.bf16 %v6762, %v6759
    %v6901 = vpack.c.bf16 %v6763, %v6760
    %v6902 = vpack.c.bf16 %v6764, %v6761
    %v6903 = vpack.c.bf16 %v6768, %v6765
    %v6904 = vpack.c.bf16 %v6769, %v6766
    %v6905 = vpack.c.bf16 %v6770, %v6767
    %v6906 = vpack.c.bf16 %v6774, %v6771
    %v6907 = vpack.c.bf16 %v6775, %v6772
    %v6908 = vpack.c.bf16 %v6776, %v6773
    %v6909 = vpack.c.bf16 %v6780, %v6777
    %v6910 = vpack.c.bf16 %v6781, %v6778
    %v6911 = vpack.c.bf16 %v6782, %v6779
    %v6912 = vpack.c.bf16 %v6786, %v6783
    %v6913 = vpack.c.bf16 %v6787, %v6784
    %v6914 = vpack.c.bf16 %v6788, %v6785
    %v6915 = vpack.c.bf16 %v6792, %v6789
    %v6916 = vpack.c.bf16 %v6793, %v6790
    %v6917 = vpack.c.bf16 %v6794, %v6791
    %v6918 = vpack.c.bf16 %v6798, %v6795
    %v6919 = vpack.c.bf16 %v6799, %v6796
    %v6920 = vpack.c.bf16 %v6800, %v6797
    %v6921 = vld [vmem:[#allocation2] sm:$0xff]
    %v6922 = vld [vmem:[#allocation2 + $0x8] sm:$0xff]
    %v6923 = vld [vmem:[#allocation2 + $0x10] sm:$0xff]
    %v6924 = vld [vmem:[#allocation2 + $0x18] sm:$0xff]
    %v6925 = vld [vmem:[#allocation2 + $0x20] sm:$0xff]
    %v6926 = vld [vmem:[#allocation2 + $0x28] sm:$0xff]
    %v6927 = vld [vmem:[#allocation2 + $0x30] sm:$0xff]
    %v6928 = vld [vmem:[#allocation2 + $0x38] sm:$0xff]
    %v6929 = vld [vmem:[#allocation2 + $0x40] sm:$0xff]
    %v6930 = vld [vmem:[#allocation2 + $0x48] sm:$0xff]
    %v6931 = vld [vmem:[#allocation2 + $0x50] sm:$0xff]
    %v6932 = vld [vmem:[#allocation2 + $0x58] sm:$0xff]
    %v6933 = vld [vmem:[#allocation2 + $0x60] sm:$0xff]
    %v6934 = vld [vmem:[#allocation2 + $0x68] sm:$0xff]
    %v6935 = vld [vmem:[#allocation2 + $0x70] sm:$0xff]
    %v6936 = vld [vmem:[#allocation2 + $0x78] sm:$0xff]
    %v6937 = vld [vmem:[#allocation2 + $0x80] sm:$0xff]
    %v6938 = vld [vmem:[#allocation2 + $0x88] sm:$0xff]
    %v6939 = vld [vmem:[#allocation2 + $0x90] sm:$0xff]
    %v6940 = vld [vmem:[#allocation2 + $0x98] sm:$0xff]
    %v6941 = vld [vmem:[#allocation2 + $0xa0] sm:$0xff]
    %v6942 = vld [vmem:[#allocation2 + $0xa8] sm:$0xff]
    %v6943 = vld [vmem:[#allocation2 + $0xb0] sm:$0xff]
    %v6944 = vld [vmem:[#allocation2 + $0xb8] sm:$0xff]
    %6945 = vmatpush.bf16.msra.mxu0 %v6822
    %6946 = vmatpush.bf16.msra.mxu0 %v6819
    %6947 = vmatpush.bf16.msra.mxu0 %v6816
    %6948 = vmatpush.bf16.msra.mxu0 %v6813
    %6949 = vmatpush.bf16.msra.mxu0 %v6810
    %6950 = vmatpush.bf16.msra.mxu0 %v6807
    %6951 = vmatpush.bf16.msra.mxu0 %v6804
    %6952 = vmatpush.bf16.msra.mxu0 %v6801
    %6953 = vmatmul.bf16.gmra.mxu0 %v6141
    %v6954 = vpop.f32.mrf.mxu0
    %v6955 = vadd.f32 0.0, %v6954
    %v6956 = vpop.f32.mrf.mxu0
    %v6957 = vadd.f32 0.0, %v6956
    %6958 = vmatmul.bf16.gmra.mxu0 %v6146
    %v6959 = vpop.f32.mrf.mxu0
    %v6960 = vadd.f32 0.0, %v6959
    %v6961 = vpop.f32.mrf.mxu0
    %v6962 = vadd.f32 0.0, %v6961
    %6963 = vmatmul.bf16.gmra.mxu0 %v6151
    %v6964 = vpop.f32.mrf.mxu0
    %v6965 = vadd.f32 0.0, %v6964
    %v6966 = vpop.f32.mrf.mxu0
    %v6967 = vadd.f32 0.0, %v6966
    %6968 = vmatmul.bf16.gmra.mxu0 %v6156
    %v6969 = vpop.f32.mrf.mxu0
    %v6970 = vadd.f32 0.0, %v6969
    %v6971 = vpop.f32.mrf.mxu0
    %v6972 = vadd.f32 0.0, %v6971
    %6973 = vdwg.mxu0
    %6974 = vmatpush.bf16.msra.mxu0 %v6846
    %6975 = vmatpush.bf16.msra.mxu0 %v6843
    %6976 = vmatpush.bf16.msra.mxu0 %v6840
    %6977 = vmatpush.bf16.msra.mxu0 %v6837
    %6978 = vmatpush.bf16.msra.mxu0 %v6834
    %6979 = vmatpush.bf16.msra.mxu0 %v6831
    %6980 = vmatpush.bf16.msra.mxu0 %v6828
    %6981 = vmatpush.bf16.msra.mxu0 %v6825
    %6982 = vmatmul.bf16.gmra.mxu0 %v6142
    %v6983 = vpop.f32.mrf.mxu0
    %v6984 = vadd.f32 %v6955, %v6983
    %v6985 = vpop.f32.mrf.mxu0
    %v6986 = vadd.f32 %v6957, %v6985
    %6987 = vmatmul.bf16.gmra.mxu0 %v6147
    %v6988 = vpop.f32.mrf.mxu0
    %v6989 = vadd.f32 %v6960, %v6988
    %v6990 = vpop.f32.mrf.mxu0
    %v6991 = vadd.f32 %v6962, %v6990
    %6992 = vmatmul.bf16.gmra.mxu0 %v6152
    %v6993 = vpop.f32.mrf.mxu0
    %v6994 = vadd.f32 %v6965, %v6993
    %v6995 = vpop.f32.mrf.mxu0
    %v6996 = vadd.f32 %v6967, %v6995
    %6997 = vmatmul.bf16.gmra.mxu0 %v6157
    %v6998 = vpop.f32.mrf.mxu0
    %v6999 = vadd.f32 %v6970, %v6998
    %v7000 = vpop.f32.mrf.mxu0
    %v7001 = vadd.f32 %v6972, %v7000
    %7002 = vdwg.mxu0
    %7003 = vmatpush.bf16.msra.mxu0 %v6870
    %7004 = vmatpush.bf16.msra.mxu0 %v6867
    %7005 = vmatpush.bf16.msra.mxu0 %v6864
    %7006 = vmatpush.bf16.msra.mxu0 %v6861
    %7007 = vmatpush.bf16.msra.mxu0 %v6858
    %7008 = vmatpush.bf16.msra.mxu0 %v6855
    %7009 = vmatpush.bf16.msra.mxu0 %v6852
    %7010 = vmatpush.bf16.msra.mxu0 %v6849
    %7011 = vmatmul.bf16.gmra.mxu0 %v6143
    %v7012 = vpop.f32.mrf.mxu0
    %v7013 = vadd.f32 %v6984, %v7012
    %v7014 = vpop.f32.mrf.mxu0
    %v7015 = vadd.f32 %v6986, %v7014
    %7016 = vmatmul.bf16.gmra.mxu0 %v6148
    %v7017 = vpop.f32.mrf.mxu0
    %v7018 = vadd.f32 %v6989, %v7017
    %v7019 = vpop.f32.mrf.mxu0
    %v7020 = vadd.f32 %v6991, %v7019
    %7021 = vmatmul.bf16.gmra.mxu0 %v6153
    %v7022 = vpop.f32.mrf.mxu0
    %v7023 = vadd.f32 %v6994, %v7022
    %v7024 = vpop.f32.mrf.mxu0
    %v7025 = vadd.f32 %v6996, %v7024
    %7026 = vmatmul.bf16.gmra.mxu0 %v6158
    %v7027 = vpop.f32.mrf.mxu0
    %v7028 = vadd.f32 %v6999, %v7027
    %v7029 = vpop.f32.mrf.mxu0
    %v7030 = vadd.f32 %v7001, %v7029
    %7031 = vdwg.mxu0
    %7032 = vmatpush.bf16.msra.mxu0 %v6894
    %7033 = vmatpush.bf16.msra.mxu0 %v6891
    %7034 = vmatpush.bf16.msra.mxu0 %v6888
    %7035 = vmatpush.bf16.msra.mxu0 %v6885
    %7036 = vmatpush.bf16.msra.mxu0 %v6882
    %7037 = vmatpush.bf16.msra.mxu0 %v6879
    %7038 = vmatpush.bf16.msra.mxu0 %v6876
    %7039 = vmatpush.bf16.msra.mxu0 %v6873
    %7040 = vmatmul.bf16.gmra.mxu0 %v6144
    %v7041 = vpop.f32.mrf.mxu0
    %v7042 = vadd.f32 %v7013, %v7041
    %v7043 = vpop.f32.mrf.mxu0
    %v7044 = vadd.f32 %v7015, %v7043
    %7045 = vmatmul.bf16.gmra.mxu0 %v6149
    %v7046 = vpop.f32.mrf.mxu0
    %v7047 = vadd.f32 %v7018, %v7046
    %v7048 = vpop.f32.mrf.mxu0
    %v7049 = vadd.f32 %v7020, %v7048
    %7050 = vmatmul.bf16.gmra.mxu0 %v6154
    %v7051 = vpop.f32.mrf.mxu0
    %v7052 = vadd.f32 %v7023, %v7051
    %v7053 = vpop.f32.mrf.mxu0
    %v7054 = vadd.f32 %v7025, %v7053
    %7055 = vmatmul.bf16.gmra.mxu0 %v6159
    %v7056 = vpop.f32.mrf.mxu0
    %v7057 = vadd.f32 %v7028, %v7056
    %v7058 = vpop.f32.mrf.mxu0
    %v7059 = vadd.f32 %v7030, %v7058
    %7060 = vdwg.mxu0
    %7061 = vmatpush.bf16.msra.mxu0 %v6918
    %7062 = vmatpush.bf16.msra.mxu0 %v6915
    %7063 = vmatpush.bf16.msra.mxu0 %v6912
    %7064 = vmatpush.bf16.msra.mxu0 %v6909
    %7065 = vmatpush.bf16.msra.mxu0 %v6906
    %7066 = vmatpush.bf16.msra.mxu0 %v6903
    %7067 = vmatpush.bf16.msra.mxu0 %v6900
    %7068 = vmatpush.bf16.msra.mxu0 %v6897
    %7069 = vmatmul.bf16.gmra.mxu0 %v6145
    %v7070 = vpop.f32.mrf.mxu0
    %v7071 = vadd.f32 %v7042, %v7070
    %v7072 = vpop.f32.mrf.mxu0
    %v7073 = vadd.f32 %v7044, %v7072
    %7074 = vmatmul.bf16.gmra.mxu0 %v6150
    %v7075 = vpop.f32.mrf.mxu0
    %v7076 = vadd.f32 %v7047, %v7075
    %v7077 = vpop.f32.mrf.mxu0
    %v7078 = vadd.f32 %v7049, %v7077
    %7079 = vmatmul.bf16.gmra.mxu0 %v6155
    %v7080 = vpop.f32.mrf.mxu0
    %v7081 = vadd.f32 %v7052, %v7080
    %v7082 = vpop.f32.mrf.mxu0
    %v7083 = vadd.f32 %v7054, %v7082
    %7084 = vmatmul.bf16.gmra.mxu0 %v6160
    %v7085 = vpop.f32.mrf.mxu0
    %v7086 = vadd.f32 %v7057, %v7085
    %v7087 = vpop.f32.mrf.mxu0
    %v7088 = vadd.f32 %v7059, %v7087
    %7089 = vdwg.mxu0
    %7090 = vmatpush.bf16.msra.mxu0 %v6823
    %7091 = vmatpush.bf16.msra.mxu0 %v6820
    %7092 = vmatpush.bf16.msra.mxu0 %v6817
    %7093 = vmatpush.bf16.msra.mxu0 %v6814
    %7094 = vmatpush.bf16.msra.mxu0 %v6811
    %7095 = vmatpush.bf16.msra.mxu0 %v6808
    %7096 = vmatpush.bf16.msra.mxu0 %v6805
    %7097 = vmatpush.bf16.msra.mxu0 %v6802
    %7098 = vmatmul.bf16.gmra.mxu0 %v6141
    %v7099 = vpop.f32.mrf.mxu0
    %v7100 = vadd.f32 0.0, %v7099
    %v7101 = vpop.f32.mrf.mxu0
    %v7102 = vadd.f32 0.0, %v7101
    %7103 = vmatmul.bf16.gmra.mxu0 %v6146
    %v7104 = vpop.f32.mrf.mxu0
    %v7105 = vadd.f32 0.0, %v7104
    %v7106 = vpop.f32.mrf.mxu0
    %v7107 = vadd.f32 0.0, %v7106
    %7108 = vmatmul.bf16.gmra.mxu0 %v6151
    %v7109 = vpop.f32.mrf.mxu0
    %v7110 = vadd.f32 0.0, %v7109
    %v7111 = vpop.f32.mrf.mxu0
    %v7112 = vadd.f32 0.0, %v7111
    %7113 = vmatmul.bf16.gmra.mxu0 %v6156
    %v7114 = vpop.f32.mrf.mxu0
    %v7115 = vadd.f32 0.0, %v7114
    %v7116 = vpop.f32.mrf.mxu0
    %v7117 = vadd.f32 0.0, %v7116
    %7118 = vdwg.mxu0
    %7119 = vmatpush.bf16.msra.mxu0 %v6847
    %7120 = vmatpush.bf16.msra.mxu0 %v6844
    %7121 = vmatpush.bf16.msra.mxu0 %v6841
    %7122 = vmatpush.bf16.msra.mxu0 %v6838
    %7123 = vmatpush.bf16.msra.mxu0 %v6835
    %7124 = vmatpush.bf16.msra.mxu0 %v6832
    %7125 = vmatpush.bf16.msra.mxu0 %v6829
    %7126 = vmatpush.bf16.msra.mxu0 %v6826
    %7127 = vmatmul.bf16.gmra.mxu0 %v6142
    %v7128 = vpop.f32.mrf.mxu0
    %v7129 = vadd.f32 %v7100, %v7128
    %v7130 = vpop.f32.mrf.mxu0
    %v7131 = vadd.f32 %v7102, %v7130
    %7132 = vmatmul.bf16.gmra.mxu0 %v6147
    %v7133 = vpop.f32.mrf.mxu0
    %v7134 = vadd.f32 %v7105, %v7133
    %v7135 = vpop.f32.mrf.mxu0
    %v7136 = vadd.f32 %v7107, %v7135
    %7137 = vmatmul.bf16.gmra.mxu0 %v6152
    %v7138 = vpop.f32.mrf.mxu0
    %v7139 = vadd.f32 %v7110, %v7138
    %v7140 = vpop.f32.mrf.mxu0
    %v7141 = vadd.f32 %v7112, %v7140
    %7142 = vmatmul.bf16.gmra.mxu0 %v6157
    %v7143 = vpop.f32.mrf.mxu0
    %v7144 = vadd.f32 %v7115, %v7143
    %v7145 = vpop.f32.mrf.mxu0
    %v7146 = vadd.f32 %v7117, %v7145
    %7147 = vdwg.mxu0
    %7148 = vmatpush.bf16.msra.mxu0 %v6871
    %7149 = vmatpush.bf16.msra.mxu0 %v6868
    %7150 = vmatpush.bf16.msra.mxu0 %v6865
    %7151 = vmatpush.bf16.msra.mxu0 %v6862
    %7152 = vmatpush.bf16.msra.mxu0 %v6859
    %7153 = vmatpush.bf16.msra.mxu0 %v6856
    %7154 = vmatpush.bf16.msra.mxu0 %v6853
    %7155 = vmatpush.bf16.msra.mxu0 %v6850
    %7156 = vmatmul.bf16.gmra.mxu0 %v6143
    %v7157 = vpop.f32.mrf.mxu0
    %v7158 = vadd.f32 %v7129, %v7157
    %v7159 = vpop.f32.mrf.mxu0
    %v7160 = vadd.f32 %v7131, %v7159
    %7161 = vmatmul.bf16.gmra.mxu0 %v6148
    %v7162 = vpop.f32.mrf.mxu0
    %v7163 = vadd.f32 %v7134, %v7162
    %v7164 = vpop.f32.mrf.mxu0
    %v7165 = vadd.f32 %v7136, %v7164
    %7166 = vmatmul.bf16.gmra.mxu0 %v6153
    %v7167 = vpop.f32.mrf.mxu0
    %v7168 = vadd.f32 %v7139, %v7167
    %v7169 = vpop.f32.mrf.mxu0
    %v7170 = vadd.f32 %v7141, %v7169
    %7171 = vmatmul.bf16.gmra.mxu0 %v6158
    %v7172 = vpop.f32.mrf.mxu0
    %v7173 = vadd.f32 %v7144, %v7172
    %v7174 = vpop.f32.mrf.mxu0
    %v7175 = vadd.f32 %v7146, %v7174
    %7176 = vdwg.mxu0
    %7177 = vmatpush.bf16.msra.mxu0 %v6895
    %7178 = vmatpush.bf16.msra.mxu0 %v6892
    %7179 = vmatpush.bf16.msra.mxu0 %v6889
    %7180 = vmatpush.bf16.msra.mxu0 %v6886
    %7181 = vmatpush.bf16.msra.mxu0 %v6883
    %7182 = vmatpush.bf16.msra.mxu0 %v6880
    %7183 = vmatpush.bf16.msra.mxu0 %v6877
    %7184 = vmatpush.bf16.msra.mxu0 %v6874
    %7185 = vmatmul.bf16.gmra.mxu0 %v6144
    %v7186 = vpop.f32.mrf.mxu0
    %v7187 = vadd.f32 %v7158, %v7186
    %v7188 = vpop.f32.mrf.mxu0
    %v7189 = vadd.f32 %v7160, %v7188
    %7190 = vmatmul.bf16.gmra.mxu0 %v6149
    %v7191 = vpop.f32.mrf.mxu0
    %v7192 = vadd.f32 %v7163, %v7191
    %v7193 = vpop.f32.mrf.mxu0
    %v7194 = vadd.f32 %v7165, %v7193
    %7195 = vmatmul.bf16.gmra.mxu0 %v6154
    %v7196 = vpop.f32.mrf.mxu0
    %v7197 = vadd.f32 %v7168, %v7196
    %v7198 = vpop.f32.mrf.mxu0
    %v7199 = vadd.f32 %v7170, %v7198
    %7200 = vmatmul.bf16.gmra.mxu0 %v6159
    %v7201 = vpop.f32.mrf.mxu0
    %v7202 = vadd.f32 %v7173, %v7201
    %v7203 = vpop.f32.mrf.mxu0
    %v7204 = vadd.f32 %v7175, %v7203
    %7205 = vdwg.mxu0
    %7206 = vmatpush.bf16.msra.mxu0 %v6919
    %7207 = vmatpush.bf16.msra.mxu0 %v6916
    %7208 = vmatpush.bf16.msra.mxu0 %v6913
    %7209 = vmatpush.bf16.msra.mxu0 %v6910
    %7210 = vmatpush.bf16.msra.mxu0 %v6907
    %7211 = vmatpush.bf16.msra.mxu0 %v6904
    %7212 = vmatpush.bf16.msra.mxu0 %v6901
    %7213 = vmatpush.bf16.msra.mxu0 %v6898
    %7214 = vmatmul.bf16.gmra.mxu0 %v6145
    %v7215 = vpop.f32.mrf.mxu0
    %v7216 = vadd.f32 %v7187, %v7215
    %v7217 = vpop.f32.mrf.mxu0
    %v7218 = vadd.f32 %v7189, %v7217
    %7219 = vmatmul.bf16.gmra.mxu0 %v6150
    %v7220 = vpop.f32.mrf.mxu0
    %v7221 = vadd.f32 %v7192, %v7220
    %v7222 = vpop.f32.mrf.mxu0
    %v7223 = vadd.f32 %v7194, %v7222
    %7224 = vmatmul.bf16.gmra.mxu0 %v6155
    %v7225 = vpop.f32.mrf.mxu0
    %v7226 = vadd.f32 %v7197, %v7225
    %v7227 = vpop.f32.mrf.mxu0
    %v7228 = vadd.f32 %v7199, %v7227
    %7229 = vmatmul.bf16.gmra.mxu0 %v6160
    %v7230 = vpop.f32.mrf.mxu0
    %v7231 = vadd.f32 %v7202, %v7230
    %v7232 = vpop.f32.mrf.mxu0
    %v7233 = vadd.f32 %v7204, %v7232
    %7234 = vdwg.mxu0
    %7235 = vmatpush.bf16.msra.mxu0 %v6824
    %7236 = vmatpush.bf16.msra.mxu0 %v6821
    %7237 = vmatpush.bf16.msra.mxu0 %v6818
    %7238 = vmatpush.bf16.msra.mxu0 %v6815
    %7239 = vmatpush.bf16.msra.mxu0 %v6812
    %7240 = vmatpush.bf16.msra.mxu0 %v6809
    %7241 = vmatpush.bf16.msra.mxu0 %v6806
    %7242 = vmatpush.bf16.msra.mxu0 %v6803
    %7243 = vmatmul.bf16.gmra.mxu0 %v6141
    %v7244 = vpop.f32.mrf.mxu0
    %v7245 = vadd.f32 0.0, %v7244
    %v7246 = vpop.f32.mrf.mxu0
    %v7247 = vadd.f32 0.0, %v7246
    %7248 = vmatmul.bf16.gmra.mxu0 %v6146
    %v7249 = vpop.f32.mrf.mxu0
    %v7250 = vadd.f32 0.0, %v7249
    %v7251 = vpop.f32.mrf.mxu0
    %v7252 = vadd.f32 0.0, %v7251
    %7253 = vmatmul.bf16.gmra.mxu0 %v6151
    %v7254 = vpop.f32.mrf.mxu0
    %v7255 = vadd.f32 0.0, %v7254
    %v7256 = vpop.f32.mrf.mxu0
    %v7257 = vadd.f32 0.0, %v7256
    %7258 = vmatmul.bf16.gmra.mxu0 %v6156
    %v7259 = vpop.f32.mrf.mxu0
    %v7260 = vadd.f32 0.0, %v7259
    %v7261 = vpop.f32.mrf.mxu0
    %v7262 = vadd.f32 0.0, %v7261
    %7263 = vdwg.mxu0
    %7264 = vmatpush.bf16.msra.mxu0 %v6848
    %7265 = vmatpush.bf16.msra.mxu0 %v6845
    %7266 = vmatpush.bf16.msra.mxu0 %v6842
    %7267 = vmatpush.bf16.msra.mxu0 %v6839
    %7268 = vmatpush.bf16.msra.mxu0 %v6836
    %7269 = vmatpush.bf16.msra.mxu0 %v6833
    %7270 = vmatpush.bf16.msra.mxu0 %v6830
    %7271 = vmatpush.bf16.msra.mxu0 %v6827
    %7272 = vmatmul.bf16.gmra.mxu0 %v6142
    %v7273 = vpop.f32.mrf.mxu0
    %v7274 = vadd.f32 %v7245, %v7273
    %v7275 = vpop.f32.mrf.mxu0
    %v7276 = vadd.f32 %v7247, %v7275
    %7277 = vmatmul.bf16.gmra.mxu0 %v6147
    %v7278 = vpop.f32.mrf.mxu0
    %v7279 = vadd.f32 %v7250, %v7278
    %v7280 = vpop.f32.mrf.mxu0
    %v7281 = vadd.f32 %v7252, %v7280
    %7282 = vmatmul.bf16.gmra.mxu0 %v6152
    %v7283 = vpop.f32.mrf.mxu0
    %v7284 = vadd.f32 %v7255, %v7283
    %v7285 = vpop.f32.mrf.mxu0
    %v7286 = vadd.f32 %v7257, %v7285
    %7287 = vmatmul.bf16.gmra.mxu0 %v6157
    %v7288 = vpop.f32.mrf.mxu0
    %v7289 = vadd.f32 %v7260, %v7288
    %v7290 = vpop.f32.mrf.mxu0
    %v7291 = vadd.f32 %v7262, %v7290
    %7292 = vdwg.mxu0
    %7293 = vmatpush.bf16.msra.mxu0 %v6872
    %7294 = vmatpush.bf16.msra.mxu0 %v6869
    %7295 = vmatpush.bf16.msra.mxu0 %v6866
    %7296 = vmatpush.bf16.msra.mxu0 %v6863
    %7297 = vmatpush.bf16.msra.mxu0 %v6860
    %7298 = vmatpush.bf16.msra.mxu0 %v6857
    %7299 = vmatpush.bf16.msra.mxu0 %v6854
    %7300 = vmatpush.bf16.msra.mxu0 %v6851
    %7301 = vmatmul.bf16.gmra.mxu0 %v6143
    %v7302 = vpop.f32.mrf.mxu0
    %v7303 = vadd.f32 %v7274, %v7302
    %v7304 = vpop.f32.mrf.mxu0
    %v7305 = vadd.f32 %v7276, %v7304
    %7306 = vmatmul.bf16.gmra.mxu0 %v6148
    %v7307 = vpop.f32.mrf.mxu0
    %v7308 = vadd.f32 %v7279, %v7307
    %v7309 = vpop.f32.mrf.mxu0
    %v7310 = vadd.f32 %v7281, %v7309
    %7311 = vmatmul.bf16.gmra.mxu0 %v6153
    %v7312 = vpop.f32.mrf.mxu0
    %v7313 = vadd.f32 %v7284, %v7312
    %v7314 = vpop.f32.mrf.mxu0
    %v7315 = vadd.f32 %v7286, %v7314
    %7316 = vmatmul.bf16.gmra.mxu0 %v6158
    %v7317 = vpop.f32.mrf.mxu0
    %v7318 = vadd.f32 %v7289, %v7317
    %v7319 = vpop.f32.mrf.mxu0
    %v7320 = vadd.f32 %v7291, %v7319
    %7321 = vdwg.mxu0
    %7322 = vmatpush.bf16.msra.mxu0 %v6896
    %7323 = vmatpush.bf16.msra.mxu0 %v6893
    %7324 = vmatpush.bf16.msra.mxu0 %v6890
    %7325 = vmatpush.bf16.msra.mxu0 %v6887
    %7326 = vmatpush.bf16.msra.mxu0 %v6884
    %7327 = vmatpush.bf16.msra.mxu0 %v6881
    %7328 = vmatpush.bf16.msra.mxu0 %v6878
    %7329 = vmatpush.bf16.msra.mxu0 %v6875
    %7330 = vmatmul.bf16.gmra.mxu0 %v6144
    %v7331 = vpop.f32.mrf.mxu0
    %v7332 = vadd.f32 %v7303, %v7331
    %v7333 = vpop.f32.mrf.mxu0
    %v7334 = vadd.f32 %v7305, %v7333
    %7335 = vmatmul.bf16.gmra.mxu0 %v6149
    %v7336 = vpop.f32.mrf.mxu0
    %v7337 = vadd.f32 %v7308, %v7336
    %v7338 = vpop.f32.mrf.mxu0
    %v7339 = vadd.f32 %v7310, %v7338
    %7340 = vmatmul.bf16.gmra.mxu0 %v6154
    %v7341 = vpop.f32.mrf.mxu0
    %v7342 = vadd.f32 %v7313, %v7341
    %v7343 = vpop.f32.mrf.mxu0
    %v7344 = vadd.f32 %v7315, %v7343
    %7345 = vmatmul.bf16.gmra.mxu0 %v6159
    %v7346 = vpop.f32.mrf.mxu0
    %v7347 = vadd.f32 %v7318, %v7346
    %v7348 = vpop.f32.mrf.mxu0
    %v7349 = vadd.f32 %v7320, %v7348
    %7350 = vdwg.mxu0
    %7351 = vmatpush.bf16.msra.mxu0 %v6920
    %7352 = vmatpush.bf16.msra.mxu0 %v6917
    %7353 = vmatpush.bf16.msra.mxu0 %v6914
    %7354 = vmatpush.bf16.msra.mxu0 %v6911
    %7355 = vmatpush.bf16.msra.mxu0 %v6908
    %7356 = vmatpush.bf16.msra.mxu0 %v6905
    %7357 = vmatpush.bf16.msra.mxu0 %v6902
    %7358 = vmatpush.bf16.msra.mxu0 %v6899
    %7359 = vmatmul.bf16.gmra.mxu0 %v6145
    %v7360 = vpop.f32.mrf.mxu0
    %v7361 = vadd.f32 %v7332, %v7360
    %v7362 = vpop.f32.mrf.mxu0
    %v7363 = vadd.f32 %v7334, %v7362
    %7364 = vmatmul.bf16.gmra.mxu0 %v6150
    %v7365 = vpop.f32.mrf.mxu0
    %v7366 = vadd.f32 %v7337, %v7365
    %v7367 = vpop.f32.mrf.mxu0
    %v7368 = vadd.f32 %v7339, %v7367
    %7369 = vmatmul.bf16.gmra.mxu0 %v6155
    %v7370 = vpop.f32.mrf.mxu0
    %v7371 = vadd.f32 %v7342, %v7370
    %v7372 = vpop.f32.mrf.mxu0
    %v7373 = vadd.f32 %v7344, %v7372
    %7374 = vmatmul.bf16.gmra.mxu0 %v6160
    %v7375 = vpop.f32.mrf.mxu0
    %v7376 = vadd.f32 %v7347, %v7375
    %v7377 = vpop.f32.mrf.mxu0
    %v7378 = vadd.f32 %v7349, %v7377
    %7379 = vdwg.mxu0
    %v7540 = vunpack.c.l.b16 %v6161
    %v7541 = vunpack.c.h.b16 %v6161
    %v7542 = vunpack.c.l.b16 %v6162
    %v7543 = vunpack.c.l.b16 %v6163
    %v7544 = vunpack.c.h.b16 %v6163
    %v7545 = vunpack.c.l.b16 %v6164
    %v7546 = vunpack.c.l.b16 %v6165
    %v7547 = vunpack.c.h.b16 %v6165
    %v7548 = vunpack.c.l.b16 %v6166
    %v7549 = vunpack.c.l.b16 %v6167
    %v7550 = vunpack.c.h.b16 %v6167
    %v7551 = vunpack.c.l.b16 %v6168
    %v7552 = vunpack.c.l.b16 %v6169
    %v7553 = vunpack.c.h.b16 %v6169
    %v7554 = vunpack.c.l.b16 %v6170
    %v7555 = vunpack.c.l.b16 %v6171
    %v7556 = vunpack.c.h.b16 %v6171
    %v7557 = vunpack.c.l.b16 %v6172
    %v7558 = vunpack.c.l.b16 %v6173
    %v7559 = vunpack.c.h.b16 %v6173
    %v7560 = vunpack.c.l.b16 %v6174
    %v7561 = vunpack.c.l.b16 %v6175
    %v7562 = vunpack.c.h.b16 %v6175
    %v7563 = vunpack.c.l.b16 %v6176
    %v7564 = vunpack.c.l.b16 %v6177
    %v7565 = vunpack.c.h.b16 %v6177
    %v7566 = vunpack.c.l.b16 %v6178
    %v7567 = vunpack.c.l.b16 %v6179
    %v7568 = vunpack.c.h.b16 %v6179
    %v7569 = vunpack.c.l.b16 %v6180
    %v7570 = vunpack.c.l.b16 %v6181
    %v7571 = vunpack.c.h.b16 %v6181
    %v7572 = vunpack.c.l.b16 %v6182
    %v7573 = vunpack.c.l.b16 %v6183
    %v7574 = vunpack.c.h.b16 %v6183
    %v7575 = vunpack.c.l.b16 %v6184
    %v7576 = vunpack.c.l.b16 %v6185
    %v7577 = vunpack.c.h.b16 %v6185
    %v7578 = vunpack.c.l.b16 %v6186
    %v7579 = vunpack.c.l.b16 %v6187
    %v7580 = vunpack.c.h.b16 %v6187
    %v7581 = vunpack.c.l.b16 %v6188
    %v7582 = vunpack.c.l.b16 %v6189
    %v7583 = vunpack.c.h.b16 %v6189
    %v7584 = vunpack.c.l.b16 %v6190
    %v7585 = vunpack.c.l.b16 %v6191
    %v7586 = vunpack.c.h.b16 %v6191
    %v7587 = vunpack.c.l.b16 %v6192
    %v7588 = vunpack.c.l.b16 %v6193
    %v7589 = vunpack.c.h.b16 %v6193
    %v7590 = vunpack.c.l.b16 %v6194
    %v7591 = vunpack.c.l.b16 %v6195
    %v7592 = vunpack.c.h.b16 %v6195
    %v7593 = vunpack.c.l.b16 %v6196
    %v7594 = vunpack.c.l.b16 %v6197
    %v7595 = vunpack.c.h.b16 %v6197
    %v7596 = vunpack.c.l.b16 %v6198
    %v7597 = vunpack.c.l.b16 %v6199
    %v7598 = vunpack.c.h.b16 %v6199
    %v7599 = vunpack.c.l.b16 %v6200
    %v7600 = vunpack.c.l.b16 %v6201
    %v7601 = vunpack.c.h.b16 %v6201
    %v7602 = vunpack.c.l.b16 %v6202
    %v7603 = vunpack.c.l.b16 %v6203
    %v7604 = vunpack.c.h.b16 %v6203
    %v7605 = vunpack.c.l.b16 %v6204
    %v7606 = vunpack.c.l.b16 %v6205
    %v7607 = vunpack.c.h.b16 %v6205
    %v7608 = vunpack.c.l.b16 %v6206
    %v7609 = vunpack.c.l.b16 %v6207
    %v7610 = vunpack.c.h.b16 %v6207
    %v7611 = vunpack.c.l.b16 %v6208
    %v7612 = vunpack.c.l.b16 %v6209
    %v7613 = vunpack.c.h.b16 %v6209
    %v7614 = vunpack.c.l.b16 %v6210
    %v7615 = vunpack.c.l.b16 %v6211
    %v7616 = vunpack.c.h.b16 %v6211
    %v7617 = vunpack.c.l.b16 %v6212
    %v7618 = vunpack.c.l.b16 %v6213
    %v7619 = vunpack.c.h.b16 %v6213
    %v7620 = vunpack.c.l.b16 %v6214
    %v7621 = vunpack.c.l.b16 %v6215
    %v7622 = vunpack.c.h.b16 %v6215
    %v7623 = vunpack.c.l.b16 %v6216
    %v7624 = vunpack.c.l.b16 %v6217
    %v7625 = vunpack.c.h.b16 %v6217
    %v7626 = vunpack.c.l.b16 %v6218
    %v7627 = vunpack.c.l.b16 %v6219
    %v7628 = vunpack.c.h.b16 %v6219
    %v7629 = vunpack.c.l.b16 %v6220
    %v7630 = vunpack.c.l.b16 %v6221
    %v7631 = vunpack.c.h.b16 %v6221
    %v7632 = vunpack.c.l.b16 %v6222
    %v7633 = vunpack.c.l.b16 %v6223
    %v7634 = vunpack.c.h.b16 %v6223
    %v7635 = vunpack.c.l.b16 %v6224
    %v7636 = vunpack.c.l.b16 %v6225
    %v7637 = vunpack.c.h.b16 %v6225
    %v7638 = vunpack.c.l.b16 %v6226
    %v7639 = vunpack.c.l.b16 %v6227
    %v7640 = vunpack.c.h.b16 %v6227
    %v7641 = vunpack.c.l.b16 %v6228
    %v7642 = vunpack.c.l.b16 %v6229
    %v7643 = vunpack.c.h.b16 %v6229
    %v7644 = vunpack.c.l.b16 %v6230
    %v7645 = vunpack.c.l.b16 %v6231
    %v7646 = vunpack.c.h.b16 %v6231
    %v7647 = vunpack.c.l.b16 %v6232
    %v7648 = vunpack.c.l.b16 %v6233
    %v7649 = vunpack.c.h.b16 %v6233
    %v7650 = vunpack.c.l.b16 %v6234
    %v7651 = vunpack.c.l.b16 %v6235
    %v7652 = vunpack.c.h.b16 %v6235
    %v7653 = vunpack.c.l.b16 %v6236
    %v7654 = vunpack.c.l.b16 %v6237
    %v7655 = vunpack.c.h.b16 %v6237
    %v7656 = vunpack.c.l.b16 %v6238
    %v7657 = vunpack.c.l.b16 %v6239
    %v7658 = vunpack.c.h.b16 %v6239
    %v7659 = vunpack.c.l.b16 %v6240
    %v7660 = vunpack.c.l.b16 %v6241
    %v7661 = vunpack.c.h.b16 %v6241
    %v7662 = vunpack.c.l.b16 %v6242
    %v7663 = vunpack.c.l.b16 %v6243
    %v7664 = vunpack.c.h.b16 %v6243
    %v7665 = vunpack.c.l.b16 %v6244
    %v7666 = vunpack.c.l.b16 %v6245
    %v7667 = vunpack.c.h.b16 %v6245
    %v7668 = vunpack.c.l.b16 %v6246
    %v7669 = vunpack.c.l.b16 %v6247
    %v7670 = vunpack.c.h.b16 %v6247
    %v7671 = vunpack.c.l.b16 %v6248
    %v7672 = vunpack.c.l.b16 %v6249
    %v7673 = vunpack.c.h.b16 %v6249
    %v7674 = vunpack.c.l.b16 %v6250
    %v7675 = vunpack.c.l.b16 %v6251
    %v7676 = vunpack.c.h.b16 %v6251
    %v7677 = vunpack.c.l.b16 %v6252
    %v7678 = vunpack.c.l.b16 %v6253
    %v7679 = vunpack.c.h.b16 %v6253
    %v7680 = vunpack.c.l.b16 %v6254
    %v7681 = vunpack.c.l.b16 %v6255
    %v7682 = vunpack.c.h.b16 %v6255
    %v7683 = vunpack.c.l.b16 %v6256
    %v7684 = vunpack.c.l.b16 %v6257
    %v7685 = vunpack.c.h.b16 %v6257
    %v7686 = vunpack.c.l.b16 %v6258
    %v7687 = vunpack.c.l.b16 %v6259
    %v7688 = vunpack.c.h.b16 %v6259
    %v7689 = vunpack.c.l.b16 %v6260
    %v7690 = vunpack.c.l.b16 %v6261
    %v7691 = vunpack.c.h.b16 %v6261
    %v7692 = vunpack.c.l.b16 %v6262
    %v7693 = vunpack.c.l.b16 %v6263
    %v7694 = vunpack.c.h.b16 %v6263
    %v7695 = vunpack.c.l.b16 %v6264
    %v7696 = vunpack.c.l.b16 %v6265
    %v7697 = vunpack.c.h.b16 %v6265
    %v7698 = vunpack.c.l.b16 %v6266
    %v7699 = vunpack.c.l.b16 %v6267
    %v7700 = vunpack.c.h.b16 %v6267
    %v7701 = vunpack.c.l.b16 %v6268
    %v7702 = vunpack.c.l.b16 %v6269
    %v7703 = vunpack.c.h.b16 %v6269
    %v7704 = vunpack.c.l.b16 %v6270
    %v7705 = vunpack.c.l.b16 %v6271
    %v7706 = vunpack.c.h.b16 %v6271
    %v7707 = vunpack.c.l.b16 %v6272
    %v7708 = vunpack.c.l.b16 %v6273
    %v7709 = vunpack.c.h.b16 %v6273
    %v7710 = vunpack.c.l.b16 %v6274
    %v7711 = vunpack.c.l.b16 %v6275
    %v7712 = vunpack.c.h.b16 %v6275
    %v7713 = vunpack.c.l.b16 %v6276
    %v7714 = vunpack.c.l.b16 %v6277
    %v7715 = vunpack.c.h.b16 %v6277
    %v7716 = vunpack.c.l.b16 %v6278
    %v7717 = vunpack.c.l.b16 %v6279
    %v7718 = vunpack.c.h.b16 %v6279
    %v7719 = vunpack.c.l.b16 %v6280
    %v7720 = vunpack.c.l.b16 %v6281
    %v7721 = vunpack.c.h.b16 %v6281
    %v7722 = vunpack.c.l.b16 %v6282
    %v7723 = vunpack.c.l.b16 %v6283
    %v7724 = vunpack.c.h.b16 %v6283
    %v7725 = vunpack.c.l.b16 %v6284
    %v7726 = vunpack.c.l.b16 %v6285
    %v7727 = vunpack.c.h.b16 %v6285
    %v7728 = vunpack.c.l.b16 %v6286
    %v7729 = vunpack.c.l.b16 %v6287
    %v7730 = vunpack.c.h.b16 %v6287
    %v7731 = vunpack.c.l.b16 %v6288
    %v7732 = vunpack.c.l.b16 %v6289
    %v7733 = vunpack.c.h.b16 %v6289
    %v7734 = vunpack.c.l.b16 %v6290
    %v7735 = vunpack.c.l.b16 %v6291
    %v7736 = vunpack.c.h.b16 %v6291
    %v7737 = vunpack.c.l.b16 %v6292
    %v7738 = vunpack.c.l.b16 %v6293
    %v7739 = vunpack.c.h.b16 %v6293
    %v7740 = vunpack.c.l.b16 %v6294
    %v7741 = vunpack.c.l.b16 %v6295
    %v7742 = vunpack.c.h.b16 %v6295
    %v7743 = vunpack.c.l.b16 %v6296
    %v7744 = vunpack.c.l.b16 %v6297
    %v7745 = vunpack.c.h.b16 %v6297
    %v7746 = vunpack.c.l.b16 %v6298
    %v7747 = vunpack.c.l.b16 %v6299
    %v7748 = vunpack.c.h.b16 %v6299
    %v7749 = vunpack.c.l.b16 %v6300
    %v7750 = vunpack.c.l.b16 %v6301
    %v7751 = vunpack.c.h.b16 %v6301
    %v7752 = vunpack.c.l.b16 %v6302
    %v7753 = vunpack.c.l.b16 %v6303
    %v7754 = vunpack.c.h.b16 %v6303
    %v7755 = vunpack.c.l.b16 %v6304
    %v7756 = vunpack.c.l.b16 %v6305
    %v7757 = vunpack.c.h.b16 %v6305
    %v7758 = vunpack.c.l.b16 %v6306
    %v7759 = vunpack.c.l.b16 %v6307
    %v7760 = vunpack.c.h.b16 %v6307
    %v7761 = vunpack.c.l.b16 %v6308
    %v7762 = vunpack.c.l.b16 %v6309
    %v7763 = vunpack.c.h.b16 %v6309
    %v7764 = vunpack.c.l.b16 %v6310
    %v7765 = vunpack.c.l.b16 %v6311
    %v7766 = vunpack.c.h.b16 %v6311
    %v7767 = vunpack.c.l.b16 %v6312
    %v7768 = vunpack.c.l.b16 %v6313
    %v7769 = vunpack.c.h.b16 %v6313
    %v7770 = vunpack.c.l.b16 %v6314
    %v7771 = vunpack.c.l.b16 %v6315
    %v7772 = vunpack.c.h.b16 %v6315
    %v7773 = vunpack.c.l.b16 %v6316
    %v7774 = vunpack.c.l.b16 %v6317
    %v7775 = vunpack.c.h.b16 %v6317
    %v7776 = vunpack.c.l.b16 %v6318
    %v7777 = vunpack.c.l.b16 %v6319
    %v7778 = vunpack.c.h.b16 %v6319
    %v7779 = vunpack.c.l.b16 %v6320
    %v7780 = vpack.c.b16 %v7543, %v7540
    %v7781 = vpack.c.b16 %v7544, %v7541
    %v7782 = vpack.c.b16 %v7545, %v7542
    %v7783 = vpack.c.b16 %v7549, %v7546
    %v7784 = vpack.c.b16 %v7550, %v7547
    %v7785 = vpack.c.b16 %v7551, %v7548
    %v7786 = vpack.c.b16 %v7555, %v7552
    %v7787 = vpack.c.b16 %v7556, %v7553
    %v7788 = vpack.c.b16 %v7557, %v7554
    %v7789 = vpack.c.b16 %v7561, %v7558
    %v7790 = vpack.c.b16 %v7562, %v7559
    %v7791 = vpack.c.b16 %v7563, %v7560
    %v7792 = vpack.c.b16 %v7567, %v7564
    %v7793 = vpack.c.b16 %v7568, %v7565
    %v7794 = vpack.c.b16 %v7569, %v7566
    %v7795 = vpack.c.b16 %v7573, %v7570
    %v7796 = vpack.c.b16 %v7574, %v7571
    %v7797 = vpack.c.b16 %v7575, %v7572
    %v7798 = vpack.c.b16 %v7579, %v7576
    %v7799 = vpack.c.b16 %v7580, %v7577
    %v7800 = vpack.c.b16 %v7581, %v7578
    %v7801 = vpack.c.b16 %v7585, %v7582
    %v7802 = vpack.c.b16 %v7586, %v7583
    %v7803 = vpack.c.b16 %v7587, %v7584
    %v7804 = vpack.c.b16 %v7591, %v7588
    %v7805 = vpack.c.b16 %v7592, %v7589
    %v7806 = vpack.c.b16 %v7593, %v7590
    %v7807 = vpack.c.b16 %v7597, %v7594
    %v7808 = vpack.c.b16 %v7598, %v7595
    %v7809 = vpack.c.b16 %v7599, %v7596
    %v7810 = vpack.c.b16 %v7603, %v7600
    %v7811 = vpack.c.b16 %v7604, %v7601
    %v7812 = vpack.c.b16 %v7605, %v7602
    %v7813 = vpack.c.b16 %v7609, %v7606
    %v7814 = vpack.c.b16 %v7610, %v7607
    %v7815 = vpack.c.b16 %v7611, %v7608
    %v7816 = vpack.c.b16 %v7615, %v7612
    %v7817 = vpack.c.b16 %v7616, %v7613
    %v7818 = vpack.c.b16 %v7617, %v7614
    %v7819 = vpack.c.b16 %v7621, %v7618
    %v7820 = vpack.c.b16 %v7622, %v7619
    %v7821 = vpack.c.b16 %v7623, %v7620
    %v7822 = vpack.c.b16 %v7627, %v7624
    %v7823 = vpack.c.b16 %v7628, %v7625
    %v7824 = vpack.c.b16 %v7629, %v7626
    %v7825 = vpack.c.b16 %v7633, %v7630
    %v7826 = vpack.c.b16 %v7634, %v7631
    %v7827 = vpack.c.b16 %v7635, %v7632
    %v7828 = vpack.c.b16 %v7639, %v7636
    %v7829 = vpack.c.b16 %v7640, %v7637
    %v7830 = vpack.c.b16 %v7641, %v7638
    %v7831 = vpack.c.b16 %v7645, %v7642
    %v7832 = vpack.c.b16 %v7646, %v7643
    %v7833 = vpack.c.b16 %v7647, %v7644
    %v7834 = vpack.c.b16 %v7651, %v7648
    %v7835 = vpack.c.b16 %v7652, %v7649
    %v7836 = vpack.c.b16 %v7653, %v7650
    %v7837 = vpack.c.b16 %v7657, %v7654
    %v7838 = vpack.c.b16 %v7658, %v7655
    %v7839 = vpack.c.b16 %v7659, %v7656
    %v7840 = vpack.c.b16 %v7663, %v7660
    %v7841 = vpack.c.b16 %v7664, %v7661
    %v7842 = vpack.c.b16 %v7665, %v7662
    %v7843 = vpack.c.b16 %v7669, %v7666
    %v7844 = vpack.c.b16 %v7670, %v7667
    %v7845 = vpack.c.b16 %v7671, %v7668
    %v7846 = vpack.c.b16 %v7675, %v7672
    %v7847 = vpack.c.b16 %v7676, %v7673
    %v7848 = vpack.c.b16 %v7677, %v7674
    %v7849 = vpack.c.b16 %v7681, %v7678
    %v7850 = vpack.c.b16 %v7682, %v7679
    %v7851 = vpack.c.b16 %v7683, %v7680
    %v7852 = vpack.c.b16 %v7687, %v7684
    %v7853 = vpack.c.b16 %v7688, %v7685
    %v7854 = vpack.c.b16 %v7689, %v7686
    %v7855 = vpack.c.b16 %v7693, %v7690
    %v7856 = vpack.c.b16 %v7694, %v7691
    %v7857 = vpack.c.b16 %v7695, %v7692
    %v7858 = vpack.c.b16 %v7699, %v7696
    %v7859 = vpack.c.b16 %v7700, %v7697
    %v7860 = vpack.c.b16 %v7701, %v7698
    %v7861 = vpack.c.b16 %v7705, %v7702
    %v7862 = vpack.c.b16 %v7706, %v7703
    %v7863 = vpack.c.b16 %v7707, %v7704
    %v7864 = vpack.c.b16 %v7711, %v7708
    %v7865 = vpack.c.b16 %v7712, %v7709
    %v7866 = vpack.c.b16 %v7713, %v7710
    %v7867 = vpack.c.b16 %v7717, %v7714
    %v7868 = vpack.c.b16 %v7718, %v7715
    %v7869 = vpack.c.b16 %v7719, %v7716
    %v7870 = vpack.c.b16 %v7723, %v7720
    %v7871 = vpack.c.b16 %v7724, %v7721
    %v7872 = vpack.c.b16 %v7725, %v7722
    %v7873 = vpack.c.b16 %v7729, %v7726
    %v7874 = vpack.c.b16 %v7730, %v7727
    %v7875 = vpack.c.b16 %v7731, %v7728
    %v7876 = vpack.c.b16 %v7735, %v7732
    %v7877 = vpack.c.b16 %v7736, %v7733
    %v7878 = vpack.c.b16 %v7737, %v7734
    %v7879 = vpack.c.b16 %v7741, %v7738
    %v7880 = vpack.c.b16 %v7742, %v7739
    %v7881 = vpack.c.b16 %v7743, %v7740
    %v7882 = vpack.c.b16 %v7747, %v7744
    %v7883 = vpack.c.b16 %v7748, %v7745
    %v7884 = vpack.c.b16 %v7749, %v7746
    %v7885 = vpack.c.b16 %v7753, %v7750
    %v7886 = vpack.c.b16 %v7754, %v7751
    %v7887 = vpack.c.b16 %v7755, %v7752
    %v7888 = vpack.c.b16 %v7759, %v7756
    %v7889 = vpack.c.b16 %v7760, %v7757
    %v7890 = vpack.c.b16 %v7761, %v7758
    %v7891 = vpack.c.b16 %v7765, %v7762
    %v7892 = vpack.c.b16 %v7766, %v7763
    %v7893 = vpack.c.b16 %v7767, %v7764
    %v7894 = vpack.c.b16 %v7771, %v7768
    %v7895 = vpack.c.b16 %v7772, %v7769
    %v7896 = vpack.c.b16 %v7773, %v7770
    %v7897 = vpack.c.b16 %v7777, %v7774
    %v7898 = vpack.c.b16 %v7778, %v7775
    %v7899 = vpack.c.b16 %v7779, %v7776
    %8020 = vmatpush.bf16.msra.mxu0 %v7801
    %8021 = vmatpush.bf16.msra.mxu0 %v7798
    %8022 = vmatpush.bf16.msra.mxu0 %v7795
    %8023 = vmatpush.bf16.msra.mxu0 %v7792
    %8024 = vmatpush.bf16.msra.mxu0 %v7789
    %8025 = vmatpush.bf16.msra.mxu0 %v7786
    %8026 = vmatpush.bf16.msra.mxu0 %v7783
    %8027 = vmatpush.bf16.msra.mxu0 %v7780
    %8028 = vmatmul.bf16.gmra.mxu0 %v6141
    %v8029 = vpop.f32.mrf.mxu0
    %v8030 = vadd.f32 %v7071, %v8029
    %v8031 = vpop.f32.mrf.mxu0
    %v8032 = vadd.f32 %v7073, %v8031
    %8033 = vmatmul.bf16.gmra.mxu0 %v6146
    %v8034 = vpop.f32.mrf.mxu0
    %v8035 = vadd.f32 %v7076, %v8034
    %v8036 = vpop.f32.mrf.mxu0
    %v8037 = vadd.f32 %v7078, %v8036
    %8038 = vmatmul.bf16.gmra.mxu0 %v6151
    %v8039 = vpop.f32.mrf.mxu0
    %v8040 = vadd.f32 %v7081, %v8039
    %v8041 = vpop.f32.mrf.mxu0
    %v8042 = vadd.f32 %v7083, %v8041
    %8043 = vmatmul.bf16.gmra.mxu0 %v6156
    %v8044 = vpop.f32.mrf.mxu0
    %v8045 = vadd.f32 %v7086, %v8044
    %v8046 = vpop.f32.mrf.mxu0
    %v8047 = vadd.f32 %v7088, %v8046
    %8048 = vdwg.mxu0
    %8049 = vmatpush.bf16.msra.mxu0 %v7825
    %8050 = vmatpush.bf16.msra.mxu0 %v7822
    %8051 = vmatpush.bf16.msra.mxu0 %v7819
    %8052 = vmatpush.bf16.msra.mxu0 %v7816
    %8053 = vmatpush.bf16.msra.mxu0 %v7813
    %8054 = vmatpush.bf16.msra.mxu0 %v7810
    %8055 = vmatpush.bf16.msra.mxu0 %v7807
    %8056 = vmatpush.bf16.msra.mxu0 %v7804
    %8057 = vmatmul.bf16.gmra.mxu0 %v6142
    %v8058 = vpop.f32.mrf.mxu0
    %v8059 = vadd.f32 %v8030, %v8058
    %v8060 = vpop.f32.mrf.mxu0
    %v8061 = vadd.f32 %v8032, %v8060
    %8062 = vmatmul.bf16.gmra.mxu0 %v6147
    %v8063 = vpop.f32.mrf.mxu0
    %v8064 = vadd.f32 %v8035, %v8063
    %v8065 = vpop.f32.mrf.mxu0
    %v8066 = vadd.f32 %v8037, %v8065
    %8067 = vmatmul.bf16.gmra.mxu0 %v6152
    %v8068 = vpop.f32.mrf.mxu0
    %v8069 = vadd.f32 %v8040, %v8068
    %v8070 = vpop.f32.mrf.mxu0
    %v8071 = vadd.f32 %v8042, %v8070
    %8072 = vmatmul.bf16.gmra.mxu0 %v6157
    %v8073 = vpop.f32.mrf.mxu0
    %v8074 = vadd.f32 %v8045, %v8073
    %v8075 = vpop.f32.mrf.mxu0
    %v8076 = vadd.f32 %v8047, %v8075
    %8077 = vdwg.mxu0
    %8078 = vmatpush.bf16.msra.mxu0 %v7849
    %8079 = vmatpush.bf16.msra.mxu0 %v7846
    %8080 = vmatpush.bf16.msra.mxu0 %v7843
    %8081 = vmatpush.bf16.msra.mxu0 %v7840
    %8082 = vmatpush.bf16.msra.mxu0 %v7837
    %8083 = vmatpush.bf16.msra.mxu0 %v7834
    %8084 = vmatpush.bf16.msra.mxu0 %v7831
    %8085 = vmatpush.bf16.msra.mxu0 %v7828
    %8086 = vmatmul.bf16.gmra.mxu0 %v6143
    %v8087 = vpop.f32.mrf.mxu0
    %v8088 = vadd.f32 %v8059, %v8087
    %v8089 = vpop.f32.mrf.mxu0
    %v8090 = vadd.f32 %v8061, %v8089
    %8091 = vmatmul.bf16.gmra.mxu0 %v6148
    %v8092 = vpop.f32.mrf.mxu0
    %v8093 = vadd.f32 %v8064, %v8092
    %v8094 = vpop.f32.mrf.mxu0
    %v8095 = vadd.f32 %v8066, %v8094
    %8096 = vmatmul.bf16.gmra.mxu0 %v6153
    %v8097 = vpop.f32.mrf.mxu0
    %v8098 = vadd.f32 %v8069, %v8097
    %v8099 = vpop.f32.mrf.mxu0
    %v8100 = vadd.f32 %v8071, %v8099
    %8101 = vmatmul.bf16.gmra.mxu0 %v6158
    %v8102 = vpop.f32.mrf.mxu0
    %v8103 = vadd.f32 %v8074, %v8102
    %v8104 = vpop.f32.mrf.mxu0
    %v8105 = vadd.f32 %v8076, %v8104
    %8106 = vdwg.mxu0
    %8107 = vmatpush.bf16.msra.mxu0 %v7873
    %8108 = vmatpush.bf16.msra.mxu0 %v7870
    %8109 = vmatpush.bf16.msra.mxu0 %v7867
    %8110 = vmatpush.bf16.msra.mxu0 %v7864
    %8111 = vmatpush.bf16.msra.mxu0 %v7861
    %8112 = vmatpush.bf16.msra.mxu0 %v7858
    %8113 = vmatpush.bf16.msra.mxu0 %v7855
    %8114 = vmatpush.bf16.msra.mxu0 %v7852
    %8115 = vmatmul.bf16.gmra.mxu0 %v6144
    %v8116 = vpop.f32.mrf.mxu0
    %v8117 = vadd.f32 %v8088, %v8116
    %v8118 = vpop.f32.mrf.mxu0
    %v8119 = vadd.f32 %v8090, %v8118
    %8120 = vmatmul.bf16.gmra.mxu0 %v6149
    %v8121 = vpop.f32.mrf.mxu0
    %v8122 = vadd.f32 %v8093, %v8121
    %v8123 = vpop.f32.mrf.mxu0
    %v8124 = vadd.f32 %v8095, %v8123
    %8125 = vmatmul.bf16.gmra.mxu0 %v6154
    %v8126 = vpop.f32.mrf.mxu0
    %v8127 = vadd.f32 %v8098, %v8126
    %v8128 = vpop.f32.mrf.mxu0
    %v8129 = vadd.f32 %v8100, %v8128
    %8130 = vmatmul.bf16.gmra.mxu0 %v6159
    %v8131 = vpop.f32.mrf.mxu0
    %v8132 = vadd.f32 %v8103, %v8131
    %v8133 = vpop.f32.mrf.mxu0
    %v8134 = vadd.f32 %v8105, %v8133
    %8135 = vdwg.mxu0
    %8136 = vmatpush.bf16.msra.mxu0 %v7897
    %8137 = vmatpush.bf16.msra.mxu0 %v7894
    %8138 = vmatpush.bf16.msra.mxu0 %v7891
    %8139 = vmatpush.bf16.msra.mxu0 %v7888
    %8140 = vmatpush.bf16.msra.mxu0 %v7885
    %8141 = vmatpush.bf16.msra.mxu0 %v7882
    %8142 = vmatpush.bf16.msra.mxu0 %v7879
    %8143 = vmatpush.bf16.msra.mxu0 %v7876
    %8144 = vmatmul.bf16.gmra.mxu0 %v6145
    %v8145 = vpop.f32.mrf.mxu0
    %v8146 = vadd.f32 %v8117, %v8145
    %v8147 = vpop.f32.mrf.mxu0
    %v8148 = vadd.f32 %v8119, %v8147
    %8149 = vmatmul.bf16.gmra.mxu0 %v6150
    %v8150 = vpop.f32.mrf.mxu0
    %v8151 = vadd.f32 %v8122, %v8150
    %v8152 = vpop.f32.mrf.mxu0
    %v8153 = vadd.f32 %v8124, %v8152
    %8154 = vmatmul.bf16.gmra.mxu0 %v6155
    %v8155 = vpop.f32.mrf.mxu0
    %v8156 = vadd.f32 %v8127, %v8155
    %v8157 = vpop.f32.mrf.mxu0
    %v8158 = vadd.f32 %v8129, %v8157
    %8159 = vmatmul.bf16.gmra.mxu0 %v6160
    %v8160 = vpop.f32.mrf.mxu0
    %v8161 = vadd.f32 %v8132, %v8160
    %v8162 = vpop.f32.mrf.mxu0
    %v8163 = vadd.f32 %v8134, %v8162
    %8164 = vdwg.mxu0
    %8165 = vmatpush.bf16.msra.mxu0 %v7802
    %8166 = vmatpush.bf16.msra.mxu0 %v7799
    %8167 = vmatpush.bf16.msra.mxu0 %v7796
    %8168 = vmatpush.bf16.msra.mxu0 %v7793
    %8169 = vmatpush.bf16.msra.mxu0 %v7790
    %8170 = vmatpush.bf16.msra.mxu0 %v7787
    %8171 = vmatpush.bf16.msra.mxu0 %v7784
    %8172 = vmatpush.bf16.msra.mxu0 %v7781
    %8173 = vmatmul.bf16.gmra.mxu0 %v6141
    %v8174 = vpop.f32.mrf.mxu0
    %v8175 = vadd.f32 %v7216, %v8174
    %v8176 = vpop.f32.mrf.mxu0
    %v8177 = vadd.f32 %v7218, %v8176
    %8178 = vmatmul.bf16.gmra.mxu0 %v6146
    %v8179 = vpop.f32.mrf.mxu0
    %v8180 = vadd.f32 %v7221, %v8179
    %v8181 = vpop.f32.mrf.mxu0
    %v8182 = vadd.f32 %v7223, %v8181
    %8183 = vmatmul.bf16.gmra.mxu0 %v6151
    %v8184 = vpop.f32.mrf.mxu0
    %v8185 = vadd.f32 %v7226, %v8184
    %v8186 = vpop.f32.mrf.mxu0
    %v8187 = vadd.f32 %v7228, %v8186
    %8188 = vmatmul.bf16.gmra.mxu0 %v6156
    %v8189 = vpop.f32.mrf.mxu0
    %v8190 = vadd.f32 %v7231, %v8189
    %v8191 = vpop.f32.mrf.mxu0
    %v8192 = vadd.f32 %v7233, %v8191
    %8193 = vdwg.mxu0
    %8194 = vmatpush.bf16.msra.mxu0 %v7826
    %8195 = vmatpush.bf16.msra.mxu0 %v7823
    %8196 = vmatpush.bf16.msra.mxu0 %v7820
    %8197 = vmatpush.bf16.msra.mxu0 %v7817
    %8198 = vmatpush.bf16.msra.mxu0 %v7814
    %8199 = vmatpush.bf16.msra.mxu0 %v7811
    %8200 = vmatpush.bf16.msra.mxu0 %v7808
    %8201 = vmatpush.bf16.msra.mxu0 %v7805
    %8202 = vmatmul.bf16.gmra.mxu0 %v6142
    %v8203 = vpop.f32.mrf.mxu0
    %v8204 = vadd.f32 %v8175, %v8203
    %v8205 = vpop.f32.mrf.mxu0
    %v8206 = vadd.f32 %v8177, %v8205
    %8207 = vmatmul.bf16.gmra.mxu0 %v6147
    %v8208 = vpop.f32.mrf.mxu0
    %v8209 = vadd.f32 %v8180, %v8208
    %v8210 = vpop.f32.mrf.mxu0
    %v8211 = vadd.f32 %v8182, %v8210
    %8212 = vmatmul.bf16.gmra.mxu0 %v6152
    %v8213 = vpop.f32.mrf.mxu0
    %v8214 = vadd.f32 %v8185, %v8213
    %v8215 = vpop.f32.mrf.mxu0
    %v8216 = vadd.f32 %v8187, %v8215
    %8217 = vmatmul.bf16.gmra.mxu0 %v6157
    %v8218 = vpop.f32.mrf.mxu0
    %v8219 = vadd.f32 %v8190, %v8218
    %v8220 = vpop.f32.mrf.mxu0
    %v8221 = vadd.f32 %v8192, %v8220
    %8222 = vdwg.mxu0
    %8223 = vmatpush.bf16.msra.mxu0 %v7850
    %8224 = vmatpush.bf16.msra.mxu0 %v7847
    %8225 = vmatpush.bf16.msra.mxu0 %v7844
    %8226 = vmatpush.bf16.msra.mxu0 %v7841
    %8227 = vmatpush.bf16.msra.mxu0 %v7838
    %8228 = vmatpush.bf16.msra.mxu0 %v7835
    %8229 = vmatpush.bf16.msra.mxu0 %v7832
    %8230 = vmatpush.bf16.msra.mxu0 %v7829
    %8231 = vmatmul.bf16.gmra.mxu0 %v6143
    %v8232 = vpop.f32.mrf.mxu0
    %v8233 = vadd.f32 %v8204, %v8232
    %v8234 = vpop.f32.mrf.mxu0
    %v8235 = vadd.f32 %v8206, %v8234
    %8236 = vmatmul.bf16.gmra.mxu0 %v6148
    %v8237 = vpop.f32.mrf.mxu0
    %v8238 = vadd.f32 %v8209, %v8237
    %v8239 = vpop.f32.mrf.mxu0
    %v8240 = vadd.f32 %v8211, %v8239
    %8241 = vmatmul.bf16.gmra.mxu0 %v6153
    %v8242 = vpop.f32.mrf.mxu0
    %v8243 = vadd.f32 %v8214, %v8242
    %v8244 = vpop.f32.mrf.mxu0
    %v8245 = vadd.f32 %v8216, %v8244
    %8246 = vmatmul.bf16.gmra.mxu0 %v6158
    %v8247 = vpop.f32.mrf.mxu0
    %v8248 = vadd.f32 %v8219, %v8247
    %v8249 = vpop.f32.mrf.mxu0
    %v8250 = vadd.f32 %v8221, %v8249
    %8251 = vdwg.mxu0
    %8252 = vmatpush.bf16.msra.mxu0 %v7874
    %8253 = vmatpush.bf16.msra.mxu0 %v7871
    %8254 = vmatpush.bf16.msra.mxu0 %v7868
    %8255 = vmatpush.bf16.msra.mxu0 %v7865
    %8256 = vmatpush.bf16.msra.mxu0 %v7862
    %8257 = vmatpush.bf16.msra.mxu0 %v7859
    %8258 = vmatpush.bf16.msra.mxu0 %v7856
    %8259 = vmatpush.bf16.msra.mxu0 %v7853
    %8260 = vmatmul.bf16.gmra.mxu0 %v6144
    %v8261 = vpop.f32.mrf.mxu0
    %v8262 = vadd.f32 %v8233, %v8261
    %v8263 = vpop.f32.mrf.mxu0
    %v8264 = vadd.f32 %v8235, %v8263
    %8265 = vmatmul.bf16.gmra.mxu0 %v6149
    %v8266 = vpop.f32.mrf.mxu0
    %v8267 = vadd.f32 %v8238, %v8266
    %v8268 = vpop.f32.mrf.mxu0
    %v8269 = vadd.f32 %v8240, %v8268
    %8270 = vmatmul.bf16.gmra.mxu0 %v6154
    %v8271 = vpop.f32.mrf.mxu0
    %v8272 = vadd.f32 %v8243, %v8271
    %v8273 = vpop.f32.mrf.mxu0
    %v8274 = vadd.f32 %v8245, %v8273
    %8275 = vmatmul.bf16.gmra.mxu0 %v6159
    %v8276 = vpop.f32.mrf.mxu0
    %v8277 = vadd.f32 %v8248, %v8276
    %v8278 = vpop.f32.mrf.mxu0
    %v8279 = vadd.f32 %v8250, %v8278
    %8280 = vdwg.mxu0
    %8281 = vmatpush.bf16.msra.mxu0 %v7898
    %8282 = vmatpush.bf16.msra.mxu0 %v7895
    %8283 = vmatpush.bf16.msra.mxu0 %v7892
    %8284 = vmatpush.bf16.msra.mxu0 %v7889
    %8285 = vmatpush.bf16.msra.mxu0 %v7886
    %8286 = vmatpush.bf16.msra.mxu0 %v7883
    %8287 = vmatpush.bf16.msra.mxu0 %v7880
    %8288 = vmatpush.bf16.msra.mxu0 %v7877
    %8289 = vmatmul.bf16.gmra.mxu0 %v6145
    %v8290 = vpop.f32.mrf.mxu0
    %v8291 = vadd.f32 %v8262, %v8290
    %v8292 = vpop.f32.mrf.mxu0
    %v8293 = vadd.f32 %v8264, %v8292
    %8294 = vmatmul.bf16.gmra.mxu0 %v6150
    %v8295 = vpop.f32.mrf.mxu0
    %v8296 = vadd.f32 %v8267, %v8295
    %v8297 = vpop.f32.mrf.mxu0
    %v8298 = vadd.f32 %v8269, %v8297
    %8299 = vmatmul.bf16.gmra.mxu0 %v6155
    %v8300 = vpop.f32.mrf.mxu0
    %v8301 = vadd.f32 %v8272, %v8300
    %v8302 = vpop.f32.mrf.mxu0
    %v8303 = vadd.f32 %v8274, %v8302
    %8304 = vmatmul.bf16.gmra.mxu0 %v6160
    %v8305 = vpop.f32.mrf.mxu0
    %v8306 = vadd.f32 %v8277, %v8305
    %v8307 = vpop.f32.mrf.mxu0
    %v8308 = vadd.f32 %v8279, %v8307
    %8309 = vdwg.mxu0
    %8310 = vmatpush.bf16.msra.mxu0 %v7803
    %8311 = vmatpush.bf16.msra.mxu0 %v7800
    %8312 = vmatpush.bf16.msra.mxu0 %v7797
    %8313 = vmatpush.bf16.msra.mxu0 %v7794
    %8314 = vmatpush.bf16.msra.mxu0 %v7791
    %8315 = vmatpush.bf16.msra.mxu0 %v7788
    %8316 = vmatpush.bf16.msra.mxu0 %v7785
    %8317 = vmatpush.bf16.msra.mxu0 %v7782
    %8318 = vmatmul.bf16.gmra.mxu0 %v6141
    %v8319 = vpop.f32.mrf.mxu0
    %v8320 = vadd.f32 %v7361, %v8319
    %v8321 = vpop.f32.mrf.mxu0
    %v8322 = vadd.f32 %v7363, %v8321
    %8323 = vmatmul.bf16.gmra.mxu0 %v6146
    %v8324 = vpop.f32.mrf.mxu0
    %v8325 = vadd.f32 %v7366, %v8324
    %v8326 = vpop.f32.mrf.mxu0
    %v8327 = vadd.f32 %v7368, %v8326
    %8328 = vmatmul.bf16.gmra.mxu0 %v6151
    %v8329 = vpop.f32.mrf.mxu0
    %v8330 = vadd.f32 %v7371, %v8329
    %v8331 = vpop.f32.mrf.mxu0
    %v8332 = vadd.f32 %v7373, %v8331
    %8333 = vmatmul.bf16.gmra.mxu0 %v6156
    %v8334 = vpop.f32.mrf.mxu0
    %v8335 = vadd.f32 %v7376, %v8334
    %v8336 = vpop.f32.mrf.mxu0
    %v8337 = vadd.f32 %v7378, %v8336
    %8338 = vdwg.mxu0
    %8339 = vmatpush.bf16.msra.mxu0 %v7827
    %8340 = vmatpush.bf16.msra.mxu0 %v7824
    %8341 = vmatpush.bf16.msra.mxu0 %v7821
    %8342 = vmatpush.bf16.msra.mxu0 %v7818
    %8343 = vmatpush.bf16.msra.mxu0 %v7815
    %8344 = vmatpush.bf16.msra.mxu0 %v7812
    %8345 = vmatpush.bf16.msra.mxu0 %v7809
    %8346 = vmatpush.bf16.msra.mxu0 %v7806
    %8347 = vmatmul.bf16.gmra.mxu0 %v6142
    %v8348 = vpop.f32.mrf.mxu0
    %v8349 = vadd.f32 %v8320, %v8348
    %v8350 = vpop.f32.mrf.mxu0
    %v8351 = vadd.f32 %v8322, %v8350
    %8352 = vmatmul.bf16.gmra.mxu0 %v6147
    %v8353 = vpop.f32.mrf.mxu0
    %v8354 = vadd.f32 %v8325, %v8353
    %v8355 = vpop.f32.mrf.mxu0
    %v8356 = vadd.f32 %v8327, %v8355
    %8357 = vmatmul.bf16.gmra.mxu0 %v6152
    %v8358 = vpop.f32.mrf.mxu0
    %v8359 = vadd.f32 %v8330, %v8358
    %v8360 = vpop.f32.mrf.mxu0
    %v8361 = vadd.f32 %v8332, %v8360
    %8362 = vmatmul.bf16.gmra.mxu0 %v6157
    %v8363 = vpop.f32.mrf.mxu0
    %v8364 = vadd.f32 %v8335, %v8363
    %v8365 = vpop.f32.mrf.mxu0
    %v8366 = vadd.f32 %v8337, %v8365
    %8367 = vdwg.mxu0
    %8368 = vmatpush.bf16.msra.mxu0 %v7851
    %8369 = vmatpush.bf16.msra.mxu0 %v7848
    %8370 = vmatpush.bf16.msra.mxu0 %v7845
    %8371 = vmatpush.bf16.msra.mxu0 %v7842
    %8372 = vmatpush.bf16.msra.mxu0 %v7839
    %8373 = vmatpush.bf16.msra.mxu0 %v7836
    %8374 = vmatpush.bf16.msra.mxu0 %v7833
    %8375 = vmatpush.bf16.msra.mxu0 %v7830
    %8376 = vmatmul.bf16.gmra.mxu0 %v6143
    %v8377 = vpop.f32.mrf.mxu0
    %v8378 = vadd.f32 %v8349, %v8377
    %v8379 = vpop.f32.mrf.mxu0
    %v8380 = vadd.f32 %v8351, %v8379
    %8381 = vmatmul.bf16.gmra.mxu0 %v6148
    %v8382 = vpop.f32.mrf.mxu0
    %v8383 = vadd.f32 %v8354, %v8382
    %v8384 = vpop.f32.mrf.mxu0
    %v8385 = vadd.f32 %v8356, %v8384
    %8386 = vmatmul.bf16.gmra.mxu0 %v6153
    %v8387 = vpop.f32.mrf.mxu0
    %v8388 = vadd.f32 %v8359, %v8387
    %v8389 = vpop.f32.mrf.mxu0
    %v8390 = vadd.f32 %v8361, %v8389
    %8391 = vmatmul.bf16.gmra.mxu0 %v6158
    %v8392 = vpop.f32.mrf.mxu0
    %v8393 = vadd.f32 %v8364, %v8392
    %v8394 = vpop.f32.mrf.mxu0
    %v8395 = vadd.f32 %v8366, %v8394
    %8396 = vdwg.mxu0
    %8397 = vmatpush.bf16.msra.mxu0 %v7875
    %8398 = vmatpush.bf16.msra.mxu0 %v7872
    %8399 = vmatpush.bf16.msra.mxu0 %v7869
    %8400 = vmatpush.bf16.msra.mxu0 %v7866
    %8401 = vmatpush.bf16.msra.mxu0 %v7863
    %8402 = vmatpush.bf16.msra.mxu0 %v7860
    %8403 = vmatpush.bf16.msra.mxu0 %v7857
    %8404 = vmatpush.bf16.msra.mxu0 %v7854
    %8405 = vmatmul.bf16.gmra.mxu0 %v6144
    %v8406 = vpop.f32.mrf.mxu0
    %v8407 = vadd.f32 %v8378, %v8406
    %v8408 = vpop.f32.mrf.mxu0
    %v8409 = vadd.f32 %v8380, %v8408
    %8410 = vmatmul.bf16.gmra.mxu0 %v6149
    %v8411 = vpop.f32.mrf.mxu0
    %v8412 = vadd.f32 %v8383, %v8411
    %v8413 = vpop.f32.mrf.mxu0
    %v8414 = vadd.f32 %v8385, %v8413
    %8415 = vmatmul.bf16.gmra.mxu0 %v6154
    %v8416 = vpop.f32.mrf.mxu0
    %v8417 = vadd.f32 %v8388, %v8416
    %v8418 = vpop.f32.mrf.mxu0
    %v8419 = vadd.f32 %v8390, %v8418
    %8420 = vmatmul.bf16.gmra.mxu0 %v6159
    %v8421 = vpop.f32.mrf.mxu0
    %v8422 = vadd.f32 %v8393, %v8421
    %v8423 = vpop.f32.mrf.mxu0
    %v8424 = vadd.f32 %v8395, %v8423
    %8425 = vdwg.mxu0
    %8426 = vmatpush.bf16.msra.mxu0 %v7899
    %8427 = vmatpush.bf16.msra.mxu0 %v7896
    %8428 = vmatpush.bf16.msra.mxu0 %v7893
    %8429 = vmatpush.bf16.msra.mxu0 %v7890
    %8430 = vmatpush.bf16.msra.mxu0 %v7887
    %8431 = vmatpush.bf16.msra.mxu0 %v7884
    %8432 = vmatpush.bf16.msra.mxu0 %v7881
    %8433 = vmatpush.bf16.msra.mxu0 %v7878
    %8434 = vmatmul.bf16.gmra.mxu0 %v6145
    %v8435 = vpop.f32.mrf.mxu0
    %v8436 = vadd.f32 %v8407, %v8435
    %v8437 = vpop.f32.mrf.mxu0
    %v8438 = vadd.f32 %v8409, %v8437
    %8439 = vmatmul.bf16.gmra.mxu0 %v6150
    %v8440 = vpop.f32.mrf.mxu0
    %v8441 = vadd.f32 %v8412, %v8440
    %v8442 = vpop.f32.mrf.mxu0
    %v8443 = vadd.f32 %v8414, %v8442
    %8444 = vmatmul.bf16.gmra.mxu0 %v6155
    %v8445 = vpop.f32.mrf.mxu0
    %v8446 = vadd.f32 %v8417, %v8445
    %v8447 = vpop.f32.mrf.mxu0
    %v8448 = vadd.f32 %v8419, %v8447
    %8449 = vmatmul.bf16.gmra.mxu0 %v6160
    %v8450 = vpop.f32.mrf.mxu0
    %v8451 = vadd.f32 %v8422, %v8450
    %v8452 = vpop.f32.mrf.mxu0
    %v8453 = vadd.f32 %v8424, %v8452
    %8454 = vdwg.mxu0
    %v8455 = vadd.f32 %v6921, %v8146
    %v8456 = vadd.f32 %v6922, %v8291
    %v8457 = vadd.f32 %v6923, %v8436
    %v8458 = vadd.f32 %v6924, %v8148
    %v8459 = vadd.f32 %v6925, %v8293
    %v8460 = vadd.f32 %v6926, %v8438
    %v8461 = vadd.f32 %v6927, %v8151
    %v8462 = vadd.f32 %v6928, %v8296
    %v8463 = vadd.f32 %v6929, %v8441
    %v8464 = vadd.f32 %v6930, %v8153
    %v8465 = vadd.f32 %v6931, %v8298
    %v8466 = vadd.f32 %v6932, %v8443
    %v8467 = vadd.f32 %v6933, %v8156
    %v8468 = vadd.f32 %v6934, %v8301
    %v8469 = vadd.f32 %v6935, %v8446
    %v8470 = vadd.f32 %v6936, %v8158
    %v8471 = vadd.f32 %v6937, %v8303
    %v8472 = vadd.f32 %v6938, %v8448
    %v8473 = vadd.f32 %v6939, %v8161
    %v8474 = vadd.f32 %v6940, %v8306
    %v8475 = vadd.f32 %v6941, %v8451
    %v8476 = vadd.f32 %v6942, %v8163
    %v8477 = vadd.f32 %v6943, %v8308
    %v8478 = vadd.f32 %v6944, %v8453
    %8479 = vst [vmem:[#allocation2] sm:$0xff] %v8455
    %8480 = vst [vmem:[#allocation2 + $0x8] sm:$0xff] %v8456
    %8481 = vst [vmem:[#allocation2 + $0x10] sm:$0xff] %v8457
    %8482 = vst [vmem:[#allocation2 + $0x18] sm:$0xff] %v8458
    %8483 = vst [vmem:[#allocation2 + $0x20] sm:$0xff] %v8459
    %8484 = vst [vmem:[#allocation2 + $0x28] sm:$0xff] %v8460
    %8485 = vst [vmem:[#allocation2 + $0x30] sm:$0xff] %v8461
    %8486 = vst [vmem:[#allocation2 + $0x38] sm:$0xff] %v8462
    %8487 = vst [vmem:[#allocation2 + $0x40] sm:$0xff] %v8463
    %8488 = vst [vmem:[#allocation2 + $0x48] sm:$0xff] %v8464
    %8489 = vst [vmem:[#allocation2 + $0x50] sm:$0xff] %v8465
    %8490 = vst [vmem:[#allocation2 + $0x58] sm:$0xff] %v8466
    %8491 = vst [vmem:[#allocation2 + $0x60] sm:$0xff] %v8467
    %8492 = vst [vmem:[#allocation2 + $0x68] sm:$0xff] %v8468
    %8493 = vst [vmem:[#allocation2 + $0x70] sm:$0xff] %v8469
    %8494 = vst [vmem:[#allocation2 + $0x78] sm:$0xff] %v8470
    %8495 = vst [vmem:[#allocation2 + $0x80] sm:$0xff] %v8471
    %8496 = vst [vmem:[#allocation2 + $0x88] sm:$0xff] %v8472
    %8497 = vst [vmem:[#allocation2 + $0x90] sm:$0xff] %v8473
    %8498 = vst [vmem:[#allocation2 + $0x98] sm:$0xff] %v8474
    %8499 = vst [vmem:[#allocation2 + $0xa0] sm:$0xff] %v8475
    %8500 = vst [vmem:[#allocation2 + $0xa8] sm:$0xff] %v8476
    %8501 = vst [vmem:[#allocation2 + $0xb0] sm:$0xff] %v8477
    %8502 = vst [vmem:[#allocation2 + $0xb8] sm:$0xff] %v8478
    // Predicated region
    $region30: #{tpu_custom_call.1} parent=1 // pred_check
      %p8503 = pneg %p25
    $region31: #{tpu_custom_call.1} parent=1 // pred_check_branch
      %8505 = sbr.rel (%p8503) target = $region33
    $region32: #{tpu_custom_call.1} parent=1 // pred_region
      %v8506 = vld [vmem:[#allocation2] sm:$0xff]
      %v8507 = vld [vmem:[#allocation2 + $0x18] sm:$0xff]
      %v8508 = vld [vmem:[#allocation2 + $0x30] sm:$0xff]
      %v8509 = vld [vmem:[#allocation2 + $0x48] sm:$0xff]
      %v8510 = vld [vmem:[#allocation2 + $0x60] sm:$0xff]
      %v8511 = vld [vmem:[#allocation2 + $0x78] sm:$0xff]
      %v8512 = vld [vmem:[#allocation2 + $0x90] sm:$0xff]
      %v8513 = vld [vmem:[#allocation2 + $0xa8] sm:$0xff]
      %v8514 = vld [vmem:[#allocation2 + $0x8] sm:$0xff]
      %v8515 = vld [vmem:[#allocation2 + $0x20] sm:$0xff]
      %v8516 = vld [vmem:[#allocation2 + $0x38] sm:$0xff]
      %v8517 = vld [vmem:[#allocation2 + $0x50] sm:$0xff]
      %v8518 = vld [vmem:[#allocation2 + $0x68] sm:$0xff]
      %v8519 = vld [vmem:[#allocation2 + $0x80] sm:$0xff]
      %v8520 = vld [vmem:[#allocation2 + $0x98] sm:$0xff]
      %v8521 = vld [vmem:[#allocation2 + $0xb0] sm:$0xff]
      %v8522 = vld [vmem:[#allocation2 + $0x10] sm:$0xff]
      %v8523 = vld [vmem:[#allocation2 + $0x28] sm:$0xff]
      %v8524 = vld [vmem:[#allocation2 + $0x40] sm:$0xff]
      %v8525 = vld [vmem:[#allocation2 + $0x58] sm:$0xff]
      %v8526 = vld [vmem:[#allocation2 + $0x70] sm:$0xff]
      %v8527 = vld [vmem:[#allocation2 + $0x88] sm:$0xff]
      %v8528 = vld [vmem:[#allocation2 + $0xa0] sm:$0xff]
      %v8529 = vld [vmem:[#allocation2 + $0xb8] sm:$0xff]
      %v8530 = vmul.f32 %v8506, 0.70710677
      %v8531 = vmul.f32 %v8507, 0.70710677
      %v8532 = vmul.f32 %v8508, 0.70710677
      %v8533 = vmul.f32 %v8509, 0.70710677
      %v8534 = vmul.f32 %v8510, 0.70710677
      %v8535 = vmul.f32 %v8511, 0.70710677
      %v8536 = vmul.f32 %v8512, 0.70710677
      %v8537 = vmul.f32 %v8513, 0.70710677
      %8538 = vst [vmem:[#allocation4] sm:$0xff] %v8530
      %8539 = vst [vmem:[#allocation4 + $0x8] sm:$0xff] %v8531
      %8540 = vst [vmem:[#allocation4 + $0x10] sm:$0xff] %v8532
      %8541 = vst [vmem:[#allocation4 + $0x18] sm:$0xff] %v8533
      %8542 = vst [vmem:[#allocation4 + $0x20] sm:$0xff] %v8534
      %8543 = vst [vmem:[#allocation4 + $0x28] sm:$0xff] %v8535
      %8544 = vst [vmem:[#allocation4 + $0x30] sm:$0xff] %v8536
      %8545 = vst [vmem:[#allocation4 + $0x38] sm:$0xff] %v8537
      %s8546 = scalar_lea.vmem [#allocation4], 64
      %8547 = vst [vmem:[%s8546] sm:$0xff] %v8522
      %8548 = vst [vmem:[%s8546 + $0x8] sm:$0xff] %v8523
      %8549 = vst [vmem:[%s8546 + $0x10] sm:$0xff] %v8524
      %8550 = vst [vmem:[%s8546 + $0x18] sm:$0xff] %v8525
      %8551 = vst [vmem:[%s8546 + $0x20] sm:$0xff] %v8526
      %8552 = vst [vmem:[%s8546 + $0x28] sm:$0xff] %v8527
      %8553 = vst [vmem:[%s8546 + $0x30] sm:$0xff] %v8528
      %8554 = vst [vmem:[%s8546 + $0x38] sm:$0xff] %v8529
      %v8555 = vsub.f32 0.0, %v8506
      %v8556 = vsub.f32 0.0, %v8507
      %v8557 = vsub.f32 0.0, %v8508
      %v8558 = vsub.f32 0.0, %v8509
      %v8559 = vsub.f32 0.0, %v8510
      %v8560 = vsub.f32 0.0, %v8511
      %v8561 = vsub.f32 0.0, %v8512
      %v8562 = vsub.f32 0.0, %v8513
      %v8563 = vmul.f32 %v8555, 0.70710677
      %v8564 = vmul.f32 %v8556, 0.70710677
      %v8565 = vmul.f32 %v8557, 0.70710677
      %v8566 = vmul.f32 %v8558, 0.70710677
      %v8567 = vmul.f32 %v8559, 0.70710677
      %v8568 = vmul.f32 %v8560, 0.70710677
      %v8569 = vmul.f32 %v8561, 0.70710677
      %v8570 = vmul.f32 %v8562, 0.70710677
      %s8571 = scalar_lea.vmem [#allocation4], 128
      %8572 = vst [vmem:[%s8571] sm:$0xff] %v8563
      %8573 = vst [vmem:[%s8571 + $0x8] sm:$0xff] %v8564
      %8574 = vst [vmem:[%s8571 + $0x10] sm:$0xff] %v8565
      %8575 = vst [vmem:[%s8571 + $0x18] sm:$0xff] %v8566
      %8576 = vst [vmem:[%s8571 + $0x20] sm:$0xff] %v8567
      %8577 = vst [vmem:[%s8571 + $0x28] sm:$0xff] %v8568
      %8578 = vst [vmem:[%s8571 + $0x30] sm:$0xff] %v8569
      %8579 = vst [vmem:[%s8571 + $0x38] sm:$0xff] %v8570
      %v8580 = vmul.f32 %v8514, 0.70710677
      %v8581 = vmul.f32 %v8515, 0.70710677
      %v8582 = vmul.f32 %v8516, 0.70710677
      %v8583 = vmul.f32 %v8517, 0.70710677
      %v8584 = vmul.f32 %v8518, 0.70710677
      %v8585 = vmul.f32 %v8519, 0.70710677
      %v8586 = vmul.f32 %v8520, 0.70710677
      %v8587 = vmul.f32 %v8521, 0.70710677
      %s8588 = scalar_lea.vmem [#allocation4], 192
      %8589 = vst [vmem:[%s8588] sm:$0xff] %v8580
      %8590 = vst [vmem:[%s8588 + $0x8] sm:$0xff] %v8581
      %8591 = vst [vmem:[%s8588 + $0x10] sm:$0xff] %v8582
      %8592 = vst [vmem:[%s8588 + $0x18] sm:$0xff] %v8583
      %8593 = vst [vmem:[%s8588 + $0x20] sm:$0xff] %v8584
      %8594 = vst [vmem:[%s8588 + $0x28] sm:$0xff] %v8585
      %8595 = vst [vmem:[%s8588 + $0x30] sm:$0xff] %v8586
      %8596 = vst [vmem:[%s8588 + $0x38] sm:$0xff] %v8587
      %s8597 = scalar_lea.vmem [#allocation4], 256
      %8598 = vst [vmem:[%s8597] sm:$0xff] 0.0
      %8599 = vst [vmem:[%s8597 + $0x8] sm:$0xff] 0.0
      %8600 = vst [vmem:[%s8597 + $0x10] sm:$0xff] 0.0
      %8601 = vst [vmem:[%s8597 + $0x18] sm:$0xff] 0.0
      %8602 = vst [vmem:[%s8597 + $0x20] sm:$0xff] 0.0
      %8603 = vst [vmem:[%s8597 + $0x28] sm:$0xff] 0.0
      %8604 = vst [vmem:[%s8597 + $0x30] sm:$0xff] 0.0
      %8605 = vst [vmem:[%s8597 + $0x38] sm:$0xff] 0.0
      %s8606 = scalar_lea.vmem [#allocation4], 320
      %8607 = vst [vmem:[%s8606] sm:$0xff] %v8580
      %8608 = vst [vmem:[%s8606 + $0x8] sm:$0xff] %v8581
      %8609 = vst [vmem:[%s8606 + $0x10] sm:$0xff] %v8582
      %8610 = vst [vmem:[%s8606 + $0x18] sm:$0xff] %v8583
      %8611 = vst [vmem:[%s8606 + $0x20] sm:$0xff] %v8584
      %8612 = vst [vmem:[%s8606 + $0x28] sm:$0xff] %v8585
      %8613 = vst [vmem:[%s8606 + $0x30] sm:$0xff] %v8586
      %8614 = vst [vmem:[%s8606 + $0x38] sm:$0xff] %v8587
    $region33: #{tpu_custom_call.1} parent=1 // pred_fallthru
      _
    // Predicated region
    $region34: #{tpu_custom_call.1} parent=1 // pred_check
      _
    $region35: #{tpu_custom_call.1} parent=1 // pred_check_branch
      %8616 = sbr.rel (0) target = $region37
    $region36: #{tpu_custom_call.1} parent=1 // pred_region
      %8618 = vsyncadd [#allocation5], 0
      %s8619 = sshll.u32 [#allocation4], 4
      %s8620 = int_to_ptr.vmem [resolvable:$true] %s8619
      %s8621 = sshll.u32 %s6, 4
      %s8622 = int_to_ptr.hbm [resolvable:$true] %s8621
      %8627 = dma.vmem_to_hbm [thread:$0]  %s8620, 6144, %s8622, [#allocation5], 128, 128, 8
    $region37: #{tpu_custom_call.1} parent=1 // pred_fallthru
      _
    // Predicated region
    $region38: #{tpu_custom_call.1} parent=1 // pred_check
      _
    $region39: #{tpu_custom_call.1} parent=1 // pred_check_branch
      %8629 = sbr.rel (0) target = $region41
    $region40: #{tpu_custom_call.1} parent=1 // pred_region
      %8631 = dma.done [#allocation5], 6144
    $region41: #{tpu_custom_call.1} parent=1 // pred_fallthru
      _
    %8632 = vsyncpa [#allocation5], 1

</llo_original>
